<compile_context>
chip_gen: v7x
topology: tpu7x:2x2x1
jax: 0.10.0
libtpu: 0.0.40
codegen_flags: <defaults>
</compile_context>

<pallas_src>
import jax
import jax.numpy as jnp
import numpy as np
from jax.experimental import pallas as pl
from jax.experimental.pallas import tpu as pltpu

# ----------------------------- configuration --------------------------------
TASK_SIZE = 4            # D
MAX_EXAMPLES = 8         # K (max)
EMBED = 32               # embed_size
MLP = 64                 # mlp_size
HEADS = 4                # num_heads
LAYERS = 2               # num_layers
TOKEN_SIZE = TASK_SIZE + 1        # V = D + 1
MAX_TOKENS = 2 * MAX_EXAMPLES     # T_max = 2K
HEAD_DIM = EMBED // HEADS
LN_EPS = 1e-5
NEG_INF = -1e30


# --------------------------- token (de)coding glue ---------------------------
def to_token_sequence(xs, ys):
    B, K, D = xs.shape
    xys = jnp.concatenate(
        [jnp.zeros_like(ys), xs, ys, jnp.zeros_like(xs)], axis=-1)
    return xys.reshape(B, 2 * K, D + 1)


def from_predicted_token_sequence(toks_pred):
    # Kept for API parity; the Pallas path emits predictions directly.
    return toks_pred[:, 0::2, :1]


# ------------------------------- Pallas kernel -------------------------------
def _ln(x, w, b):
    mu = jnp.mean(x, axis=-1, keepdims=True)
    var = jnp.mean((x - mu) ** 2, axis=-1, keepdims=True)
    return (x - mu) * jax.lax.rsqrt(var + LN_EPS) * w + b


def _dot(a, b):
    return jnp.dot(a, b, preferred_element_type=jnp.float32)


def _dot_nt(a, b):
    # a @ b.T without materializing the transpose.
    return jax.lax.dot_general(
        a, b, (((1,), (1,)), ((), ())), preferred_element_type=jnp.float32)


def _transformer_kernel(
    toks_ref,                        # (M, V)   M = block_batch * T
    w_emb_ref,                       # (V, E)   bf16
    emb_pos_ref,                     # (M, E)   f32, b_emb + pos, tiled
    attn_bias_ref,                   # (M, M)   f32, block-diag causal additive
    head_mask_ref,                   # (H, 1, E) f32, 0/1 lane masks
    ln1_w_ref, ln1_b_ref,            # (L, 1, E)
    w_qkv_ref, b_qkv_ref,            # (L, E, 3E) bf16 / (L, 1, 3E) f32
    ln2_w_ref, ln2_b_ref,            # (L, 1, E)
    w1_ref, b1_ref,                  # (L, E, M_mlp) bf16 / (L, 1, M_mlp) f32
    w2_ref, b2_ref,                  # (L, M_mlp, E) bf16 / (L, 1, E) f32
    w_u_ref, b_u_ref,                # (E, 1) bf16 / (1, 1) f32
    sel_ref,                         # (block_batch*K, M) f32 even-row selector
    out_ref,                         # (block_batch*K, 1)
):
    bf16 = jnp.bfloat16
    scale = 1.0 / float(HEAD_DIM) ** 0.5

    # token embedding + fused (bias + positional embedding)
    x = _dot(toks_ref[...].astype(bf16), w_emb_ref[...]) + emb_pos_ref[...]

    attn_bias = attn_bias_ref[...]
    head_mask = head_mask_ref[...]

    for l in range(LAYERS):                                   # static unroll
        # ----- multi-head causal self-attention (pre-LN, residual) -----
        h = _ln(x, ln1_w_ref[l], ln1_b_ref[l])
        qkv = _dot(h.astype(bf16), w_qkv_ref[l]) + b_qkv_ref[l]   # (M, 3E) f32
        q = qkv[:, 0 * EMBED:1 * EMBED]
        k = qkv[:, 1 * EMBED:2 * EMBED]
        v = qkv[:, 2 * EMBED:3 * EMBED]
        k_bf = k.astype(bf16)
        for hh in range(HEADS):                               # static unroll
            m_h = head_mask[hh]                               # (1, E) 0/1
            q_h = (q * (m_h * scale)).astype(bf16)            # non-head lanes 0
            v_h = (v * m_h).astype(bf16)
            s = _dot_nt(q_h, k_bf) + attn_bias                # (M, M) f32
            s = s - jnp.max(s, axis=-1, keepdims=True)
            p = jnp.exp(s)
            p = p * pl.reciprocal(jnp.sum(p, axis=-1, keepdims=True),
                                  approx=True)
            # output lands only in head hh's lanes -> accumulate residual
            x = x + _dot(p.astype(bf16), v_h)
        # include_output=False -> no output projection after attention

        # ----- MLP (pre-LN, residual) -----
        h2 = _ln(x, ln2_w_ref[l], ln2_b_ref[l])
        m = _dot(h2.astype(bf16), w1_ref[l]) + b1_ref[l]
        m = jnp.maximum(m, 0.0)
        x = x + _dot(m.astype(bf16), w2_ref[l]) + b2_ref[l]

    # unembed only the y column, then gather even (x-) tokens via selection dot
    y_all = _dot(x.astype(bf16), w_u_ref[...]) + b_u_ref[...]     # (M, 1)
    out_ref[...] = _dot(sel_ref[...], y_all)                      # (Bt*K, 1)


def _const_spec(shape):
    nd = len(shape)
    return pl.BlockSpec(shape, lambda b, _nd=nd: (0,) * _nd)


def transformer_forward(toks, params, block_batch=8):
    """toks: (B, T, V) float32 -> predictions (B, K, 1), K = T // 2."""
    B, T, V = toks.shape
    K = T // 2
    Bt = block_batch                      # examples per grid step
    B_pad = ((B + Bt - 1) // Bt) * Bt
    if B_pad != B:
        toks = jnp.pad(toks, ((0, B_pad - B), (0, 0), (0, 0)))
    M = Bt * T                            # matmul rows per grid step
    steps = B_pad // Bt

    f32, bf16 = jnp.float32, jnp.bfloat16
    toks_flat = toks.reshape(B_pad * T, V).astype(f32)

    # ---- hoisted invariants (computed once in the wrapper) -------------
    emb_pos = jnp.tile(params["b_emb"] + params["pos"][:T], (Bt, 1)).astype(f32)
    idx = jnp.arange(M)
    same = (idx[:, None] // T) == (idx[None, :] // T)
    causal = idx[:, None] >= idx[None, :]
    attn_bias = jnp.where(same & causal, 0.0, NEG_INF).astype(f32)   # (M, M)
    lane = jnp.arange(EMBED)
    head_mask = (lane[None, None, :] // HEAD_DIM ==
                 jnp.arange(HEADS)[:, None, None]).astype(f32)       # (H,1,E)
    rows = jnp.arange(Bt * K)
    sel = (idx[None, :] == 2 * rows[:, None]).astype(f32)            # (BtK, M)

    order = ["w_emb", "emb_pos", "attn_bias", "head_mask",
             "ln1_w", "ln1_b", "w_qkv", "b_qkv",
             "ln2_w", "ln2_b", "w1", "b1", "w2", "b2",
             "w_u", "b_u", "sel"]
    weights = {
        "w_emb": params["w_emb"].astype(bf16),
        "emb_pos": emb_pos,
        "attn_bias": attn_bias,
        "head_mask": head_mask,
        "ln1_w": params["ln1_w"].astype(f32),
        "ln1_b": params["ln1_b"].astype(f32),
        "w_qkv": params["w_qkv"].astype(bf16),
        "b_qkv": params["b_qkv"].astype(f32),
        "ln2_w": params["ln2_w"].astype(f32),
        "ln2_b": params["ln2_b"].astype(f32),
        "w1": params["w1"].astype(bf16),
        "b1": params["b1"].astype(f32),
        "w2": params["w2"].astype(bf16),
        "b2": params["b2"].astype(f32),
        "w_u": params["w_unemb"][:, :1].astype(bf16),
        "b_u": params["b_unemb"][:, :1].astype(f32),
        "sel": sel,
    }
    weight_args = [weights[n] for n in order]

    in_specs = [pl.BlockSpec((M, V), lambda b: (b, 0))]
    in_specs += [_const_spec(w.shape) for w in weight_args]
    out_specs = pl.BlockSpec((Bt * K, 1), lambda b: (b, 0))

    # advisory cost estimate so XLA can schedule around the custom call
    flops_step = 2 * M * V * EMBED
    flops_step += LAYERS * (2 * M * EMBED * 3 * EMBED
                            + HEADS * (2 * M * EMBED * M + 2 * M * M * EMBED)
                            + 2 * 2 * M * EMBED * MLP)
    flops_step += 2 * M * EMBED + 2 * (Bt * K) * M
    bytes_step = M * V * 4 + Bt * K * 4
    bytes_step += sum(int(np.prod(w.shape)) * w.dtype.itemsize
                      for w in weight_args)
    cost = pl.CostEstimate(flops=steps * flops_step,
                           transcendentals=steps * LAYERS * HEADS * M * M,
                           bytes_accessed=steps * bytes_step)

    out = pl.pallas_call(
        _transformer_kernel,
        out_shape=jax.ShapeDtypeStruct((B_pad * K, 1), jnp.float32),
        grid=(steps,),
        in_specs=in_specs,
        out_specs=out_specs,
        compiler_params=pltpu.CompilerParams(
            dimension_semantics=("parallel",)),
        cost_estimate=cost,
    )(toks_flat, *weight_args)

    return out.reshape(B_pad, K, 1)[:B]


def in_context_regression_forward(xs, ys, params, block_batch=8):
    B, K, D = xs.shape
    assert K <= MAX_EXAMPLES and D == TASK_SIZE
    assert ys.shape == (B, K, 1)
    toks = to_token_sequence(xs, ys)
    return transformer_forward(toks, params, block_batch=block_batch)


# ------------------------- pure-JAX reference (check) ------------------------
def _reference_transformer(toks, params):
    pos = params["pos"][: toks.shape[1]]
    x = toks @ params["w_emb"] + params["b_emb"] + pos
    T = toks.shape[1]
    causal = np.tril(np.ones((T, T), dtype=bool))
    scale = 1.0 / float(HEAD_DIM) ** 0.5
    for l in range(LAYERS):
        h = _ln(x, params["ln1_w"][l], params["ln1_b"][l])
        qkv = h @ params["w_qkv"][l] + params["b_qkv"][l]
        q, k, v = jnp.split(qkv, 3, axis=-1)
        outs = []
        for hh in range(HEADS):
            sl = slice(hh * HEAD_DIM, (hh + 1) * HEAD_DIM)
            qh, kh, vh = q[..., sl], k[..., sl], v[..., sl]
            s = jnp.einsum("btd,bsd->bts", qh, kh) * scale
            s = jnp.where(causal, s, NEG_INF)
            p = jax.nn.softmax(s, axis=-1)
            outs.append(jnp.einsum("bts,bsd->btd", p, vh))
        x = x + jnp.concatenate(outs, axis=-1)
        h2 = _ln(x, params["ln2_w"][l], params["ln2_b"][l])
        m = jnp.maximum(h2 @ params["w1"][l] + params["b1"][l], 0.0)
        x = x + m @ params["w2"][l] + params["b2"][l]
    return x @ params["w_unemb"] + params["b_unemb"]


def reference_forward(xs, ys, params):
    toks = to_token_sequence(xs, ys)
    return from_predicted_token_sequence(_reference_transformer(toks, params))


# ----------------------------- parameter init --------------------------------
def init_params(key):
    ks = jax.random.split(key, 10)
    s = 0.02
    f32 = jnp.float32
    return {
        "w_emb":  s * jax.random.normal(ks[0], (TOKEN_SIZE, EMBED), f32),
        "b_emb":  s * jax.random.normal(ks[1], (1, EMBED), f32),
        "pos":    s * jax.random.normal(ks[2], (MAX_TOKENS, EMBED), f32),
        "ln1_w":  jnp.ones((LAYERS, 1, EMBED), f32),
        "ln1_b":  jnp.zeros((LAYERS, 1, EMBED), f32),
        "w_qkv":  s * jax.random.normal(ks[3], (LAYERS, EMBED, 3 * EMBED), f32),
        "b_qkv":  s * jax.random.normal(ks[4], (LAYERS, 1, 3 * EMBED), f32),
        "ln2_w":  jnp.ones((LAYERS, 1, EMBED), f32),
        "ln2_b":  jnp.zeros((LAYERS, 1, EMBED), f32),
        "w1":     s * jax.random.normal(ks[5], (LAYERS, EMBED, MLP), f32),
        "b1":     s * jax.random.normal(ks[6], (LAYERS, 1, MLP), f32),
        "w2":     s * jax.random.normal(ks[7], (LAYERS, MLP, EMBED), f32),
        "b2":     s * jax.random.normal(ks[8], (LAYERS, 1, EMBED), f32),
        "w_unemb": s * jax.random.normal(ks[9], (EMBED, TOKEN_SIZE), f32),
        "b_unemb": jnp.zeros((1, TOKEN_SIZE), f32),
    }


# ---------------------------------- main --------------------------------------
if __name__ == "__main__":
    key = jax.random.PRNGKey(0)
    kx, kw, kp = jax.random.split(key, 3)

    # B=16 with block_batch=8 -> 2 grid steps of M = 8*16 = 128 matmul rows
    # (keeps both v7x TensorCores busy; use block_batch=16 for M=256 on v6e).
    B, K, D = 16, MAX_EXAMPLES, TASK_SIZE
    xs = jax.random.normal(kx, (B, K, D), jnp.float32)
    w_true = jax.random.normal(kw, (B, D, 1), jnp.float32)
    ys = jnp.einsum("bkd,bdo->bko", xs, w_true)          # (B, K, 1)

    params = init_params(kp)

    ys_pred = in_context_regression_forward(xs, ys, params, block_batch=8)
    ys_pred = jax.block_until_ready(ys_pred)
    assert ys_pred.shape == (B, K, 1), ys_pred.shape

    ys_ref = jax.block_until_ready(reference_forward(xs, ys, params))
    # tolerance accounts for bf16 MXU operands (f32 accumulation / LN / softmax)
    np.testing.assert_allclose(
        np.asarray(ys_pred), np.asarray(ys_ref), rtol=2e-2, atol=1e-3)

    print("KERNEL_OK")
</pallas_src>

<mosaic_0001>
module attributes {stable_mosaic.version = 11 : i64} {
  func.func @_transformer_kernel(%arg0: i32, %arg1: memref<128x5xf32, #tpu.memory_space<vmem>>, %arg2: memref<5x32xbf16, #tpu.memory_space<vmem>>, %arg3: memref<128x32xf32, #tpu.memory_space<vmem>>, %arg4: memref<128x128xf32, #tpu.memory_space<vmem>>, %arg5: memref<4x1x32xf32, #tpu.memory_space<vmem>>, %arg6: memref<2x1x32xf32, #tpu.memory_space<vmem>>, %arg7: memref<2x1x32xf32, #tpu.memory_space<vmem>>, %arg8: memref<2x32x96xbf16, #tpu.memory_space<vmem>>, %arg9: memref<2x1x96xf32, #tpu.memory_space<vmem>>, %arg10: memref<2x1x32xf32, #tpu.memory_space<vmem>>, %arg11: memref<2x1x32xf32, #tpu.memory_space<vmem>>, %arg12: memref<2x32x64xbf16, #tpu.memory_space<vmem>>, %arg13: memref<2x1x64xf32, #tpu.memory_space<vmem>>, %arg14: memref<2x64x32xbf16, #tpu.memory_space<vmem>>, %arg15: memref<2x1x32xf32, #tpu.memory_space<vmem>>, %arg16: memref<32x1xbf16, #tpu.memory_space<vmem>>, %arg17: memref<1x1xf32, #tpu.memory_space<vmem>>, %arg18: memref<64x128xf32, #tpu.memory_space<vmem>>, %arg19: memref<64x1xf32, #tpu.memory_space<vmem>>) attributes {dimension_semantics = [#tpu.dimension_semantics<parallel>], iteration_bounds = array<i64: 2>, scalar_prefetch = 0 : i64, scratch_operands = 0 : i64, tpu.core_type = #tpu.core_type<tc>, window_params = [{transform_indices = @transform_0, window_bounds = array<i64: 128, 5>}, {pipeline_mode = #tpu.pipeline_mode<synchronous>, transform_indices = @transform_1, window_bounds = array<i64: 5, 32>}, {pipeline_mode = #tpu.pipeline_mode<synchronous>, transform_indices = @transform_2, window_bounds = array<i64: 128, 32>}, {pipeline_mode = #tpu.pipeline_mode<synchronous>, transform_indices = @transform_3, window_bounds = array<i64: 128, 128>}, {pipeline_mode = #tpu.pipeline_mode<synchronous>, transform_indices = @transform_4, window_bounds = array<i64: 4, 1, 32>}, {pipeline_mode = #tpu.pipeline_mode<synchronous>, transform_indices = @transform_5, window_bounds = array<i64: 2, 1, 32>}, {pipeline_mode = #tpu.pipeline_mode<synchronous>, transform_indices = @transform_6, window_bounds = array<i64: 2, 1, 32>}, {pipeline_mode = #tpu.pipeline_mode<synchronous>, transform_indices = @transform_7, window_bounds = array<i64: 2, 32, 96>}, {pipeline_mode = #tpu.pipeline_mode<synchronous>, transform_indices = @transform_8, window_bounds = array<i64: 2, 1, 96>}, {pipeline_mode = #tpu.pipeline_mode<synchronous>, transform_indices = @transform_9, window_bounds = array<i64: 2, 1, 32>}, {pipeline_mode = #tpu.pipeline_mode<synchronous>, transform_indices = @transform_10, window_bounds = array<i64: 2, 1, 32>}, {pipeline_mode = #tpu.pipeline_mode<synchronous>, transform_indices = @transform_11, window_bounds = array<i64: 2, 32, 64>}, {pipeline_mode = #tpu.pipeline_mode<synchronous>, transform_indices = @transform_12, window_bounds = array<i64: 2, 1, 64>}, {pipeline_mode = #tpu.pipeline_mode<synchronous>, transform_indices = @transform_13, window_bounds = array<i64: 2, 64, 32>}, {pipeline_mode = #tpu.pipeline_mode<synchronous>, transform_indices = @transform_14, window_bounds = array<i64: 2, 1, 32>}, {pipeline_mode = #tpu.pipeline_mode<synchronous>, transform_indices = @transform_15, window_bounds = array<i64: 32, 1>}, {pipeline_mode = #tpu.pipeline_mode<synchronous>, transform_indices = @transform_16, window_bounds = array<i64: 1, 1>}, {pipeline_mode = #tpu.pipeline_mode<synchronous>, transform_indices = @transform_17, window_bounds = array<i64: 64, 128>}, {transform_indices = @transform_18, window_bounds = array<i64: 64, 1>}]} {
    %c0 = arith.constant 0 : index
    %c0_0 = arith.constant 0 : index
    %0 = vector.load %arg1[%c0, %c0_0] : memref<128x5xf32, #tpu.memory_space<vmem>>, vector<128x5xf32>
    %1 = arith.truncf %0 : vector<128x5xf32> to vector<128x5xbf16>
    %c0_1 = arith.constant 0 : index
    %c0_2 = arith.constant 0 : index
    %2 = vector.load %arg2[%c0_1, %c0_2] : memref<5x32xbf16, #tpu.memory_space<vmem>>, vector<5x32xbf16>
    %cst = arith.constant dense<0.000000e+00> : vector<128x32xf32>
    %3 = tpu.matmul %1, %2, %cst {dimension_numbers = #tpu.dot_dimension_numbers<[1], [0], [0], [1], [0, 0, 1, 1], [], []>} : vector<128x5xbf16>, vector<5x32xbf16>, vector<128x32xf32> -> vector<128x32xf32>
    %c0_3 = arith.constant 0 : index
    %c0_4 = arith.constant 0 : index
    %4 = vector.load %arg3[%c0_3, %c0_4] : memref<128x32xf32, #tpu.memory_space<vmem>>, vector<128x32xf32>
    %5 = arith.addf %3, %4 : vector<128x32xf32>
    %c0_5 = arith.constant 0 : index
    %c0_6 = arith.constant 0 : index
    %6 = vector.load %arg4[%c0_5, %c0_6] : memref<128x128xf32, #tpu.memory_space<vmem>>, vector<128x128xf32>
    %c0_7 = arith.constant 0 : index
    %c0_8 = arith.constant 0 : index
    %c0_9 = arith.constant 0 : index
    %7 = vector.load %arg5[%c0_7, %c0_8, %c0_9] : memref<4x1x32xf32, #tpu.memory_space<vmem>>, vector<4x1x32xf32>
    %c0_10 = arith.constant 0 : index
    %c0_11 = arith.constant 0 : index
    %c0_12 = arith.constant 0 : index
    %8 = vector.load %arg6[%c0_10, %c0_11, %c0_12] : memref<2x1x32xf32, #tpu.memory_space<vmem>>, vector<1x1x32xf32>
    %9 = vector.shape_cast %8 : vector<1x1x32xf32> to vector<1x32xf32>
    %c0_13 = arith.constant 0 : index
    %c0_14 = arith.constant 0 : index
    %c0_15 = arith.constant 0 : index
    %10 = vector.load %arg7[%c0_13, %c0_14, %c0_15] : memref<2x1x32xf32, #tpu.memory_space<vmem>>, vector<1x1x32xf32>
    %11 = vector.shape_cast %10 : vector<1x1x32xf32> to vector<1x32xf32>
    %cst_16 = arith.constant dense<0.000000e+00> : vector<128xf32>
    %12 = vector.multi_reduction <add>, %5, %cst_16 [1] : vector<128x32xf32> to vector<128xf32>
    %13 = vector.shape_cast %12 : vector<128xf32> to vector<128x1xf32>
    %cst_17 = arith.constant 3.200000e+01 : f32
    %14 = vector.broadcast %cst_17 : f32 to vector<128x1xf32>
    %15 = arith.divf %13, %14 : vector<128x1xf32>
    %16 = vector.broadcast %15 : vector<128x1xf32> to vector<128x32xf32>
    %17 = arith.subf %5, %16 : vector<128x32xf32>
    %18 = arith.mulf %17, %17 : vector<128x32xf32>
    %cst_18 = arith.constant dense<0.000000e+00> : vector<128xf32>
    %19 = vector.multi_reduction <add>, %18, %cst_18 [1] : vector<128x32xf32> to vector<128xf32>
    %20 = vector.shape_cast %19 : vector<128xf32> to vector<128x1xf32>
    %cst_19 = arith.constant 3.200000e+01 : f32
    %21 = vector.broadcast %cst_19 : f32 to vector<128x1xf32>
    %22 = arith.divf %20, %21 : vector<128x1xf32>
    %23 = vector.broadcast %15 : vector<128x1xf32> to vector<128x32xf32>
    %24 = arith.subf %5, %23 : vector<128x32xf32>
    %cst_20 = arith.constant 9.99999974E-6 : f32
    %25 = vector.broadcast %cst_20 : f32 to vector<128x1xf32>
    %26 = arith.addf %22, %25 : vector<128x1xf32>
    %27 = math.rsqrt %26 : vector<128x1xf32>
    %28 = vector.broadcast %27 : vector<128x1xf32> to vector<128x32xf32>
    %29 = arith.mulf %24, %28 : vector<128x32xf32>
    %30 = vector.broadcast %9 : vector<1x32xf32> to vector<128x32xf32>
    %31 = arith.mulf %29, %30 : vector<128x32xf32>
    %32 = vector.broadcast %11 : vector<1x32xf32> to vector<128x32xf32>
    %33 = arith.addf %31, %32 : vector<128x32xf32>
    %34 = arith.truncf %33 : vector<128x32xf32> to vector<128x32xbf16>
    %c0_21 = arith.constant 0 : index
    %c0_22 = arith.constant 0 : index
    %c0_23 = arith.constant 0 : index
    %35 = vector.load %arg8[%c0_21, %c0_22, %c0_23] : memref<2x32x96xbf16, #tpu.memory_space<vmem>>, vector<1x32x96xbf16>
    %36 = vector.shape_cast %35 : vector<1x32x96xbf16> to vector<32x96xbf16>
    %cst_24 = arith.constant dense<0.000000e+00> : vector<128x96xf32>
    %37 = tpu.matmul %34, %36, %cst_24 {dimension_numbers = #tpu.dot_dimension_numbers<[1], [0], [0], [1], [0, 0, 1, 1], [], []>} : vector<128x32xbf16>, vector<32x96xbf16>, vector<128x96xf32> -> vector<128x96xf32>
    %c0_25 = arith.constant 0 : index
    %c0_26 = arith.constant 0 : index
    %c0_27 = arith.constant 0 : index
    %38 = vector.load %arg9[%c0_25, %c0_26, %c0_27] : memref<2x1x96xf32, #tpu.memory_space<vmem>>, vector<1x1x96xf32>
    %39 = vector.shape_cast %38 : vector<1x1x96xf32> to vector<1x96xf32>
    %40 = vector.broadcast %39 : vector<1x96xf32> to vector<128x96xf32>
    %41 = arith.addf %37, %40 : vector<128x96xf32>
    %42 = vector.extract_strided_slice %41 {offsets = [0, 0], sizes = [128, 32], strides = [1, 1]} : vector<128x96xf32> to vector<128x32xf32>
    %43 = vector.extract_strided_slice %41 {offsets = [0, 32], sizes = [128, 32], strides = [1, 1]} : vector<128x96xf32> to vector<128x32xf32>
    %44 = vector.extract_strided_slice %41 {offsets = [0, 64], sizes = [128, 32], strides = [1, 1]} : vector<128x96xf32> to vector<128x32xf32>
    %45 = arith.truncf %43 : vector<128x32xf32> to vector<128x32xbf16>
    %46 = vector.extract_strided_slice %7 {offsets = [0, 0, 0], sizes = [1, 1, 32], strides = [1, 1, 1]} : vector<4x1x32xf32> to vector<1x1x32xf32>
    %47 = vector.shape_cast %46 : vector<1x1x32xf32> to vector<1x32xf32>
    %cst_28 = arith.constant 0.353553385 : f32
    %48 = vector.broadcast %cst_28 : f32 to vector<1x32xf32>
    %49 = arith.mulf %47, %48 : vector<1x32xf32>
    %50 = vector.broadcast %49 : vector<1x32xf32> to vector<128x32xf32>
    %51 = arith.mulf %42, %50 : vector<128x32xf32>
    %52 = arith.truncf %51 : vector<128x32xf32> to vector<128x32xbf16>
    %53 = vector.broadcast %47 : vector<1x32xf32> to vector<128x32xf32>
    %54 = arith.mulf %44, %53 : vector<128x32xf32>
    %55 = arith.truncf %54 : vector<128x32xf32> to vector<128x32xbf16>
    %cst_29 = arith.constant dense<0.000000e+00> : vector<128x128xf32>
    %56 = tpu.matmul %52, %45, %cst_29 {dimension_numbers = #tpu.dot_dimension_numbers<[1], [1], [0], [0], [0, 0, 1, 0], [], []>} : vector<128x32xbf16>, vector<128x32xbf16>, vector<128x128xf32> -> vector<128x128xf32>
    %57 = arith.addf %56, %6 : vector<128x128xf32>
    %cst_30 = arith.constant dense<0xFF800000> : vector<128xf32>
    %58 = vector.multi_reduction <maximumf>, %57, %cst_30 [1] : vector<128x128xf32> to vector<128xf32>
    %59 = vector.shape_cast %58 : vector<128xf32> to vector<128x1xf32>
    %60 = vector.broadcast %59 : vector<128x1xf32> to vector<128x128xf32>
    %61 = arith.subf %57, %60 : vector<128x128xf32>
    %62 = math.exp %61 : vector<128x128xf32>
    %cst_31 = arith.constant dense<0.000000e+00> : vector<128xf32>
    %63 = vector.multi_reduction <add>, %62, %cst_31 [1] : vector<128x128xf32> to vector<128xf32>
    %64 = vector.shape_cast %63 : vector<128xf32> to vector<128x1xf32>
    %65 = tpu.reciprocal %64 {approx = true} : vector<128x1xf32> -> vector<128x1xf32>
    %66 = vector.broadcast %65 : vector<128x1xf32> to vector<128x128xf32>
    %67 = arith.mulf %62, %66 : vector<128x128xf32>
    %68 = arith.truncf %67 : vector<128x128xf32> to vector<128x128xbf16>
    %cst_32 = arith.constant dense<0.000000e+00> : vector<128x32xf32>
    %69 = tpu.matmul %68, %55, %cst_32 {dimension_numbers = #tpu.dot_dimension_numbers<[1], [0], [0], [1], [0, 0, 1, 1], [], []>} : vector<128x128xbf16>, vector<128x32xbf16>, vector<128x32xf32> -> vector<128x32xf32>
    %70 = arith.addf %5, %69 : vector<128x32xf32>
    %71 = vector.extract_strided_slice %7 {offsets = [1, 0, 0], sizes = [1, 1, 32], strides = [1, 1, 1]} : vector<4x1x32xf32> to vector<1x1x32xf32>
    %72 = vector.shape_cast %71 : vector<1x1x32xf32> to vector<1x32xf32>
    %cst_33 = arith.constant 0.353553385 : f32
    %73 = vector.broadcast %cst_33 : f32 to vector<1x32xf32>
    %74 = arith.mulf %72, %73 : vector<1x32xf32>
    %75 = vector.broadcast %74 : vector<1x32xf32> to vector<128x32xf32>
    %76 = arith.mulf %42, %75 : vector<128x32xf32>
    %77 = arith.truncf %76 : vector<128x32xf32> to vector<128x32xbf16>
    %78 = vector.broadcast %72 : vector<1x32xf32> to vector<128x32xf32>
    %79 = arith.mulf %44, %78 : vector<128x32xf32>
    %80 = arith.truncf %79 : vector<128x32xf32> to vector<128x32xbf16>
    %cst_34 = arith.constant dense<0.000000e+00> : vector<128x128xf32>
    %81 = tpu.matmul %77, %45, %cst_34 {dimension_numbers = #tpu.dot_dimension_numbers<[1], [1], [0], [0], [0, 0, 1, 0], [], []>} : vector<128x32xbf16>, vector<128x32xbf16>, vector<128x128xf32> -> vector<128x128xf32>
    %82 = arith.addf %81, %6 : vector<128x128xf32>
    %cst_35 = arith.constant dense<0xFF800000> : vector<128xf32>
    %83 = vector.multi_reduction <maximumf>, %82, %cst_35 [1] : vector<128x128xf32> to vector<128xf32>
    %84 = vector.shape_cast %83 : vector<128xf32> to vector<128x1xf32>
    %85 = vector.broadcast %84 : vector<128x1xf32> to vector<128x128xf32>
    %86 = arith.subf %82, %85 : vector<128x128xf32>
    %87 = math.exp %86 : vector<128x128xf32>
    %cst_36 = arith.constant dense<0.000000e+00> : vector<128xf32>
    %88 = vector.multi_reduction <add>, %87, %cst_36 [1] : vector<128x128xf32> to vector<128xf32>
    %89 = vector.shape_cast %88 : vector<128xf32> to vector<128x1xf32>
    %90 = tpu.reciprocal %89 {approx = true} : vector<128x1xf32> -> vector<128x1xf32>
    %91 = vector.broadcast %90 : vector<128x1xf32> to vector<128x128xf32>
    %92 = arith.mulf %87, %91 : vector<128x128xf32>
    %93 = arith.truncf %92 : vector<128x128xf32> to vector<128x128xbf16>
    %cst_37 = arith.constant dense<0.000000e+00> : vector<128x32xf32>
    %94 = tpu.matmul %93, %80, %cst_37 {dimension_numbers = #tpu.dot_dimension_numbers<[1], [0], [0], [1], [0, 0, 1, 1], [], []>} : vector<128x128xbf16>, vector<128x32xbf16>, vector<128x32xf32> -> vector<128x32xf32>
    %95 = arith.addf %70, %94 : vector<128x32xf32>
    %96 = vector.extract_strided_slice %7 {offsets = [2, 0, 0], sizes = [1, 1, 32], strides = [1, 1, 1]} : vector<4x1x32xf32> to vector<1x1x32xf32>
    %97 = vector.shape_cast %96 : vector<1x1x32xf32> to vector<1x32xf32>
    %cst_38 = arith.constant 0.353553385 : f32
    %98 = vector.broadcast %cst_38 : f32 to vector<1x32xf32>
    %99 = arith.mulf %97, %98 : vector<1x32xf32>
    %100 = vector.broadcast %99 : vector<1x32xf32> to vector<128x32xf32>
    %101 = arith.mulf %42, %100 : vector<128x32xf32>
    %102 = arith.truncf %101 : vector<128x32xf32> to vector<128x32xbf16>
    %103 = vector.broadcast %97 : vector<1x32xf32> to vector<128x32xf32>
    %104 = arith.mulf %44, %103 : vector<128x32xf32>
    %105 = arith.truncf %104 : vector<128x32xf32> to vector<128x32xbf16>
    %cst_39 = arith.constant dense<0.000000e+00> : vector<128x128xf32>
    %106 = tpu.matmul %102, %45, %cst_39 {dimension_numbers = #tpu.dot_dimension_numbers<[1], [1], [0], [0], [0, 0, 1, 0], [], []>} : vector<128x32xbf16>, vector<128x32xbf16>, vector<128x128xf32> -> vector<128x128xf32>
    %107 = arith.addf %106, %6 : vector<128x128xf32>
    %cst_40 = arith.constant dense<0xFF800000> : vector<128xf32>
    %108 = vector.multi_reduction <maximumf>, %107, %cst_40 [1] : vector<128x128xf32> to vector<128xf32>
    %109 = vector.shape_cast %108 : vector<128xf32> to vector<128x1xf32>
    %110 = vector.broadcast %109 : vector<128x1xf32> to vector<128x128xf32>
    %111 = arith.subf %107, %110 : vector<128x128xf32>
    %112 = math.exp %111 : vector<128x128xf32>
    %cst_41 = arith.constant dense<0.000000e+00> : vector<128xf32>
    %113 = vector.multi_reduction <add>, %112, %cst_41 [1] : vector<128x128xf32> to vector<128xf32>
    %114 = vector.shape_cast %113 : vector<128xf32> to vector<128x1xf32>
    %115 = tpu.reciprocal %114 {approx = true} : vector<128x1xf32> -> vector<128x1xf32>
    %116 = vector.broadcast %115 : vector<128x1xf32> to vector<128x128xf32>
    %117 = arith.mulf %112, %116 : vector<128x128xf32>
    %118 = arith.truncf %117 : vector<128x128xf32> to vector<128x128xbf16>
    %cst_42 = arith.constant dense<0.000000e+00> : vector<128x32xf32>
    %119 = tpu.matmul %118, %105, %cst_42 {dimension_numbers = #tpu.dot_dimension_numbers<[1], [0], [0], [1], [0, 0, 1, 1], [], []>} : vector<128x128xbf16>, vector<128x32xbf16>, vector<128x32xf32> -> vector<128x32xf32>
    %120 = arith.addf %95, %119 : vector<128x32xf32>
    %121 = vector.extract_strided_slice %7 {offsets = [3, 0, 0], sizes = [1, 1, 32], strides = [1, 1, 1]} : vector<4x1x32xf32> to vector<1x1x32xf32>
    %122 = vector.shape_cast %121 : vector<1x1x32xf32> to vector<1x32xf32>
    %cst_43 = arith.constant 0.353553385 : f32
    %123 = vector.broadcast %cst_43 : f32 to vector<1x32xf32>
    %124 = arith.mulf %122, %123 : vector<1x32xf32>
    %125 = vector.broadcast %124 : vector<1x32xf32> to vector<128x32xf32>
    %126 = arith.mulf %42, %125 : vector<128x32xf32>
    %127 = arith.truncf %126 : vector<128x32xf32> to vector<128x32xbf16>
    %128 = vector.broadcast %122 : vector<1x32xf32> to vector<128x32xf32>
    %129 = arith.mulf %44, %128 : vector<128x32xf32>
    %130 = arith.truncf %129 : vector<128x32xf32> to vector<128x32xbf16>
    %cst_44 = arith.constant dense<0.000000e+00> : vector<128x128xf32>
    %131 = tpu.matmul %127, %45, %cst_44 {dimension_numbers = #tpu.dot_dimension_numbers<[1], [1], [0], [0], [0, 0, 1, 0], [], []>} : vector<128x32xbf16>, vector<128x32xbf16>, vector<128x128xf32> -> vector<128x128xf32>
    %132 = arith.addf %131, %6 : vector<128x128xf32>
    %cst_45 = arith.constant dense<0xFF800000> : vector<128xf32>
    %133 = vector.multi_reduction <maximumf>, %132, %cst_45 [1] : vector<128x128xf32> to vector<128xf32>
    %134 = vector.shape_cast %133 : vector<128xf32> to vector<128x1xf32>
    %135 = vector.broadcast %134 : vector<128x1xf32> to vector<128x128xf32>
    %136 = arith.subf %132, %135 : vector<128x128xf32>
    %137 = math.exp %136 : vector<128x128xf32>
    %cst_46 = arith.constant dense<0.000000e+00> : vector<128xf32>
    %138 = vector.multi_reduction <add>, %137, %cst_46 [1] : vector<128x128xf32> to vector<128xf32>
    %139 = vector.shape_cast %138 : vector<128xf32> to vector<128x1xf32>
    %140 = tpu.reciprocal %139 {approx = true} : vector<128x1xf32> -> vector<128x1xf32>
    %141 = vector.broadcast %140 : vector<128x1xf32> to vector<128x128xf32>
    %142 = arith.mulf %137, %141 : vector<128x128xf32>
    %143 = arith.truncf %142 : vector<128x128xf32> to vector<128x128xbf16>
    %cst_47 = arith.constant dense<0.000000e+00> : vector<128x32xf32>
    %144 = tpu.matmul %143, %130, %cst_47 {dimension_numbers = #tpu.dot_dimension_numbers<[1], [0], [0], [1], [0, 0, 1, 1], [], []>} : vector<128x128xbf16>, vector<128x32xbf16>, vector<128x32xf32> -> vector<128x32xf32>
    %145 = arith.addf %120, %144 : vector<128x32xf32>
    %c0_48 = arith.constant 0 : index
    %c0_49 = arith.constant 0 : index
    %c0_50 = arith.constant 0 : index
    %146 = vector.load %arg10[%c0_48, %c0_49, %c0_50] : memref<2x1x32xf32, #tpu.memory_space<vmem>>, vector<1x1x32xf32>
    %147 = vector.shape_cast %146 : vector<1x1x32xf32> to vector<1x32xf32>
    %c0_51 = arith.constant 0 : index
    %c0_52 = arith.constant 0 : index
    %c0_53 = arith.constant 0 : index
    %148 = vector.load %arg11[%c0_51, %c0_52, %c0_53] : memref<2x1x32xf32, #tpu.memory_space<vmem>>, vector<1x1x32xf32>
    %149 = vector.shape_cast %148 : vector<1x1x32xf32> to vector<1x32xf32>
    %cst_54 = arith.constant dense<0.000000e+00> : vector<128xf32>
    %150 = vector.multi_reduction <add>, %145, %cst_54 [1] : vector<128x32xf32> to vector<128xf32>
    %151 = vector.shape_cast %150 : vector<128xf32> to vector<128x1xf32>
    %cst_55 = arith.constant 3.200000e+01 : f32
    %152 = vector.broadcast %cst_55 : f32 to vector<128x1xf32>
    %153 = arith.divf %151, %152 : vector<128x1xf32>
    %154 = vector.broadcast %153 : vector<128x1xf32> to vector<128x32xf32>
    %155 = arith.subf %145, %154 : vector<128x32xf32>
    %156 = arith.mulf %155, %155 : vector<128x32xf32>
    %cst_56 = arith.constant dense<0.000000e+00> : vector<128xf32>
    %157 = vector.multi_reduction <add>, %156, %cst_56 [1] : vector<128x32xf32> to vector<128xf32>
    %158 = vector.shape_cast %157 : vector<128xf32> to vector<128x1xf32>
    %cst_57 = arith.constant 3.200000e+01 : f32
    %159 = vector.broadcast %cst_57 : f32 to vector<128x1xf32>
    %160 = arith.divf %158, %159 : vector<128x1xf32>
    %161 = vector.broadcast %153 : vector<128x1xf32> to vector<128x32xf32>
    %162 = arith.subf %145, %161 : vector<128x32xf32>
    %cst_58 = arith.constant 9.99999974E-6 : f32
    %163 = vector.broadcast %cst_58 : f32 to vector<128x1xf32>
    %164 = arith.addf %160, %163 : vector<128x1xf32>
    %165 = math.rsqrt %164 : vector<128x1xf32>
    %166 = vector.broadcast %165 : vector<128x1xf32> to vector<128x32xf32>
    %167 = arith.mulf %162, %166 : vector<128x32xf32>
    %168 = vector.broadcast %147 : vector<1x32xf32> to vector<128x32xf32>
    %169 = arith.mulf %167, %168 : vector<128x32xf32>
    %170 = vector.broadcast %149 : vector<1x32xf32> to vector<128x32xf32>
    %171 = arith.addf %169, %170 : vector<128x32xf32>
    %172 = arith.truncf %171 : vector<128x32xf32> to vector<128x32xbf16>
    %c0_59 = arith.constant 0 : index
    %c0_60 = arith.constant 0 : index
    %c0_61 = arith.constant 0 : index
    %173 = vector.load %arg12[%c0_59, %c0_60, %c0_61] : memref<2x32x64xbf16, #tpu.memory_space<vmem>>, vector<1x32x64xbf16>
    %174 = vector.shape_cast %173 : vector<1x32x64xbf16> to vector<32x64xbf16>
    %cst_62 = arith.constant dense<0.000000e+00> : vector<128x64xf32>
    %175 = tpu.matmul %172, %174, %cst_62 {dimension_numbers = #tpu.dot_dimension_numbers<[1], [0], [0], [1], [0, 0, 1, 1], [], []>} : vector<128x32xbf16>, vector<32x64xbf16>, vector<128x64xf32> -> vector<128x64xf32>
    %c0_63 = arith.constant 0 : index
    %c0_64 = arith.constant 0 : index
    %c0_65 = arith.constant 0 : index
    %176 = vector.load %arg13[%c0_63, %c0_64, %c0_65] : memref<2x1x64xf32, #tpu.memory_space<vmem>>, vector<1x1x64xf32>
    %177 = vector.shape_cast %176 : vector<1x1x64xf32> to vector<1x64xf32>
    %178 = vector.broadcast %177 : vector<1x64xf32> to vector<128x64xf32>
    %179 = arith.addf %175, %178 : vector<128x64xf32>
    %cst_66 = arith.constant 0.000000e+00 : f32
    %180 = vector.broadcast %cst_66 : f32 to vector<128x64xf32>
    %181 = arith.maximumf %179, %180 : vector<128x64xf32>
    %182 = arith.truncf %181 : vector<128x64xf32> to vector<128x64xbf16>
    %c0_67 = arith.constant 0 : index
    %c0_68 = arith.constant 0 : index
    %c0_69 = arith.constant 0 : index
    %183 = vector.load %arg14[%c0_67, %c0_68, %c0_69] : memref<2x64x32xbf16, #tpu.memory_space<vmem>>, vector<1x64x32xbf16>
    %184 = vector.shape_cast %183 : vector<1x64x32xbf16> to vector<64x32xbf16>
    %cst_70 = arith.constant dense<0.000000e+00> : vector<128x32xf32>
    %185 = tpu.matmul %182, %184, %cst_70 {dimension_numbers = #tpu.dot_dimension_numbers<[1], [0], [0], [1], [0, 0, 1, 1], [], []>} : vector<128x64xbf16>, vector<64x32xbf16>, vector<128x32xf32> -> vector<128x32xf32>
    %186 = arith.addf %145, %185 : vector<128x32xf32>
    %c0_71 = arith.constant 0 : index
    %c0_72 = arith.constant 0 : index
    %c0_73 = arith.constant 0 : index
    %187 = vector.load %arg15[%c0_71, %c0_72, %c0_73] : memref<2x1x32xf32, #tpu.memory_space<vmem>>, vector<1x1x32xf32>
    %188 = vector.shape_cast %187 : vector<1x1x32xf32> to vector<1x32xf32>
    %189 = vector.broadcast %188 : vector<1x32xf32> to vector<128x32xf32>
    %190 = arith.addf %186, %189 : vector<128x32xf32>
    %c1 = arith.constant 1 : index
    %c0_74 = arith.constant 0 : index
    %c0_75 = arith.constant 0 : index
    %191 = vector.load %arg6[%c1, %c0_74, %c0_75] : memref<2x1x32xf32, #tpu.memory_space<vmem>>, vector<1x1x32xf32>
    %192 = vector.shape_cast %191 : vector<1x1x32xf32> to vector<1x32xf32>
    %c1_76 = arith.constant 1 : index
    %c0_77 = arith.constant 0 : index
    %c0_78 = arith.constant 0 : index
    %193 = vector.load %arg7[%c1_76, %c0_77, %c0_78] : memref<2x1x32xf32, #tpu.memory_space<vmem>>, vector<1x1x32xf32>
    %194 = vector.shape_cast %193 : vector<1x1x32xf32> to vector<1x32xf32>
    %cst_79 = arith.constant dense<0.000000e+00> : vector<128xf32>
    %195 = vector.multi_reduction <add>, %190, %cst_79 [1] : vector<128x32xf32> to vector<128xf32>
    %196 = vector.shape_cast %195 : vector<128xf32> to vector<128x1xf32>
    %cst_80 = arith.constant 3.200000e+01 : f32
    %197 = vector.broadcast %cst_80 : f32 to vector<128x1xf32>
    %198 = arith.divf %196, %197 : vector<128x1xf32>
    %199 = vector.broadcast %198 : vector<128x1xf32> to vector<128x32xf32>
    %200 = arith.subf %190, %199 : vector<128x32xf32>
    %201 = arith.mulf %200, %200 : vector<128x32xf32>
    %cst_81 = arith.constant dense<0.000000e+00> : vector<128xf32>
    %202 = vector.multi_reduction <add>, %201, %cst_81 [1] : vector<128x32xf32> to vector<128xf32>
    %203 = vector.shape_cast %202 : vector<128xf32> to vector<128x1xf32>
    %cst_82 = arith.constant 3.200000e+01 : f32
    %204 = vector.broadcast %cst_82 : f32 to vector<128x1xf32>
    %205 = arith.divf %203, %204 : vector<128x1xf32>
    %206 = vector.broadcast %198 : vector<128x1xf32> to vector<128x32xf32>
    %207 = arith.subf %190, %206 : vector<128x32xf32>
    %cst_83 = arith.constant 9.99999974E-6 : f32
    %208 = vector.broadcast %cst_83 : f32 to vector<128x1xf32>
    %209 = arith.addf %205, %208 : vector<128x1xf32>
    %210 = math.rsqrt %209 : vector<128x1xf32>
    %211 = vector.broadcast %210 : vector<128x1xf32> to vector<128x32xf32>
    %212 = arith.mulf %207, %211 : vector<128x32xf32>
    %213 = vector.broadcast %192 : vector<1x32xf32> to vector<128x32xf32>
    %214 = arith.mulf %212, %213 : vector<128x32xf32>
    %215 = vector.broadcast %194 : vector<1x32xf32> to vector<128x32xf32>
    %216 = arith.addf %214, %215 : vector<128x32xf32>
    %217 = arith.truncf %216 : vector<128x32xf32> to vector<128x32xbf16>
    %c1_84 = arith.constant 1 : index
    %c0_85 = arith.constant 0 : index
    %c0_86 = arith.constant 0 : index
    %218 = vector.load %arg8[%c1_84, %c0_85, %c0_86] : memref<2x32x96xbf16, #tpu.memory_space<vmem>>, vector<1x32x96xbf16>
    %219 = vector.shape_cast %218 : vector<1x32x96xbf16> to vector<32x96xbf16>
    %cst_87 = arith.constant dense<0.000000e+00> : vector<128x96xf32>
    %220 = tpu.matmul %217, %219, %cst_87 {dimension_numbers = #tpu.dot_dimension_numbers<[1], [0], [0], [1], [0, 0, 1, 1], [], []>} : vector<128x32xbf16>, vector<32x96xbf16>, vector<128x96xf32> -> vector<128x96xf32>
    %c1_88 = arith.constant 1 : index
    %c0_89 = arith.constant 0 : index
    %c0_90 = arith.constant 0 : index
    %221 = vector.load %arg9[%c1_88, %c0_89, %c0_90] : memref<2x1x96xf32, #tpu.memory_space<vmem>>, vector<1x1x96xf32>
    %222 = vector.shape_cast %221 : vector<1x1x96xf32> to vector<1x96xf32>
    %223 = vector.broadcast %222 : vector<1x96xf32> to vector<128x96xf32>
    %224 = arith.addf %220, %223 : vector<128x96xf32>
    %225 = vector.extract_strided_slice %224 {offsets = [0, 0], sizes = [128, 32], strides = [1, 1]} : vector<128x96xf32> to vector<128x32xf32>
    %226 = vector.extract_strided_slice %224 {offsets = [0, 32], sizes = [128, 32], strides = [1, 1]} : vector<128x96xf32> to vector<128x32xf32>
    %227 = vector.extract_strided_slice %224 {offsets = [0, 64], sizes = [128, 32], strides = [1, 1]} : vector<128x96xf32> to vector<128x32xf32>
    %228 = arith.truncf %226 : vector<128x32xf32> to vector<128x32xbf16>
    %229 = vector.extract_strided_slice %7 {offsets = [0, 0, 0], sizes = [1, 1, 32], strides = [1, 1, 1]} : vector<4x1x32xf32> to vector<1x1x32xf32>
    %230 = vector.shape_cast %229 : vector<1x1x32xf32> to vector<1x32xf32>
    %cst_91 = arith.constant 0.353553385 : f32
    %231 = vector.broadcast %cst_91 : f32 to vector<1x32xf32>
    %232 = arith.mulf %230, %231 : vector<1x32xf32>
    %233 = vector.broadcast %232 : vector<1x32xf32> to vector<128x32xf32>
    %234 = arith.mulf %225, %233 : vector<128x32xf32>
    %235 = arith.truncf %234 : vector<128x32xf32> to vector<128x32xbf16>
    %236 = vector.broadcast %230 : vector<1x32xf32> to vector<128x32xf32>
    %237 = arith.mulf %227, %236 : vector<128x32xf32>
    %238 = arith.truncf %237 : vector<128x32xf32> to vector<128x32xbf16>
    %cst_92 = arith.constant dense<0.000000e+00> : vector<128x128xf32>
    %239 = tpu.matmul %235, %228, %cst_92 {dimension_numbers = #tpu.dot_dimension_numbers<[1], [1], [0], [0], [0, 0, 1, 0], [], []>} : vector<128x32xbf16>, vector<128x32xbf16>, vector<128x128xf32> -> vector<128x128xf32>
    %240 = arith.addf %239, %6 : vector<128x128xf32>
    %cst_93 = arith.constant dense<0xFF800000> : vector<128xf32>
    %241 = vector.multi_reduction <maximumf>, %240, %cst_93 [1] : vector<128x128xf32> to vector<128xf32>
    %242 = vector.shape_cast %241 : vector<128xf32> to vector<128x1xf32>
    %243 = vector.broadcast %242 : vector<128x1xf32> to vector<128x128xf32>
    %244 = arith.subf %240, %243 : vector<128x128xf32>
    %245 = math.exp %244 : vector<128x128xf32>
    %cst_94 = arith.constant dense<0.000000e+00> : vector<128xf32>
    %246 = vector.multi_reduction <add>, %245, %cst_94 [1] : vector<128x128xf32> to vector<128xf32>
    %247 = vector.shape_cast %246 : vector<128xf32> to vector<128x1xf32>
    %248 = tpu.reciprocal %247 {approx = true} : vector<128x1xf32> -> vector<128x1xf32>
    %249 = vector.broadcast %248 : vector<128x1xf32> to vector<128x128xf32>
    %250 = arith.mulf %245, %249 : vector<128x128xf32>
    %251 = arith.truncf %250 : vector<128x128xf32> to vector<128x128xbf16>
    %cst_95 = arith.constant dense<0.000000e+00> : vector<128x32xf32>
    %252 = tpu.matmul %251, %238, %cst_95 {dimension_numbers = #tpu.dot_dimension_numbers<[1], [0], [0], [1], [0, 0, 1, 1], [], []>} : vector<128x128xbf16>, vector<128x32xbf16>, vector<128x32xf32> -> vector<128x32xf32>
    %253 = arith.addf %190, %252 : vector<128x32xf32>
    %254 = vector.extract_strided_slice %7 {offsets = [1, 0, 0], sizes = [1, 1, 32], strides = [1, 1, 1]} : vector<4x1x32xf32> to vector<1x1x32xf32>
    %255 = vector.shape_cast %254 : vector<1x1x32xf32> to vector<1x32xf32>
    %cst_96 = arith.constant 0.353553385 : f32
    %256 = vector.broadcast %cst_96 : f32 to vector<1x32xf32>
    %257 = arith.mulf %255, %256 : vector<1x32xf32>
    %258 = vector.broadcast %257 : vector<1x32xf32> to vector<128x32xf32>
    %259 = arith.mulf %225, %258 : vector<128x32xf32>
    %260 = arith.truncf %259 : vector<128x32xf32> to vector<128x32xbf16>
    %261 = vector.broadcast %255 : vector<1x32xf32> to vector<128x32xf32>
    %262 = arith.mulf %227, %261 : vector<128x32xf32>
    %263 = arith.truncf %262 : vector<128x32xf32> to vector<128x32xbf16>
    %cst_97 = arith.constant dense<0.000000e+00> : vector<128x128xf32>
    %264 = tpu.matmul %260, %228, %cst_97 {dimension_numbers = #tpu.dot_dimension_numbers<[1], [1], [0], [0], [0, 0, 1, 0], [], []>} : vector<128x32xbf16>, vector<128x32xbf16>, vector<128x128xf32> -> vector<128x128xf32>
    %265 = arith.addf %264, %6 : vector<128x128xf32>
    %cst_98 = arith.constant dense<0xFF800000> : vector<128xf32>
    %266 = vector.multi_reduction <maximumf>, %265, %cst_98 [1] : vector<128x128xf32> to vector<128xf32>
    %267 = vector.shape_cast %266 : vector<128xf32> to vector<128x1xf32>
    %268 = vector.broadcast %267 : vector<128x1xf32> to vector<128x128xf32>
    %269 = arith.subf %265, %268 : vector<128x128xf32>
    %270 = math.exp %269 : vector<128x128xf32>
    %cst_99 = arith.constant dense<0.000000e+00> : vector<128xf32>
    %271 = vector.multi_reduction <add>, %270, %cst_99 [1] : vector<128x128xf32> to vector<128xf32>
    %272 = vector.shape_cast %271 : vector<128xf32> to vector<128x1xf32>
    %273 = tpu.reciprocal %272 {approx = true} : vector<128x1xf32> -> vector<128x1xf32>
    %274 = vector.broadcast %273 : vector<128x1xf32> to vector<128x128xf32>
    %275 = arith.mulf %270, %274 : vector<128x128xf32>
    %276 = arith.truncf %275 : vector<128x128xf32> to vector<128x128xbf16>
    %cst_100 = arith.constant dense<0.000000e+00> : vector<128x32xf32>
    %277 = tpu.matmul %276, %263, %cst_100 {dimension_numbers = #tpu.dot_dimension_numbers<[1], [0], [0], [1], [0, 0, 1, 1], [], []>} : vector<128x128xbf16>, vector<128x32xbf16>, vector<128x32xf32> -> vector<128x32xf32>
    %278 = arith.addf %253, %277 : vector<128x32xf32>
    %279 = vector.extract_strided_slice %7 {offsets = [2, 0, 0], sizes = [1, 1, 32], strides = [1, 1, 1]} : vector<4x1x32xf32> to vector<1x1x32xf32>
    %280 = vector.shape_cast %279 : vector<1x1x32xf32> to vector<1x32xf32>
    %cst_101 = arith.constant 0.353553385 : f32
    %281 = vector.broadcast %cst_101 : f32 to vector<1x32xf32>
    %282 = arith.mulf %280, %281 : vector<1x32xf32>
    %283 = vector.broadcast %282 : vector<1x32xf32> to vector<128x32xf32>
    %284 = arith.mulf %225, %283 : vector<128x32xf32>
    %285 = arith.truncf %284 : vector<128x32xf32> to vector<128x32xbf16>
    %286 = vector.broadcast %280 : vector<1x32xf32> to vector<128x32xf32>
    %287 = arith.mulf %227, %286 : vector<128x32xf32>
    %288 = arith.truncf %287 : vector<128x32xf32> to vector<128x32xbf16>
    %cst_102 = arith.constant dense<0.000000e+00> : vector<128x128xf32>
    %289 = tpu.matmul %285, %228, %cst_102 {dimension_numbers = #tpu.dot_dimension_numbers<[1], [1], [0], [0], [0, 0, 1, 0], [], []>} : vector<128x32xbf16>, vector<128x32xbf16>, vector<128x128xf32> -> vector<128x128xf32>
    %290 = arith.addf %289, %6 : vector<128x128xf32>
    %cst_103 = arith.constant dense<0xFF800000> : vector<128xf32>
    %291 = vector.multi_reduction <maximumf>, %290, %cst_103 [1] : vector<128x128xf32> to vector<128xf32>
    %292 = vector.shape_cast %291 : vector<128xf32> to vector<128x1xf32>
    %293 = vector.broadcast %292 : vector<128x1xf32> to vector<128x128xf32>
    %294 = arith.subf %290, %293 : vector<128x128xf32>
    %295 = math.exp %294 : vector<128x128xf32>
    %cst_104 = arith.constant dense<0.000000e+00> : vector<128xf32>
    %296 = vector.multi_reduction <add>, %295, %cst_104 [1] : vector<128x128xf32> to vector<128xf32>
    %297 = vector.shape_cast %296 : vector<128xf32> to vector<128x1xf32>
    %298 = tpu.reciprocal %297 {approx = true} : vector<128x1xf32> -> vector<128x1xf32>
    %299 = vector.broadcast %298 : vector<128x1xf32> to vector<128x128xf32>
    %300 = arith.mulf %295, %299 : vector<128x128xf32>
    %301 = arith.truncf %300 : vector<128x128xf32> to vector<128x128xbf16>
    %cst_105 = arith.constant dense<0.000000e+00> : vector<128x32xf32>
    %302 = tpu.matmul %301, %288, %cst_105 {dimension_numbers = #tpu.dot_dimension_numbers<[1], [0], [0], [1], [0, 0, 1, 1], [], []>} : vector<128x128xbf16>, vector<128x32xbf16>, vector<128x32xf32> -> vector<128x32xf32>
    %303 = arith.addf %278, %302 : vector<128x32xf32>
    %304 = vector.extract_strided_slice %7 {offsets = [3, 0, 0], sizes = [1, 1, 32], strides = [1, 1, 1]} : vector<4x1x32xf32> to vector<1x1x32xf32>
    %305 = vector.shape_cast %304 : vector<1x1x32xf32> to vector<1x32xf32>
    %cst_106 = arith.constant 0.353553385 : f32
    %306 = vector.broadcast %cst_106 : f32 to vector<1x32xf32>
    %307 = arith.mulf %305, %306 : vector<1x32xf32>
    %308 = vector.broadcast %307 : vector<1x32xf32> to vector<128x32xf32>
    %309 = arith.mulf %225, %308 : vector<128x32xf32>
    %310 = arith.truncf %309 : vector<128x32xf32> to vector<128x32xbf16>
    %311 = vector.broadcast %305 : vector<1x32xf32> to vector<128x32xf32>
    %312 = arith.mulf %227, %311 : vector<128x32xf32>
    %313 = arith.truncf %312 : vector<128x32xf32> to vector<128x32xbf16>
    %cst_107 = arith.constant dense<0.000000e+00> : vector<128x128xf32>
    %314 = tpu.matmul %310, %228, %cst_107 {dimension_numbers = #tpu.dot_dimension_numbers<[1], [1], [0], [0], [0, 0, 1, 0], [], []>} : vector<128x32xbf16>, vector<128x32xbf16>, vector<128x128xf32> -> vector<128x128xf32>
    %315 = arith.addf %314, %6 : vector<128x128xf32>
    %cst_108 = arith.constant dense<0xFF800000> : vector<128xf32>
    %316 = vector.multi_reduction <maximumf>, %315, %cst_108 [1] : vector<128x128xf32> to vector<128xf32>
    %317 = vector.shape_cast %316 : vector<128xf32> to vector<128x1xf32>
    %318 = vector.broadcast %317 : vector<128x1xf32> to vector<128x128xf32>
    %319 = arith.subf %315, %318 : vector<128x128xf32>
    %320 = math.exp %319 : vector<128x128xf32>
    %cst_109 = arith.constant dense<0.000000e+00> : vector<128xf32>
    %321 = vector.multi_reduction <add>, %320, %cst_109 [1] : vector<128x128xf32> to vector<128xf32>
    %322 = vector.shape_cast %321 : vector<128xf32> to vector<128x1xf32>
    %323 = tpu.reciprocal %322 {approx = true} : vector<128x1xf32> -> vector<128x1xf32>
    %324 = vector.broadcast %323 : vector<128x1xf32> to vector<128x128xf32>
    %325 = arith.mulf %320, %324 : vector<128x128xf32>
    %326 = arith.truncf %325 : vector<128x128xf32> to vector<128x128xbf16>
    %cst_110 = arith.constant dense<0.000000e+00> : vector<128x32xf32>
    %327 = tpu.matmul %326, %313, %cst_110 {dimension_numbers = #tpu.dot_dimension_numbers<[1], [0], [0], [1], [0, 0, 1, 1], [], []>} : vector<128x128xbf16>, vector<128x32xbf16>, vector<128x32xf32> -> vector<128x32xf32>
    %328 = arith.addf %303, %327 : vector<128x32xf32>
    %c1_111 = arith.constant 1 : index
    %c0_112 = arith.constant 0 : index
    %c0_113 = arith.constant 0 : index
    %329 = vector.load %arg10[%c1_111, %c0_112, %c0_113] : memref<2x1x32xf32, #tpu.memory_space<vmem>>, vector<1x1x32xf32>
    %330 = vector.shape_cast %329 : vector<1x1x32xf32> to vector<1x32xf32>
    %c1_114 = arith.constant 1 : index
    %c0_115 = arith.constant 0 : index
    %c0_116 = arith.constant 0 : index
    %331 = vector.load %arg11[%c1_114, %c0_115, %c0_116] : memref<2x1x32xf32, #tpu.memory_space<vmem>>, vector<1x1x32xf32>
    %332 = vector.shape_cast %331 : vector<1x1x32xf32> to vector<1x32xf32>
    %cst_117 = arith.constant dense<0.000000e+00> : vector<128xf32>
    %333 = vector.multi_reduction <add>, %328, %cst_117 [1] : vector<128x32xf32> to vector<128xf32>
    %334 = vector.shape_cast %333 : vector<128xf32> to vector<128x1xf32>
    %cst_118 = arith.constant 3.200000e+01 : f32
    %335 = vector.broadcast %cst_118 : f32 to vector<128x1xf32>
    %336 = arith.divf %334, %335 : vector<128x1xf32>
    %337 = vector.broadcast %336 : vector<128x1xf32> to vector<128x32xf32>
    %338 = arith.subf %328, %337 : vector<128x32xf32>
    %339 = arith.mulf %338, %338 : vector<128x32xf32>
    %cst_119 = arith.constant dense<0.000000e+00> : vector<128xf32>
    %340 = vector.multi_reduction <add>, %339, %cst_119 [1] : vector<128x32xf32> to vector<128xf32>
    %341 = vector.shape_cast %340 : vector<128xf32> to vector<128x1xf32>
    %cst_120 = arith.constant 3.200000e+01 : f32
    %342 = vector.broadcast %cst_120 : f32 to vector<128x1xf32>
    %343 = arith.divf %341, %342 : vector<128x1xf32>
    %344 = vector.broadcast %336 : vector<128x1xf32> to vector<128x32xf32>
    %345 = arith.subf %328, %344 : vector<128x32xf32>
    %cst_121 = arith.constant 9.99999974E-6 : f32
    %346 = vector.broadcast %cst_121 : f32 to vector<128x1xf32>
    %347 = arith.addf %343, %346 : vector<128x1xf32>
    %348 = math.rsqrt %347 : vector<128x1xf32>
    %349 = vector.broadcast %348 : vector<128x1xf32> to vector<128x32xf32>
    %350 = arith.mulf %345, %349 : vector<128x32xf32>
    %351 = vector.broadcast %330 : vector<1x32xf32> to vector<128x32xf32>
    %352 = arith.mulf %350, %351 : vector<128x32xf32>
    %353 = vector.broadcast %332 : vector<1x32xf32> to vector<128x32xf32>
    %354 = arith.addf %352, %353 : vector<128x32xf32>
    %355 = arith.truncf %354 : vector<128x32xf32> to vector<128x32xbf16>
    %c1_122 = arith.constant 1 : index
    %c0_123 = arith.constant 0 : index
    %c0_124 = arith.constant 0 : index
    %356 = vector.load %arg12[%c1_122, %c0_123, %c0_124] : memref<2x32x64xbf16, #tpu.memory_space<vmem>>, vector<1x32x64xbf16>
    %357 = vector.shape_cast %356 : vector<1x32x64xbf16> to vector<32x64xbf16>
    %cst_125 = arith.constant dense<0.000000e+00> : vector<128x64xf32>
    %358 = tpu.matmul %355, %357, %cst_125 {dimension_numbers = #tpu.dot_dimension_numbers<[1], [0], [0], [1], [0, 0, 1, 1], [], []>} : vector<128x32xbf16>, vector<32x64xbf16>, vector<128x64xf32> -> vector<128x64xf32>
    %c1_126 = arith.constant 1 : index
    %c0_127 = arith.constant 0 : index
    %c0_128 = arith.constant 0 : index
    %359 = vector.load %arg13[%c1_126, %c0_127, %c0_128] : memref<2x1x64xf32, #tpu.memory_space<vmem>>, vector<1x1x64xf32>
    %360 = vector.shape_cast %359 : vector<1x1x64xf32> to vector<1x64xf32>
    %361 = vector.broadcast %360 : vector<1x64xf32> to vector<128x64xf32>
    %362 = arith.addf %358, %361 : vector<128x64xf32>
    %cst_129 = arith.constant 0.000000e+00 : f32
    %363 = vector.broadcast %cst_129 : f32 to vector<128x64xf32>
    %364 = arith.maximumf %362, %363 : vector<128x64xf32>
    %365 = arith.truncf %364 : vector<128x64xf32> to vector<128x64xbf16>
    %c1_130 = arith.constant 1 : index
    %c0_131 = arith.constant 0 : index
    %c0_132 = arith.constant 0 : index
    %366 = vector.load %arg14[%c1_130, %c0_131, %c0_132] : memref<2x64x32xbf16, #tpu.memory_space<vmem>>, vector<1x64x32xbf16>
    %367 = vector.shape_cast %366 : vector<1x64x32xbf16> to vector<64x32xbf16>
    %cst_133 = arith.constant dense<0.000000e+00> : vector<128x32xf32>
    %368 = tpu.matmul %365, %367, %cst_133 {dimension_numbers = #tpu.dot_dimension_numbers<[1], [0], [0], [1], [0, 0, 1, 1], [], []>} : vector<128x64xbf16>, vector<64x32xbf16>, vector<128x32xf32> -> vector<128x32xf32>
    %369 = arith.addf %328, %368 : vector<128x32xf32>
    %c1_134 = arith.constant 1 : index
    %c0_135 = arith.constant 0 : index
    %c0_136 = arith.constant 0 : index
    %370 = vector.load %arg15[%c1_134, %c0_135, %c0_136] : memref<2x1x32xf32, #tpu.memory_space<vmem>>, vector<1x1x32xf32>
    %371 = vector.shape_cast %370 : vector<1x1x32xf32> to vector<1x32xf32>
    %372 = vector.broadcast %371 : vector<1x32xf32> to vector<128x32xf32>
    %373 = arith.addf %369, %372 : vector<128x32xf32>
    %374 = arith.truncf %373 : vector<128x32xf32> to vector<128x32xbf16>
    %c0_137 = arith.constant 0 : index
    %c0_138 = arith.constant 0 : index
    %375 = vector.load %arg16[%c0_137, %c0_138] : memref<32x1xbf16, #tpu.memory_space<vmem>>, vector<32x1xbf16>
    %cst_139 = arith.constant dense<0.000000e+00> : vector<128x1xf32>
    %376 = tpu.matmul %374, %375, %cst_139 {dimension_numbers = #tpu.dot_dimension_numbers<[1], [0], [0], [1], [0, 0, 1, 1], [], []>} : vector<128x32xbf16>, vector<32x1xbf16>, vector<128x1xf32> -> vector<128x1xf32>
    %c0_140 = arith.constant 0 : index
    %c0_141 = arith.constant 0 : index
    %377 = vector.load %arg17[%c0_140, %c0_141] : memref<1x1xf32, #tpu.memory_space<vmem>>, vector<1x1xf32>
    %378 = vector.broadcast %377 : vector<1x1xf32> to vector<128x1xf32>
    %379 = arith.addf %376, %378 : vector<128x1xf32>
    %c0_142 = arith.constant 0 : index
    %c0_143 = arith.constant 0 : index
    %380 = vector.load %arg18[%c0_142, %c0_143] : memref<64x128xf32, #tpu.memory_space<vmem>>, vector<64x128xf32>
    %cst_144 = arith.constant dense<0.000000e+00> : vector<64x1xf32>
    %381 = tpu.matmul %380, %379, %cst_144 {dimension_numbers = #tpu.dot_dimension_numbers<[1], [0], [0], [1], [0, 0, 1, 1], [], []>} : vector<64x128xf32>, vector<128x1xf32>, vector<64x1xf32> -> vector<64x1xf32>
    %c0_145 = arith.constant 0 : index
    %c0_146 = arith.constant 0 : index
    %382 = vector.load %arg19[%c0_145, %c0_146] : memref<64x1xf32, #tpu.memory_space<vmem>>, vector<64x1xf32>
    tpu.vector_store %arg19[%c0_145, %c0_146], %381 {strides = array<i32>} : memref<64x1xf32, #tpu.memory_space<vmem>>, vector<64x1xf32>,
    return
  }
  func.func @transform_0(%arg0: i32) -> (i32, i32) {
    %c0_i32 = arith.constant 0 : i32
    %c0_i32_0 = arith.constant 0 : i32
    return %arg0, %c0_i32 : i32, i32
  }
  func.func @transform_1(%arg0: i32) -> (i32, i32) {
    %c0_i32 = arith.constant 0 : i32
    %c0_i32_0 = arith.constant 0 : i32
    %c0_i32_1 = arith.constant 0 : i32
    return %c0_i32, %c0_i32_0 : i32, i32
  }
  func.func @transform_2(%arg0: i32) -> (i32, i32) {
    %c0_i32 = arith.constant 0 : i32
    %c0_i32_0 = arith.constant 0 : i32
    %c0_i32_1 = arith.constant 0 : i32
    return %c0_i32, %c0_i32_0 : i32, i32
  }
  func.func @transform_3(%arg0: i32) -> (i32, i32) {
    %c0_i32 = arith.constant 0 : i32
    %c0_i32_0 = arith.constant 0 : i32
    %c0_i32_1 = arith.constant 0 : i32
    return %c0_i32, %c0_i32_0 : i32, i32
  }
  func.func @transform_4(%arg0: i32) -> (i32, i32, i32) {
    %c0_i32 = arith.constant 0 : i32
    %c0_i32_0 = arith.constant 0 : i32
    %c0_i32_1 = arith.constant 0 : i32
    %c0_i32_2 = arith.constant 0 : i32
    return %c0_i32, %c0_i32_0, %c0_i32_1 : i32, i32, i32
  }
  func.func @transform_5(%arg0: i32) -> (i32, i32, i32) {
    %c0_i32 = arith.constant 0 : i32
    %c0_i32_0 = arith.constant 0 : i32
    %c0_i32_1 = arith.constant 0 : i32
    %c0_i32_2 = arith.constant 0 : i32
    return %c0_i32, %c0_i32_0, %c0_i32_1 : i32, i32, i32
  }
  func.func @transform_6(%arg0: i32) -> (i32, i32, i32) {
    %c0_i32 = arith.constant 0 : i32
    %c0_i32_0 = arith.constant 0 : i32
    %c0_i32_1 = arith.constant 0 : i32
    %c0_i32_2 = arith.constant 0 : i32
    return %c0_i32, %c0_i32_0, %c0_i32_1 : i32, i32, i32
  }
  func.func @transform_7(%arg0: i32) -> (i32, i32, i32) {
    %c0_i32 = arith.constant 0 : i32
    %c0_i32_0 = arith.constant 0 : i32
    %c0_i32_1 = arith.constant 0 : i32
    %c0_i32_2 = arith.constant 0 : i32
    return %c0_i32, %c0_i32_0, %c0_i32_1 : i32, i32, i32
  }
  func.func @transform_8(%arg0: i32) -> (i32, i32, i32) {
    %c0_i32 = arith.constant 0 : i32
    %c0_i32_0 = arith.constant 0 : i32
    %c0_i32_1 = arith.constant 0 : i32
    %c0_i32_2 = arith.constant 0 : i32
    return %c0_i32, %c0_i32_0, %c0_i32_1 : i32, i32, i32
  }
  func.func @transform_9(%arg0: i32) -> (i32, i32, i32) {
    %c0_i32 = arith.constant 0 : i32
    %c0_i32_0 = arith.constant 0 : i32
    %c0_i32_1 = arith.constant 0 : i32
    %c0_i32_2 = arith.constant 0 : i32
    return %c0_i32, %c0_i32_0, %c0_i32_1 : i32, i32, i32
  }
  func.func @transform_10(%arg0: i32) -> (i32, i32, i32) {
    %c0_i32 = arith.constant 0 : i32
    %c0_i32_0 = arith.constant 0 : i32
    %c0_i32_1 = arith.constant 0 : i32
    %c0_i32_2 = arith.constant 0 : i32
    return %c0_i32, %c0_i32_0, %c0_i32_1 : i32, i32, i32
  }
  func.func @transform_11(%arg0: i32) -> (i32, i32, i32) {
    %c0_i32 = arith.constant 0 : i32
    %c0_i32_0 = arith.constant 0 : i32
    %c0_i32_1 = arith.constant 0 : i32
    %c0_i32_2 = arith.constant 0 : i32
    return %c0_i32, %c0_i32_0, %c0_i32_1 : i32, i32, i32
  }
  func.func @transform_12(%arg0: i32) -> (i32, i32, i32) {
    %c0_i32 = arith.constant 0 : i32
    %c0_i32_0 = arith.constant 0 : i32
    %c0_i32_1 = arith.constant 0 : i32
    %c0_i32_2 = arith.constant 0 : i32
    return %c0_i32, %c0_i32_0, %c0_i32_1 : i32, i32, i32
  }
  func.func @transform_13(%arg0: i32) -> (i32, i32, i32) {
    %c0_i32 = arith.constant 0 : i32
    %c0_i32_0 = arith.constant 0 : i32
    %c0_i32_1 = arith.constant 0 : i32
    %c0_i32_2 = arith.constant 0 : i32
    return %c0_i32, %c0_i32_0, %c0_i32_1 : i32, i32, i32
  }
  func.func @transform_14(%arg0: i32) -> (i32, i32, i32) {
    %c0_i32 = arith.constant 0 : i32
    %c0_i32_0 = arith.constant 0 : i32
    %c0_i32_1 = arith.constant 0 : i32
    %c0_i32_2 = arith.constant 0 : i32
    return %c0_i32, %c0_i32_0, %c0_i32_1 : i32, i32, i32
  }
  func.func @transform_15(%arg0: i32) -> (i32, i32) {
    %c0_i32 = arith.constant 0 : i32
    %c0_i32_0 = arith.constant 0 : i32
    %c0_i32_1 = arith.constant 0 : i32
    return %c0_i32, %c0_i32_0 : i32, i32
  }
  func.func @transform_16(%arg0: i32) -> (i32, i32) {
    %c0_i32 = arith.constant 0 : i32
    %c0_i32_0 = arith.constant 0 : i32
    %c0_i32_1 = arith.constant 0 : i32
    return %c0_i32, %c0_i32_0 : i32, i32
  }
  func.func @transform_17(%arg0: i32) -> (i32, i32) {
    %c0_i32 = arith.constant 0 : i32
    %c0_i32_0 = arith.constant 0 : i32
    %c0_i32_1 = arith.constant 0 : i32
    return %c0_i32, %c0_i32_0 : i32, i32
  }
  func.func @transform_18(%arg0: i32) -> (i32, i32) {
    %c0_i32 = arith.constant 0 : i32
    %c0_i32_0 = arith.constant 0 : i32
    return %arg0, %c0_i32 : i32, i32
  }
}

</mosaic_0001>

<llo_original>
// kernel: tpu_custom_call.1
$region0: #{tpu_custom_call.1}
  #allocation0 [shape = 'u32[]', space=smem, size = 0x4, offset = 0x4, fixed_abs, tag = 'smem constant byte address 0x4 - core index']
  #allocation1 [shape = 'u32[144,128]{1,0:T(1,128)}', space=vmem, size = 0x12000, scoped, tag = 'internal scratch']
  #allocation2 [shape = 'f32[1,1]{1,0:T(1,128)S(1)}', space=vmem, size = 0x200, scoped, tag = 'scoped memory for tpu_custom_call.1']
  %s0 = inlined_call_operand.vmem [shape: f32[256,5], index: 0, kind: input, shape index: {}]
  %s1 = inlined_call_operand.vmem [shape: bf16[5,32], index: 1, kind: input, shape index: {}]
  %s2 = inlined_call_operand.vmem [shape: f32[128,32], index: 2, kind: input, shape index: {}]
  %s3 = inlined_call_operand.vmem [shape: f32[128,128], index: 3, kind: input, shape index: {}]
  %s4 = inlined_call_operand.vmem [shape: f32[4,1,32], index: 4, kind: input, shape index: {}]
  %s5 = inlined_call_operand.vmem [shape: f32[2,1,32], index: 5, kind: input, shape index: {}]
  %s6 = inlined_call_operand.vmem [shape: f32[2,1,32], index: 6, kind: input, shape index: {}]
  %s7 = inlined_call_operand.vmem [shape: bf16[2,32,96], index: 7, kind: input, shape index: {}]
  %s8 = inlined_call_operand.vmem [shape: f32[2,1,96], index: 8, kind: input, shape index: {}]
  %s9 = inlined_call_operand.vmem [shape: f32[2,1,32], index: 9, kind: input, shape index: {}]
  %s10 = inlined_call_operand.vmem [shape: f32[2,1,32], index: 10, kind: input, shape index: {}]
  %s11 = inlined_call_operand.vmem [shape: bf16[2,32,64], index: 11, kind: input, shape index: {}]
  %s12 = inlined_call_operand.vmem [shape: f32[2,1,64], index: 12, kind: input, shape index: {}]
  %s13 = inlined_call_operand.vmem [shape: bf16[2,64,32], index: 13, kind: input, shape index: {}]
  %s14 = inlined_call_operand.vmem [shape: f32[2,1,32], index: 14, kind: input, shape index: {}]
  %s15 = inlined_call_operand.vmem [shape: bf16[32,1], index: 15, kind: input, shape index: {}]
  %s16 = inlined_call_operand.<no memory space> [shape: f32[1,1], index: 16, kind: input, shape index: {}]
  %s17 = inlined_call_operand.vmem [shape: f32[64,128], index: 17, kind: input, shape index: {}]
  %s18 = inlined_call_operand.vmem [shape: f32[128,1], index: 18, kind: output, shape index: {}]
  %s19 = sld [smem:[#allocation0]]
  $region105: #{tpu_custom_call.1} parent=0
    _
  %s21 = ssub.s32 1, %s19
  %s22 = scalar_select 0, %s21, %s19
  %v23 = vstv %s16
  %24 = vst [vmem:[#allocation2] sm:$0x1] %v23
  loop: start=0, step=1, limit=4
  $region2: #{tpu_custom_call.1} parent=0 // loop_pre_header
    _
  $region3: #{tpu_custom_call.1} parent=0 // loop_header
    %s26 = sphi 0, %s30
    %p27 = scmp.ge.s32.totalorder %s26, 4
    %s36 = sphi 0, %s38
    %s39 = sphi 0, %s36
    %s40 = sphi 0, %s39
    %s56 = sphi 0, %s40
    %s60 = sphi 0, %s60
    %s62 = sphi 0, %s60
    %s63 = sphi 0, %s62
    %s77 = sphi 0, %s63
    %s81 = sphi 0, %s81
    %s83 = sphi 0, %s81
    %s84 = sphi 0, %s83
    %s98 = sphi 0, %s84
    %s102 = sphi 0, %s102
    %s104 = sphi 0, %s102
    %s105 = sphi 0, %s104
    %s119 = sphi 0, %s105
    %s123 = sphi 0, %s123
    %s125 = sphi 0, %s123
    %s126 = sphi 0, %s125
    %s140 = sphi 0, %s126
    %s144 = sphi 0, %s144
    %s146 = sphi 0, %s144
    %s147 = sphi 0, %s146
    %s161 = sphi 0, %s147
    %s165 = sphi 0, %s165
    %s167 = sphi 0, %s165
    %s168 = sphi 0, %s167
    %s182 = sphi 0, %s168
    %s186 = sphi 0, %s186
    %s188 = sphi 0, %s186
    %s189 = sphi 0, %s188
    %s203 = sphi 0, %s189
    %s207 = sphi 0, %s207
    %s209 = sphi 0, %s207
    %s210 = sphi 0, %s209
    %s224 = sphi 0, %s210
    %s228 = sphi 0, %s228
    %s230 = sphi 0, %s228
    %s231 = sphi 0, %s230
    %s245 = sphi 0, %s231
    %s249 = sphi 0, %s249
    %s251 = sphi 0, %s249
    %s252 = sphi 0, %s251
    %s266 = sphi 0, %s252
    %s270 = sphi 0, %s270
    %s272 = sphi 0, %s270
    %s273 = sphi 0, %s272
    %s287 = sphi 0, %s273
    %s291 = sphi 0, %s291
    %s293 = sphi 0, %s291
    %s294 = sphi 0, %s293
    %s308 = sphi 0, %s294
    %s312 = sphi 0, %s312
    %s314 = sphi 0, %s312
    %s315 = sphi 0, %s314
    %s329 = sphi 0, %s315
    %s333 = sphi 0, %s333
    %s335 = sphi 0, %s333
    %s336 = sphi 0, %s335
    %s350 = sphi 0, %s336
    %s354 = sphi 0, %s354
    %s356 = sphi 0, %s354
    %s357 = sphi 0, %s356
    %s371 = sphi 0, %s357
    %s375 = sphi 0, %s375
    %s377 = sphi 0, %s375
    %s378 = sphi 0, %s377
    %s392 = sphi 0, %s378
    %s396 = sphi 0, %s396
    %s398 = sphi 0, %s396
    %s399 = sphi 0, %s398
    %s413 = sphi 0, %s399
    %s419 = sphi 0, %s421
    %s422 = sphi 0, %s419
    %s423 = sphi 0, %s422
    %s439 = sphi 0, %s423
  $region4: #{tpu_custom_call.1} parent=0 // loop_header_branch
    %29 = sbr.rel (%p27) target = $region8
  $region5: #{tpu_custom_call.1} parent=0 // loop_body
    %s31 = ssub.s32 %s26, 1
    %s32 = ssub.s32 %s26, 2
    %s33 = sadd.s32 %s26, 1
    %s34 = ssub.s32 %s26, %s33
    %p35 = scmp.eq.s32.totalorder %s34, 0
    %s37 = sadd.s32 %s36, 1
    %s38 = scalar_select %p35, %s36, %s37
    %p41 = pneg %p35
    %p42 = scmp.eq.s32.totalorder %s26, 1
    %p43 = por %p41, %p42
    %p44 = scmp.ne.s32.totalorder %s36, %s39
    %p45 = scmp.eq.s32.totalorder %s26, 0
    %p46 = por %p44, %p45
    %p47 = scmp.ne.s32.totalorder %s36, %s39
    %p48 = scmp.eq.s32.totalorder %s31, 1
    %p49 = por %p47, %p48
    %p50 = scmp.ne.s32.totalorder %s39, %s40
    %p51 = scmp.eq.s32.totalorder %s31, 0
    %p52 = por %p50, %p51
    %p53 = scmp.ne.s32.totalorder %s39, %s40
    %p54 = scmp.eq.s32.totalorder %s32, 1
    %p55 = por %p53, %p54
    %p57 = scmp.ne.s32.totalorder %s40, %s56
    %p58 = scmp.eq.s32.totalorder %s32, 0
    %p59 = por %p57, %p58
    %s61 = sadd.s32 %s60, 1
    %p64 = scmp.eq.s32.totalorder %s26, 1
    %p65 = scmp.ne.s32.totalorder %s60, %s62
    %p66 = scmp.eq.s32.totalorder %s26, 0
    %p67 = por %p65, %p66
    %p68 = scmp.ne.s32.totalorder %s60, %s62
    %p69 = scmp.eq.s32.totalorder %s31, 1
    %p70 = por %p68, %p69
    %p71 = scmp.ne.s32.totalorder %s62, %s63
    %p72 = scmp.eq.s32.totalorder %s31, 0
    %p73 = por %p71, %p72
    %p74 = scmp.ne.s32.totalorder %s62, %s63
    %p75 = scmp.eq.s32.totalorder %s32, 1
    %p76 = por %p74, %p75
    %p78 = scmp.ne.s32.totalorder %s63, %s77
    %p79 = scmp.eq.s32.totalorder %s32, 0
    %p80 = por %p78, %p79
    %s82 = sadd.s32 %s81, 1
    %p85 = scmp.eq.s32.totalorder %s26, 1
    %p86 = scmp.ne.s32.totalorder %s81, %s83
    %p87 = scmp.eq.s32.totalorder %s26, 0
    %p88 = por %p86, %p87
    %p89 = scmp.ne.s32.totalorder %s81, %s83
    %p90 = scmp.eq.s32.totalorder %s31, 1
    %p91 = por %p89, %p90
    %p92 = scmp.ne.s32.totalorder %s83, %s84
    %p93 = scmp.eq.s32.totalorder %s31, 0
    %p94 = por %p92, %p93
    %p95 = scmp.ne.s32.totalorder %s83, %s84
    %p96 = scmp.eq.s32.totalorder %s32, 1
    %p97 = por %p95, %p96
    %p99 = scmp.ne.s32.totalorder %s84, %s98
    %p100 = scmp.eq.s32.totalorder %s32, 0
    %p101 = por %p99, %p100
    %s103 = sadd.s32 %s102, 1
    %p106 = scmp.eq.s32.totalorder %s26, 1
    %p107 = scmp.ne.s32.totalorder %s102, %s104
    %p108 = scmp.eq.s32.totalorder %s26, 0
    %p109 = por %p107, %p108
    %p110 = scmp.ne.s32.totalorder %s102, %s104
    %p111 = scmp.eq.s32.totalorder %s31, 1
    %p112 = por %p110, %p111
    %p113 = scmp.ne.s32.totalorder %s104, %s105
    %p114 = scmp.eq.s32.totalorder %s31, 0
    %p115 = por %p113, %p114
    %p116 = scmp.ne.s32.totalorder %s104, %s105
    %p117 = scmp.eq.s32.totalorder %s32, 1
    %p118 = por %p116, %p117
    %p120 = scmp.ne.s32.totalorder %s105, %s119
    %p121 = scmp.eq.s32.totalorder %s32, 0
    %p122 = por %p120, %p121
    %s124 = sadd.s32 %s123, 1
    %p127 = scmp.eq.s32.totalorder %s26, 1
    %p128 = scmp.ne.s32.totalorder %s123, %s125
    %p129 = scmp.eq.s32.totalorder %s26, 0
    %p130 = por %p128, %p129
    %p131 = scmp.ne.s32.totalorder %s123, %s125
    %p132 = scmp.eq.s32.totalorder %s31, 1
    %p133 = por %p131, %p132
    %p134 = scmp.ne.s32.totalorder %s125, %s126
    %p135 = scmp.eq.s32.totalorder %s31, 0
    %p136 = por %p134, %p135
    %p137 = scmp.ne.s32.totalorder %s125, %s126
    %p138 = scmp.eq.s32.totalorder %s32, 1
    %p139 = por %p137, %p138
    %p141 = scmp.ne.s32.totalorder %s126, %s140
    %p142 = scmp.eq.s32.totalorder %s32, 0
    %p143 = por %p141, %p142
    %s145 = sadd.s32 %s144, 1
    %p148 = scmp.eq.s32.totalorder %s26, 1
    %p149 = scmp.ne.s32.totalorder %s144, %s146
    %p150 = scmp.eq.s32.totalorder %s26, 0
    %p151 = por %p149, %p150
    %p152 = scmp.ne.s32.totalorder %s144, %s146
    %p153 = scmp.eq.s32.totalorder %s31, 1
    %p154 = por %p152, %p153
    %p155 = scmp.ne.s32.totalorder %s146, %s147
    %p156 = scmp.eq.s32.totalorder %s31, 0
    %p157 = por %p155, %p156
    %p158 = scmp.ne.s32.totalorder %s146, %s147
    %p159 = scmp.eq.s32.totalorder %s32, 1
    %p160 = por %p158, %p159
    %p162 = scmp.ne.s32.totalorder %s147, %s161
    %p163 = scmp.eq.s32.totalorder %s32, 0
    %p164 = por %p162, %p163
    %s166 = sadd.s32 %s165, 1
    %p169 = scmp.eq.s32.totalorder %s26, 1
    %p170 = scmp.ne.s32.totalorder %s165, %s167
    %p171 = scmp.eq.s32.totalorder %s26, 0
    %p172 = por %p170, %p171
    %p173 = scmp.ne.s32.totalorder %s165, %s167
    %p174 = scmp.eq.s32.totalorder %s31, 1
    %p175 = por %p173, %p174
    %p176 = scmp.ne.s32.totalorder %s167, %s168
    %p177 = scmp.eq.s32.totalorder %s31, 0
    %p178 = por %p176, %p177
    %p179 = scmp.ne.s32.totalorder %s167, %s168
    %p180 = scmp.eq.s32.totalorder %s32, 1
    %p181 = por %p179, %p180
    %p183 = scmp.ne.s32.totalorder %s168, %s182
    %p184 = scmp.eq.s32.totalorder %s32, 0
    %p185 = por %p183, %p184
    %s187 = sadd.s32 %s186, 1
    %p190 = scmp.eq.s32.totalorder %s26, 1
    %p191 = scmp.ne.s32.totalorder %s186, %s188
    %p192 = scmp.eq.s32.totalorder %s26, 0
    %p193 = por %p191, %p192
    %p194 = scmp.ne.s32.totalorder %s186, %s188
    %p195 = scmp.eq.s32.totalorder %s31, 1
    %p196 = por %p194, %p195
    %p197 = scmp.ne.s32.totalorder %s188, %s189
    %p198 = scmp.eq.s32.totalorder %s31, 0
    %p199 = por %p197, %p198
    %p200 = scmp.ne.s32.totalorder %s188, %s189
    %p201 = scmp.eq.s32.totalorder %s32, 1
    %p202 = por %p200, %p201
    %p204 = scmp.ne.s32.totalorder %s189, %s203
    %p205 = scmp.eq.s32.totalorder %s32, 0
    %p206 = por %p204, %p205
    %s208 = sadd.s32 %s207, 1
    %p211 = scmp.eq.s32.totalorder %s26, 1
    %p212 = scmp.ne.s32.totalorder %s207, %s209
    %p213 = scmp.eq.s32.totalorder %s26, 0
    %p214 = por %p212, %p213
    %p215 = scmp.ne.s32.totalorder %s207, %s209
    %p216 = scmp.eq.s32.totalorder %s31, 1
    %p217 = por %p215, %p216
    %p218 = scmp.ne.s32.totalorder %s209, %s210
    %p219 = scmp.eq.s32.totalorder %s31, 0
    %p220 = por %p218, %p219
    %p221 = scmp.ne.s32.totalorder %s209, %s210
    %p222 = scmp.eq.s32.totalorder %s32, 1
    %p223 = por %p221, %p222
    %p225 = scmp.ne.s32.totalorder %s210, %s224
    %p226 = scmp.eq.s32.totalorder %s32, 0
    %p227 = por %p225, %p226
    %s229 = sadd.s32 %s228, 1
    %p232 = scmp.eq.s32.totalorder %s26, 1
    %p233 = scmp.ne.s32.totalorder %s228, %s230
    %p234 = scmp.eq.s32.totalorder %s26, 0
    %p235 = por %p233, %p234
    %p236 = scmp.ne.s32.totalorder %s228, %s230
    %p237 = scmp.eq.s32.totalorder %s31, 1
    %p238 = por %p236, %p237
    %p239 = scmp.ne.s32.totalorder %s230, %s231
    %p240 = scmp.eq.s32.totalorder %s31, 0
    %p241 = por %p239, %p240
    %p242 = scmp.ne.s32.totalorder %s230, %s231
    %p243 = scmp.eq.s32.totalorder %s32, 1
    %p244 = por %p242, %p243
    %p246 = scmp.ne.s32.totalorder %s231, %s245
    %p247 = scmp.eq.s32.totalorder %s32, 0
    %p248 = por %p246, %p247
    %s250 = sadd.s32 %s249, 1
    %p253 = scmp.eq.s32.totalorder %s26, 1
    %p254 = scmp.ne.s32.totalorder %s249, %s251
    %p255 = scmp.eq.s32.totalorder %s26, 0
    %p256 = por %p254, %p255
    %p257 = scmp.ne.s32.totalorder %s249, %s251
    %p258 = scmp.eq.s32.totalorder %s31, 1
    %p259 = por %p257, %p258
    %p260 = scmp.ne.s32.totalorder %s251, %s252
    %p261 = scmp.eq.s32.totalorder %s31, 0
    %p262 = por %p260, %p261
    %p263 = scmp.ne.s32.totalorder %s251, %s252
    %p264 = scmp.eq.s32.totalorder %s32, 1
    %p265 = por %p263, %p264
    %p267 = scmp.ne.s32.totalorder %s252, %s266
    %p268 = scmp.eq.s32.totalorder %s32, 0
    %p269 = por %p267, %p268
    %s271 = sadd.s32 %s270, 1
    %p274 = scmp.eq.s32.totalorder %s26, 1
    %p275 = scmp.ne.s32.totalorder %s270, %s272
    %p276 = scmp.eq.s32.totalorder %s26, 0
    %p277 = por %p275, %p276
    %p278 = scmp.ne.s32.totalorder %s270, %s272
    %p279 = scmp.eq.s32.totalorder %s31, 1
    %p280 = por %p278, %p279
    %p281 = scmp.ne.s32.totalorder %s272, %s273
    %p282 = scmp.eq.s32.totalorder %s31, 0
    %p283 = por %p281, %p282
    %p284 = scmp.ne.s32.totalorder %s272, %s273
    %p285 = scmp.eq.s32.totalorder %s32, 1
    %p286 = por %p284, %p285
    %p288 = scmp.ne.s32.totalorder %s273, %s287
    %p289 = scmp.eq.s32.totalorder %s32, 0
    %p290 = por %p288, %p289
    %s292 = sadd.s32 %s291, 1
    %p295 = scmp.eq.s32.totalorder %s26, 1
    %p296 = scmp.ne.s32.totalorder %s291, %s293
    %p297 = scmp.eq.s32.totalorder %s26, 0
    %p298 = por %p296, %p297
    %p299 = scmp.ne.s32.totalorder %s291, %s293
    %p300 = scmp.eq.s32.totalorder %s31, 1
    %p301 = por %p299, %p300
    %p302 = scmp.ne.s32.totalorder %s293, %s294
    %p303 = scmp.eq.s32.totalorder %s31, 0
    %p304 = por %p302, %p303
    %p305 = scmp.ne.s32.totalorder %s293, %s294
    %p306 = scmp.eq.s32.totalorder %s32, 1
    %p307 = por %p305, %p306
    %p309 = scmp.ne.s32.totalorder %s294, %s308
    %p310 = scmp.eq.s32.totalorder %s32, 0
    %p311 = por %p309, %p310
    %s313 = sadd.s32 %s312, 1
    %p316 = scmp.eq.s32.totalorder %s26, 1
    %p317 = scmp.ne.s32.totalorder %s312, %s314
    %p318 = scmp.eq.s32.totalorder %s26, 0
    %p319 = por %p317, %p318
    %p320 = scmp.ne.s32.totalorder %s312, %s314
    %p321 = scmp.eq.s32.totalorder %s31, 1
    %p322 = por %p320, %p321
    %p323 = scmp.ne.s32.totalorder %s314, %s315
    %p324 = scmp.eq.s32.totalorder %s31, 0
    %p325 = por %p323, %p324
    %p326 = scmp.ne.s32.totalorder %s314, %s315
    %p327 = scmp.eq.s32.totalorder %s32, 1
    %p328 = por %p326, %p327
    %p330 = scmp.ne.s32.totalorder %s315, %s329
    %p331 = scmp.eq.s32.totalorder %s32, 0
    %p332 = por %p330, %p331
    %s334 = sadd.s32 %s333, 1
    %p337 = scmp.eq.s32.totalorder %s26, 1
    %p338 = scmp.ne.s32.totalorder %s333, %s335
    %p339 = scmp.eq.s32.totalorder %s26, 0
    %p340 = por %p338, %p339
    %p341 = scmp.ne.s32.totalorder %s333, %s335
    %p342 = scmp.eq.s32.totalorder %s31, 1
    %p343 = por %p341, %p342
    %p344 = scmp.ne.s32.totalorder %s335, %s336
    %p345 = scmp.eq.s32.totalorder %s31, 0
    %p346 = por %p344, %p345
    %p347 = scmp.ne.s32.totalorder %s335, %s336
    %p348 = scmp.eq.s32.totalorder %s32, 1
    %p349 = por %p347, %p348
    %p351 = scmp.ne.s32.totalorder %s336, %s350
    %p352 = scmp.eq.s32.totalorder %s32, 0
    %p353 = por %p351, %p352
    %s355 = sadd.s32 %s354, 1
    %p358 = scmp.eq.s32.totalorder %s26, 1
    %p359 = scmp.ne.s32.totalorder %s354, %s356
    %p360 = scmp.eq.s32.totalorder %s26, 0
    %p361 = por %p359, %p360
    %p362 = scmp.ne.s32.totalorder %s354, %s356
    %p363 = scmp.eq.s32.totalorder %s31, 1
    %p364 = por %p362, %p363
    %p365 = scmp.ne.s32.totalorder %s356, %s357
    %p366 = scmp.eq.s32.totalorder %s31, 0
    %p367 = por %p365, %p366
    %p368 = scmp.ne.s32.totalorder %s356, %s357
    %p369 = scmp.eq.s32.totalorder %s32, 1
    %p370 = por %p368, %p369
    %p372 = scmp.ne.s32.totalorder %s357, %s371
    %p373 = scmp.eq.s32.totalorder %s32, 0
    %p374 = por %p372, %p373
    %s376 = sadd.s32 %s375, 1
    %p379 = scmp.eq.s32.totalorder %s26, 1
    %p380 = scmp.ne.s32.totalorder %s375, %s377
    %p381 = scmp.eq.s32.totalorder %s26, 0
    %p382 = por %p380, %p381
    %p383 = scmp.ne.s32.totalorder %s375, %s377
    %p384 = scmp.eq.s32.totalorder %s31, 1
    %p385 = por %p383, %p384
    %p386 = scmp.ne.s32.totalorder %s377, %s378
    %p387 = scmp.eq.s32.totalorder %s31, 0
    %p388 = por %p386, %p387
    %p389 = scmp.ne.s32.totalorder %s377, %s378
    %p390 = scmp.eq.s32.totalorder %s32, 1
    %p391 = por %p389, %p390
    %p393 = scmp.ne.s32.totalorder %s378, %s392
    %p394 = scmp.eq.s32.totalorder %s32, 0
    %p395 = por %p393, %p394
    %s397 = sadd.s32 %s396, 1
    %p400 = scmp.eq.s32.totalorder %s26, 1
    %p401 = scmp.ne.s32.totalorder %s396, %s398
    %p402 = scmp.eq.s32.totalorder %s26, 0
    %p403 = por %p401, %p402
    %p404 = scmp.ne.s32.totalorder %s396, %s398
    %p405 = scmp.eq.s32.totalorder %s31, 1
    %p406 = por %p404, %p405
    %p407 = scmp.ne.s32.totalorder %s398, %s399
    %p408 = scmp.eq.s32.totalorder %s31, 0
    %p409 = por %p407, %p408
    %p410 = scmp.ne.s32.totalorder %s398, %s399
    %p411 = scmp.eq.s32.totalorder %s32, 1
    %p412 = por %p410, %p411
    %p414 = scmp.ne.s32.totalorder %s399, %s413
    %p415 = scmp.eq.s32.totalorder %s32, 0
    %p416 = por %p414, %p415
    %s417 = ssub.s32 %s26, %s33
    %p418 = scmp.eq.s32.totalorder %s417, 0
    %s420 = sadd.s32 %s419, 1
    %s421 = scalar_select %p418, %s419, %s420
    %p424 = pneg %p418
    %p425 = scmp.eq.s32.totalorder %s26, 1
    %p426 = por %p424, %p425
    %p427 = scmp.ne.s32.totalorder %s419, %s422
    %p428 = scmp.eq.s32.totalorder %s26, 0
    %p429 = por %p427, %p428
    %p430 = scmp.ne.s32.totalorder %s419, %s422
    %p431 = scmp.eq.s32.totalorder %s31, 1
    %p432 = por %p430, %p431
    %p433 = scmp.ne.s32.totalorder %s422, %s423
    %p434 = scmp.eq.s32.totalorder %s31, 0
    %p435 = por %p433, %p434
    %p436 = scmp.ne.s32.totalorder %s422, %s423
    %p437 = scmp.eq.s32.totalorder %s32, 1
    %p438 = por %p436, %p437
    %p440 = scmp.ne.s32.totalorder %s423, %s439
    %p441 = scmp.eq.s32.totalorder %s32, 0
    %p442 = por %p440, %p441
    %p443 = scmp.le.s32.totalorder 1, %s26
    %p444 = scmp.lt.s32.totalorder %s26, 3
    %p445 = pnand %p443, %p444
    %p446 = pneg %p445
    // Predicated region
    $region9: #{tpu_custom_call.1} parent=5 // pred_check
      _
    $region10: #{tpu_custom_call.1} parent=5 // pred_check_branch
      %448 = sbr.rel (%p445) target = $region12
    $region11: #{tpu_custom_call.1} parent=5 // pred_region
      %s449 = ssub.s32 %s26, 1
      // Predicated region
      $region13: #{tpu_custom_call.1} parent=11 // pred_check
        %p450 = pneg %p73
      $region14: #{tpu_custom_call.1} parent=11 // pred_check_branch
        %452 = sbr.rel (%p450) target = $region16
      $region15: #{tpu_custom_call.1} parent=11 // pred_region
        _
      $region16: #{tpu_custom_call.1} parent=11 // pred_fallthru
        _
      // Predicated region
      $region17: #{tpu_custom_call.1} parent=11 // pred_check
        %p453 = pneg %p94
      $region18: #{tpu_custom_call.1} parent=11 // pred_check_branch
        %455 = sbr.rel (%p453) target = $region20
      $region19: #{tpu_custom_call.1} parent=11 // pred_region
        _
      $region20: #{tpu_custom_call.1} parent=11 // pred_fallthru
        _
      // Predicated region
      $region21: #{tpu_custom_call.1} parent=11 // pred_check
        %p456 = pneg %p115
      $region22: #{tpu_custom_call.1} parent=11 // pred_check_branch
        %458 = sbr.rel (%p456) target = $region24
      $region23: #{tpu_custom_call.1} parent=11 // pred_region
        _
      $region24: #{tpu_custom_call.1} parent=11 // pred_fallthru
        _
      // Predicated region
      $region25: #{tpu_custom_call.1} parent=11 // pred_check
        %p459 = pneg %p136
      $region26: #{tpu_custom_call.1} parent=11 // pred_check_branch
        %461 = sbr.rel (%p459) target = $region28
      $region27: #{tpu_custom_call.1} parent=11 // pred_region
        _
      $region28: #{tpu_custom_call.1} parent=11 // pred_fallthru
        _
      // Predicated region
      $region29: #{tpu_custom_call.1} parent=11 // pred_check
        %p462 = pneg %p157
      $region30: #{tpu_custom_call.1} parent=11 // pred_check_branch
        %464 = sbr.rel (%p462) target = $region32
      $region31: #{tpu_custom_call.1} parent=11 // pred_region
        _
      $region32: #{tpu_custom_call.1} parent=11 // pred_fallthru
        _
      // Predicated region
      $region33: #{tpu_custom_call.1} parent=11 // pred_check
        %p465 = pneg %p178
      $region34: #{tpu_custom_call.1} parent=11 // pred_check_branch
        %467 = sbr.rel (%p465) target = $region36
      $region35: #{tpu_custom_call.1} parent=11 // pred_region
        _
      $region36: #{tpu_custom_call.1} parent=11 // pred_fallthru
        _
      // Predicated region
      $region37: #{tpu_custom_call.1} parent=11 // pred_check
        %p468 = pneg %p199
      $region38: #{tpu_custom_call.1} parent=11 // pred_check_branch
        %470 = sbr.rel (%p468) target = $region40
      $region39: #{tpu_custom_call.1} parent=11 // pred_region
        _
      $region40: #{tpu_custom_call.1} parent=11 // pred_fallthru
        _
      // Predicated region
      $region41: #{tpu_custom_call.1} parent=11 // pred_check
        %p471 = pneg %p220
      $region42: #{tpu_custom_call.1} parent=11 // pred_check_branch
        %473 = sbr.rel (%p471) target = $region44
      $region43: #{tpu_custom_call.1} parent=11 // pred_region
        _
      $region44: #{tpu_custom_call.1} parent=11 // pred_fallthru
        _
      // Predicated region
      $region45: #{tpu_custom_call.1} parent=11 // pred_check
        %p474 = pneg %p241
      $region46: #{tpu_custom_call.1} parent=11 // pred_check_branch
        %476 = sbr.rel (%p474) target = $region48
      $region47: #{tpu_custom_call.1} parent=11 // pred_region
        _
      $region48: #{tpu_custom_call.1} parent=11 // pred_fallthru
        _
      // Predicated region
      $region49: #{tpu_custom_call.1} parent=11 // pred_check
        %p477 = pneg %p262
      $region50: #{tpu_custom_call.1} parent=11 // pred_check_branch
        %479 = sbr.rel (%p477) target = $region52
      $region51: #{tpu_custom_call.1} parent=11 // pred_region
        _
      $region52: #{tpu_custom_call.1} parent=11 // pred_fallthru
        _
      // Predicated region
      $region53: #{tpu_custom_call.1} parent=11 // pred_check
        %p480 = pneg %p283
      $region54: #{tpu_custom_call.1} parent=11 // pred_check_branch
        %482 = sbr.rel (%p480) target = $region56
      $region55: #{tpu_custom_call.1} parent=11 // pred_region
        _
      $region56: #{tpu_custom_call.1} parent=11 // pred_fallthru
        _
      // Predicated region
      $region57: #{tpu_custom_call.1} parent=11 // pred_check
        %p483 = pneg %p304
      $region58: #{tpu_custom_call.1} parent=11 // pred_check_branch
        %485 = sbr.rel (%p483) target = $region60
      $region59: #{tpu_custom_call.1} parent=11 // pred_region
        _
      $region60: #{tpu_custom_call.1} parent=11 // pred_fallthru
        _
      // Predicated region
      $region61: #{tpu_custom_call.1} parent=11 // pred_check
        %p486 = pneg %p325
      $region62: #{tpu_custom_call.1} parent=11 // pred_check_branch
        %488 = sbr.rel (%p486) target = $region64
      $region63: #{tpu_custom_call.1} parent=11 // pred_region
        _
      $region64: #{tpu_custom_call.1} parent=11 // pred_fallthru
        _
      // Predicated region
      $region65: #{tpu_custom_call.1} parent=11 // pred_check
        %p489 = pneg %p346
      $region66: #{tpu_custom_call.1} parent=11 // pred_check_branch
        %491 = sbr.rel (%p489) target = $region68
      $region67: #{tpu_custom_call.1} parent=11 // pred_region
        _
      $region68: #{tpu_custom_call.1} parent=11 // pred_fallthru
        _
      // Predicated region
      $region69: #{tpu_custom_call.1} parent=11 // pred_check
        %p492 = pneg %p367
      $region70: #{tpu_custom_call.1} parent=11 // pred_check_branch
        %494 = sbr.rel (%p492) target = $region72
      $region71: #{tpu_custom_call.1} parent=11 // pred_region
        _
      $region72: #{tpu_custom_call.1} parent=11 // pred_fallthru
        _
      // Predicated region
      $region73: #{tpu_custom_call.1} parent=11 // pred_check
        %p495 = pneg %p388
      $region74: #{tpu_custom_call.1} parent=11 // pred_check_branch
        %497 = sbr.rel (%p495) target = $region76
      $region75: #{tpu_custom_call.1} parent=11 // pred_region
        _
      $region76: #{tpu_custom_call.1} parent=11 // pred_fallthru
        _
      // Predicated region
      $region77: #{tpu_custom_call.1} parent=11 // pred_check
        %p498 = pneg %p409
      $region78: #{tpu_custom_call.1} parent=11 // pred_check_branch
        %500 = sbr.rel (%p498) target = $region80
      $region79: #{tpu_custom_call.1} parent=11 // pred_region
        _
      $region80: #{tpu_custom_call.1} parent=11 // pred_fallthru
        _
    $region12: #{tpu_custom_call.1} parent=5 // pred_fallthru
      _
    %p501 = scmp.lt.s32.totalorder %s26, 2
    // Predicated region
    $region81: #{tpu_custom_call.1} parent=5 // pred_check
      %p502 = pneg %p501
    $region82: #{tpu_custom_call.1} parent=5 // pred_check_branch
      %504 = sbr.rel (%p502) target = $region84
    $region83: #{tpu_custom_call.1} parent=5 // pred_region
      // Predicated region
      $region85: #{tpu_custom_call.1} parent=83 // pred_check
        %p505 = pneg %p46
      $region86: #{tpu_custom_call.1} parent=83 // pred_check_branch
        %507 = sbr.rel (%p505) target = $region88
      $region87: #{tpu_custom_call.1} parent=83 // pred_region
        %s508 = smul.u32 16, %s26
        %p509 = scmp.lt.s32.totalorder %s508, 31
        %s510 = scalar_select %p509, %s508, 31
        %s511 = smul.addr %s510, 8
        %s512 = scalar_lea.vmem %s0, %s511
        %s513 = smul.u32 16, %s26
      $region88: #{tpu_custom_call.1} parent=83 // pred_fallthru
        _
    $region84: #{tpu_custom_call.1} parent=5 // pred_fallthru
      _
    %p514 = scmp.le.s32.totalorder 1, %s26
    %p515 = scmp.lt.s32.totalorder %s26, 3
    %p516 = pnand %p514, %p515
    %p517 = pneg %p516
    // Predicated region
    $region89: #{tpu_custom_call.1} parent=5 // pred_check
      _
    $region90: #{tpu_custom_call.1} parent=5 // pred_check_branch
      %519 = sbr.rel (%p516) target = $region92
    $region91: #{tpu_custom_call.1} parent=5 // pred_region
      %s520 = ssub.s32 %s26, 1
      %s521 = smul.u32 16, %s31
      %p522 = scmp.lt.s32.totalorder %s521, 31
      %s523 = scalar_select %p522, %s521, 31
      %s524 = smul.addr %s523, 8
      %s525 = scalar_lea.vmem %s0, %s524
      %p526 = pneg %p52
      %p527 = pneg %p49
      %p528 = pneg %p73
      %p529 = pneg %p70
      %p530 = pneg %p94
      %p531 = pneg %p91
      %p532 = pneg %p115
      %p533 = pneg %p112
      %p534 = pneg %p136
      %p535 = pneg %p133
      %p536 = pneg %p157
      %p537 = pneg %p154
      %p538 = pneg %p178
      %p539 = pneg %p175
      %p540 = pneg %p199
      %p541 = pneg %p196
      %p542 = pneg %p220
      %p543 = pneg %p217
      %p544 = pneg %p241
      %p545 = pneg %p238
      %p546 = pneg %p262
      %p547 = pneg %p259
      %p548 = pneg %p283
      %p549 = pneg %p280
      %p550 = pneg %p304
      %p551 = pneg %p301
      %p552 = pneg %p325
      %p553 = pneg %p322
      %p554 = pneg %p346
      %p555 = pneg %p343
      %p556 = pneg %p367
      %p557 = pneg %p364
      %p558 = pneg %p388
      %p559 = pneg %p385
      %p560 = pneg %p409
      %p561 = pneg %p406
      %p562 = pneg %p435
      %p563 = pneg %p432
      %s564 = smul.u32 8, %s31
      %p565 = scmp.lt.s32.totalorder %s564, 15
      %s566 = scalar_select %p565, %s564, 15
      %s567 = smul.addr %s566, 8
      %s568 = scalar_lea.vmem %s18, %s567
      %s569 = smul.u32 16, %s31
      %p570 = scmp.lt.s32.totalorder %s569, 31
      %s571 = scalar_select %p570, %s569, 31
      %s572 = smul.addr %s571, 8
      %s573 = scalar_lea.vmem %s0, %s572
      %s574 = smul.u32 16, %s31
      %s575 = smul.u32 8, %s31
      %p576 = scmp.lt.s32.totalorder %s575, 15
      %s577 = scalar_select %p576, %s575, 15
      %s578 = smul.addr %s577, 8
      %s579 = scalar_lea.vmem %s18, %s578
      %s580 = smul.u32 8, %s31
      %v582 = vld [vmem:[%s573] sm:$0xff]
      %v583 = vld [vmem:[%s573 + $0x8] sm:$0xff]
      %v584 = vld [vmem:[%s573 + $0x10] sm:$0xff]
      %v585 = vld [vmem:[%s573 + $0x18] sm:$0xff]
      %v586 = vld [vmem:[%s573 + $0x20] sm:$0xff]
      %v587 = vld [vmem:[%s573 + $0x28] sm:$0xff]
      %v588 = vld [vmem:[%s573 + $0x30] sm:$0xff]
      %v589 = vld [vmem:[%s573 + $0x38] sm:$0xff]
      %v590 = vld [vmem:[%s573 + $0x40] sm:$0xff]
      %v591 = vld [vmem:[%s573 + $0x48] sm:$0xff]
      %v592 = vld [vmem:[%s573 + $0x50] sm:$0xff]
      %v593 = vld [vmem:[%s573 + $0x58] sm:$0xff]
      %v594 = vld [vmem:[%s573 + $0x60] sm:$0xff]
      %v595 = vld [vmem:[%s573 + $0x68] sm:$0xff]
      %v596 = vld [vmem:[%s573 + $0x70] sm:$0xff]
      %v597 = vld [vmem:[%s573 + $0x78] sm:$0xff]
      %v598 = vpack.c.bf16 %v583, %v582
      %v599 = vpack.c.bf16 %v585, %v584
      %v600 = vpack.c.bf16 %v587, %v586
      %v601 = vpack.c.bf16 %v589, %v588
      %v602 = vpack.c.bf16 %v591, %v590
      %v603 = vpack.c.bf16 %v593, %v592
      %v604 = vpack.c.bf16 %v595, %v594
      %v605 = vpack.c.bf16 %v597, %v596
      %v606 = vld [vmem:[%s1] sm:$0x7]
      %v607 = vld [vmem:[%s2] sm:$0xff]
      %v608 = vld [vmem:[%s2 + $0x8] sm:$0xff]
      %v609 = vld [vmem:[%s2 + $0x10] sm:$0xff]
      %v610 = vld [vmem:[%s2 + $0x18] sm:$0xff]
      %v611 = vld [vmem:[%s2 + $0x20] sm:$0xff]
      %v612 = vld [vmem:[%s2 + $0x28] sm:$0xff]
      %v613 = vld [vmem:[%s2 + $0x30] sm:$0xff]
      %v614 = vld [vmem:[%s2 + $0x38] sm:$0xff]
      %v615 = vld [vmem:[%s2 + $0x40] sm:$0xff]
      %v616 = vld [vmem:[%s2 + $0x48] sm:$0xff]
      %v617 = vld [vmem:[%s2 + $0x50] sm:$0xff]
      %v618 = vld [vmem:[%s2 + $0x58] sm:$0xff]
      %v619 = vld [vmem:[%s2 + $0x60] sm:$0xff]
      %v620 = vld [vmem:[%s2 + $0x68] sm:$0xff]
      %v621 = vld [vmem:[%s2 + $0x70] sm:$0xff]
      %v622 = vld [vmem:[%s2 + $0x78] sm:$0xff]
      %vm623 = vcmask 39936
      %v625 = vsel %vm623, %v598, 0
      %v628 = vsel %vm623, %v599, 0
      %v631 = vsel %vm623, %v600, 0
      %v634 = vsel %vm623, %v601, 0
      %v637 = vsel %vm623, %v602, 0
      %v640 = vsel %vm623, %v603, 0
      %v643 = vsel %vm623, %v604, 0
      %v646 = vsel %vm623, %v605, 0
      %vm648 = vcmask 1041408
      %vm649 = vcmask 1042432
      %v650 = vsel %vm648, 4294967295, 65535
      %v651 = vsel %vm649, %v650, 0
      %v653 = vand.u32 %v606, %v651
      %655 = vmatprep.subr.bf16.mxu0 0
      %656 = vmatpush1.bf16.msra.mxu0 %v653
      %657 = vmatprep.subr.bf16.mxu0 0
      %658 = vmatpush1.bf16.msra.mxu0 0
      %659 = vmatprep.subr.bf16.mxu0 0
      %660 = vmatpush1.bf16.msra.mxu0 0
      %661 = vmatprep.subr.bf16.mxu0 0
      %662 = vmatpush1.bf16.msra.mxu0 0
      %663 = vmatprep.subr.bf16.mxu0 0
      %664 = vmatpush1.bf16.msra.mxu0 0
      %665 = vmatprep.subr.bf16.mxu0 0
      %666 = vmatpush1.bf16.msra.mxu0 0
      %667 = vmatprep.subr.bf16.mxu0 0
      %668 = vmatpush1.bf16.msra.mxu0 0
      %669 = vmatprep.subr.bf16.mxu0 0
      %670 = vmatpush1.bf16.msra.mxu0 0
      %671 = vmatprep.subr.bf16.mxu0 0
      %672 = vmatpush1.bf16.msra.mxu0 0
      %673 = vmatprep.subr.bf16.mxu0 0
      %674 = vmatpush1.bf16.msra.mxu0 0
      %675 = vmatprep.subr.bf16.mxu0 0
      %676 = vmatpush1.bf16.msra.mxu0 0
      %677 = vmatprep.subr.bf16.mxu0 0
      %678 = vmatpush1.bf16.msra.mxu0 0
      %679 = vmatprep.subr.bf16.mxu0 0
      %680 = vmatpush1.bf16.msra.mxu0 0
      %681 = vmatprep.subr.bf16.mxu0 0
      %682 = vmatpush1.bf16.msra.mxu0 0
      %683 = vmatprep.subr.bf16.mxu0 0
      %684 = vmatpush1.bf16.msra.mxu0 0
      %685 = vmatprep.subr.bf16.mxu0 0
      %686 = vmatpush1.bf16.msra.mxu0 0
      %687 = vmatprep.mubr.bf16.mxu0 0
      %688 = vmatmul.mubr.bf16.gmra.mrb[0].mxu0 %v625
      %v689 = vpop.f32.mrb[0].mxu0
      %v690 = vadd.f32 %v607, %v689
      %v691 = vpop.f32.mrb[0].mxu0
      %v692 = vpop.f32.mrb[0].mxu0
      %v693 = vadd.f32 %v608, %v692
      %v694 = vpop.f32.mrb[0].mxu0
      %695 = vmatprep.mubr.bf16.mxu0 0
      %696 = vmatmul.mubr.bf16.gmra.mrb[0].mxu0 %v628
      %v697 = vpop.f32.mrb[0].mxu0
      %v698 = vadd.f32 %v609, %v697
      %v699 = vpop.f32.mrb[0].mxu0
      %v700 = vpop.f32.mrb[0].mxu0
      %v701 = vadd.f32 %v610, %v700
      %v702 = vpop.f32.mrb[0].mxu0
      %703 = vmatprep.mubr.bf16.mxu0 0
      %704 = vmatmul.mubr.bf16.gmra.mrb[0].mxu0 %v631
      %v705 = vpop.f32.mrb[0].mxu0
      %v706 = vadd.f32 %v611, %v705
      %v707 = vpop.f32.mrb[0].mxu0
      %v708 = vpop.f32.mrb[0].mxu0
      %v709 = vadd.f32 %v612, %v708
      %v710 = vpop.f32.mrb[0].mxu0
      %711 = vmatprep.mubr.bf16.mxu0 0
      %712 = vmatmul.mubr.bf16.gmra.mrb[0].mxu0 %v634
      %v713 = vpop.f32.mrb[0].mxu0
      %v714 = vadd.f32 %v613, %v713
      %v715 = vpop.f32.mrb[0].mxu0
      %v716 = vpop.f32.mrb[0].mxu0
      %v717 = vadd.f32 %v614, %v716
      %v718 = vpop.f32.mrb[0].mxu0
      %719 = vmatprep.mubr.bf16.mxu0 0
      %720 = vmatmul.mubr.bf16.gmra.mrb[0].mxu0 %v637
      %v721 = vpop.f32.mrb[0].mxu0
      %v722 = vadd.f32 %v615, %v721
      %v723 = vpop.f32.mrb[0].mxu0
      %v724 = vpop.f32.mrb[0].mxu0
      %v725 = vadd.f32 %v616, %v724
      %v726 = vpop.f32.mrb[0].mxu0
      %727 = vmatprep.mubr.bf16.mxu0 0
      %728 = vmatmul.mubr.bf16.gmra.mrb[0].mxu0 %v640
      %v729 = vpop.f32.mrb[0].mxu0
      %v730 = vadd.f32 %v617, %v729
      %v731 = vpop.f32.mrb[0].mxu0
      %v732 = vpop.f32.mrb[0].mxu0
      %v733 = vadd.f32 %v618, %v732
      %v734 = vpop.f32.mrb[0].mxu0
      %735 = vmatprep.mubr.bf16.mxu0 0
      %736 = vmatmul.mubr.bf16.gmra.mrb[0].mxu0 %v643
      %v737 = vpop.f32.mrb[0].mxu0
      %v738 = vadd.f32 %v619, %v737
      %v739 = vpop.f32.mrb[0].mxu0
      %v740 = vpop.f32.mrb[0].mxu0
      %v741 = vadd.f32 %v620, %v740
      %v742 = vpop.f32.mrb[0].mxu0
      %743 = vmatprep.mubr.bf16.mxu0 0
      %744 = vmatmul.mubr.bf16.gmra.mrb[0].mxu0 %v646
      %v745 = vpop.f32.mrb[0].mxu0
      %v746 = vadd.f32 %v621, %v745
      %v747 = vpop.f32.mrb[0].mxu0
      %v748 = vpop.f32.mrb[0].mxu0
      %v749 = vadd.f32 %v622, %v748
      %v750 = vpop.f32.mrb[0].mxu0
      %751 = vdwg.mxu0
      %v752 = vld [vmem:[%s3] sm:$0xff]
      %v753 = vld [vmem:[%s3 + $0x8] sm:$0xff]
      %v754 = vld [vmem:[%s3 + $0x10] sm:$0xff]
      %v755 = vld [vmem:[%s3 + $0x18] sm:$0xff]
      %v756 = vld [vmem:[%s3 + $0x20] sm:$0xff]
      %v757 = vld [vmem:[%s3 + $0x28] sm:$0xff]
      %v758 = vld [vmem:[%s3 + $0x30] sm:$0xff]
      %v759 = vld [vmem:[%s3 + $0x38] sm:$0xff]
      %v760 = vld [vmem:[%s3 + $0x40] sm:$0xff]
      %v761 = vld [vmem:[%s3 + $0x48] sm:$0xff]
      %v762 = vld [vmem:[%s3 + $0x50] sm:$0xff]
      %v763 = vld [vmem:[%s3 + $0x58] sm:$0xff]
      %v764 = vld [vmem:[%s3 + $0x60] sm:$0xff]
      %v765 = vld [vmem:[%s3 + $0x68] sm:$0xff]
      %v766 = vld [vmem:[%s3 + $0x70] sm:$0xff]
      %v767 = vld [vmem:[%s3 + $0x78] sm:$0xff]
      %v768 = vld [vmem:[%s4] sm:$0x1]
      %v769 = vld [vmem:[%s4 + $0x1] sm:$0x1]
      %v770 = vld [vmem:[%s4 + $0x2] sm:$0x1]
      %v771 = vld [vmem:[%s4 + $0x3] sm:$0x1]
      %v772 = vld [vmem:[%s5] sm:$0x1]
      %v773 = vld [vmem:[%s6] sm:$0x1]
      %vm774 = vcmask 261120
      %v775 = vsel %vm774, %v690, 0.0
      %776 = vadd.xlane.f32.xlu0 %v775
      %v777 = vpop.xlane.xlu0 %776
      %v778 = vsel %vm774, %v693, 0.0
      %779 = vadd.xlane.f32.xlu0 %v778
      %v780 = vpop.xlane.xlu0 %779
      %v781 = vsel %vm774, %v698, 0.0
      %782 = vadd.xlane.f32.xlu0 %v781
      %v783 = vpop.xlane.xlu0 %782
      %v784 = vsel %vm774, %v701, 0.0
      %785 = vadd.xlane.f32.xlu0 %v784
      %v786 = vpop.xlane.xlu0 %785
      %v787 = vsel %vm774, %v706, 0.0
      %788 = vadd.xlane.f32.xlu0 %v787
      %v789 = vpop.xlane.xlu0 %788
      %v790 = vsel %vm774, %v709, 0.0
      %791 = vadd.xlane.f32.xlu0 %v790
      %v792 = vpop.xlane.xlu0 %791
      %v793 = vsel %vm774, %v714, 0.0
      %794 = vadd.xlane.f32.xlu0 %v793
      %v795 = vpop.xlane.xlu0 %794
      %v796 = vsel %vm774, %v717, 0.0
      %797 = vadd.xlane.f32.xlu0 %v796
      %v798 = vpop.xlane.xlu0 %797
      %v799 = vsel %vm774, %v722, 0.0
      %800 = vadd.xlane.f32.xlu0 %v799
      %v801 = vpop.xlane.xlu0 %800
      %v802 = vsel %vm774, %v725, 0.0
      %803 = vadd.xlane.f32.xlu0 %v802
      %v804 = vpop.xlane.xlu0 %803
      %v805 = vsel %vm774, %v730, 0.0
      %806 = vadd.xlane.f32.xlu0 %v805
      %v807 = vpop.xlane.xlu0 %806
      %v808 = vsel %vm774, %v733, 0.0
      %809 = vadd.xlane.f32.xlu0 %v808
      %v810 = vpop.xlane.xlu0 %809
      %v811 = vsel %vm774, %v738, 0.0
      %812 = vadd.xlane.f32.xlu0 %v811
      %v813 = vpop.xlane.xlu0 %812
      %v814 = vsel %vm774, %v741, 0.0
      %815 = vadd.xlane.f32.xlu0 %v814
      %v816 = vpop.xlane.xlu0 %815
      %v817 = vsel %vm774, %v746, 0.0
      %818 = vadd.xlane.f32.xlu0 %v817
      %v819 = vpop.xlane.xlu0 %818
      %v820 = vsel %vm774, %v749, 0.0
      %821 = vadd.xlane.f32.xlu0 %v820
      %v822 = vpop.xlane.xlu0 %821
      %v823 = vrcp.pop 32.0
      %v824 = vmul.f32 %v777, %v823
      %v825 = vmul.f32 %v780, %v823
      %v826 = vmul.f32 %v783, %v823
      %v827 = vmul.f32 %v786, %v823
      %v828 = vmul.f32 %v789, %v823
      %v829 = vmul.f32 %v792, %v823
      %v830 = vmul.f32 %v795, %v823
      %v831 = vmul.f32 %v798, %v823
      %v832 = vmul.f32 %v801, %v823
      %v833 = vmul.f32 %v804, %v823
      %v834 = vmul.f32 %v807, %v823
      %v835 = vmul.f32 %v810, %v823
      %v836 = vmul.f32 %v813, %v823
      %v837 = vmul.f32 %v816, %v823
      %v838 = vmul.f32 %v819, %v823
      %v839 = vmul.f32 %v822, %v823
      %v840 = vsub.f32 %v690, %v824
      %v841 = vsub.f32 %v693, %v825
      %v842 = vsub.f32 %v698, %v826
      %v843 = vsub.f32 %v701, %v827
      %v844 = vsub.f32 %v706, %v828
      %v845 = vsub.f32 %v709, %v829
      %v846 = vsub.f32 %v714, %v830
      %v847 = vsub.f32 %v717, %v831
      %v848 = vsub.f32 %v722, %v832
      %v849 = vsub.f32 %v725, %v833
      %v850 = vsub.f32 %v730, %v834
      %v851 = vsub.f32 %v733, %v835
      %v852 = vsub.f32 %v738, %v836
      %v853 = vsub.f32 %v741, %v837
      %v854 = vsub.f32 %v746, %v838
      %v855 = vsub.f32 %v749, %v839
      %v856 = vmul.f32 %v840, %v840
      %v857 = vmul.f32 %v841, %v841
      %v858 = vmul.f32 %v842, %v842
      %v859 = vmul.f32 %v843, %v843
      %v860 = vmul.f32 %v844, %v844
      %v861 = vmul.f32 %v845, %v845
      %v862 = vmul.f32 %v846, %v846
      %v863 = vmul.f32 %v847, %v847
      %v864 = vmul.f32 %v848, %v848
      %v865 = vmul.f32 %v849, %v849
      %v866 = vmul.f32 %v850, %v850
      %v867 = vmul.f32 %v851, %v851
      %v868 = vmul.f32 %v852, %v852
      %v869 = vmul.f32 %v853, %v853
      %v870 = vmul.f32 %v854, %v854
      %v871 = vmul.f32 %v855, %v855
      %v872 = vsel %vm774, %v856, 0.0
      %873 = vadd.xlane.f32.xlu0 %v872
      %v874 = vpop.xlane.xlu0 %873
      %v875 = vsel %vm774, %v857, 0.0
      %876 = vadd.xlane.f32.xlu0 %v875
      %v877 = vpop.xlane.xlu0 %876
      %v878 = vsel %vm774, %v858, 0.0
      %879 = vadd.xlane.f32.xlu0 %v878
      %v880 = vpop.xlane.xlu0 %879
      %v881 = vsel %vm774, %v859, 0.0
      %882 = vadd.xlane.f32.xlu0 %v881
      %v883 = vpop.xlane.xlu0 %882
      %v884 = vsel %vm774, %v860, 0.0
      %885 = vadd.xlane.f32.xlu0 %v884
      %v886 = vpop.xlane.xlu0 %885
      %v887 = vsel %vm774, %v861, 0.0
      %888 = vadd.xlane.f32.xlu0 %v887
      %v889 = vpop.xlane.xlu0 %888
      %v890 = vsel %vm774, %v862, 0.0
      %891 = vadd.xlane.f32.xlu0 %v890
      %v892 = vpop.xlane.xlu0 %891
      %v893 = vsel %vm774, %v863, 0.0
      %894 = vadd.xlane.f32.xlu0 %v893
      %v895 = vpop.xlane.xlu0 %894
      %v896 = vsel %vm774, %v864, 0.0
      %897 = vadd.xlane.f32.xlu0 %v896
      %v898 = vpop.xlane.xlu0 %897
      %v899 = vsel %vm774, %v865, 0.0
      %900 = vadd.xlane.f32.xlu0 %v899
      %v901 = vpop.xlane.xlu0 %900
      %v902 = vsel %vm774, %v866, 0.0
      %903 = vadd.xlane.f32.xlu0 %v902
      %v904 = vpop.xlane.xlu0 %903
      %v905 = vsel %vm774, %v867, 0.0
      %906 = vadd.xlane.f32.xlu0 %v905
      %v907 = vpop.xlane.xlu0 %906
      %v908 = vsel %vm774, %v868, 0.0
      %909 = vadd.xlane.f32.xlu0 %v908
      %v910 = vpop.xlane.xlu0 %909
      %v911 = vsel %vm774, %v869, 0.0
      %912 = vadd.xlane.f32.xlu0 %v911
      %v913 = vpop.xlane.xlu0 %912
      %v914 = vsel %vm774, %v870, 0.0
      %915 = vadd.xlane.f32.xlu0 %v914
      %v916 = vpop.xlane.xlu0 %915
      %v917 = vsel %vm774, %v871, 0.0
      %918 = vadd.xlane.f32.xlu0 %v917
      %v919 = vpop.xlane.xlu0 %918
      %v920 = vmul.f32 %v874, %v823
      %v921 = vmul.f32 %v877, %v823
      %v922 = vmul.f32 %v880, %v823
      %v923 = vmul.f32 %v883, %v823
      %v924 = vmul.f32 %v886, %v823
      %v925 = vmul.f32 %v889, %v823
      %v926 = vmul.f32 %v892, %v823
      %v927 = vmul.f32 %v895, %v823
      %v928 = vmul.f32 %v898, %v823
      %v929 = vmul.f32 %v901, %v823
      %v930 = vmul.f32 %v904, %v823
      %v931 = vmul.f32 %v907, %v823
      %v932 = vmul.f32 %v910, %v823
      %v933 = vmul.f32 %v913, %v823
      %v934 = vmul.f32 %v916, %v823
      %v935 = vmul.f32 %v919, %v823
      %v936 = vadd.f32 %v920, 1e-05
      %v937 = vadd.f32 %v921, 1e-05
      %v938 = vadd.f32 %v922, 1e-05
      %v939 = vadd.f32 %v923, 1e-05
      %v940 = vadd.f32 %v924, 1e-05
      %v941 = vadd.f32 %v925, 1e-05
      %v942 = vadd.f32 %v926, 1e-05
      %v943 = vadd.f32 %v927, 1e-05
      %v944 = vadd.f32 %v928, 1e-05
      %v945 = vadd.f32 %v929, 1e-05
      %v946 = vadd.f32 %v930, 1e-05
      %v947 = vadd.f32 %v931, 1e-05
      %v948 = vadd.f32 %v932, 1e-05
      %v949 = vadd.f32 %v933, 1e-05
      %v950 = vadd.f32 %v934, 1e-05
      %v951 = vadd.f32 %v935, 1e-05
      %v952 = vrsqrt.pop %v936
      %v953 = vrsqrt.pop %v937
      %v954 = vrsqrt.pop %v938
      %v955 = vrsqrt.pop %v939
      %v956 = vrsqrt.pop %v940
      %v957 = vrsqrt.pop %v941
      %v958 = vrsqrt.pop %v942
      %v959 = vrsqrt.pop %v943
      %v960 = vrsqrt.pop %v944
      %v961 = vrsqrt.pop %v945
      %v962 = vrsqrt.pop %v946
      %v963 = vrsqrt.pop %v947
      %v964 = vrsqrt.pop %v948
      %v965 = vrsqrt.pop %v949
      %v966 = vrsqrt.pop %v950
      %v967 = vrsqrt.pop %v951
      %v968 = vmul.f32 %v840, %v952
      %v969 = vmul.f32 %v841, %v953
      %v970 = vmul.f32 %v842, %v954
      %v971 = vmul.f32 %v843, %v955
      %v972 = vmul.f32 %v844, %v956
      %v973 = vmul.f32 %v845, %v957
      %v974 = vmul.f32 %v846, %v958
      %v975 = vmul.f32 %v847, %v959
      %v976 = vmul.f32 %v848, %v960
      %v977 = vmul.f32 %v849, %v961
      %v978 = vmul.f32 %v850, %v962
      %v979 = vmul.f32 %v851, %v963
      %v980 = vmul.f32 %v852, %v964
      %v981 = vmul.f32 %v853, %v965
      %v982 = vmul.f32 %v854, %v966
      %v983 = vmul.f32 %v855, %v967
      %v985 = vlaneseq
      %v986 = vshrl.u32 %v985, 7
      %v987 = vsub.s32 0, %v986
      %v988 = vrot.slane %v772, %v987
      %v990 = vmul.f32 %v968, %v988
      %v991 = vmul.f32 %v969, %v988
      %v992 = vmul.f32 %v970, %v988
      %v993 = vmul.f32 %v971, %v988
      %v994 = vmul.f32 %v972, %v988
      %v995 = vmul.f32 %v973, %v988
      %v996 = vmul.f32 %v974, %v988
      %v997 = vmul.f32 %v975, %v988
      %v998 = vmul.f32 %v976, %v988
      %v999 = vmul.f32 %v977, %v988
      %v1000 = vmul.f32 %v978, %v988
      %v1001 = vmul.f32 %v979, %v988
      %v1002 = vmul.f32 %v980, %v988
      %v1003 = vmul.f32 %v981, %v988
      %v1004 = vmul.f32 %v982, %v988
      %v1005 = vmul.f32 %v983, %v988
      %v1007 = vlaneseq
      %v1008 = vshrl.u32 %v1007, 7
      %v1009 = vsub.s32 0, %v1008
      %v1010 = vrot.slane %v773, %v1009
      %v1012 = vadd.f32 %v990, %v1010
      %v1013 = vadd.f32 %v991, %v1010
      %v1014 = vadd.f32 %v992, %v1010
      %v1015 = vadd.f32 %v993, %v1010
      %v1016 = vadd.f32 %v994, %v1010
      %v1017 = vadd.f32 %v995, %v1010
      %v1018 = vadd.f32 %v996, %v1010
      %v1019 = vadd.f32 %v997, %v1010
      %v1020 = vadd.f32 %v998, %v1010
      %v1021 = vadd.f32 %v999, %v1010
      %v1022 = vadd.f32 %v1000, %v1010
      %v1023 = vadd.f32 %v1001, %v1010
      %v1024 = vadd.f32 %v1002, %v1010
      %v1025 = vadd.f32 %v1003, %v1010
      %v1026 = vadd.f32 %v1004, %v1010
      %v1027 = vadd.f32 %v1005, %v1010
      %v1028 = vpack.c.bf16 %v1013, %v1012
      %v1029 = vpack.c.bf16 %v1015, %v1014
      %v1030 = vpack.c.bf16 %v1017, %v1016
      %v1031 = vpack.c.bf16 %v1019, %v1018
      %v1032 = vpack.c.bf16 %v1021, %v1020
      %v1033 = vpack.c.bf16 %v1023, %v1022
      %v1034 = vpack.c.bf16 %v1025, %v1024
      %v1035 = vpack.c.bf16 %v1027, %v1026
      %v1036 = vld [vmem:[%s7] sm:$0xf]
      %v1037 = vld [vmem:[%s7 + $0x4] sm:$0xf]
      %v1038 = vld [vmem:[%s7 + $0x8] sm:$0xf]
      %v1039 = vld [vmem:[%s7 + $0xc] sm:$0xf]
      %v1040 = vld [vmem:[%s8] sm:$0x1]
      %v1042 = vlaneseq
      %v1043 = vshrl.u32 %v1042, 7
      %v1044 = vsub.s32 0, %v1043
      %v1045 = vrot.slane %v1040, %v1044
      %v1051 = vunpack.c.l.b16 %v1036
      %v1052 = vunpack.c.l.b16 %v1037
      %v1053 = vunpack.c.l.b16 %v1038
      %v1054 = vunpack.c.l.b16 %v1039
      %v1055 = vpack.c.b16 %v1052, %v1051
      %v1056 = vpack.c.b16 %v1054, %v1053
      %v1060 = vsel %vm774, %v1028, 0
      %v1063 = vsel %vm774, %v1029, 0
      %v1066 = vsel %vm774, %v1030, 0
      %v1069 = vsel %vm774, %v1031, 0
      %v1072 = vsel %vm774, %v1032, 0
      %v1075 = vsel %vm774, %v1033, 0
      %v1078 = vsel %vm774, %v1034, 0
      %v1081 = vsel %vm774, %v1035, 0
      %1083 = vmatprep.subr.bf16.mxu0 0
      %1084 = vmatpush1.bf16.msra.mxu0 %v1055
      %1085 = vmatprep.subr.bf16.mxu0 0
      %1086 = vmatpush1.bf16.msra.mxu0 %v1056
      %1087 = vmatprep.subr.bf16.mxu0 0
      %1088 = vmatpush1.bf16.msra.mxu0 0
      %1089 = vmatprep.subr.bf16.mxu0 0
      %1090 = vmatpush1.bf16.msra.mxu0 0
      %1091 = vmatprep.subr.bf16.mxu0 0
      %1092 = vmatpush1.bf16.msra.mxu0 0
      %1093 = vmatprep.subr.bf16.mxu0 0
      %1094 = vmatpush1.bf16.msra.mxu0 0
      %1095 = vmatprep.subr.bf16.mxu0 0
      %1096 = vmatpush1.bf16.msra.mxu0 0
      %1097 = vmatprep.subr.bf16.mxu0 0
      %1098 = vmatpush1.bf16.msra.mxu0 0
      %1099 = vmatprep.subr.bf16.mxu0 0
      %1100 = vmatpush1.bf16.msra.mxu0 0
      %1101 = vmatprep.subr.bf16.mxu0 0
      %1102 = vmatpush1.bf16.msra.mxu0 0
      %1103 = vmatprep.subr.bf16.mxu0 0
      %1104 = vmatpush1.bf16.msra.mxu0 0
      %1105 = vmatprep.subr.bf16.mxu0 0
      %1106 = vmatpush1.bf16.msra.mxu0 0
      %1107 = vmatprep.subr.bf16.mxu0 0
      %1108 = vmatpush1.bf16.msra.mxu0 0
      %1109 = vmatprep.subr.bf16.mxu0 0
      %1110 = vmatpush1.bf16.msra.mxu0 0
      %1111 = vmatprep.subr.bf16.mxu0 0
      %1112 = vmatpush1.bf16.msra.mxu0 0
      %1113 = vmatprep.subr.bf16.mxu0 0
      %1114 = vmatpush1.bf16.msra.mxu0 0
      %1115 = vmatprep.mubr.bf16.mxu0 0
      %1116 = vmatmul.mubr.bf16.gmra.mrb[0].mxu0 %v1060
      %v1117 = vpop.f32.mrb[0].mxu0
      %v1118 = vadd.f32 %v1045, %v1117
      %v1119 = vpop.f32.mrb[0].mxu0
      %v1120 = vpop.f32.mrb[0].mxu0
      %v1121 = vadd.f32 %v1045, %v1120
      %v1122 = vpop.f32.mrb[0].mxu0
      %1123 = vmatprep.mubr.bf16.mxu0 0
      %1124 = vmatmul.mubr.bf16.gmra.mrb[0].mxu0 %v1063
      %v1125 = vpop.f32.mrb[0].mxu0
      %v1126 = vadd.f32 %v1045, %v1125
      %v1127 = vpop.f32.mrb[0].mxu0
      %v1128 = vpop.f32.mrb[0].mxu0
      %v1129 = vadd.f32 %v1045, %v1128
      %v1130 = vpop.f32.mrb[0].mxu0
      %1131 = vmatprep.mubr.bf16.mxu0 0
      %1132 = vmatmul.mubr.bf16.gmra.mrb[0].mxu0 %v1066
      %v1133 = vpop.f32.mrb[0].mxu0
      %v1134 = vadd.f32 %v1045, %v1133
      %v1135 = vpop.f32.mrb[0].mxu0
      %v1136 = vpop.f32.mrb[0].mxu0
      %v1137 = vadd.f32 %v1045, %v1136
      %v1138 = vpop.f32.mrb[0].mxu0
      %1139 = vmatprep.mubr.bf16.mxu0 0
      %1140 = vmatmul.mubr.bf16.gmra.mrb[0].mxu0 %v1069
      %v1141 = vpop.f32.mrb[0].mxu0
      %v1142 = vadd.f32 %v1045, %v1141
      %v1143 = vpop.f32.mrb[0].mxu0
      %v1144 = vpop.f32.mrb[0].mxu0
      %v1145 = vadd.f32 %v1045, %v1144
      %v1146 = vpop.f32.mrb[0].mxu0
      %1147 = vmatprep.mubr.bf16.mxu0 0
      %1148 = vmatmul.mubr.bf16.gmra.mrb[0].mxu0 %v1072
      %v1149 = vpop.f32.mrb[0].mxu0
      %v1150 = vadd.f32 %v1045, %v1149
      %v1151 = vpop.f32.mrb[0].mxu0
      %v1152 = vpop.f32.mrb[0].mxu0
      %v1153 = vadd.f32 %v1045, %v1152
      %v1154 = vpop.f32.mrb[0].mxu0
      %1155 = vmatprep.mubr.bf16.mxu0 0
      %1156 = vmatmul.mubr.bf16.gmra.mrb[0].mxu0 %v1075
      %v1157 = vpop.f32.mrb[0].mxu0
      %v1158 = vadd.f32 %v1045, %v1157
      %v1159 = vpop.f32.mrb[0].mxu0
      %v1160 = vpop.f32.mrb[0].mxu0
      %v1161 = vadd.f32 %v1045, %v1160
      %v1162 = vpop.f32.mrb[0].mxu0
      %1163 = vmatprep.mubr.bf16.mxu0 0
      %1164 = vmatmul.mubr.bf16.gmra.mrb[0].mxu0 %v1078
      %v1165 = vpop.f32.mrb[0].mxu0
      %v1166 = vadd.f32 %v1045, %v1165
      %v1167 = vpop.f32.mrb[0].mxu0
      %v1168 = vpop.f32.mrb[0].mxu0
      %v1169 = vadd.f32 %v1045, %v1168
      %v1170 = vpop.f32.mrb[0].mxu0
      %1171 = vmatprep.mubr.bf16.mxu0 0
      %1172 = vmatmul.mubr.bf16.gmra.mrb[0].mxu0 %v1081
      %v1173 = vpop.f32.mrb[0].mxu0
      %v1174 = vadd.f32 %v1045, %v1173
      %v1175 = vpop.f32.mrb[0].mxu0
      %v1176 = vpop.f32.mrb[0].mxu0
      %v1177 = vadd.f32 %v1045, %v1176
      %v1178 = vpop.f32.mrb[0].mxu0
      %1179 = vdwg.mxu0
      %v1180 = vpack.c.bf16 %v1121, %v1118
      %v1181 = vpack.c.bf16 %v1129, %v1126
      %v1182 = vpack.c.bf16 %v1137, %v1134
      %v1183 = vpack.c.bf16 %v1145, %v1142
      %v1184 = vpack.c.bf16 %v1153, %v1150
      %v1185 = vpack.c.bf16 %v1161, %v1158
      %v1186 = vpack.c.bf16 %v1169, %v1166
      %v1187 = vpack.c.bf16 %v1177, %v1174
      %v1188 = vmul.f32 %v768, 0.35355338
      %v1190 = vlaneseq
      %v1191 = vshrl.u32 %v1190, 7
      %v1192 = vsub.s32 0, %v1191
      %v1193 = vrot.slane %v1188, %v1192
      %v1195 = vmul.f32 %v1118, %v1193
      %v1196 = vmul.f32 %v1121, %v1193
      %v1197 = vmul.f32 %v1126, %v1193
      %v1198 = vmul.f32 %v1129, %v1193
      %v1199 = vmul.f32 %v1134, %v1193
      %v1200 = vmul.f32 %v1137, %v1193
      %v1201 = vmul.f32 %v1142, %v1193
      %v1202 = vmul.f32 %v1145, %v1193
      %v1203 = vmul.f32 %v1150, %v1193
      %v1204 = vmul.f32 %v1153, %v1193
      %v1205 = vmul.f32 %v1158, %v1193
      %v1206 = vmul.f32 %v1161, %v1193
      %v1207 = vmul.f32 %v1166, %v1193
      %v1208 = vmul.f32 %v1169, %v1193
      %v1209 = vmul.f32 %v1174, %v1193
      %v1210 = vmul.f32 %v1177, %v1193
      %v1211 = vpack.c.bf16 %v1196, %v1195
      %v1212 = vpack.c.bf16 %v1198, %v1197
      %v1213 = vpack.c.bf16 %v1200, %v1199
      %v1214 = vpack.c.bf16 %v1202, %v1201
      %v1215 = vpack.c.bf16 %v1204, %v1203
      %v1216 = vpack.c.bf16 %v1206, %v1205
      %v1217 = vpack.c.bf16 %v1208, %v1207
      %v1218 = vpack.c.bf16 %v1210, %v1209
      %v1220 = vlaneseq
      %v1221 = vshrl.u32 %v1220, 7
      %v1222 = vsub.s32 0, %v1221
      %v1223 = vrot.slane %v768, %v1222
      %1224 = vrot.lane.b32.xlu0 %v1223, 64
      %v1225 = vpop.permute.xlu0 %1224
      %v1227 = vmul.f32 %v1118, %v1225
      %v1228 = vmul.f32 %v1121, %v1225
      %v1229 = vmul.f32 %v1126, %v1225
      %v1230 = vmul.f32 %v1129, %v1225
      %v1231 = vmul.f32 %v1134, %v1225
      %v1232 = vmul.f32 %v1137, %v1225
      %v1233 = vmul.f32 %v1142, %v1225
      %v1234 = vmul.f32 %v1145, %v1225
      %v1235 = vmul.f32 %v1150, %v1225
      %v1236 = vmul.f32 %v1153, %v1225
      %v1237 = vmul.f32 %v1158, %v1225
      %v1238 = vmul.f32 %v1161, %v1225
      %v1239 = vmul.f32 %v1166, %v1225
      %v1240 = vmul.f32 %v1169, %v1225
      %v1241 = vmul.f32 %v1174, %v1225
      %v1242 = vmul.f32 %v1177, %v1225
      %v1243 = vpack.c.bf16 %v1228, %v1227
      %v1244 = vpack.c.bf16 %v1230, %v1229
      %v1245 = vpack.c.bf16 %v1232, %v1231
      %v1246 = vpack.c.bf16 %v1234, %v1233
      %v1247 = vpack.c.bf16 %v1236, %v1235
      %v1248 = vpack.c.bf16 %v1238, %v1237
      %v1249 = vpack.c.bf16 %v1240, %v1239
      %v1250 = vpack.c.bf16 %v1242, %v1241
      %1259 = vrot.lane.b32.xlu0 %v1180, 96
      %v1260 = vpop.permute.xlu0 %1259
      %1261 = vrot.lane.b32.xlu0 %v1181, 96
      %v1262 = vpop.permute.xlu0 %1261
      %1263 = vrot.lane.b32.xlu0 %v1182, 96
      %v1264 = vpop.permute.xlu0 %1263
      %1265 = vrot.lane.b32.xlu0 %v1183, 96
      %v1266 = vpop.permute.xlu0 %1265
      %1267 = vrot.lane.b32.xlu0 %v1184, 96
      %v1268 = vpop.permute.xlu0 %1267
      %1269 = vrot.lane.b32.xlu0 %v1185, 96
      %v1270 = vpop.permute.xlu0 %1269
      %1271 = vrot.lane.b32.xlu0 %v1186, 96
      %v1272 = vpop.permute.xlu0 %1271
      %1273 = vrot.lane.b32.xlu0 %v1187, 96
      %v1274 = vpop.permute.xlu0 %1273
      %v1276 = vsel %vm774, %v1211, 0
      %v1279 = vsel %vm774, %v1212, 0
      %v1282 = vsel %vm774, %v1213, 0
      %v1285 = vsel %vm774, %v1214, 0
      %v1288 = vsel %vm774, %v1215, 0
      %v1291 = vsel %vm774, %v1216, 0
      %v1294 = vsel %vm774, %v1217, 0
      %v1297 = vsel %vm774, %v1218, 0
      %v1300 = vsel %vm774, %v1260, 0
      %v1303 = vsel %vm774, %v1262, 0
      %v1306 = vsel %vm774, %v1264, 0
      %v1309 = vsel %vm774, %v1266, 0
      %v1312 = vsel %vm774, %v1268, 0
      %v1315 = vsel %vm774, %v1270, 0
      %v1318 = vsel %vm774, %v1272, 0
      %v1321 = vsel %vm774, %v1274, 0
      %1323 = vmatprep.subr.bf16.mxu0 0
      %1324 = vmatpush1.bf16.xpose.msra.mxu0 %v1300
      %1325 = vmatprep.subr.bf16.mxu0 0
      %1326 = vmatpush1.bf16.xpose.msra.mxu0 %v1303
      %1327 = vmatprep.subr.bf16.mxu0 0
      %1328 = vmatpush1.bf16.xpose.msra.mxu0 %v1306
      %1329 = vmatprep.subr.bf16.mxu0 0
      %1330 = vmatpush1.bf16.xpose.msra.mxu0 %v1309
      %1331 = vmatprep.subr.bf16.mxu0 0
      %1332 = vmatpush1.bf16.xpose.msra.mxu0 %v1312
      %1333 = vmatprep.subr.bf16.mxu0 0
      %1334 = vmatpush1.bf16.xpose.msra.mxu0 %v1315
      %1335 = vmatprep.subr.bf16.mxu0 0
      %1336 = vmatpush1.bf16.xpose.msra.mxu0 %v1318
      %1337 = vmatprep.subr.bf16.mxu0 0
      %1338 = vmatpush1.bf16.xpose.msra.mxu0 %v1321
      %1339 = vmatprep.subr.bf16.mxu0 0
      %1340 = vmatpush1.bf16.xpose.msra.mxu0 0
      %1341 = vmatprep.subr.bf16.mxu0 0
      %1342 = vmatpush1.bf16.xpose.msra.mxu0 0
      %1343 = vmatprep.subr.bf16.mxu0 0
      %1344 = vmatpush1.bf16.xpose.msra.mxu0 0
      %1345 = vmatprep.subr.bf16.mxu0 0
      %1346 = vmatpush1.bf16.xpose.msra.mxu0 0
      %1347 = vmatprep.subr.bf16.mxu0 0
      %1348 = vmatpush1.bf16.xpose.msra.mxu0 0
      %1349 = vmatprep.subr.bf16.mxu0 0
      %1350 = vmatpush1.bf16.xpose.msra.mxu0 0
      %1351 = vmatprep.subr.bf16.mxu0 0
      %1352 = vmatpush1.bf16.xpose.msra.mxu0 0
      %1353 = vmatprep.subr.bf16.mxu0 0
      %1354 = vmatpush1.bf16.xpose.msra.mxu0 0
      %1355 = vmatprep.mubr.bf16.mxu0 0
      %1356 = vmatmul.mubr.bf16.gmra.mrb[0].mxu0 %v1276
      %v1357 = vpop.f32.mrb[0].mxu0
      %v1358 = vadd.f32 %v752, %v1357
      %v1359 = vpop.f32.mrb[0].mxu0
      %v1360 = vpop.f32.mrb[0].mxu0
      %v1361 = vadd.f32 %v753, %v1360
      %v1362 = vpop.f32.mrb[0].mxu0
      %1363 = vmatprep.mubr.bf16.mxu0 0
      %1364 = vmatmul.mubr.bf16.gmra.mrb[0].mxu0 %v1279
      %v1365 = vpop.f32.mrb[0].mxu0
      %v1366 = vadd.f32 %v754, %v1365
      %v1367 = vpop.f32.mrb[0].mxu0
      %v1368 = vpop.f32.mrb[0].mxu0
      %v1369 = vadd.f32 %v755, %v1368
      %v1370 = vpop.f32.mrb[0].mxu0
      %1371 = vmatprep.mubr.bf16.mxu0 0
      %1372 = vmatmul.mubr.bf16.gmra.mrb[0].mxu0 %v1282
      %v1373 = vpop.f32.mrb[0].mxu0
      %v1374 = vadd.f32 %v756, %v1373
      %v1375 = vpop.f32.mrb[0].mxu0
      %v1376 = vpop.f32.mrb[0].mxu0
      %v1377 = vadd.f32 %v757, %v1376
      %v1378 = vpop.f32.mrb[0].mxu0
      %1379 = vmatprep.mubr.bf16.mxu0 0
      %1380 = vmatmul.mubr.bf16.gmra.mrb[0].mxu0 %v1285
      %v1381 = vpop.f32.mrb[0].mxu0
      %v1382 = vadd.f32 %v758, %v1381
      %v1383 = vpop.f32.mrb[0].mxu0
      %v1384 = vpop.f32.mrb[0].mxu0
      %v1385 = vadd.f32 %v759, %v1384
      %v1386 = vpop.f32.mrb[0].mxu0
      %1387 = vmatprep.mubr.bf16.mxu0 0
      %1388 = vmatmul.mubr.bf16.gmra.mrb[0].mxu0 %v1288
      %v1389 = vpop.f32.mrb[0].mxu0
      %v1390 = vadd.f32 %v760, %v1389
      %v1391 = vpop.f32.mrb[0].mxu0
      %v1392 = vpop.f32.mrb[0].mxu0
      %v1393 = vadd.f32 %v761, %v1392
      %v1394 = vpop.f32.mrb[0].mxu0
      %1395 = vmatprep.mubr.bf16.mxu0 0
      %1396 = vmatmul.mubr.bf16.gmra.mrb[0].mxu0 %v1291
      %v1397 = vpop.f32.mrb[0].mxu0
      %v1398 = vadd.f32 %v762, %v1397
      %v1399 = vpop.f32.mrb[0].mxu0
      %v1400 = vpop.f32.mrb[0].mxu0
      %v1401 = vadd.f32 %v763, %v1400
      %v1402 = vpop.f32.mrb[0].mxu0
      %1403 = vmatprep.mubr.bf16.mxu0 0
      %1404 = vmatmul.mubr.bf16.gmra.mrb[0].mxu0 %v1294
      %v1405 = vpop.f32.mrb[0].mxu0
      %v1406 = vadd.f32 %v764, %v1405
      %v1407 = vpop.f32.mrb[0].mxu0
      %v1408 = vpop.f32.mrb[0].mxu0
      %v1409 = vadd.f32 %v765, %v1408
      %v1410 = vpop.f32.mrb[0].mxu0
      %1411 = vmatprep.mubr.bf16.mxu0 0
      %1412 = vmatmul.mubr.bf16.gmra.mrb[0].mxu0 %v1297
      %v1413 = vpop.f32.mrb[0].mxu0
      %v1414 = vadd.f32 %v766, %v1413
      %v1415 = vpop.f32.mrb[0].mxu0
      %v1416 = vpop.f32.mrb[0].mxu0
      %v1417 = vadd.f32 %v767, %v1416
      %v1418 = vpop.f32.mrb[0].mxu0
      %1419 = vdwg.mxu0
      %1420 = vmax.xlane.f32.xlu0 %v1358
      %v1421 = vpop.xlane.xlu0 %1420
      %1422 = vmax.xlane.f32.xlu0 %v1361
      %v1423 = vpop.xlane.xlu0 %1422
      %1424 = vmax.xlane.f32.xlu0 %v1366
      %v1425 = vpop.xlane.xlu0 %1424
      %1426 = vmax.xlane.f32.xlu0 %v1369
      %v1427 = vpop.xlane.xlu0 %1426
      %1428 = vmax.xlane.f32.xlu0 %v1374
      %v1429 = vpop.xlane.xlu0 %1428
      %1430 = vmax.xlane.f32.xlu0 %v1377
      %v1431 = vpop.xlane.xlu0 %1430
      %1432 = vmax.xlane.f32.xlu0 %v1382
      %v1433 = vpop.xlane.xlu0 %1432
      %1434 = vmax.xlane.f32.xlu0 %v1385
      %v1435 = vpop.xlane.xlu0 %1434
      %1436 = vmax.xlane.f32.xlu0 %v1390
      %v1437 = vpop.xlane.xlu0 %1436
      %1438 = vmax.xlane.f32.xlu0 %v1393
      %v1439 = vpop.xlane.xlu0 %1438
      %1440 = vmax.xlane.f32.xlu0 %v1398
      %v1441 = vpop.xlane.xlu0 %1440
      %1442 = vmax.xlane.f32.xlu0 %v1401
      %v1443 = vpop.xlane.xlu0 %1442
      %1444 = vmax.xlane.f32.xlu0 %v1406
      %v1445 = vpop.xlane.xlu0 %1444
      %1446 = vmax.xlane.f32.xlu0 %v1409
      %v1447 = vpop.xlane.xlu0 %1446
      %1448 = vmax.xlane.f32.xlu0 %v1414
      %v1449 = vpop.xlane.xlu0 %1448
      %1450 = vmax.xlane.f32.xlu0 %v1417
      %v1451 = vpop.xlane.xlu0 %1450
      %v1452 = vsub.f32 %v1358, %v1421
      %v1453 = vsub.f32 %v1361, %v1423
      %v1454 = vsub.f32 %v1366, %v1425
      %v1455 = vsub.f32 %v1369, %v1427
      %v1456 = vsub.f32 %v1374, %v1429
      %v1457 = vsub.f32 %v1377, %v1431
      %v1458 = vsub.f32 %v1382, %v1433
      %v1459 = vsub.f32 %v1385, %v1435
      %v1460 = vsub.f32 %v1390, %v1437
      %v1461 = vsub.f32 %v1393, %v1439
      %v1462 = vsub.f32 %v1398, %v1441
      %v1463 = vsub.f32 %v1401, %v1443
      %v1464 = vsub.f32 %v1406, %v1445
      %v1465 = vsub.f32 %v1409, %v1447
      %v1466 = vsub.f32 %v1414, %v1449
      %v1467 = vsub.f32 %v1417, %v1451
      %v1468 = vmul.f32 %v1452, 1.442695
      %v1469 = vpow.pop %v1468
      %v1470 = vmul.f32 %v1453, 1.442695
      %v1471 = vpow.pop %v1470
      %v1472 = vmul.f32 %v1454, 1.442695
      %v1473 = vpow.pop %v1472
      %v1474 = vmul.f32 %v1455, 1.442695
      %v1475 = vpow.pop %v1474
      %v1476 = vmul.f32 %v1456, 1.442695
      %v1477 = vpow.pop %v1476
      %v1478 = vmul.f32 %v1457, 1.442695
      %v1479 = vpow.pop %v1478
      %v1480 = vmul.f32 %v1458, 1.442695
      %v1481 = vpow.pop %v1480
      %v1482 = vmul.f32 %v1459, 1.442695
      %v1483 = vpow.pop %v1482
      %v1484 = vmul.f32 %v1460, 1.442695
      %v1485 = vpow.pop %v1484
      %v1486 = vmul.f32 %v1461, 1.442695
      %v1487 = vpow.pop %v1486
      %v1488 = vmul.f32 %v1462, 1.442695
      %v1489 = vpow.pop %v1488
      %v1490 = vmul.f32 %v1463, 1.442695
      %v1491 = vpow.pop %v1490
      %v1492 = vmul.f32 %v1464, 1.442695
      %v1493 = vpow.pop %v1492
      %v1494 = vmul.f32 %v1465, 1.442695
      %v1495 = vpow.pop %v1494
      %v1496 = vmul.f32 %v1466, 1.442695
      %v1497 = vpow.pop %v1496
      %v1498 = vmul.f32 %v1467, 1.442695
      %v1499 = vpow.pop %v1498
      %1500 = vadd.xlane.f32.xlu0 %v1469
      %v1501 = vpop.xlane.xlu0 %1500
      %1502 = vadd.xlane.f32.xlu0 %v1471
      %v1503 = vpop.xlane.xlu0 %1502
      %1504 = vadd.xlane.f32.xlu0 %v1473
      %v1505 = vpop.xlane.xlu0 %1504
      %1506 = vadd.xlane.f32.xlu0 %v1475
      %v1507 = vpop.xlane.xlu0 %1506
      %1508 = vadd.xlane.f32.xlu0 %v1477
      %v1509 = vpop.xlane.xlu0 %1508
      %1510 = vadd.xlane.f32.xlu0 %v1479
      %v1511 = vpop.xlane.xlu0 %1510
      %1512 = vadd.xlane.f32.xlu0 %v1481
      %v1513 = vpop.xlane.xlu0 %1512
      %1514 = vadd.xlane.f32.xlu0 %v1483
      %v1515 = vpop.xlane.xlu0 %1514
      %1516 = vadd.xlane.f32.xlu0 %v1485
      %v1517 = vpop.xlane.xlu0 %1516
      %1518 = vadd.xlane.f32.xlu0 %v1487
      %v1519 = vpop.xlane.xlu0 %1518
      %1520 = vadd.xlane.f32.xlu0 %v1489
      %v1521 = vpop.xlane.xlu0 %1520
      %1522 = vadd.xlane.f32.xlu0 %v1491
      %v1523 = vpop.xlane.xlu0 %1522
      %1524 = vadd.xlane.f32.xlu0 %v1493
      %v1525 = vpop.xlane.xlu0 %1524
      %1526 = vadd.xlane.f32.xlu0 %v1495
      %v1527 = vpop.xlane.xlu0 %1526
      %1528 = vadd.xlane.f32.xlu0 %v1497
      %v1529 = vpop.xlane.xlu0 %1528
      %1530 = vadd.xlane.f32.xlu0 %v1499
      %v1531 = vpop.xlane.xlu0 %1530
      %v1532 = vrcp.pop %v1501
      %v1533 = vrcp.pop %v1503
      %v1534 = vrcp.pop %v1505
      %v1535 = vrcp.pop %v1507
      %v1536 = vrcp.pop %v1509
      %v1537 = vrcp.pop %v1511
      %v1538 = vrcp.pop %v1513
      %v1539 = vrcp.pop %v1515
      %v1540 = vrcp.pop %v1517
      %v1541 = vrcp.pop %v1519
      %v1542 = vrcp.pop %v1521
      %v1543 = vrcp.pop %v1523
      %v1544 = vrcp.pop %v1525
      %v1545 = vrcp.pop %v1527
      %v1546 = vrcp.pop %v1529
      %v1547 = vrcp.pop %v1531
      %v1548 = vmul.f32 %v1469, %v1532
      %v1549 = vmul.f32 %v1471, %v1533
      %v1550 = vmul.f32 %v1473, %v1534
      %v1551 = vmul.f32 %v1475, %v1535
      %v1552 = vmul.f32 %v1477, %v1536
      %v1553 = vmul.f32 %v1479, %v1537
      %v1554 = vmul.f32 %v1481, %v1538
      %v1555 = vmul.f32 %v1483, %v1539
      %v1556 = vmul.f32 %v1485, %v1540
      %v1557 = vmul.f32 %v1487, %v1541
      %v1558 = vmul.f32 %v1489, %v1542
      %v1559 = vmul.f32 %v1491, %v1543
      %v1560 = vmul.f32 %v1493, %v1544
      %v1561 = vmul.f32 %v1495, %v1545
      %v1562 = vmul.f32 %v1497, %v1546
      %v1563 = vmul.f32 %v1499, %v1547
      %v1564 = vpack.c.bf16 %v1549, %v1548
      %v1565 = vpack.c.bf16 %v1551, %v1550
      %v1566 = vpack.c.bf16 %v1553, %v1552
      %v1567 = vpack.c.bf16 %v1555, %v1554
      %v1568 = vpack.c.bf16 %v1557, %v1556
      %v1569 = vpack.c.bf16 %v1559, %v1558
      %v1570 = vpack.c.bf16 %v1561, %v1560
      %v1571 = vpack.c.bf16 %v1563, %v1562
      %1580 = vrot.lane.b32.xlu0 %v1243, 64
      %v1581 = vpop.permute.xlu0 %1580
      %1582 = vrot.lane.b32.xlu0 %v1244, 64
      %v1583 = vpop.permute.xlu0 %1582
      %1584 = vrot.lane.b32.xlu0 %v1245, 64
      %v1585 = vpop.permute.xlu0 %1584
      %1586 = vrot.lane.b32.xlu0 %v1246, 64
      %v1587 = vpop.permute.xlu0 %1586
      %1588 = vrot.lane.b32.xlu0 %v1247, 64
      %v1589 = vpop.permute.xlu0 %1588
      %1590 = vrot.lane.b32.xlu0 %v1248, 64
      %v1591 = vpop.permute.xlu0 %1590
      %1592 = vrot.lane.b32.xlu0 %v1249, 64
      %v1593 = vpop.permute.xlu0 %1592
      %1594 = vrot.lane.b32.xlu0 %v1250, 64
      %v1595 = vpop.permute.xlu0 %1594
      %1604 = vmatprep.subr.bf16.mxu0 0
      %1605 = vmatpush1.bf16.msra.mxu0 %v1581
      %1606 = vmatprep.subr.bf16.mxu0 0
      %1607 = vmatpush1.bf16.msra.mxu0 %v1583
      %1608 = vmatprep.subr.bf16.mxu0 0
      %1609 = vmatpush1.bf16.msra.mxu0 %v1585
      %1610 = vmatprep.subr.bf16.mxu0 0
      %1611 = vmatpush1.bf16.msra.mxu0 %v1587
      %1612 = vmatprep.subr.bf16.mxu0 0
      %1613 = vmatpush1.bf16.msra.mxu0 %v1589
      %1614 = vmatprep.subr.bf16.mxu0 0
      %1615 = vmatpush1.bf16.msra.mxu0 %v1591
      %1616 = vmatprep.subr.bf16.mxu0 0
      %1617 = vmatpush1.bf16.msra.mxu0 %v1593
      %1618 = vmatprep.subr.bf16.mxu0 0
      %1619 = vmatpush1.bf16.msra.mxu0 %v1595
      %1620 = vmatprep.subr.bf16.mxu0 0
      %1621 = vmatpush1.bf16.msra.mxu0 0
      %1622 = vmatprep.subr.bf16.mxu0 0
      %1623 = vmatpush1.bf16.msra.mxu0 0
      %1624 = vmatprep.subr.bf16.mxu0 0
      %1625 = vmatpush1.bf16.msra.mxu0 0
      %1626 = vmatprep.subr.bf16.mxu0 0
      %1627 = vmatpush1.bf16.msra.mxu0 0
      %1628 = vmatprep.subr.bf16.mxu0 0
      %1629 = vmatpush1.bf16.msra.mxu0 0
      %1630 = vmatprep.subr.bf16.mxu0 0
      %1631 = vmatpush1.bf16.msra.mxu0 0
      %1632 = vmatprep.subr.bf16.mxu0 0
      %1633 = vmatpush1.bf16.msra.mxu0 0
      %1634 = vmatprep.subr.bf16.mxu0 0
      %1635 = vmatpush1.bf16.msra.mxu0 0
      %1636 = vmatprep.mubr.bf16.mxu0 0
      %1637 = vmatmul.mubr.bf16.gmra.mrb[0].mxu0 %v1564
      %v1638 = vpop.f32.mrb[0].mxu0
      %v1639 = vadd.f32 0.0, %v1638
      %v1640 = vpop.f32.mrb[0].mxu0
      %v1641 = vpop.f32.mrb[0].mxu0
      %v1642 = vadd.f32 0.0, %v1641
      %v1643 = vpop.f32.mrb[0].mxu0
      %1644 = vmatprep.mubr.bf16.mxu0 0
      %1645 = vmatmul.mubr.bf16.gmra.mrb[0].mxu0 %v1565
      %v1646 = vpop.f32.mrb[0].mxu0
      %v1647 = vadd.f32 0.0, %v1646
      %v1648 = vpop.f32.mrb[0].mxu0
      %v1649 = vpop.f32.mrb[0].mxu0
      %v1650 = vadd.f32 0.0, %v1649
      %v1651 = vpop.f32.mrb[0].mxu0
      %1652 = vmatprep.mubr.bf16.mxu0 0
      %1653 = vmatmul.mubr.bf16.gmra.mrb[0].mxu0 %v1566
      %v1654 = vpop.f32.mrb[0].mxu0
      %v1655 = vadd.f32 0.0, %v1654
      %v1656 = vpop.f32.mrb[0].mxu0
      %v1657 = vpop.f32.mrb[0].mxu0
      %v1658 = vadd.f32 0.0, %v1657
      %v1659 = vpop.f32.mrb[0].mxu0
      %1660 = vmatprep.mubr.bf16.mxu0 0
      %1661 = vmatmul.mubr.bf16.gmra.mrb[0].mxu0 %v1567
      %v1662 = vpop.f32.mrb[0].mxu0
      %v1663 = vadd.f32 0.0, %v1662
      %v1664 = vpop.f32.mrb[0].mxu0
      %v1665 = vpop.f32.mrb[0].mxu0
      %v1666 = vadd.f32 0.0, %v1665
      %v1667 = vpop.f32.mrb[0].mxu0
      %1668 = vmatprep.mubr.bf16.mxu0 0
      %1669 = vmatmul.mubr.bf16.gmra.mrb[0].mxu0 %v1568
      %v1670 = vpop.f32.mrb[0].mxu0
      %v1671 = vadd.f32 0.0, %v1670
      %v1672 = vpop.f32.mrb[0].mxu0
      %v1673 = vpop.f32.mrb[0].mxu0
      %v1674 = vadd.f32 0.0, %v1673
      %v1675 = vpop.f32.mrb[0].mxu0
      %1676 = vmatprep.mubr.bf16.mxu0 0
      %1677 = vmatmul.mubr.bf16.gmra.mrb[0].mxu0 %v1569
      %v1678 = vpop.f32.mrb[0].mxu0
      %v1679 = vadd.f32 0.0, %v1678
      %v1680 = vpop.f32.mrb[0].mxu0
      %v1681 = vpop.f32.mrb[0].mxu0
      %v1682 = vadd.f32 0.0, %v1681
      %v1683 = vpop.f32.mrb[0].mxu0
      %1684 = vmatprep.mubr.bf16.mxu0 0
      %1685 = vmatmul.mubr.bf16.gmra.mrb[0].mxu0 %v1570
      %v1686 = vpop.f32.mrb[0].mxu0
      %v1687 = vadd.f32 0.0, %v1686
      %v1688 = vpop.f32.mrb[0].mxu0
      %v1689 = vpop.f32.mrb[0].mxu0
      %v1690 = vadd.f32 0.0, %v1689
      %v1691 = vpop.f32.mrb[0].mxu0
      %1692 = vmatprep.mubr.bf16.mxu0 0
      %1693 = vmatmul.mubr.bf16.gmra.mrb[0].mxu0 %v1571
      %v1694 = vpop.f32.mrb[0].mxu0
      %v1695 = vadd.f32 0.0, %v1694
      %v1696 = vpop.f32.mrb[0].mxu0
      %v1697 = vpop.f32.mrb[0].mxu0
      %v1698 = vadd.f32 0.0, %v1697
      %v1699 = vpop.f32.mrb[0].mxu0
      %1700 = vdwg.mxu0
      %v1701 = vadd.f32 %v690, %v1639
      %v1702 = vadd.f32 %v693, %v1642
      %v1703 = vadd.f32 %v698, %v1647
      %v1704 = vadd.f32 %v701, %v1650
      %v1705 = vadd.f32 %v706, %v1655
      %v1706 = vadd.f32 %v709, %v1658
      %v1707 = vadd.f32 %v714, %v1663
      %v1708 = vadd.f32 %v717, %v1666
      %v1709 = vadd.f32 %v722, %v1671
      %v1710 = vadd.f32 %v725, %v1674
      %v1711 = vadd.f32 %v730, %v1679
      %v1712 = vadd.f32 %v733, %v1682
      %v1713 = vadd.f32 %v738, %v1687
      %v1714 = vadd.f32 %v741, %v1690
      %v1715 = vadd.f32 %v746, %v1695
      %v1716 = vadd.f32 %v749, %v1698
      %v1717 = vmul.f32 %v769, 0.35355338
      %v1719 = vlaneseq
      %v1720 = vshrl.u32 %v1719, 7
      %v1721 = vsub.s32 0, %v1720
      %v1722 = vrot.slane %v1717, %v1721
      %v1724 = vmul.f32 %v1118, %v1722
      %v1725 = vmul.f32 %v1121, %v1722
      %v1726 = vmul.f32 %v1126, %v1722
      %v1727 = vmul.f32 %v1129, %v1722
      %v1728 = vmul.f32 %v1134, %v1722
      %v1729 = vmul.f32 %v1137, %v1722
      %v1730 = vmul.f32 %v1142, %v1722
      %v1731 = vmul.f32 %v1145, %v1722
      %v1732 = vmul.f32 %v1150, %v1722
      %v1733 = vmul.f32 %v1153, %v1722
      %v1734 = vmul.f32 %v1158, %v1722
      %v1735 = vmul.f32 %v1161, %v1722
      %v1736 = vmul.f32 %v1166, %v1722
      %v1737 = vmul.f32 %v1169, %v1722
      %v1738 = vmul.f32 %v1174, %v1722
      %v1739 = vmul.f32 %v1177, %v1722
      %v1740 = vpack.c.bf16 %v1725, %v1724
      %v1741 = vpack.c.bf16 %v1727, %v1726
      %v1742 = vpack.c.bf16 %v1729, %v1728
      %v1743 = vpack.c.bf16 %v1731, %v1730
      %v1744 = vpack.c.bf16 %v1733, %v1732
      %v1745 = vpack.c.bf16 %v1735, %v1734
      %v1746 = vpack.c.bf16 %v1737, %v1736
      %v1747 = vpack.c.bf16 %v1739, %v1738
      %v1749 = vlaneseq
      %v1750 = vshrl.u32 %v1749, 7
      %v1751 = vsub.s32 0, %v1750
      %v1752 = vrot.slane %v769, %v1751
      %1753 = vrot.lane.b32.xlu0 %v1752, 64
      %v1754 = vpop.permute.xlu0 %1753
      %v1756 = vmul.f32 %v1118, %v1754
      %v1757 = vmul.f32 %v1121, %v1754
      %v1758 = vmul.f32 %v1126, %v1754
      %v1759 = vmul.f32 %v1129, %v1754
      %v1760 = vmul.f32 %v1134, %v1754
      %v1761 = vmul.f32 %v1137, %v1754
      %v1762 = vmul.f32 %v1142, %v1754
      %v1763 = vmul.f32 %v1145, %v1754
      %v1764 = vmul.f32 %v1150, %v1754
      %v1765 = vmul.f32 %v1153, %v1754
      %v1766 = vmul.f32 %v1158, %v1754
      %v1767 = vmul.f32 %v1161, %v1754
      %v1768 = vmul.f32 %v1166, %v1754
      %v1769 = vmul.f32 %v1169, %v1754
      %v1770 = vmul.f32 %v1174, %v1754
      %v1771 = vmul.f32 %v1177, %v1754
      %v1772 = vpack.c.bf16 %v1757, %v1756
      %v1773 = vpack.c.bf16 %v1759, %v1758
      %v1774 = vpack.c.bf16 %v1761, %v1760
      %v1775 = vpack.c.bf16 %v1763, %v1762
      %v1776 = vpack.c.bf16 %v1765, %v1764
      %v1777 = vpack.c.bf16 %v1767, %v1766
      %v1778 = vpack.c.bf16 %v1769, %v1768
      %v1779 = vpack.c.bf16 %v1771, %v1770
      %v1781 = vsel %vm774, %v1740, 0
      %v1784 = vsel %vm774, %v1741, 0
      %v1787 = vsel %vm774, %v1742, 0
      %v1790 = vsel %vm774, %v1743, 0
      %v1793 = vsel %vm774, %v1744, 0
      %v1796 = vsel %vm774, %v1745, 0
      %v1799 = vsel %vm774, %v1746, 0
      %v1802 = vsel %vm774, %v1747, 0
      %1804 = vmatprep.subr.bf16.mxu0 0
      %1805 = vmatpush1.bf16.xpose.msra.mxu0 %v1300
      %1806 = vmatprep.subr.bf16.mxu0 0
      %1807 = vmatpush1.bf16.xpose.msra.mxu0 %v1303
      %1808 = vmatprep.subr.bf16.mxu0 0
      %1809 = vmatpush1.bf16.xpose.msra.mxu0 %v1306
      %1810 = vmatprep.subr.bf16.mxu0 0
      %1811 = vmatpush1.bf16.xpose.msra.mxu0 %v1309
      %1812 = vmatprep.subr.bf16.mxu0 0
      %1813 = vmatpush1.bf16.xpose.msra.mxu0 %v1312
      %1814 = vmatprep.subr.bf16.mxu0 0
      %1815 = vmatpush1.bf16.xpose.msra.mxu0 %v1315
      %1816 = vmatprep.subr.bf16.mxu0 0
      %1817 = vmatpush1.bf16.xpose.msra.mxu0 %v1318
      %1818 = vmatprep.subr.bf16.mxu0 0
      %1819 = vmatpush1.bf16.xpose.msra.mxu0 %v1321
      %1820 = vmatprep.subr.bf16.mxu0 0
      %1821 = vmatpush1.bf16.xpose.msra.mxu0 0
      %1822 = vmatprep.subr.bf16.mxu0 0
      %1823 = vmatpush1.bf16.xpose.msra.mxu0 0
      %1824 = vmatprep.subr.bf16.mxu0 0
      %1825 = vmatpush1.bf16.xpose.msra.mxu0 0
      %1826 = vmatprep.subr.bf16.mxu0 0
      %1827 = vmatpush1.bf16.xpose.msra.mxu0 0
      %1828 = vmatprep.subr.bf16.mxu0 0
      %1829 = vmatpush1.bf16.xpose.msra.mxu0 0
      %1830 = vmatprep.subr.bf16.mxu0 0
      %1831 = vmatpush1.bf16.xpose.msra.mxu0 0
      %1832 = vmatprep.subr.bf16.mxu0 0
      %1833 = vmatpush1.bf16.xpose.msra.mxu0 0
      %1834 = vmatprep.subr.bf16.mxu0 0
      %1835 = vmatpush1.bf16.xpose.msra.mxu0 0
      %1836 = vmatprep.mubr.bf16.mxu0 0
      %1837 = vmatmul.mubr.bf16.gmra.mrb[0].mxu0 %v1781
      %v1838 = vpop.f32.mrb[0].mxu0
      %v1839 = vadd.f32 %v752, %v1838
      %v1840 = vpop.f32.mrb[0].mxu0
      %v1841 = vpop.f32.mrb[0].mxu0
      %v1842 = vadd.f32 %v753, %v1841
      %v1843 = vpop.f32.mrb[0].mxu0
      %1844 = vmatprep.mubr.bf16.mxu0 0
      %1845 = vmatmul.mubr.bf16.gmra.mrb[0].mxu0 %v1784
      %v1846 = vpop.f32.mrb[0].mxu0
      %v1847 = vadd.f32 %v754, %v1846
      %v1848 = vpop.f32.mrb[0].mxu0
      %v1849 = vpop.f32.mrb[0].mxu0
      %v1850 = vadd.f32 %v755, %v1849
      %v1851 = vpop.f32.mrb[0].mxu0
      %1852 = vmatprep.mubr.bf16.mxu0 0
      %1853 = vmatmul.mubr.bf16.gmra.mrb[0].mxu0 %v1787
      %v1854 = vpop.f32.mrb[0].mxu0
      %v1855 = vadd.f32 %v756, %v1854
      %v1856 = vpop.f32.mrb[0].mxu0
      %v1857 = vpop.f32.mrb[0].mxu0
      %v1858 = vadd.f32 %v757, %v1857
      %v1859 = vpop.f32.mrb[0].mxu0
      %1860 = vmatprep.mubr.bf16.mxu0 0
      %1861 = vmatmul.mubr.bf16.gmra.mrb[0].mxu0 %v1790
      %v1862 = vpop.f32.mrb[0].mxu0
      %v1863 = vadd.f32 %v758, %v1862
      %v1864 = vpop.f32.mrb[0].mxu0
      %v1865 = vpop.f32.mrb[0].mxu0
      %v1866 = vadd.f32 %v759, %v1865
      %v1867 = vpop.f32.mrb[0].mxu0
      %1868 = vmatprep.mubr.bf16.mxu0 0
      %1869 = vmatmul.mubr.bf16.gmra.mrb[0].mxu0 %v1793
      %v1870 = vpop.f32.mrb[0].mxu0
      %v1871 = vadd.f32 %v760, %v1870
      %v1872 = vpop.f32.mrb[0].mxu0
      %v1873 = vpop.f32.mrb[0].mxu0
      %v1874 = vadd.f32 %v761, %v1873
      %v1875 = vpop.f32.mrb[0].mxu0
      %1876 = vmatprep.mubr.bf16.mxu0 0
      %1877 = vmatmul.mubr.bf16.gmra.mrb[0].mxu0 %v1796
      %v1878 = vpop.f32.mrb[0].mxu0
      %v1879 = vadd.f32 %v762, %v1878
      %v1880 = vpop.f32.mrb[0].mxu0
      %v1881 = vpop.f32.mrb[0].mxu0
      %v1882 = vadd.f32 %v763, %v1881
      %v1883 = vpop.f32.mrb[0].mxu0
      %1884 = vmatprep.mubr.bf16.mxu0 0
      %1885 = vmatmul.mubr.bf16.gmra.mrb[0].mxu0 %v1799
      %v1886 = vpop.f32.mrb[0].mxu0
      %v1887 = vadd.f32 %v764, %v1886
      %v1888 = vpop.f32.mrb[0].mxu0
      %v1889 = vpop.f32.mrb[0].mxu0
      %v1890 = vadd.f32 %v765, %v1889
      %v1891 = vpop.f32.mrb[0].mxu0
      %1892 = vmatprep.mubr.bf16.mxu0 0
      %1893 = vmatmul.mubr.bf16.gmra.mrb[0].mxu0 %v1802
      %v1894 = vpop.f32.mrb[0].mxu0
      %v1895 = vadd.f32 %v766, %v1894
      %v1896 = vpop.f32.mrb[0].mxu0
      %v1897 = vpop.f32.mrb[0].mxu0
      %v1898 = vadd.f32 %v767, %v1897
      %v1899 = vpop.f32.mrb[0].mxu0
      %1900 = vdwg.mxu0
      %1901 = vmax.xlane.f32.xlu0 %v1839
      %v1902 = vpop.xlane.xlu0 %1901
      %1903 = vmax.xlane.f32.xlu0 %v1842
      %v1904 = vpop.xlane.xlu0 %1903
      %1905 = vmax.xlane.f32.xlu0 %v1847
      %v1906 = vpop.xlane.xlu0 %1905
      %1907 = vmax.xlane.f32.xlu0 %v1850
      %v1908 = vpop.xlane.xlu0 %1907
      %1909 = vmax.xlane.f32.xlu0 %v1855
      %v1910 = vpop.xlane.xlu0 %1909
      %1911 = vmax.xlane.f32.xlu0 %v1858
      %v1912 = vpop.xlane.xlu0 %1911
      %1913 = vmax.xlane.f32.xlu0 %v1863
      %v1914 = vpop.xlane.xlu0 %1913
      %1915 = vmax.xlane.f32.xlu0 %v1866
      %v1916 = vpop.xlane.xlu0 %1915
      %1917 = vmax.xlane.f32.xlu0 %v1871
      %v1918 = vpop.xlane.xlu0 %1917
      %1919 = vmax.xlane.f32.xlu0 %v1874
      %v1920 = vpop.xlane.xlu0 %1919
      %1921 = vmax.xlane.f32.xlu0 %v1879
      %v1922 = vpop.xlane.xlu0 %1921
      %1923 = vmax.xlane.f32.xlu0 %v1882
      %v1924 = vpop.xlane.xlu0 %1923
      %1925 = vmax.xlane.f32.xlu0 %v1887
      %v1926 = vpop.xlane.xlu0 %1925
      %1927 = vmax.xlane.f32.xlu0 %v1890
      %v1928 = vpop.xlane.xlu0 %1927
      %1929 = vmax.xlane.f32.xlu0 %v1895
      %v1930 = vpop.xlane.xlu0 %1929
      %1931 = vmax.xlane.f32.xlu0 %v1898
      %v1932 = vpop.xlane.xlu0 %1931
      %v1933 = vsub.f32 %v1839, %v1902
      %v1934 = vsub.f32 %v1842, %v1904
      %v1935 = vsub.f32 %v1847, %v1906
      %v1936 = vsub.f32 %v1850, %v1908
      %v1937 = vsub.f32 %v1855, %v1910
      %v1938 = vsub.f32 %v1858, %v1912
      %v1939 = vsub.f32 %v1863, %v1914
      %v1940 = vsub.f32 %v1866, %v1916
      %v1941 = vsub.f32 %v1871, %v1918
      %v1942 = vsub.f32 %v1874, %v1920
      %v1943 = vsub.f32 %v1879, %v1922
      %v1944 = vsub.f32 %v1882, %v1924
      %v1945 = vsub.f32 %v1887, %v1926
      %v1946 = vsub.f32 %v1890, %v1928
      %v1947 = vsub.f32 %v1895, %v1930
      %v1948 = vsub.f32 %v1898, %v1932
      %v1949 = vmul.f32 %v1933, 1.442695
      %v1950 = vpow.pop %v1949
      %v1951 = vmul.f32 %v1934, 1.442695
      %v1952 = vpow.pop %v1951
      %v1953 = vmul.f32 %v1935, 1.442695
      %v1954 = vpow.pop %v1953
      %v1955 = vmul.f32 %v1936, 1.442695
      %v1956 = vpow.pop %v1955
      %v1957 = vmul.f32 %v1937, 1.442695
      %v1958 = vpow.pop %v1957
      %v1959 = vmul.f32 %v1938, 1.442695
      %v1960 = vpow.pop %v1959
      %v1961 = vmul.f32 %v1939, 1.442695
      %v1962 = vpow.pop %v1961
      %v1963 = vmul.f32 %v1940, 1.442695
      %v1964 = vpow.pop %v1963
      %v1965 = vmul.f32 %v1941, 1.442695
      %v1966 = vpow.pop %v1965
      %v1967 = vmul.f32 %v1942, 1.442695
      %v1968 = vpow.pop %v1967
      %v1969 = vmul.f32 %v1943, 1.442695
      %v1970 = vpow.pop %v1969
      %v1971 = vmul.f32 %v1944, 1.442695
      %v1972 = vpow.pop %v1971
      %v1973 = vmul.f32 %v1945, 1.442695
      %v1974 = vpow.pop %v1973
      %v1975 = vmul.f32 %v1946, 1.442695
      %v1976 = vpow.pop %v1975
      %v1977 = vmul.f32 %v1947, 1.442695
      %v1978 = vpow.pop %v1977
      %v1979 = vmul.f32 %v1948, 1.442695
      %v1980 = vpow.pop %v1979
      %1981 = vadd.xlane.f32.xlu0 %v1950
      %v1982 = vpop.xlane.xlu0 %1981
      %1983 = vadd.xlane.f32.xlu0 %v1952
      %v1984 = vpop.xlane.xlu0 %1983
      %1985 = vadd.xlane.f32.xlu0 %v1954
      %v1986 = vpop.xlane.xlu0 %1985
      %1987 = vadd.xlane.f32.xlu0 %v1956
      %v1988 = vpop.xlane.xlu0 %1987
      %1989 = vadd.xlane.f32.xlu0 %v1958
      %v1990 = vpop.xlane.xlu0 %1989
      %1991 = vadd.xlane.f32.xlu0 %v1960
      %v1992 = vpop.xlane.xlu0 %1991
      %1993 = vadd.xlane.f32.xlu0 %v1962
      %v1994 = vpop.xlane.xlu0 %1993
      %1995 = vadd.xlane.f32.xlu0 %v1964
      %v1996 = vpop.xlane.xlu0 %1995
      %1997 = vadd.xlane.f32.xlu0 %v1966
      %v1998 = vpop.xlane.xlu0 %1997
      %1999 = vadd.xlane.f32.xlu0 %v1968
      %v2000 = vpop.xlane.xlu0 %1999
      %2001 = vadd.xlane.f32.xlu0 %v1970
      %v2002 = vpop.xlane.xlu0 %2001
      %2003 = vadd.xlane.f32.xlu0 %v1972
      %v2004 = vpop.xlane.xlu0 %2003
      %2005 = vadd.xlane.f32.xlu0 %v1974
      %v2006 = vpop.xlane.xlu0 %2005
      %2007 = vadd.xlane.f32.xlu0 %v1976
      %v2008 = vpop.xlane.xlu0 %2007
      %2009 = vadd.xlane.f32.xlu0 %v1978
      %v2010 = vpop.xlane.xlu0 %2009
      %2011 = vadd.xlane.f32.xlu0 %v1980
      %v2012 = vpop.xlane.xlu0 %2011
      %v2013 = vrcp.pop %v1982
      %v2014 = vrcp.pop %v1984
      %v2015 = vrcp.pop %v1986
      %v2016 = vrcp.pop %v1988
      %v2017 = vrcp.pop %v1990
      %v2018 = vrcp.pop %v1992
      %v2019 = vrcp.pop %v1994
      %v2020 = vrcp.pop %v1996
      %v2021 = vrcp.pop %v1998
      %v2022 = vrcp.pop %v2000
      %v2023 = vrcp.pop %v2002
      %v2024 = vrcp.pop %v2004
      %v2025 = vrcp.pop %v2006
      %v2026 = vrcp.pop %v2008
      %v2027 = vrcp.pop %v2010
      %v2028 = vrcp.pop %v2012
      %v2029 = vmul.f32 %v1950, %v2013
      %v2030 = vmul.f32 %v1952, %v2014
      %v2031 = vmul.f32 %v1954, %v2015
      %v2032 = vmul.f32 %v1956, %v2016
      %v2033 = vmul.f32 %v1958, %v2017
      %v2034 = vmul.f32 %v1960, %v2018
      %v2035 = vmul.f32 %v1962, %v2019
      %v2036 = vmul.f32 %v1964, %v2020
      %v2037 = vmul.f32 %v1966, %v2021
      %v2038 = vmul.f32 %v1968, %v2022
      %v2039 = vmul.f32 %v1970, %v2023
      %v2040 = vmul.f32 %v1972, %v2024
      %v2041 = vmul.f32 %v1974, %v2025
      %v2042 = vmul.f32 %v1976, %v2026
      %v2043 = vmul.f32 %v1978, %v2027
      %v2044 = vmul.f32 %v1980, %v2028
      %v2045 = vpack.c.bf16 %v2030, %v2029
      %v2046 = vpack.c.bf16 %v2032, %v2031
      %v2047 = vpack.c.bf16 %v2034, %v2033
      %v2048 = vpack.c.bf16 %v2036, %v2035
      %v2049 = vpack.c.bf16 %v2038, %v2037
      %v2050 = vpack.c.bf16 %v2040, %v2039
      %v2051 = vpack.c.bf16 %v2042, %v2041
      %v2052 = vpack.c.bf16 %v2044, %v2043
      %2061 = vrot.lane.b32.xlu0 %v1772, 64
      %v2062 = vpop.permute.xlu0 %2061
      %2063 = vrot.lane.b32.xlu0 %v1773, 64
      %v2064 = vpop.permute.xlu0 %2063
      %2065 = vrot.lane.b32.xlu0 %v1774, 64
      %v2066 = vpop.permute.xlu0 %2065
      %2067 = vrot.lane.b32.xlu0 %v1775, 64
      %v2068 = vpop.permute.xlu0 %2067
      %2069 = vrot.lane.b32.xlu0 %v1776, 64
      %v2070 = vpop.permute.xlu0 %2069
      %2071 = vrot.lane.b32.xlu0 %v1777, 64
      %v2072 = vpop.permute.xlu0 %2071
      %2073 = vrot.lane.b32.xlu0 %v1778, 64
      %v2074 = vpop.permute.xlu0 %2073
      %2075 = vrot.lane.b32.xlu0 %v1779, 64
      %v2076 = vpop.permute.xlu0 %2075
      %2085 = vmatprep.subr.bf16.mxu0 0
      %2086 = vmatpush1.bf16.msra.mxu0 %v2062
      %2087 = vmatprep.subr.bf16.mxu0 0
      %2088 = vmatpush1.bf16.msra.mxu0 %v2064
      %2089 = vmatprep.subr.bf16.mxu0 0
      %2090 = vmatpush1.bf16.msra.mxu0 %v2066
      %2091 = vmatprep.subr.bf16.mxu0 0
      %2092 = vmatpush1.bf16.msra.mxu0 %v2068
      %2093 = vmatprep.subr.bf16.mxu0 0
      %2094 = vmatpush1.bf16.msra.mxu0 %v2070
      %2095 = vmatprep.subr.bf16.mxu0 0
      %2096 = vmatpush1.bf16.msra.mxu0 %v2072
      %2097 = vmatprep.subr.bf16.mxu0 0
      %2098 = vmatpush1.bf16.msra.mxu0 %v2074
      %2099 = vmatprep.subr.bf16.mxu0 0
      %2100 = vmatpush1.bf16.msra.mxu0 %v2076
      %2101 = vmatprep.subr.bf16.mxu0 0
      %2102 = vmatpush1.bf16.msra.mxu0 0
      %2103 = vmatprep.subr.bf16.mxu0 0
      %2104 = vmatpush1.bf16.msra.mxu0 0
      %2105 = vmatprep.subr.bf16.mxu0 0
      %2106 = vmatpush1.bf16.msra.mxu0 0
      %2107 = vmatprep.subr.bf16.mxu0 0
      %2108 = vmatpush1.bf16.msra.mxu0 0
      %2109 = vmatprep.subr.bf16.mxu0 0
      %2110 = vmatpush1.bf16.msra.mxu0 0
      %2111 = vmatprep.subr.bf16.mxu0 0
      %2112 = vmatpush1.bf16.msra.mxu0 0
      %2113 = vmatprep.subr.bf16.mxu0 0
      %2114 = vmatpush1.bf16.msra.mxu0 0
      %2115 = vmatprep.subr.bf16.mxu0 0
      %2116 = vmatpush1.bf16.msra.mxu0 0
      %2117 = vmatprep.mubr.bf16.mxu0 0
      %2118 = vmatmul.mubr.bf16.gmra.mrb[0].mxu0 %v2045
      %v2119 = vpop.f32.mrb[0].mxu0
      %v2120 = vadd.f32 0.0, %v2119
      %v2121 = vpop.f32.mrb[0].mxu0
      %v2122 = vpop.f32.mrb[0].mxu0
      %v2123 = vadd.f32 0.0, %v2122
      %v2124 = vpop.f32.mrb[0].mxu0
      %2125 = vmatprep.mubr.bf16.mxu0 0
      %2126 = vmatmul.mubr.bf16.gmra.mrb[0].mxu0 %v2046
      %v2127 = vpop.f32.mrb[0].mxu0
      %v2128 = vadd.f32 0.0, %v2127
      %v2129 = vpop.f32.mrb[0].mxu0
      %v2130 = vpop.f32.mrb[0].mxu0
      %v2131 = vadd.f32 0.0, %v2130
      %v2132 = vpop.f32.mrb[0].mxu0
      %2133 = vmatprep.mubr.bf16.mxu0 0
      %2134 = vmatmul.mubr.bf16.gmra.mrb[0].mxu0 %v2047
      %v2135 = vpop.f32.mrb[0].mxu0
      %v2136 = vadd.f32 0.0, %v2135
      %v2137 = vpop.f32.mrb[0].mxu0
      %v2138 = vpop.f32.mrb[0].mxu0
      %v2139 = vadd.f32 0.0, %v2138
      %v2140 = vpop.f32.mrb[0].mxu0
      %2141 = vmatprep.mubr.bf16.mxu0 0
      %2142 = vmatmul.mubr.bf16.gmra.mrb[0].mxu0 %v2048
      %v2143 = vpop.f32.mrb[0].mxu0
      %v2144 = vadd.f32 0.0, %v2143
      %v2145 = vpop.f32.mrb[0].mxu0
      %v2146 = vpop.f32.mrb[0].mxu0
      %v2147 = vadd.f32 0.0, %v2146
      %v2148 = vpop.f32.mrb[0].mxu0
      %2149 = vmatprep.mubr.bf16.mxu0 0
      %2150 = vmatmul.mubr.bf16.gmra.mrb[0].mxu0 %v2049
      %v2151 = vpop.f32.mrb[0].mxu0
      %v2152 = vadd.f32 0.0, %v2151
      %v2153 = vpop.f32.mrb[0].mxu0
      %v2154 = vpop.f32.mrb[0].mxu0
      %v2155 = vadd.f32 0.0, %v2154
      %v2156 = vpop.f32.mrb[0].mxu0
      %2157 = vmatprep.mubr.bf16.mxu0 0
      %2158 = vmatmul.mubr.bf16.gmra.mrb[0].mxu0 %v2050
      %v2159 = vpop.f32.mrb[0].mxu0
      %v2160 = vadd.f32 0.0, %v2159
      %v2161 = vpop.f32.mrb[0].mxu0
      %v2162 = vpop.f32.mrb[0].mxu0
      %v2163 = vadd.f32 0.0, %v2162
      %v2164 = vpop.f32.mrb[0].mxu0
      %2165 = vmatprep.mubr.bf16.mxu0 0
      %2166 = vmatmul.mubr.bf16.gmra.mrb[0].mxu0 %v2051
      %v2167 = vpop.f32.mrb[0].mxu0
      %v2168 = vadd.f32 0.0, %v2167
      %v2169 = vpop.f32.mrb[0].mxu0
      %v2170 = vpop.f32.mrb[0].mxu0
      %v2171 = vadd.f32 0.0, %v2170
      %v2172 = vpop.f32.mrb[0].mxu0
      %2173 = vmatprep.mubr.bf16.mxu0 0
      %2174 = vmatmul.mubr.bf16.gmra.mrb[0].mxu0 %v2052
      %v2175 = vpop.f32.mrb[0].mxu0
      %v2176 = vadd.f32 0.0, %v2175
      %v2177 = vpop.f32.mrb[0].mxu0
      %v2178 = vpop.f32.mrb[0].mxu0
      %v2179 = vadd.f32 0.0, %v2178
      %v2180 = vpop.f32.mrb[0].mxu0
      %2181 = vdwg.mxu0
      %v2182 = vadd.f32 %v1701, %v2120
      %v2183 = vadd.f32 %v1702, %v2123
      %v2184 = vadd.f32 %v1703, %v2128
      %v2185 = vadd.f32 %v1704, %v2131
      %v2186 = vadd.f32 %v1705, %v2136
      %v2187 = vadd.f32 %v1706, %v2139
      %v2188 = vadd.f32 %v1707, %v2144
      %v2189 = vadd.f32 %v1708, %v2147
      %v2190 = vadd.f32 %v1709, %v2152
      %v2191 = vadd.f32 %v1710, %v2155
      %v2192 = vadd.f32 %v1711, %v2160
      %v2193 = vadd.f32 %v1712, %v2163
      %v2194 = vadd.f32 %v1713, %v2168
      %v2195 = vadd.f32 %v1714, %v2171
      %v2196 = vadd.f32 %v1715, %v2176
      %v2197 = vadd.f32 %v1716, %v2179
      %v2198 = vmul.f32 %v770, 0.35355338
      %v2200 = vlaneseq
      %v2201 = vshrl.u32 %v2200, 7
      %v2202 = vsub.s32 0, %v2201
      %v2203 = vrot.slane %v2198, %v2202
      %v2205 = vmul.f32 %v1118, %v2203
      %v2206 = vmul.f32 %v1121, %v2203
      %v2207 = vmul.f32 %v1126, %v2203
      %v2208 = vmul.f32 %v1129, %v2203
      %v2209 = vmul.f32 %v1134, %v2203
      %v2210 = vmul.f32 %v1137, %v2203
      %v2211 = vmul.f32 %v1142, %v2203
      %v2212 = vmul.f32 %v1145, %v2203
      %v2213 = vmul.f32 %v1150, %v2203
      %v2214 = vmul.f32 %v1153, %v2203
      %v2215 = vmul.f32 %v1158, %v2203
      %v2216 = vmul.f32 %v1161, %v2203
      %v2217 = vmul.f32 %v1166, %v2203
      %v2218 = vmul.f32 %v1169, %v2203
      %v2219 = vmul.f32 %v1174, %v2203
      %v2220 = vmul.f32 %v1177, %v2203
      %v2221 = vpack.c.bf16 %v2206, %v2205
      %v2222 = vpack.c.bf16 %v2208, %v2207
      %v2223 = vpack.c.bf16 %v2210, %v2209
      %v2224 = vpack.c.bf16 %v2212, %v2211
      %v2225 = vpack.c.bf16 %v2214, %v2213
      %v2226 = vpack.c.bf16 %v2216, %v2215
      %v2227 = vpack.c.bf16 %v2218, %v2217
      %v2228 = vpack.c.bf16 %v2220, %v2219
      %v2230 = vlaneseq
      %v2231 = vshrl.u32 %v2230, 7
      %v2232 = vsub.s32 0, %v2231
      %v2233 = vrot.slane %v770, %v2232
      %2234 = vrot.lane.b32.xlu0 %v2233, 64
      %v2235 = vpop.permute.xlu0 %2234
      %v2237 = vmul.f32 %v1118, %v2235
      %v2238 = vmul.f32 %v1121, %v2235
      %v2239 = vmul.f32 %v1126, %v2235
      %v2240 = vmul.f32 %v1129, %v2235
      %v2241 = vmul.f32 %v1134, %v2235
      %v2242 = vmul.f32 %v1137, %v2235
      %v2243 = vmul.f32 %v1142, %v2235
      %v2244 = vmul.f32 %v1145, %v2235
      %v2245 = vmul.f32 %v1150, %v2235
      %v2246 = vmul.f32 %v1153, %v2235
      %v2247 = vmul.f32 %v1158, %v2235
      %v2248 = vmul.f32 %v1161, %v2235
      %v2249 = vmul.f32 %v1166, %v2235
      %v2250 = vmul.f32 %v1169, %v2235
      %v2251 = vmul.f32 %v1174, %v2235
      %v2252 = vmul.f32 %v1177, %v2235
      %v2253 = vpack.c.bf16 %v2238, %v2237
      %v2254 = vpack.c.bf16 %v2240, %v2239
      %v2255 = vpack.c.bf16 %v2242, %v2241
      %v2256 = vpack.c.bf16 %v2244, %v2243
      %v2257 = vpack.c.bf16 %v2246, %v2245
      %v2258 = vpack.c.bf16 %v2248, %v2247
      %v2259 = vpack.c.bf16 %v2250, %v2249
      %v2260 = vpack.c.bf16 %v2252, %v2251
      %v2262 = vsel %vm774, %v2221, 0
      %v2265 = vsel %vm774, %v2222, 0
      %v2268 = vsel %vm774, %v2223, 0
      %v2271 = vsel %vm774, %v2224, 0
      %v2274 = vsel %vm774, %v2225, 0
      %v2277 = vsel %vm774, %v2226, 0
      %v2280 = vsel %vm774, %v2227, 0
      %v2283 = vsel %vm774, %v2228, 0
      %2285 = vmatprep.subr.bf16.mxu0 0
      %2286 = vmatpush1.bf16.xpose.msra.mxu0 %v1300
      %2287 = vmatprep.subr.bf16.mxu0 0
      %2288 = vmatpush1.bf16.xpose.msra.mxu0 %v1303
      %2289 = vmatprep.subr.bf16.mxu0 0
      %2290 = vmatpush1.bf16.xpose.msra.mxu0 %v1306
      %2291 = vmatprep.subr.bf16.mxu0 0
      %2292 = vmatpush1.bf16.xpose.msra.mxu0 %v1309
      %2293 = vmatprep.subr.bf16.mxu0 0
      %2294 = vmatpush1.bf16.xpose.msra.mxu0 %v1312
      %2295 = vmatprep.subr.bf16.mxu0 0
      %2296 = vmatpush1.bf16.xpose.msra.mxu0 %v1315
      %2297 = vmatprep.subr.bf16.mxu0 0
      %2298 = vmatpush1.bf16.xpose.msra.mxu0 %v1318
      %2299 = vmatprep.subr.bf16.mxu0 0
      %2300 = vmatpush1.bf16.xpose.msra.mxu0 %v1321
      %2301 = vmatprep.subr.bf16.mxu0 0
      %2302 = vmatpush1.bf16.xpose.msra.mxu0 0
      %2303 = vmatprep.subr.bf16.mxu0 0
      %2304 = vmatpush1.bf16.xpose.msra.mxu0 0
      %2305 = vmatprep.subr.bf16.mxu0 0
      %2306 = vmatpush1.bf16.xpose.msra.mxu0 0
      %2307 = vmatprep.subr.bf16.mxu0 0
      %2308 = vmatpush1.bf16.xpose.msra.mxu0 0
      %2309 = vmatprep.subr.bf16.mxu0 0
      %2310 = vmatpush1.bf16.xpose.msra.mxu0 0
      %2311 = vmatprep.subr.bf16.mxu0 0
      %2312 = vmatpush1.bf16.xpose.msra.mxu0 0
      %2313 = vmatprep.subr.bf16.mxu0 0
      %2314 = vmatpush1.bf16.xpose.msra.mxu0 0
      %2315 = vmatprep.subr.bf16.mxu0 0
      %2316 = vmatpush1.bf16.xpose.msra.mxu0 0
      %2317 = vmatprep.mubr.bf16.mxu0 0
      %2318 = vmatmul.mubr.bf16.gmra.mrb[0].mxu0 %v2262
      %v2319 = vpop.f32.mrb[0].mxu0
      %v2320 = vadd.f32 %v752, %v2319
      %v2321 = vpop.f32.mrb[0].mxu0
      %v2322 = vpop.f32.mrb[0].mxu0
      %v2323 = vadd.f32 %v753, %v2322
      %v2324 = vpop.f32.mrb[0].mxu0
      %2325 = vmatprep.mubr.bf16.mxu0 0
      %2326 = vmatmul.mubr.bf16.gmra.mrb[0].mxu0 %v2265
      %v2327 = vpop.f32.mrb[0].mxu0
      %v2328 = vadd.f32 %v754, %v2327
      %v2329 = vpop.f32.mrb[0].mxu0
      %v2330 = vpop.f32.mrb[0].mxu0
      %v2331 = vadd.f32 %v755, %v2330
      %v2332 = vpop.f32.mrb[0].mxu0
      %2333 = vmatprep.mubr.bf16.mxu0 0
      %2334 = vmatmul.mubr.bf16.gmra.mrb[0].mxu0 %v2268
      %v2335 = vpop.f32.mrb[0].mxu0
      %v2336 = vadd.f32 %v756, %v2335
      %v2337 = vpop.f32.mrb[0].mxu0
      %v2338 = vpop.f32.mrb[0].mxu0
      %v2339 = vadd.f32 %v757, %v2338
      %v2340 = vpop.f32.mrb[0].mxu0
      %2341 = vmatprep.mubr.bf16.mxu0 0
      %2342 = vmatmul.mubr.bf16.gmra.mrb[0].mxu0 %v2271
      %v2343 = vpop.f32.mrb[0].mxu0
      %v2344 = vadd.f32 %v758, %v2343
      %v2345 = vpop.f32.mrb[0].mxu0
      %v2346 = vpop.f32.mrb[0].mxu0
      %v2347 = vadd.f32 %v759, %v2346
      %v2348 = vpop.f32.mrb[0].mxu0
      %2349 = vmatprep.mubr.bf16.mxu0 0
      %2350 = vmatmul.mubr.bf16.gmra.mrb[0].mxu0 %v2274
      %v2351 = vpop.f32.mrb[0].mxu0
      %v2352 = vadd.f32 %v760, %v2351
      %v2353 = vpop.f32.mrb[0].mxu0
      %v2354 = vpop.f32.mrb[0].mxu0
      %v2355 = vadd.f32 %v761, %v2354
      %v2356 = vpop.f32.mrb[0].mxu0
      %2357 = vmatprep.mubr.bf16.mxu0 0
      %2358 = vmatmul.mubr.bf16.gmra.mrb[0].mxu0 %v2277
      %v2359 = vpop.f32.mrb[0].mxu0
      %v2360 = vadd.f32 %v762, %v2359
      %v2361 = vpop.f32.mrb[0].mxu0
      %v2362 = vpop.f32.mrb[0].mxu0
      %v2363 = vadd.f32 %v763, %v2362
      %v2364 = vpop.f32.mrb[0].mxu0
      %2365 = vmatprep.mubr.bf16.mxu0 0
      %2366 = vmatmul.mubr.bf16.gmra.mrb[0].mxu0 %v2280
      %v2367 = vpop.f32.mrb[0].mxu0
      %v2368 = vadd.f32 %v764, %v2367
      %v2369 = vpop.f32.mrb[0].mxu0
      %v2370 = vpop.f32.mrb[0].mxu0
      %v2371 = vadd.f32 %v765, %v2370
      %v2372 = vpop.f32.mrb[0].mxu0
      %2373 = vmatprep.mubr.bf16.mxu0 0
      %2374 = vmatmul.mubr.bf16.gmra.mrb[0].mxu0 %v2283
      %v2375 = vpop.f32.mrb[0].mxu0
      %v2376 = vadd.f32 %v766, %v2375
      %v2377 = vpop.f32.mrb[0].mxu0
      %v2378 = vpop.f32.mrb[0].mxu0
      %v2379 = vadd.f32 %v767, %v2378
      %v2380 = vpop.f32.mrb[0].mxu0
      %2381 = vdwg.mxu0
      %2382 = vmax.xlane.f32.xlu0 %v2320
      %v2383 = vpop.xlane.xlu0 %2382
      %2384 = vmax.xlane.f32.xlu0 %v2323
      %v2385 = vpop.xlane.xlu0 %2384
      %2386 = vmax.xlane.f32.xlu0 %v2328
      %v2387 = vpop.xlane.xlu0 %2386
      %2388 = vmax.xlane.f32.xlu0 %v2331
      %v2389 = vpop.xlane.xlu0 %2388
      %2390 = vmax.xlane.f32.xlu0 %v2336
      %v2391 = vpop.xlane.xlu0 %2390
      %2392 = vmax.xlane.f32.xlu0 %v2339
      %v2393 = vpop.xlane.xlu0 %2392
      %2394 = vmax.xlane.f32.xlu0 %v2344
      %v2395 = vpop.xlane.xlu0 %2394
      %2396 = vmax.xlane.f32.xlu0 %v2347
      %v2397 = vpop.xlane.xlu0 %2396
      %2398 = vmax.xlane.f32.xlu0 %v2352
      %v2399 = vpop.xlane.xlu0 %2398
      %2400 = vmax.xlane.f32.xlu0 %v2355
      %v2401 = vpop.xlane.xlu0 %2400
      %2402 = vmax.xlane.f32.xlu0 %v2360
      %v2403 = vpop.xlane.xlu0 %2402
      %2404 = vmax.xlane.f32.xlu0 %v2363
      %v2405 = vpop.xlane.xlu0 %2404
      %2406 = vmax.xlane.f32.xlu0 %v2368
      %v2407 = vpop.xlane.xlu0 %2406
      %2408 = vmax.xlane.f32.xlu0 %v2371
      %v2409 = vpop.xlane.xlu0 %2408
      %2410 = vmax.xlane.f32.xlu0 %v2376
      %v2411 = vpop.xlane.xlu0 %2410
      %2412 = vmax.xlane.f32.xlu0 %v2379
      %v2413 = vpop.xlane.xlu0 %2412
      %v2414 = vsub.f32 %v2320, %v2383
      %v2415 = vsub.f32 %v2323, %v2385
      %v2416 = vsub.f32 %v2328, %v2387
      %v2417 = vsub.f32 %v2331, %v2389
      %v2418 = vsub.f32 %v2336, %v2391
      %v2419 = vsub.f32 %v2339, %v2393
      %v2420 = vsub.f32 %v2344, %v2395
      %v2421 = vsub.f32 %v2347, %v2397
      %v2422 = vsub.f32 %v2352, %v2399
      %v2423 = vsub.f32 %v2355, %v2401
      %v2424 = vsub.f32 %v2360, %v2403
      %v2425 = vsub.f32 %v2363, %v2405
      %v2426 = vsub.f32 %v2368, %v2407
      %v2427 = vsub.f32 %v2371, %v2409
      %v2428 = vsub.f32 %v2376, %v2411
      %v2429 = vsub.f32 %v2379, %v2413
      %v2430 = vmul.f32 %v2414, 1.442695
      %v2431 = vpow.pop %v2430
      %v2432 = vmul.f32 %v2415, 1.442695
      %v2433 = vpow.pop %v2432
      %v2434 = vmul.f32 %v2416, 1.442695
      %v2435 = vpow.pop %v2434
      %v2436 = vmul.f32 %v2417, 1.442695
      %v2437 = vpow.pop %v2436
      %v2438 = vmul.f32 %v2418, 1.442695
      %v2439 = vpow.pop %v2438
      %v2440 = vmul.f32 %v2419, 1.442695
      %v2441 = vpow.pop %v2440
      %v2442 = vmul.f32 %v2420, 1.442695
      %v2443 = vpow.pop %v2442
      %v2444 = vmul.f32 %v2421, 1.442695
      %v2445 = vpow.pop %v2444
      %v2446 = vmul.f32 %v2422, 1.442695
      %v2447 = vpow.pop %v2446
      %v2448 = vmul.f32 %v2423, 1.442695
      %v2449 = vpow.pop %v2448
      %v2450 = vmul.f32 %v2424, 1.442695
      %v2451 = vpow.pop %v2450
      %v2452 = vmul.f32 %v2425, 1.442695
      %v2453 = vpow.pop %v2452
      %v2454 = vmul.f32 %v2426, 1.442695
      %v2455 = vpow.pop %v2454
      %v2456 = vmul.f32 %v2427, 1.442695
      %v2457 = vpow.pop %v2456
      %v2458 = vmul.f32 %v2428, 1.442695
      %v2459 = vpow.pop %v2458
      %v2460 = vmul.f32 %v2429, 1.442695
      %v2461 = vpow.pop %v2460
      %2462 = vadd.xlane.f32.xlu0 %v2431
      %v2463 = vpop.xlane.xlu0 %2462
      %2464 = vadd.xlane.f32.xlu0 %v2433
      %v2465 = vpop.xlane.xlu0 %2464
      %2466 = vadd.xlane.f32.xlu0 %v2435
      %v2467 = vpop.xlane.xlu0 %2466
      %2468 = vadd.xlane.f32.xlu0 %v2437
      %v2469 = vpop.xlane.xlu0 %2468
      %2470 = vadd.xlane.f32.xlu0 %v2439
      %v2471 = vpop.xlane.xlu0 %2470
      %2472 = vadd.xlane.f32.xlu0 %v2441
      %v2473 = vpop.xlane.xlu0 %2472
      %2474 = vadd.xlane.f32.xlu0 %v2443
      %v2475 = vpop.xlane.xlu0 %2474
      %2476 = vadd.xlane.f32.xlu0 %v2445
      %v2477 = vpop.xlane.xlu0 %2476
      %2478 = vadd.xlane.f32.xlu0 %v2447
      %v2479 = vpop.xlane.xlu0 %2478
      %2480 = vadd.xlane.f32.xlu0 %v2449
      %v2481 = vpop.xlane.xlu0 %2480
      %2482 = vadd.xlane.f32.xlu0 %v2451
      %v2483 = vpop.xlane.xlu0 %2482
      %2484 = vadd.xlane.f32.xlu0 %v2453
      %v2485 = vpop.xlane.xlu0 %2484
      %2486 = vadd.xlane.f32.xlu0 %v2455
      %v2487 = vpop.xlane.xlu0 %2486
      %2488 = vadd.xlane.f32.xlu0 %v2457
      %v2489 = vpop.xlane.xlu0 %2488
      %2490 = vadd.xlane.f32.xlu0 %v2459
      %v2491 = vpop.xlane.xlu0 %2490
      %2492 = vadd.xlane.f32.xlu0 %v2461
      %v2493 = vpop.xlane.xlu0 %2492
      %v2494 = vrcp.pop %v2463
      %v2495 = vrcp.pop %v2465
      %v2496 = vrcp.pop %v2467
      %v2497 = vrcp.pop %v2469
      %v2498 = vrcp.pop %v2471
      %v2499 = vrcp.pop %v2473
      %v2500 = vrcp.pop %v2475
      %v2501 = vrcp.pop %v2477
      %v2502 = vrcp.pop %v2479
      %v2503 = vrcp.pop %v2481
      %v2504 = vrcp.pop %v2483
      %v2505 = vrcp.pop %v2485
      %v2506 = vrcp.pop %v2487
      %v2507 = vrcp.pop %v2489
      %v2508 = vrcp.pop %v2491
      %v2509 = vrcp.pop %v2493
      %v2510 = vmul.f32 %v2431, %v2494
      %v2511 = vmul.f32 %v2433, %v2495
      %v2512 = vmul.f32 %v2435, %v2496
      %v2513 = vmul.f32 %v2437, %v2497
      %v2514 = vmul.f32 %v2439, %v2498
      %v2515 = vmul.f32 %v2441, %v2499
      %v2516 = vmul.f32 %v2443, %v2500
      %v2517 = vmul.f32 %v2445, %v2501
      %v2518 = vmul.f32 %v2447, %v2502
      %v2519 = vmul.f32 %v2449, %v2503
      %v2520 = vmul.f32 %v2451, %v2504
      %v2521 = vmul.f32 %v2453, %v2505
      %v2522 = vmul.f32 %v2455, %v2506
      %v2523 = vmul.f32 %v2457, %v2507
      %v2524 = vmul.f32 %v2459, %v2508
      %v2525 = vmul.f32 %v2461, %v2509
      %v2526 = vpack.c.bf16 %v2511, %v2510
      %v2527 = vpack.c.bf16 %v2513, %v2512
      %v2528 = vpack.c.bf16 %v2515, %v2514
      %v2529 = vpack.c.bf16 %v2517, %v2516
      %v2530 = vpack.c.bf16 %v2519, %v2518
      %v2531 = vpack.c.bf16 %v2521, %v2520
      %v2532 = vpack.c.bf16 %v2523, %v2522
      %v2533 = vpack.c.bf16 %v2525, %v2524
      %2542 = vrot.lane.b32.xlu0 %v2253, 64
      %v2543 = vpop.permute.xlu0 %2542
      %2544 = vrot.lane.b32.xlu0 %v2254, 64
      %v2545 = vpop.permute.xlu0 %2544
      %2546 = vrot.lane.b32.xlu0 %v2255, 64
      %v2547 = vpop.permute.xlu0 %2546
      %2548 = vrot.lane.b32.xlu0 %v2256, 64
      %v2549 = vpop.permute.xlu0 %2548
      %2550 = vrot.lane.b32.xlu0 %v2257, 64
      %v2551 = vpop.permute.xlu0 %2550
      %2552 = vrot.lane.b32.xlu0 %v2258, 64
      %v2553 = vpop.permute.xlu0 %2552
      %2554 = vrot.lane.b32.xlu0 %v2259, 64
      %v2555 = vpop.permute.xlu0 %2554
      %2556 = vrot.lane.b32.xlu0 %v2260, 64
      %v2557 = vpop.permute.xlu0 %2556
      %2566 = vmatprep.subr.bf16.mxu0 0
      %2567 = vmatpush1.bf16.msra.mxu0 %v2543
      %2568 = vmatprep.subr.bf16.mxu0 0
      %2569 = vmatpush1.bf16.msra.mxu0 %v2545
      %2570 = vmatprep.subr.bf16.mxu0 0
      %2571 = vmatpush1.bf16.msra.mxu0 %v2547
      %2572 = vmatprep.subr.bf16.mxu0 0
      %2573 = vmatpush1.bf16.msra.mxu0 %v2549
      %2574 = vmatprep.subr.bf16.mxu0 0
      %2575 = vmatpush1.bf16.msra.mxu0 %v2551
      %2576 = vmatprep.subr.bf16.mxu0 0
      %2577 = vmatpush1.bf16.msra.mxu0 %v2553
      %2578 = vmatprep.subr.bf16.mxu0 0
      %2579 = vmatpush1.bf16.msra.mxu0 %v2555
      %2580 = vmatprep.subr.bf16.mxu0 0
      %2581 = vmatpush1.bf16.msra.mxu0 %v2557
      %2582 = vmatprep.subr.bf16.mxu0 0
      %2583 = vmatpush1.bf16.msra.mxu0 0
      %2584 = vmatprep.subr.bf16.mxu0 0
      %2585 = vmatpush1.bf16.msra.mxu0 0
      %2586 = vmatprep.subr.bf16.mxu0 0
      %2587 = vmatpush1.bf16.msra.mxu0 0
      %2588 = vmatprep.subr.bf16.mxu0 0
      %2589 = vmatpush1.bf16.msra.mxu0 0
      %2590 = vmatprep.subr.bf16.mxu0 0
      %2591 = vmatpush1.bf16.msra.mxu0 0
      %2592 = vmatprep.subr.bf16.mxu0 0
      %2593 = vmatpush1.bf16.msra.mxu0 0
      %2594 = vmatprep.subr.bf16.mxu0 0
      %2595 = vmatpush1.bf16.msra.mxu0 0
      %2596 = vmatprep.subr.bf16.mxu0 0
      %2597 = vmatpush1.bf16.msra.mxu0 0
      %2598 = vmatprep.mubr.bf16.mxu0 0
      %2599 = vmatmul.mubr.bf16.gmra.mrb[0].mxu0 %v2526
      %v2600 = vpop.f32.mrb[0].mxu0
      %v2601 = vadd.f32 0.0, %v2600
      %v2602 = vpop.f32.mrb[0].mxu0
      %v2603 = vpop.f32.mrb[0].mxu0
      %v2604 = vadd.f32 0.0, %v2603
      %v2605 = vpop.f32.mrb[0].mxu0
      %2606 = vmatprep.mubr.bf16.mxu0 0
      %2607 = vmatmul.mubr.bf16.gmra.mrb[0].mxu0 %v2527
      %v2608 = vpop.f32.mrb[0].mxu0
      %v2609 = vadd.f32 0.0, %v2608
      %v2610 = vpop.f32.mrb[0].mxu0
      %v2611 = vpop.f32.mrb[0].mxu0
      %v2612 = vadd.f32 0.0, %v2611
      %v2613 = vpop.f32.mrb[0].mxu0
      %2614 = vmatprep.mubr.bf16.mxu0 0
      %2615 = vmatmul.mubr.bf16.gmra.mrb[0].mxu0 %v2528
      %v2616 = vpop.f32.mrb[0].mxu0
      %v2617 = vadd.f32 0.0, %v2616
      %v2618 = vpop.f32.mrb[0].mxu0
      %v2619 = vpop.f32.mrb[0].mxu0
      %v2620 = vadd.f32 0.0, %v2619
      %v2621 = vpop.f32.mrb[0].mxu0
      %2622 = vmatprep.mubr.bf16.mxu0 0
      %2623 = vmatmul.mubr.bf16.gmra.mrb[0].mxu0 %v2529
      %v2624 = vpop.f32.mrb[0].mxu0
      %v2625 = vadd.f32 0.0, %v2624
      %v2626 = vpop.f32.mrb[0].mxu0
      %v2627 = vpop.f32.mrb[0].mxu0
      %v2628 = vadd.f32 0.0, %v2627
      %v2629 = vpop.f32.mrb[0].mxu0
      %2630 = vmatprep.mubr.bf16.mxu0 0
      %2631 = vmatmul.mubr.bf16.gmra.mrb[0].mxu0 %v2530
      %v2632 = vpop.f32.mrb[0].mxu0
      %v2633 = vadd.f32 0.0, %v2632
      %v2634 = vpop.f32.mrb[0].mxu0
      %v2635 = vpop.f32.mrb[0].mxu0
      %v2636 = vadd.f32 0.0, %v2635
      %v2637 = vpop.f32.mrb[0].mxu0
      %2638 = vmatprep.mubr.bf16.mxu0 0
      %2639 = vmatmul.mubr.bf16.gmra.mrb[0].mxu0 %v2531
      %v2640 = vpop.f32.mrb[0].mxu0
      %v2641 = vadd.f32 0.0, %v2640
      %v2642 = vpop.f32.mrb[0].mxu0
      %v2643 = vpop.f32.mrb[0].mxu0
      %v2644 = vadd.f32 0.0, %v2643
      %v2645 = vpop.f32.mrb[0].mxu0
      %2646 = vmatprep.mubr.bf16.mxu0 0
      %2647 = vmatmul.mubr.bf16.gmra.mrb[0].mxu0 %v2532
      %v2648 = vpop.f32.mrb[0].mxu0
      %v2649 = vadd.f32 0.0, %v2648
      %v2650 = vpop.f32.mrb[0].mxu0
      %v2651 = vpop.f32.mrb[0].mxu0
      %v2652 = vadd.f32 0.0, %v2651
      %v2653 = vpop.f32.mrb[0].mxu0
      %2654 = vmatprep.mubr.bf16.mxu0 0
      %2655 = vmatmul.mubr.bf16.gmra.mrb[0].mxu0 %v2533
      %v2656 = vpop.f32.mrb[0].mxu0
      %v2657 = vadd.f32 0.0, %v2656
      %v2658 = vpop.f32.mrb[0].mxu0
      %v2659 = vpop.f32.mrb[0].mxu0
      %v2660 = vadd.f32 0.0, %v2659
      %v2661 = vpop.f32.mrb[0].mxu0
      %2662 = vdwg.mxu0
      %v2663 = vadd.f32 %v2182, %v2601
      %v2664 = vadd.f32 %v2183, %v2604
      %v2665 = vadd.f32 %v2184, %v2609
      %v2666 = vadd.f32 %v2185, %v2612
      %v2667 = vadd.f32 %v2186, %v2617
      %v2668 = vadd.f32 %v2187, %v2620
      %v2669 = vadd.f32 %v2188, %v2625
      %v2670 = vadd.f32 %v2189, %v2628
      %v2671 = vadd.f32 %v2190, %v2633
      %v2672 = vadd.f32 %v2191, %v2636
      %v2673 = vadd.f32 %v2192, %v2641
      %v2674 = vadd.f32 %v2193, %v2644
      %v2675 = vadd.f32 %v2194, %v2649
      %v2676 = vadd.f32 %v2195, %v2652
      %v2677 = vadd.f32 %v2196, %v2657
      %v2678 = vadd.f32 %v2197, %v2660
      %v2679 = vmul.f32 %v771, 0.35355338
      %v2681 = vlaneseq
      %v2682 = vshrl.u32 %v2681, 7
      %v2683 = vsub.s32 0, %v2682
      %v2684 = vrot.slane %v2679, %v2683
      %v2686 = vmul.f32 %v1118, %v2684
      %v2687 = vmul.f32 %v1121, %v2684
      %v2688 = vmul.f32 %v1126, %v2684
      %v2689 = vmul.f32 %v1129, %v2684
      %v2690 = vmul.f32 %v1134, %v2684
      %v2691 = vmul.f32 %v1137, %v2684
      %v2692 = vmul.f32 %v1142, %v2684
      %v2693 = vmul.f32 %v1145, %v2684
      %v2694 = vmul.f32 %v1150, %v2684
      %v2695 = vmul.f32 %v1153, %v2684
      %v2696 = vmul.f32 %v1158, %v2684
      %v2697 = vmul.f32 %v1161, %v2684
      %v2698 = vmul.f32 %v1166, %v2684
      %v2699 = vmul.f32 %v1169, %v2684
      %v2700 = vmul.f32 %v1174, %v2684
      %v2701 = vmul.f32 %v1177, %v2684
      %v2702 = vpack.c.bf16 %v2687, %v2686
      %v2703 = vpack.c.bf16 %v2689, %v2688
      %v2704 = vpack.c.bf16 %v2691, %v2690
      %v2705 = vpack.c.bf16 %v2693, %v2692
      %v2706 = vpack.c.bf16 %v2695, %v2694
      %v2707 = vpack.c.bf16 %v2697, %v2696
      %v2708 = vpack.c.bf16 %v2699, %v2698
      %v2709 = vpack.c.bf16 %v2701, %v2700
      %v2711 = vlaneseq
      %v2712 = vshrl.u32 %v2711, 7
      %v2713 = vsub.s32 0, %v2712
      %v2714 = vrot.slane %v771, %v2713
      %2715 = vrot.lane.b32.xlu0 %v2714, 64
      %v2716 = vpop.permute.xlu0 %2715
      %v2718 = vmul.f32 %v1118, %v2716
      %v2719 = vmul.f32 %v1121, %v2716
      %v2720 = vmul.f32 %v1126, %v2716
      %v2721 = vmul.f32 %v1129, %v2716
      %v2722 = vmul.f32 %v1134, %v2716
      %v2723 = vmul.f32 %v1137, %v2716
      %v2724 = vmul.f32 %v1142, %v2716
      %v2725 = vmul.f32 %v1145, %v2716
      %v2726 = vmul.f32 %v1150, %v2716
      %v2727 = vmul.f32 %v1153, %v2716
      %v2728 = vmul.f32 %v1158, %v2716
      %v2729 = vmul.f32 %v1161, %v2716
      %v2730 = vmul.f32 %v1166, %v2716
      %v2731 = vmul.f32 %v1169, %v2716
      %v2732 = vmul.f32 %v1174, %v2716
      %v2733 = vmul.f32 %v1177, %v2716
      %v2734 = vpack.c.bf16 %v2719, %v2718
      %v2735 = vpack.c.bf16 %v2721, %v2720
      %v2736 = vpack.c.bf16 %v2723, %v2722
      %v2737 = vpack.c.bf16 %v2725, %v2724
      %v2738 = vpack.c.bf16 %v2727, %v2726
      %v2739 = vpack.c.bf16 %v2729, %v2728
      %v2740 = vpack.c.bf16 %v2731, %v2730
      %v2741 = vpack.c.bf16 %v2733, %v2732
      %v2743 = vsel %vm774, %v2702, 0
      %v2746 = vsel %vm774, %v2703, 0
      %v2749 = vsel %vm774, %v2704, 0
      %v2752 = vsel %vm774, %v2705, 0
      %v2755 = vsel %vm774, %v2706, 0
      %v2758 = vsel %vm774, %v2707, 0
      %v2761 = vsel %vm774, %v2708, 0
      %v2764 = vsel %vm774, %v2709, 0
      %2766 = vmatprep.subr.bf16.mxu0 0
      %2767 = vmatpush1.bf16.xpose.msra.mxu0 %v1300
      %2768 = vmatprep.subr.bf16.mxu0 0
      %2769 = vmatpush1.bf16.xpose.msra.mxu0 %v1303
      %2770 = vmatprep.subr.bf16.mxu0 0
      %2771 = vmatpush1.bf16.xpose.msra.mxu0 %v1306
      %2772 = vmatprep.subr.bf16.mxu0 0
      %2773 = vmatpush1.bf16.xpose.msra.mxu0 %v1309
      %2774 = vmatprep.subr.bf16.mxu0 0
      %2775 = vmatpush1.bf16.xpose.msra.mxu0 %v1312
      %2776 = vmatprep.subr.bf16.mxu0 0
      %2777 = vmatpush1.bf16.xpose.msra.mxu0 %v1315
      %2778 = vmatprep.subr.bf16.mxu0 0
      %2779 = vmatpush1.bf16.xpose.msra.mxu0 %v1318
      %2780 = vmatprep.subr.bf16.mxu0 0
      %2781 = vmatpush1.bf16.xpose.msra.mxu0 %v1321
      %2782 = vmatprep.subr.bf16.mxu0 0
      %2783 = vmatpush1.bf16.xpose.msra.mxu0 0
      %2784 = vmatprep.subr.bf16.mxu0 0
      %2785 = vmatpush1.bf16.xpose.msra.mxu0 0
      %2786 = vmatprep.subr.bf16.mxu0 0
      %2787 = vmatpush1.bf16.xpose.msra.mxu0 0
      %2788 = vmatprep.subr.bf16.mxu0 0
      %2789 = vmatpush1.bf16.xpose.msra.mxu0 0
      %2790 = vmatprep.subr.bf16.mxu0 0
      %2791 = vmatpush1.bf16.xpose.msra.mxu0 0
      %2792 = vmatprep.subr.bf16.mxu0 0
      %2793 = vmatpush1.bf16.xpose.msra.mxu0 0
      %2794 = vmatprep.subr.bf16.mxu0 0
      %2795 = vmatpush1.bf16.xpose.msra.mxu0 0
      %2796 = vmatprep.subr.bf16.mxu0 0
      %2797 = vmatpush1.bf16.xpose.msra.mxu0 0
      %2798 = vmatprep.mubr.bf16.mxu0 0
      %2799 = vmatmul.mubr.bf16.gmra.mrb[0].mxu0 %v2743
      %v2800 = vpop.f32.mrb[0].mxu0
      %v2801 = vadd.f32 %v752, %v2800
      %v2802 = vpop.f32.mrb[0].mxu0
      %v2803 = vpop.f32.mrb[0].mxu0
      %v2804 = vadd.f32 %v753, %v2803
      %v2805 = vpop.f32.mrb[0].mxu0
      %2806 = vmatprep.mubr.bf16.mxu0 0
      %2807 = vmatmul.mubr.bf16.gmra.mrb[0].mxu0 %v2746
      %v2808 = vpop.f32.mrb[0].mxu0
      %v2809 = vadd.f32 %v754, %v2808
      %v2810 = vpop.f32.mrb[0].mxu0
      %v2811 = vpop.f32.mrb[0].mxu0
      %v2812 = vadd.f32 %v755, %v2811
      %v2813 = vpop.f32.mrb[0].mxu0
      %2814 = vmatprep.mubr.bf16.mxu0 0
      %2815 = vmatmul.mubr.bf16.gmra.mrb[0].mxu0 %v2749
      %v2816 = vpop.f32.mrb[0].mxu0
      %v2817 = vadd.f32 %v756, %v2816
      %v2818 = vpop.f32.mrb[0].mxu0
      %v2819 = vpop.f32.mrb[0].mxu0
      %v2820 = vadd.f32 %v757, %v2819
      %v2821 = vpop.f32.mrb[0].mxu0
      %2822 = vmatprep.mubr.bf16.mxu0 0
      %2823 = vmatmul.mubr.bf16.gmra.mrb[0].mxu0 %v2752
      %v2824 = vpop.f32.mrb[0].mxu0
      %v2825 = vadd.f32 %v758, %v2824
      %v2826 = vpop.f32.mrb[0].mxu0
      %v2827 = vpop.f32.mrb[0].mxu0
      %v2828 = vadd.f32 %v759, %v2827
      %v2829 = vpop.f32.mrb[0].mxu0
      %2830 = vmatprep.mubr.bf16.mxu0 0
      %2831 = vmatmul.mubr.bf16.gmra.mrb[0].mxu0 %v2755
      %v2832 = vpop.f32.mrb[0].mxu0
      %v2833 = vadd.f32 %v760, %v2832
      %v2834 = vpop.f32.mrb[0].mxu0
      %v2835 = vpop.f32.mrb[0].mxu0
      %v2836 = vadd.f32 %v761, %v2835
      %v2837 = vpop.f32.mrb[0].mxu0
      %2838 = vmatprep.mubr.bf16.mxu0 0
      %2839 = vmatmul.mubr.bf16.gmra.mrb[0].mxu0 %v2758
      %v2840 = vpop.f32.mrb[0].mxu0
      %v2841 = vadd.f32 %v762, %v2840
      %v2842 = vpop.f32.mrb[0].mxu0
      %v2843 = vpop.f32.mrb[0].mxu0
      %v2844 = vadd.f32 %v763, %v2843
      %v2845 = vpop.f32.mrb[0].mxu0
      %2846 = vmatprep.mubr.bf16.mxu0 0
      %2847 = vmatmul.mubr.bf16.gmra.mrb[0].mxu0 %v2761
      %v2848 = vpop.f32.mrb[0].mxu0
      %v2849 = vadd.f32 %v764, %v2848
      %v2850 = vpop.f32.mrb[0].mxu0
      %v2851 = vpop.f32.mrb[0].mxu0
      %v2852 = vadd.f32 %v765, %v2851
      %v2853 = vpop.f32.mrb[0].mxu0
      %2854 = vmatprep.mubr.bf16.mxu0 0
      %2855 = vmatmul.mubr.bf16.gmra.mrb[0].mxu0 %v2764
      %v2856 = vpop.f32.mrb[0].mxu0
      %v2857 = vadd.f32 %v766, %v2856
      %v2858 = vpop.f32.mrb[0].mxu0
      %v2859 = vpop.f32.mrb[0].mxu0
      %v2860 = vadd.f32 %v767, %v2859
      %v2861 = vpop.f32.mrb[0].mxu0
      %2862 = vdwg.mxu0
      %2863 = vmax.xlane.f32.xlu0 %v2801
      %v2864 = vpop.xlane.xlu0 %2863
      %2865 = vmax.xlane.f32.xlu0 %v2804
      %v2866 = vpop.xlane.xlu0 %2865
      %2867 = vmax.xlane.f32.xlu0 %v2809
      %v2868 = vpop.xlane.xlu0 %2867
      %2869 = vmax.xlane.f32.xlu0 %v2812
      %v2870 = vpop.xlane.xlu0 %2869
      %2871 = vmax.xlane.f32.xlu0 %v2817
      %v2872 = vpop.xlane.xlu0 %2871
      %2873 = vmax.xlane.f32.xlu0 %v2820
      %v2874 = vpop.xlane.xlu0 %2873
      %2875 = vmax.xlane.f32.xlu0 %v2825
      %v2876 = vpop.xlane.xlu0 %2875
      %2877 = vmax.xlane.f32.xlu0 %v2828
      %v2878 = vpop.xlane.xlu0 %2877
      %2879 = vmax.xlane.f32.xlu0 %v2833
      %v2880 = vpop.xlane.xlu0 %2879
      %2881 = vmax.xlane.f32.xlu0 %v2836
      %v2882 = vpop.xlane.xlu0 %2881
      %2883 = vmax.xlane.f32.xlu0 %v2841
      %v2884 = vpop.xlane.xlu0 %2883
      %2885 = vmax.xlane.f32.xlu0 %v2844
      %v2886 = vpop.xlane.xlu0 %2885
      %2887 = vmax.xlane.f32.xlu0 %v2849
      %v2888 = vpop.xlane.xlu0 %2887
      %2889 = vmax.xlane.f32.xlu0 %v2852
      %v2890 = vpop.xlane.xlu0 %2889
      %2891 = vmax.xlane.f32.xlu0 %v2857
      %v2892 = vpop.xlane.xlu0 %2891
      %2893 = vmax.xlane.f32.xlu0 %v2860
      %v2894 = vpop.xlane.xlu0 %2893
      %v2895 = vsub.f32 %v2801, %v2864
      %v2896 = vsub.f32 %v2804, %v2866
      %v2897 = vsub.f32 %v2809, %v2868
      %v2898 = vsub.f32 %v2812, %v2870
      %v2899 = vsub.f32 %v2817, %v2872
      %v2900 = vsub.f32 %v2820, %v2874
      %v2901 = vsub.f32 %v2825, %v2876
      %v2902 = vsub.f32 %v2828, %v2878
      %v2903 = vsub.f32 %v2833, %v2880
      %v2904 = vsub.f32 %v2836, %v2882
      %v2905 = vsub.f32 %v2841, %v2884
      %v2906 = vsub.f32 %v2844, %v2886
      %v2907 = vsub.f32 %v2849, %v2888
      %v2908 = vsub.f32 %v2852, %v2890
      %v2909 = vsub.f32 %v2857, %v2892
      %v2910 = vsub.f32 %v2860, %v2894
      %v2911 = vmul.f32 %v2895, 1.442695
      %v2912 = vpow.pop %v2911
      %v2913 = vmul.f32 %v2896, 1.442695
      %v2914 = vpow.pop %v2913
      %v2915 = vmul.f32 %v2897, 1.442695
      %v2916 = vpow.pop %v2915
      %v2917 = vmul.f32 %v2898, 1.442695
      %v2918 = vpow.pop %v2917
      %v2919 = vmul.f32 %v2899, 1.442695
      %v2920 = vpow.pop %v2919
      %v2921 = vmul.f32 %v2900, 1.442695
      %v2922 = vpow.pop %v2921
      %v2923 = vmul.f32 %v2901, 1.442695
      %v2924 = vpow.pop %v2923
      %v2925 = vmul.f32 %v2902, 1.442695
      %v2926 = vpow.pop %v2925
      %v2927 = vmul.f32 %v2903, 1.442695
      %v2928 = vpow.pop %v2927
      %v2929 = vmul.f32 %v2904, 1.442695
      %v2930 = vpow.pop %v2929
      %v2931 = vmul.f32 %v2905, 1.442695
      %v2932 = vpow.pop %v2931
      %v2933 = vmul.f32 %v2906, 1.442695
      %v2934 = vpow.pop %v2933
      %v2935 = vmul.f32 %v2907, 1.442695
      %v2936 = vpow.pop %v2935
      %v2937 = vmul.f32 %v2908, 1.442695
      %v2938 = vpow.pop %v2937
      %v2939 = vmul.f32 %v2909, 1.442695
      %v2940 = vpow.pop %v2939
      %v2941 = vmul.f32 %v2910, 1.442695
      %v2942 = vpow.pop %v2941
      %2943 = vadd.xlane.f32.xlu0 %v2912
      %v2944 = vpop.xlane.xlu0 %2943
      %2945 = vadd.xlane.f32.xlu0 %v2914
      %v2946 = vpop.xlane.xlu0 %2945
      %2947 = vadd.xlane.f32.xlu0 %v2916
      %v2948 = vpop.xlane.xlu0 %2947
      %2949 = vadd.xlane.f32.xlu0 %v2918
      %v2950 = vpop.xlane.xlu0 %2949
      %2951 = vadd.xlane.f32.xlu0 %v2920
      %v2952 = vpop.xlane.xlu0 %2951
      %2953 = vadd.xlane.f32.xlu0 %v2922
      %v2954 = vpop.xlane.xlu0 %2953
      %2955 = vadd.xlane.f32.xlu0 %v2924
      %v2956 = vpop.xlane.xlu0 %2955
      %2957 = vadd.xlane.f32.xlu0 %v2926
      %v2958 = vpop.xlane.xlu0 %2957
      %2959 = vadd.xlane.f32.xlu0 %v2928
      %v2960 = vpop.xlane.xlu0 %2959
      %2961 = vadd.xlane.f32.xlu0 %v2930
      %v2962 = vpop.xlane.xlu0 %2961
      %2963 = vadd.xlane.f32.xlu0 %v2932
      %v2964 = vpop.xlane.xlu0 %2963
      %2965 = vadd.xlane.f32.xlu0 %v2934
      %v2966 = vpop.xlane.xlu0 %2965
      %2967 = vadd.xlane.f32.xlu0 %v2936
      %v2968 = vpop.xlane.xlu0 %2967
      %2969 = vadd.xlane.f32.xlu0 %v2938
      %v2970 = vpop.xlane.xlu0 %2969
      %2971 = vadd.xlane.f32.xlu0 %v2940
      %v2972 = vpop.xlane.xlu0 %2971
      %2973 = vadd.xlane.f32.xlu0 %v2942
      %v2974 = vpop.xlane.xlu0 %2973
      %v2975 = vrcp.pop %v2944
      %v2976 = vrcp.pop %v2946
      %v2977 = vrcp.pop %v2948
      %v2978 = vrcp.pop %v2950
      %v2979 = vrcp.pop %v2952
      %v2980 = vrcp.pop %v2954
      %v2981 = vrcp.pop %v2956
      %v2982 = vrcp.pop %v2958
      %v2983 = vrcp.pop %v2960
      %v2984 = vrcp.pop %v2962
      %v2985 = vrcp.pop %v2964
      %v2986 = vrcp.pop %v2966
      %v2987 = vrcp.pop %v2968
      %v2988 = vrcp.pop %v2970
      %v2989 = vrcp.pop %v2972
      %v2990 = vrcp.pop %v2974
      %v2991 = vmul.f32 %v2912, %v2975
      %v2992 = vmul.f32 %v2914, %v2976
      %v2993 = vmul.f32 %v2916, %v2977
      %v2994 = vmul.f32 %v2918, %v2978
      %v2995 = vmul.f32 %v2920, %v2979
      %v2996 = vmul.f32 %v2922, %v2980
      %v2997 = vmul.f32 %v2924, %v2981
      %v2998 = vmul.f32 %v2926, %v2982
      %v2999 = vmul.f32 %v2928, %v2983
      %v3000 = vmul.f32 %v2930, %v2984
      %v3001 = vmul.f32 %v2932, %v2985
      %v3002 = vmul.f32 %v2934, %v2986
      %v3003 = vmul.f32 %v2936, %v2987
      %v3004 = vmul.f32 %v2938, %v2988
      %v3005 = vmul.f32 %v2940, %v2989
      %v3006 = vmul.f32 %v2942, %v2990
      %v3007 = vpack.c.bf16 %v2992, %v2991
      %v3008 = vpack.c.bf16 %v2994, %v2993
      %v3009 = vpack.c.bf16 %v2996, %v2995
      %v3010 = vpack.c.bf16 %v2998, %v2997
      %v3011 = vpack.c.bf16 %v3000, %v2999
      %v3012 = vpack.c.bf16 %v3002, %v3001
      %v3013 = vpack.c.bf16 %v3004, %v3003
      %v3014 = vpack.c.bf16 %v3006, %v3005
      %3023 = vrot.lane.b32.xlu0 %v2734, 64
      %v3024 = vpop.permute.xlu0 %3023
      %3025 = vrot.lane.b32.xlu0 %v2735, 64
      %v3026 = vpop.permute.xlu0 %3025
      %3027 = vrot.lane.b32.xlu0 %v2736, 64
      %v3028 = vpop.permute.xlu0 %3027
      %3029 = vrot.lane.b32.xlu0 %v2737, 64
      %v3030 = vpop.permute.xlu0 %3029
      %3031 = vrot.lane.b32.xlu0 %v2738, 64
      %v3032 = vpop.permute.xlu0 %3031
      %3033 = vrot.lane.b32.xlu0 %v2739, 64
      %v3034 = vpop.permute.xlu0 %3033
      %3035 = vrot.lane.b32.xlu0 %v2740, 64
      %v3036 = vpop.permute.xlu0 %3035
      %3037 = vrot.lane.b32.xlu0 %v2741, 64
      %v3038 = vpop.permute.xlu0 %3037
      %3047 = vmatprep.subr.bf16.mxu0 0
      %3048 = vmatpush1.bf16.msra.mxu0 %v3024
      %3049 = vmatprep.subr.bf16.mxu0 0
      %3050 = vmatpush1.bf16.msra.mxu0 %v3026
      %3051 = vmatprep.subr.bf16.mxu0 0
      %3052 = vmatpush1.bf16.msra.mxu0 %v3028
      %3053 = vmatprep.subr.bf16.mxu0 0
      %3054 = vmatpush1.bf16.msra.mxu0 %v3030
      %3055 = vmatprep.subr.bf16.mxu0 0
      %3056 = vmatpush1.bf16.msra.mxu0 %v3032
      %3057 = vmatprep.subr.bf16.mxu0 0
      %3058 = vmatpush1.bf16.msra.mxu0 %v3034
      %3059 = vmatprep.subr.bf16.mxu0 0
      %3060 = vmatpush1.bf16.msra.mxu0 %v3036
      %3061 = vmatprep.subr.bf16.mxu0 0
      %3062 = vmatpush1.bf16.msra.mxu0 %v3038
      %3063 = vmatprep.subr.bf16.mxu0 0
      %3064 = vmatpush1.bf16.msra.mxu0 0
      %3065 = vmatprep.subr.bf16.mxu0 0
      %3066 = vmatpush1.bf16.msra.mxu0 0
      %3067 = vmatprep.subr.bf16.mxu0 0
      %3068 = vmatpush1.bf16.msra.mxu0 0
      %3069 = vmatprep.subr.bf16.mxu0 0
      %3070 = vmatpush1.bf16.msra.mxu0 0
      %3071 = vmatprep.subr.bf16.mxu0 0
      %3072 = vmatpush1.bf16.msra.mxu0 0
      %3073 = vmatprep.subr.bf16.mxu0 0
      %3074 = vmatpush1.bf16.msra.mxu0 0
      %3075 = vmatprep.subr.bf16.mxu0 0
      %3076 = vmatpush1.bf16.msra.mxu0 0
      %3077 = vmatprep.subr.bf16.mxu0 0
      %3078 = vmatpush1.bf16.msra.mxu0 0
      %3079 = vmatprep.mubr.bf16.mxu0 0
      %3080 = vmatmul.mubr.bf16.gmra.mrb[0].mxu0 %v3007
      %v3081 = vpop.f32.mrb[0].mxu0
      %v3082 = vadd.f32 0.0, %v3081
      %v3083 = vpop.f32.mrb[0].mxu0
      %v3084 = vpop.f32.mrb[0].mxu0
      %v3085 = vadd.f32 0.0, %v3084
      %v3086 = vpop.f32.mrb[0].mxu0
      %3087 = vmatprep.mubr.bf16.mxu0 0
      %3088 = vmatmul.mubr.bf16.gmra.mrb[0].mxu0 %v3008
      %v3089 = vpop.f32.mrb[0].mxu0
      %v3090 = vadd.f32 0.0, %v3089
      %v3091 = vpop.f32.mrb[0].mxu0
      %v3092 = vpop.f32.mrb[0].mxu0
      %v3093 = vadd.f32 0.0, %v3092
      %v3094 = vpop.f32.mrb[0].mxu0
      %3095 = vmatprep.mubr.bf16.mxu0 0
      %3096 = vmatmul.mubr.bf16.gmra.mrb[0].mxu0 %v3009
      %v3097 = vpop.f32.mrb[0].mxu0
      %v3098 = vadd.f32 0.0, %v3097
      %v3099 = vpop.f32.mrb[0].mxu0
      %v3100 = vpop.f32.mrb[0].mxu0
      %v3101 = vadd.f32 0.0, %v3100
      %v3102 = vpop.f32.mrb[0].mxu0
      %3103 = vmatprep.mubr.bf16.mxu0 0
      %3104 = vmatmul.mubr.bf16.gmra.mrb[0].mxu0 %v3010
      %v3105 = vpop.f32.mrb[0].mxu0
      %v3106 = vadd.f32 0.0, %v3105
      %v3107 = vpop.f32.mrb[0].mxu0
      %v3108 = vpop.f32.mrb[0].mxu0
      %v3109 = vadd.f32 0.0, %v3108
      %v3110 = vpop.f32.mrb[0].mxu0
      %3111 = vmatprep.mubr.bf16.mxu0 0
      %3112 = vmatmul.mubr.bf16.gmra.mrb[0].mxu0 %v3011
      %v3113 = vpop.f32.mrb[0].mxu0
      %v3114 = vadd.f32 0.0, %v3113
      %v3115 = vpop.f32.mrb[0].mxu0
      %v3116 = vpop.f32.mrb[0].mxu0
      %v3117 = vadd.f32 0.0, %v3116
      %v3118 = vpop.f32.mrb[0].mxu0
      %3119 = vmatprep.mubr.bf16.mxu0 0
      %3120 = vmatmul.mubr.bf16.gmra.mrb[0].mxu0 %v3012
      %v3121 = vpop.f32.mrb[0].mxu0
      %v3122 = vadd.f32 0.0, %v3121
      %v3123 = vpop.f32.mrb[0].mxu0
      %v3124 = vpop.f32.mrb[0].mxu0
      %v3125 = vadd.f32 0.0, %v3124
      %v3126 = vpop.f32.mrb[0].mxu0
      %3127 = vmatprep.mubr.bf16.mxu0 0
      %3128 = vmatmul.mubr.bf16.gmra.mrb[0].mxu0 %v3013
      %v3129 = vpop.f32.mrb[0].mxu0
      %v3130 = vadd.f32 0.0, %v3129
      %v3131 = vpop.f32.mrb[0].mxu0
      %v3132 = vpop.f32.mrb[0].mxu0
      %v3133 = vadd.f32 0.0, %v3132
      %v3134 = vpop.f32.mrb[0].mxu0
      %3135 = vmatprep.mubr.bf16.mxu0 0
      %3136 = vmatmul.mubr.bf16.gmra.mrb[0].mxu0 %v3014
      %v3137 = vpop.f32.mrb[0].mxu0
      %v3138 = vadd.f32 0.0, %v3137
      %v3139 = vpop.f32.mrb[0].mxu0
      %v3140 = vpop.f32.mrb[0].mxu0
      %v3141 = vadd.f32 0.0, %v3140
      %v3142 = vpop.f32.mrb[0].mxu0
      %3143 = vdwg.mxu0
      %v3144 = vadd.f32 %v2663, %v3082
      %v3145 = vadd.f32 %v2664, %v3085
      %v3146 = vadd.f32 %v2665, %v3090
      %v3147 = vadd.f32 %v2666, %v3093
      %v3148 = vadd.f32 %v2667, %v3098
      %v3149 = vadd.f32 %v2668, %v3101
      %v3150 = vadd.f32 %v2669, %v3106
      %v3151 = vadd.f32 %v2670, %v3109
      %v3152 = vadd.f32 %v2671, %v3114
      %v3153 = vadd.f32 %v2672, %v3117
      %v3154 = vadd.f32 %v2673, %v3122
      %v3155 = vadd.f32 %v2674, %v3125
      %v3156 = vadd.f32 %v2675, %v3130
      %v3157 = vadd.f32 %v2676, %v3133
      %v3158 = vadd.f32 %v2677, %v3138
      %v3159 = vadd.f32 %v2678, %v3141
      %v3160 = vld [vmem:[%s9] sm:$0x1]
      %v3161 = vld [vmem:[%s10] sm:$0x1]
      %v3162 = vsel %vm774, %v3144, 0.0
      %3163 = vadd.xlane.f32.xlu0 %v3162
      %v3164 = vpop.xlane.xlu0 %3163
      %v3165 = vsel %vm774, %v3145, 0.0
      %3166 = vadd.xlane.f32.xlu0 %v3165
      %v3167 = vpop.xlane.xlu0 %3166
      %v3168 = vsel %vm774, %v3146, 0.0
      %3169 = vadd.xlane.f32.xlu0 %v3168
      %v3170 = vpop.xlane.xlu0 %3169
      %v3171 = vsel %vm774, %v3147, 0.0
      %3172 = vadd.xlane.f32.xlu0 %v3171
      %v3173 = vpop.xlane.xlu0 %3172
      %v3174 = vsel %vm774, %v3148, 0.0
      %3175 = vadd.xlane.f32.xlu0 %v3174
      %v3176 = vpop.xlane.xlu0 %3175
      %v3177 = vsel %vm774, %v3149, 0.0
      %3178 = vadd.xlane.f32.xlu0 %v3177
      %v3179 = vpop.xlane.xlu0 %3178
      %v3180 = vsel %vm774, %v3150, 0.0
      %3181 = vadd.xlane.f32.xlu0 %v3180
      %v3182 = vpop.xlane.xlu0 %3181
      %v3183 = vsel %vm774, %v3151, 0.0
      %3184 = vadd.xlane.f32.xlu0 %v3183
      %v3185 = vpop.xlane.xlu0 %3184
      %v3186 = vsel %vm774, %v3152, 0.0
      %3187 = vadd.xlane.f32.xlu0 %v3186
      %v3188 = vpop.xlane.xlu0 %3187
      %v3189 = vsel %vm774, %v3153, 0.0
      %3190 = vadd.xlane.f32.xlu0 %v3189
      %v3191 = vpop.xlane.xlu0 %3190
      %v3192 = vsel %vm774, %v3154, 0.0
      %3193 = vadd.xlane.f32.xlu0 %v3192
      %v3194 = vpop.xlane.xlu0 %3193
      %v3195 = vsel %vm774, %v3155, 0.0
      %3196 = vadd.xlane.f32.xlu0 %v3195
      %v3197 = vpop.xlane.xlu0 %3196
      %v3198 = vsel %vm774, %v3156, 0.0
      %3199 = vadd.xlane.f32.xlu0 %v3198
      %v3200 = vpop.xlane.xlu0 %3199
      %v3201 = vsel %vm774, %v3157, 0.0
      %3202 = vadd.xlane.f32.xlu0 %v3201
      %v3203 = vpop.xlane.xlu0 %3202
      %v3204 = vsel %vm774, %v3158, 0.0
      %3205 = vadd.xlane.f32.xlu0 %v3204
      %v3206 = vpop.xlane.xlu0 %3205
      %v3207 = vsel %vm774, %v3159, 0.0
      %3208 = vadd.xlane.f32.xlu0 %v3207
      %v3209 = vpop.xlane.xlu0 %3208
      %v3210 = vmul.f32 %v3164, %v823
      %v3211 = vmul.f32 %v3167, %v823
      %v3212 = vmul.f32 %v3170, %v823
      %v3213 = vmul.f32 %v3173, %v823
      %v3214 = vmul.f32 %v3176, %v823
      %v3215 = vmul.f32 %v3179, %v823
      %v3216 = vmul.f32 %v3182, %v823
      %v3217 = vmul.f32 %v3185, %v823
      %v3218 = vmul.f32 %v3188, %v823
      %v3219 = vmul.f32 %v3191, %v823
      %v3220 = vmul.f32 %v3194, %v823
      %v3221 = vmul.f32 %v3197, %v823
      %v3222 = vmul.f32 %v3200, %v823
      %v3223 = vmul.f32 %v3203, %v823
      %v3224 = vmul.f32 %v3206, %v823
      %v3225 = vmul.f32 %v3209, %v823
      %v3226 = vsub.f32 %v3144, %v3210
      %v3227 = vsub.f32 %v3145, %v3211
      %v3228 = vsub.f32 %v3146, %v3212
      %v3229 = vsub.f32 %v3147, %v3213
      %v3230 = vsub.f32 %v3148, %v3214
      %v3231 = vsub.f32 %v3149, %v3215
      %v3232 = vsub.f32 %v3150, %v3216
      %v3233 = vsub.f32 %v3151, %v3217
      %v3234 = vsub.f32 %v3152, %v3218
      %v3235 = vsub.f32 %v3153, %v3219
      %v3236 = vsub.f32 %v3154, %v3220
      %v3237 = vsub.f32 %v3155, %v3221
      %v3238 = vsub.f32 %v3156, %v3222
      %v3239 = vsub.f32 %v3157, %v3223
      %v3240 = vsub.f32 %v3158, %v3224
      %v3241 = vsub.f32 %v3159, %v3225
      %v3242 = vmul.f32 %v3226, %v3226
      %v3243 = vmul.f32 %v3227, %v3227
      %v3244 = vmul.f32 %v3228, %v3228
      %v3245 = vmul.f32 %v3229, %v3229
      %v3246 = vmul.f32 %v3230, %v3230
      %v3247 = vmul.f32 %v3231, %v3231
      %v3248 = vmul.f32 %v3232, %v3232
      %v3249 = vmul.f32 %v3233, %v3233
      %v3250 = vmul.f32 %v3234, %v3234
      %v3251 = vmul.f32 %v3235, %v3235
      %v3252 = vmul.f32 %v3236, %v3236
      %v3253 = vmul.f32 %v3237, %v3237
      %v3254 = vmul.f32 %v3238, %v3238
      %v3255 = vmul.f32 %v3239, %v3239
      %v3256 = vmul.f32 %v3240, %v3240
      %v3257 = vmul.f32 %v3241, %v3241
      %v3258 = vsel %vm774, %v3242, 0.0
      %3259 = vadd.xlane.f32.xlu0 %v3258
      %v3260 = vpop.xlane.xlu0 %3259
      %v3261 = vsel %vm774, %v3243, 0.0
      %3262 = vadd.xlane.f32.xlu0 %v3261
      %v3263 = vpop.xlane.xlu0 %3262
      %v3264 = vsel %vm774, %v3244, 0.0
      %3265 = vadd.xlane.f32.xlu0 %v3264
      %v3266 = vpop.xlane.xlu0 %3265
      %v3267 = vsel %vm774, %v3245, 0.0
      %3268 = vadd.xlane.f32.xlu0 %v3267
      %v3269 = vpop.xlane.xlu0 %3268
      %v3270 = vsel %vm774, %v3246, 0.0
      %3271 = vadd.xlane.f32.xlu0 %v3270
      %v3272 = vpop.xlane.xlu0 %3271
      %v3273 = vsel %vm774, %v3247, 0.0
      %3274 = vadd.xlane.f32.xlu0 %v3273
      %v3275 = vpop.xlane.xlu0 %3274
      %v3276 = vsel %vm774, %v3248, 0.0
      %3277 = vadd.xlane.f32.xlu0 %v3276
      %v3278 = vpop.xlane.xlu0 %3277
      %v3279 = vsel %vm774, %v3249, 0.0
      %3280 = vadd.xlane.f32.xlu0 %v3279
      %v3281 = vpop.xlane.xlu0 %3280
      %v3282 = vsel %vm774, %v3250, 0.0
      %3283 = vadd.xlane.f32.xlu0 %v3282
      %v3284 = vpop.xlane.xlu0 %3283
      %v3285 = vsel %vm774, %v3251, 0.0
      %3286 = vadd.xlane.f32.xlu0 %v3285
      %v3287 = vpop.xlane.xlu0 %3286
      %v3288 = vsel %vm774, %v3252, 0.0
      %3289 = vadd.xlane.f32.xlu0 %v3288
      %v3290 = vpop.xlane.xlu0 %3289
      %v3291 = vsel %vm774, %v3253, 0.0
      %3292 = vadd.xlane.f32.xlu0 %v3291
      %v3293 = vpop.xlane.xlu0 %3292
      %v3294 = vsel %vm774, %v3254, 0.0
      %3295 = vadd.xlane.f32.xlu0 %v3294
      %v3296 = vpop.xlane.xlu0 %3295
      %v3297 = vsel %vm774, %v3255, 0.0
      %3298 = vadd.xlane.f32.xlu0 %v3297
      %v3299 = vpop.xlane.xlu0 %3298
      %v3300 = vsel %vm774, %v3256, 0.0
      %3301 = vadd.xlane.f32.xlu0 %v3300
      %v3302 = vpop.xlane.xlu0 %3301
      %v3303 = vsel %vm774, %v3257, 0.0
      %3304 = vadd.xlane.f32.xlu0 %v3303
      %v3305 = vpop.xlane.xlu0 %3304
      %v3306 = vmul.f32 %v3260, %v823
      %v3307 = vmul.f32 %v3263, %v823
      %v3308 = vmul.f32 %v3266, %v823
      %v3309 = vmul.f32 %v3269, %v823
      %v3310 = vmul.f32 %v3272, %v823
      %v3311 = vmul.f32 %v3275, %v823
      %v3312 = vmul.f32 %v3278, %v823
      %v3313 = vmul.f32 %v3281, %v823
      %v3314 = vmul.f32 %v3284, %v823
      %v3315 = vmul.f32 %v3287, %v823
      %v3316 = vmul.f32 %v3290, %v823
      %v3317 = vmul.f32 %v3293, %v823
      %v3318 = vmul.f32 %v3296, %v823
      %v3319 = vmul.f32 %v3299, %v823
      %v3320 = vmul.f32 %v3302, %v823
      %v3321 = vmul.f32 %v3305, %v823
      %v3322 = vadd.f32 %v3306, 1e-05
      %v3323 = vadd.f32 %v3307, 1e-05
      %v3324 = vadd.f32 %v3308, 1e-05
      %v3325 = vadd.f32 %v3309, 1e-05
      %v3326 = vadd.f32 %v3310, 1e-05
      %v3327 = vadd.f32 %v3311, 1e-05
      %v3328 = vadd.f32 %v3312, 1e-05
      %v3329 = vadd.f32 %v3313, 1e-05
      %v3330 = vadd.f32 %v3314, 1e-05
      %v3331 = vadd.f32 %v3315, 1e-05
      %v3332 = vadd.f32 %v3316, 1e-05
      %v3333 = vadd.f32 %v3317, 1e-05
      %v3334 = vadd.f32 %v3318, 1e-05
      %v3335 = vadd.f32 %v3319, 1e-05
      %v3336 = vadd.f32 %v3320, 1e-05
      %v3337 = vadd.f32 %v3321, 1e-05
      %v3338 = vrsqrt.pop %v3322
      %v3339 = vrsqrt.pop %v3323
      %v3340 = vrsqrt.pop %v3324
      %v3341 = vrsqrt.pop %v3325
      %v3342 = vrsqrt.pop %v3326
      %v3343 = vrsqrt.pop %v3327
      %v3344 = vrsqrt.pop %v3328
      %v3345 = vrsqrt.pop %v3329
      %v3346 = vrsqrt.pop %v3330
      %v3347 = vrsqrt.pop %v3331
      %v3348 = vrsqrt.pop %v3332
      %v3349 = vrsqrt.pop %v3333
      %v3350 = vrsqrt.pop %v3334
      %v3351 = vrsqrt.pop %v3335
      %v3352 = vrsqrt.pop %v3336
      %v3353 = vrsqrt.pop %v3337
      %v3354 = vmul.f32 %v3226, %v3338
      %v3355 = vmul.f32 %v3227, %v3339
      %v3356 = vmul.f32 %v3228, %v3340
      %v3357 = vmul.f32 %v3229, %v3341
      %v3358 = vmul.f32 %v3230, %v3342
      %v3359 = vmul.f32 %v3231, %v3343
      %v3360 = vmul.f32 %v3232, %v3344
      %v3361 = vmul.f32 %v3233, %v3345
      %v3362 = vmul.f32 %v3234, %v3346
      %v3363 = vmul.f32 %v3235, %v3347
      %v3364 = vmul.f32 %v3236, %v3348
      %v3365 = vmul.f32 %v3237, %v3349
      %v3366 = vmul.f32 %v3238, %v3350
      %v3367 = vmul.f32 %v3239, %v3351
      %v3368 = vmul.f32 %v3240, %v3352
      %v3369 = vmul.f32 %v3241, %v3353
      %v3371 = vlaneseq
      %v3372 = vshrl.u32 %v3371, 7
      %v3373 = vsub.s32 0, %v3372
      %v3374 = vrot.slane %v3160, %v3373
      %v3376 = vmul.f32 %v3354, %v3374
      %v3377 = vmul.f32 %v3355, %v3374
      %v3378 = vmul.f32 %v3356, %v3374
      %v3379 = vmul.f32 %v3357, %v3374
      %v3380 = vmul.f32 %v3358, %v3374
      %v3381 = vmul.f32 %v3359, %v3374
      %v3382 = vmul.f32 %v3360, %v3374
      %v3383 = vmul.f32 %v3361, %v3374
      %v3384 = vmul.f32 %v3362, %v3374
      %v3385 = vmul.f32 %v3363, %v3374
      %v3386 = vmul.f32 %v3364, %v3374
      %v3387 = vmul.f32 %v3365, %v3374
      %v3388 = vmul.f32 %v3366, %v3374
      %v3389 = vmul.f32 %v3367, %v3374
      %v3390 = vmul.f32 %v3368, %v3374
      %v3391 = vmul.f32 %v3369, %v3374
      %v3393 = vlaneseq
      %v3394 = vshrl.u32 %v3393, 7
      %v3395 = vsub.s32 0, %v3394
      %v3396 = vrot.slane %v3161, %v3395
      %v3398 = vadd.f32 %v3376, %v3396
      %v3399 = vadd.f32 %v3377, %v3396
      %v3400 = vadd.f32 %v3378, %v3396
      %v3401 = vadd.f32 %v3379, %v3396
      %v3402 = vadd.f32 %v3380, %v3396
      %v3403 = vadd.f32 %v3381, %v3396
      %v3404 = vadd.f32 %v3382, %v3396
      %v3405 = vadd.f32 %v3383, %v3396
      %v3406 = vadd.f32 %v3384, %v3396
      %v3407 = vadd.f32 %v3385, %v3396
      %v3408 = vadd.f32 %v3386, %v3396
      %v3409 = vadd.f32 %v3387, %v3396
      %v3410 = vadd.f32 %v3388, %v3396
      %v3411 = vadd.f32 %v3389, %v3396
      %v3412 = vadd.f32 %v3390, %v3396
      %v3413 = vadd.f32 %v3391, %v3396
      %v3414 = vpack.c.bf16 %v3399, %v3398
      %v3415 = vpack.c.bf16 %v3401, %v3400
      %v3416 = vpack.c.bf16 %v3403, %v3402
      %v3417 = vpack.c.bf16 %v3405, %v3404
      %v3418 = vpack.c.bf16 %v3407, %v3406
      %v3419 = vpack.c.bf16 %v3409, %v3408
      %v3420 = vpack.c.bf16 %v3411, %v3410
      %v3421 = vpack.c.bf16 %v3413, %v3412
      %v3422 = vld [vmem:[%s11] sm:$0xf]
      %v3423 = vld [vmem:[%s11 + $0x4] sm:$0xf]
      %v3424 = vld [vmem:[%s11 + $0x8] sm:$0xf]
      %v3425 = vld [vmem:[%s11 + $0xc] sm:$0xf]
      %v3426 = vld [vmem:[%s12] sm:$0x1]
      %v3428 = vlaneseq
      %v3429 = vshrl.u32 %v3428, 7
      %v3430 = vsub.s32 0, %v3429
      %v3431 = vrot.slane %v3426, %v3430
      %v3437 = vunpack.c.l.b16 %v3422
      %v3438 = vunpack.c.l.b16 %v3423
      %v3439 = vunpack.c.l.b16 %v3424
      %v3440 = vunpack.c.l.b16 %v3425
      %v3441 = vpack.c.b16 %v3438, %v3437
      %v3442 = vpack.c.b16 %v3440, %v3439
      %v3446 = vsel %vm774, %v3414, 0
      %v3449 = vsel %vm774, %v3415, 0
      %v3452 = vsel %vm774, %v3416, 0
      %v3455 = vsel %vm774, %v3417, 0
      %v3458 = vsel %vm774, %v3418, 0
      %v3461 = vsel %vm774, %v3419, 0
      %v3464 = vsel %vm774, %v3420, 0
      %v3467 = vsel %vm774, %v3421, 0
      %3469 = vmatprep.subr.bf16.mxu0 0
      %3470 = vmatpush1.bf16.msra.mxu0 %v3441
      %3471 = vmatprep.subr.bf16.mxu0 0
      %3472 = vmatpush1.bf16.msra.mxu0 %v3442
      %3473 = vmatprep.subr.bf16.mxu0 0
      %3474 = vmatpush1.bf16.msra.mxu0 0
      %3475 = vmatprep.subr.bf16.mxu0 0
      %3476 = vmatpush1.bf16.msra.mxu0 0
      %3477 = vmatprep.subr.bf16.mxu0 0
      %3478 = vmatpush1.bf16.msra.mxu0 0
      %3479 = vmatprep.subr.bf16.mxu0 0
      %3480 = vmatpush1.bf16.msra.mxu0 0
      %3481 = vmatprep.subr.bf16.mxu0 0
      %3482 = vmatpush1.bf16.msra.mxu0 0
      %3483 = vmatprep.subr.bf16.mxu0 0
      %3484 = vmatpush1.bf16.msra.mxu0 0
      %3485 = vmatprep.subr.bf16.mxu0 0
      %3486 = vmatpush1.bf16.msra.mxu0 0
      %3487 = vmatprep.subr.bf16.mxu0 0
      %3488 = vmatpush1.bf16.msra.mxu0 0
      %3489 = vmatprep.subr.bf16.mxu0 0
      %3490 = vmatpush1.bf16.msra.mxu0 0
      %3491 = vmatprep.subr.bf16.mxu0 0
      %3492 = vmatpush1.bf16.msra.mxu0 0
      %3493 = vmatprep.subr.bf16.mxu0 0
      %3494 = vmatpush1.bf16.msra.mxu0 0
      %3495 = vmatprep.subr.bf16.mxu0 0
      %3496 = vmatpush1.bf16.msra.mxu0 0
      %3497 = vmatprep.subr.bf16.mxu0 0
      %3498 = vmatpush1.bf16.msra.mxu0 0
      %3499 = vmatprep.subr.bf16.mxu0 0
      %3500 = vmatpush1.bf16.msra.mxu0 0
      %3501 = vmatprep.mubr.bf16.mxu0 0
      %3502 = vmatmul.mubr.bf16.gmra.mrb[0].mxu0 %v3446
      %v3503 = vpop.f32.mrb[0].mxu0
      %v3504 = vadd.f32 %v3431, %v3503
      %v3505 = vpop.f32.mrb[0].mxu0
      %v3506 = vpop.f32.mrb[0].mxu0
      %v3507 = vadd.f32 %v3431, %v3506
      %v3508 = vpop.f32.mrb[0].mxu0
      %3509 = vmatprep.mubr.bf16.mxu0 0
      %3510 = vmatmul.mubr.bf16.gmra.mrb[0].mxu0 %v3449
      %v3511 = vpop.f32.mrb[0].mxu0
      %v3512 = vadd.f32 %v3431, %v3511
      %v3513 = vpop.f32.mrb[0].mxu0
      %v3514 = vpop.f32.mrb[0].mxu0
      %v3515 = vadd.f32 %v3431, %v3514
      %v3516 = vpop.f32.mrb[0].mxu0
      %3517 = vmatprep.mubr.bf16.mxu0 0
      %3518 = vmatmul.mubr.bf16.gmra.mrb[0].mxu0 %v3452
      %v3519 = vpop.f32.mrb[0].mxu0
      %v3520 = vadd.f32 %v3431, %v3519
      %v3521 = vpop.f32.mrb[0].mxu0
      %v3522 = vpop.f32.mrb[0].mxu0
      %v3523 = vadd.f32 %v3431, %v3522
      %v3524 = vpop.f32.mrb[0].mxu0
      %3525 = vmatprep.mubr.bf16.mxu0 0
      %3526 = vmatmul.mubr.bf16.gmra.mrb[0].mxu0 %v3455
      %v3527 = vpop.f32.mrb[0].mxu0
      %v3528 = vadd.f32 %v3431, %v3527
      %v3529 = vpop.f32.mrb[0].mxu0
      %v3530 = vpop.f32.mrb[0].mxu0
      %v3531 = vadd.f32 %v3431, %v3530
      %v3532 = vpop.f32.mrb[0].mxu0
      %3533 = vmatprep.mubr.bf16.mxu0 0
      %3534 = vmatmul.mubr.bf16.gmra.mrb[0].mxu0 %v3458
      %v3535 = vpop.f32.mrb[0].mxu0
      %v3536 = vadd.f32 %v3431, %v3535
      %v3537 = vpop.f32.mrb[0].mxu0
      %v3538 = vpop.f32.mrb[0].mxu0
      %v3539 = vadd.f32 %v3431, %v3538
      %v3540 = vpop.f32.mrb[0].mxu0
      %3541 = vmatprep.mubr.bf16.mxu0 0
      %3542 = vmatmul.mubr.bf16.gmra.mrb[0].mxu0 %v3461
      %v3543 = vpop.f32.mrb[0].mxu0
      %v3544 = vadd.f32 %v3431, %v3543
      %v3545 = vpop.f32.mrb[0].mxu0
      %v3546 = vpop.f32.mrb[0].mxu0
      %v3547 = vadd.f32 %v3431, %v3546
      %v3548 = vpop.f32.mrb[0].mxu0
      %3549 = vmatprep.mubr.bf16.mxu0 0
      %3550 = vmatmul.mubr.bf16.gmra.mrb[0].mxu0 %v3464
      %v3551 = vpop.f32.mrb[0].mxu0
      %v3552 = vadd.f32 %v3431, %v3551
      %v3553 = vpop.f32.mrb[0].mxu0
      %v3554 = vpop.f32.mrb[0].mxu0
      %v3555 = vadd.f32 %v3431, %v3554
      %v3556 = vpop.f32.mrb[0].mxu0
      %3557 = vmatprep.mubr.bf16.mxu0 0
      %3558 = vmatmul.mubr.bf16.gmra.mrb[0].mxu0 %v3467
      %v3559 = vpop.f32.mrb[0].mxu0
      %v3560 = vadd.f32 %v3431, %v3559
      %v3561 = vpop.f32.mrb[0].mxu0
      %v3562 = vpop.f32.mrb[0].mxu0
      %v3563 = vadd.f32 %v3431, %v3562
      %v3564 = vpop.f32.mrb[0].mxu0
      %3565 = vdwg.mxu0
      %v3566 = vmax.f32 %v3504, 0.0
      %v3567 = vmax.f32 %v3507, 0.0
      %v3568 = vmax.f32 %v3512, 0.0
      %v3569 = vmax.f32 %v3515, 0.0
      %v3570 = vmax.f32 %v3520, 0.0
      %v3571 = vmax.f32 %v3523, 0.0
      %v3572 = vmax.f32 %v3528, 0.0
      %v3573 = vmax.f32 %v3531, 0.0
      %v3574 = vmax.f32 %v3536, 0.0
      %v3575 = vmax.f32 %v3539, 0.0
      %v3576 = vmax.f32 %v3544, 0.0
      %v3577 = vmax.f32 %v3547, 0.0
      %v3578 = vmax.f32 %v3552, 0.0
      %v3579 = vmax.f32 %v3555, 0.0
      %v3580 = vmax.f32 %v3560, 0.0
      %v3581 = vmax.f32 %v3563, 0.0
      %v3582 = vpack.c.bf16 %v3567, %v3566
      %v3583 = vpack.c.bf16 %v3569, %v3568
      %v3584 = vpack.c.bf16 %v3571, %v3570
      %v3585 = vpack.c.bf16 %v3573, %v3572
      %v3586 = vpack.c.bf16 %v3575, %v3574
      %v3587 = vpack.c.bf16 %v3577, %v3576
      %v3588 = vpack.c.bf16 %v3579, %v3578
      %v3589 = vpack.c.bf16 %v3581, %v3580
      %v3590 = vld [vmem:[%s13] sm:$0xf]
      %v3591 = vld [vmem:[%s13 + $0x4] sm:$0xf]
      %v3592 = vld [vmem:[%s13 + $0x8] sm:$0xf]
      %v3593 = vld [vmem:[%s13 + $0xc] sm:$0xf]
      %v3594 = vld [vmem:[%s13 + $0x10] sm:$0xf]
      %v3595 = vld [vmem:[%s13 + $0x14] sm:$0xf]
      %v3596 = vld [vmem:[%s13 + $0x18] sm:$0xf]
      %v3597 = vld [vmem:[%s13 + $0x1c] sm:$0xf]
      %v3606 = vunpack.c.l.b16 %v3590
      %v3607 = vunpack.c.l.b16 %v3591
      %v3608 = vunpack.c.l.b16 %v3592
      %v3609 = vunpack.c.l.b16 %v3593
      %v3610 = vunpack.c.l.b16 %v3594
      %v3611 = vunpack.c.l.b16 %v3595
      %v3612 = vunpack.c.l.b16 %v3596
      %v3613 = vunpack.c.l.b16 %v3597
      %v3614 = vpack.c.b16 %v3607, %v3606
      %v3615 = vpack.c.b16 %v3609, %v3608
      %v3616 = vpack.c.b16 %v3611, %v3610
      %v3617 = vpack.c.b16 %v3613, %v3612
      %vm3622 = vcmask 523264
      %v3624 = vsel %vm3622, %v3582, 0
      %v3627 = vsel %vm3622, %v3583, 0
      %v3630 = vsel %vm3622, %v3584, 0
      %v3633 = vsel %vm3622, %v3585, 0
      %v3636 = vsel %vm3622, %v3586, 0
      %v3639 = vsel %vm3622, %v3587, 0
      %v3642 = vsel %vm3622, %v3588, 0
      %v3645 = vsel %vm3622, %v3589, 0
      %3647 = vmatprep.subr.bf16.mxu0 0
      %3648 = vmatpush1.bf16.msra.mxu0 %v3614
      %3649 = vmatprep.subr.bf16.mxu0 0
      %3650 = vmatpush1.bf16.msra.mxu0 %v3615
      %3651 = vmatprep.subr.bf16.mxu0 0
      %3652 = vmatpush1.bf16.msra.mxu0 %v3616
      %3653 = vmatprep.subr.bf16.mxu0 0
      %3654 = vmatpush1.bf16.msra.mxu0 %v3617
      %3655 = vmatprep.subr.bf16.mxu0 0
      %3656 = vmatpush1.bf16.msra.mxu0 0
      %3657 = vmatprep.subr.bf16.mxu0 0
      %3658 = vmatpush1.bf16.msra.mxu0 0
      %3659 = vmatprep.subr.bf16.mxu0 0
      %3660 = vmatpush1.bf16.msra.mxu0 0
      %3661 = vmatprep.subr.bf16.mxu0 0
      %3662 = vmatpush1.bf16.msra.mxu0 0
      %3663 = vmatprep.subr.bf16.mxu0 0
      %3664 = vmatpush1.bf16.msra.mxu0 0
      %3665 = vmatprep.subr.bf16.mxu0 0
      %3666 = vmatpush1.bf16.msra.mxu0 0
      %3667 = vmatprep.subr.bf16.mxu0 0
      %3668 = vmatpush1.bf16.msra.mxu0 0
      %3669 = vmatprep.subr.bf16.mxu0 0
      %3670 = vmatpush1.bf16.msra.mxu0 0
      %3671 = vmatprep.subr.bf16.mxu0 0
      %3672 = vmatpush1.bf16.msra.mxu0 0
      %3673 = vmatprep.subr.bf16.mxu0 0
      %3674 = vmatpush1.bf16.msra.mxu0 0
      %3675 = vmatprep.subr.bf16.mxu0 0
      %3676 = vmatpush1.bf16.msra.mxu0 0
      %3677 = vmatprep.subr.bf16.mxu0 0
      %3678 = vmatpush1.bf16.msra.mxu0 0
      %3679 = vmatprep.mubr.bf16.mxu0 0
      %3680 = vmatmul.mubr.bf16.gmra.mrb[0].mxu0 %v3624
      %v3681 = vpop.f32.mrb[0].mxu0
      %v3682 = vadd.f32 0.0, %v3681
      %v3683 = vpop.f32.mrb[0].mxu0
      %v3684 = vpop.f32.mrb[0].mxu0
      %v3685 = vadd.f32 0.0, %v3684
      %v3686 = vpop.f32.mrb[0].mxu0
      %3687 = vmatprep.mubr.bf16.mxu0 0
      %3688 = vmatmul.mubr.bf16.gmra.mrb[0].mxu0 %v3627
      %v3689 = vpop.f32.mrb[0].mxu0
      %v3690 = vadd.f32 0.0, %v3689
      %v3691 = vpop.f32.mrb[0].mxu0
      %v3692 = vpop.f32.mrb[0].mxu0
      %v3693 = vadd.f32 0.0, %v3692
      %v3694 = vpop.f32.mrb[0].mxu0
      %3695 = vmatprep.mubr.bf16.mxu0 0
      %3696 = vmatmul.mubr.bf16.gmra.mrb[0].mxu0 %v3630
      %v3697 = vpop.f32.mrb[0].mxu0
      %v3698 = vadd.f32 0.0, %v3697
      %v3699 = vpop.f32.mrb[0].mxu0
      %v3700 = vpop.f32.mrb[0].mxu0
      %v3701 = vadd.f32 0.0, %v3700
      %v3702 = vpop.f32.mrb[0].mxu0
      %3703 = vmatprep.mubr.bf16.mxu0 0
      %3704 = vmatmul.mubr.bf16.gmra.mrb[0].mxu0 %v3633
      %v3705 = vpop.f32.mrb[0].mxu0
      %v3706 = vadd.f32 0.0, %v3705
      %v3707 = vpop.f32.mrb[0].mxu0
      %v3708 = vpop.f32.mrb[0].mxu0
      %v3709 = vadd.f32 0.0, %v3708
      %v3710 = vpop.f32.mrb[0].mxu0
      %3711 = vmatprep.mubr.bf16.mxu0 0
      %3712 = vmatmul.mubr.bf16.gmra.mrb[0].mxu0 %v3636
      %v3713 = vpop.f32.mrb[0].mxu0
      %v3714 = vadd.f32 0.0, %v3713
      %v3715 = vpop.f32.mrb[0].mxu0
      %v3716 = vpop.f32.mrb[0].mxu0
      %v3717 = vadd.f32 0.0, %v3716
      %v3718 = vpop.f32.mrb[0].mxu0
      %3719 = vmatprep.mubr.bf16.mxu0 0
      %3720 = vmatmul.mubr.bf16.gmra.mrb[0].mxu0 %v3639
      %v3721 = vpop.f32.mrb[0].mxu0
      %v3722 = vadd.f32 0.0, %v3721
      %v3723 = vpop.f32.mrb[0].mxu0
      %v3724 = vpop.f32.mrb[0].mxu0
      %v3725 = vadd.f32 0.0, %v3724
      %v3726 = vpop.f32.mrb[0].mxu0
      %3727 = vmatprep.mubr.bf16.mxu0 0
      %3728 = vmatmul.mubr.bf16.gmra.mrb[0].mxu0 %v3642
      %v3729 = vpop.f32.mrb[0].mxu0
      %v3730 = vadd.f32 0.0, %v3729
      %v3731 = vpop.f32.mrb[0].mxu0
      %v3732 = vpop.f32.mrb[0].mxu0
      %v3733 = vadd.f32 0.0, %v3732
      %v3734 = vpop.f32.mrb[0].mxu0
      %3735 = vmatprep.mubr.bf16.mxu0 0
      %3736 = vmatmul.mubr.bf16.gmra.mrb[0].mxu0 %v3645
      %v3737 = vpop.f32.mrb[0].mxu0
      %v3738 = vadd.f32 0.0, %v3737
      %v3739 = vpop.f32.mrb[0].mxu0
      %v3740 = vpop.f32.mrb[0].mxu0
      %v3741 = vadd.f32 0.0, %v3740
      %v3742 = vpop.f32.mrb[0].mxu0
      %3743 = vdwg.mxu0
      %v3744 = vadd.f32 %v3144, %v3682
      %v3745 = vadd.f32 %v3145, %v3685
      %v3746 = vadd.f32 %v3146, %v3690
      %v3747 = vadd.f32 %v3147, %v3693
      %v3748 = vadd.f32 %v3148, %v3698
      %v3749 = vadd.f32 %v3149, %v3701
      %v3750 = vadd.f32 %v3150, %v3706
      %v3751 = vadd.f32 %v3151, %v3709
      %v3752 = vadd.f32 %v3152, %v3714
      %v3753 = vadd.f32 %v3153, %v3717
      %v3754 = vadd.f32 %v3154, %v3722
      %v3755 = vadd.f32 %v3155, %v3725
      %v3756 = vadd.f32 %v3156, %v3730
      %v3757 = vadd.f32 %v3157, %v3733
      %v3758 = vadd.f32 %v3158, %v3738
      %v3759 = vadd.f32 %v3159, %v3741
      %v3760 = vld [vmem:[%s14] sm:$0x1]
      %v3762 = vlaneseq
      %v3763 = vshrl.u32 %v3762, 7
      %v3764 = vsub.s32 0, %v3763
      %v3765 = vrot.slane %v3760, %v3764
      %v3767 = vadd.f32 %v3744, %v3765
      %v3768 = vadd.f32 %v3745, %v3765
      %v3769 = vadd.f32 %v3746, %v3765
      %v3770 = vadd.f32 %v3747, %v3765
      %v3771 = vadd.f32 %v3748, %v3765
      %v3772 = vadd.f32 %v3749, %v3765
      %v3773 = vadd.f32 %v3750, %v3765
      %v3774 = vadd.f32 %v3751, %v3765
      %v3775 = vadd.f32 %v3752, %v3765
      %v3776 = vadd.f32 %v3753, %v3765
      %v3777 = vadd.f32 %v3754, %v3765
      %v3778 = vadd.f32 %v3755, %v3765
      %v3779 = vadd.f32 %v3756, %v3765
      %v3780 = vadd.f32 %v3757, %v3765
      %v3781 = vadd.f32 %v3758, %v3765
      %v3782 = vadd.f32 %v3759, %v3765
      %s3783 = scalar_lea.vmem %s5, 1
      %v3784 = vld [vmem:[%s3783] sm:$0x1]
      %s3785 = scalar_lea.vmem %s6, 1
      %v3786 = vld [vmem:[%s3785] sm:$0x1]
      %v3787 = vsel %vm774, %v3767, 0.0
      %3788 = vadd.xlane.f32.xlu0 %v3787
      %v3789 = vpop.xlane.xlu0 %3788
      %v3790 = vsel %vm774, %v3768, 0.0
      %3791 = vadd.xlane.f32.xlu0 %v3790
      %v3792 = vpop.xlane.xlu0 %3791
      %v3793 = vsel %vm774, %v3769, 0.0
      %3794 = vadd.xlane.f32.xlu0 %v3793
      %v3795 = vpop.xlane.xlu0 %3794
      %v3796 = vsel %vm774, %v3770, 0.0
      %3797 = vadd.xlane.f32.xlu0 %v3796
      %v3798 = vpop.xlane.xlu0 %3797
      %v3799 = vsel %vm774, %v3771, 0.0
      %3800 = vadd.xlane.f32.xlu0 %v3799
      %v3801 = vpop.xlane.xlu0 %3800
      %v3802 = vsel %vm774, %v3772, 0.0
      %3803 = vadd.xlane.f32.xlu0 %v3802
      %v3804 = vpop.xlane.xlu0 %3803
      %v3805 = vsel %vm774, %v3773, 0.0
      %3806 = vadd.xlane.f32.xlu0 %v3805
      %v3807 = vpop.xlane.xlu0 %3806
      %v3808 = vsel %vm774, %v3774, 0.0
      %3809 = vadd.xlane.f32.xlu0 %v3808
      %v3810 = vpop.xlane.xlu0 %3809
      %v3811 = vsel %vm774, %v3775, 0.0
      %3812 = vadd.xlane.f32.xlu0 %v3811
      %v3813 = vpop.xlane.xlu0 %3812
      %v3814 = vsel %vm774, %v3776, 0.0
      %3815 = vadd.xlane.f32.xlu0 %v3814
      %v3816 = vpop.xlane.xlu0 %3815
      %v3817 = vsel %vm774, %v3777, 0.0
      %3818 = vadd.xlane.f32.xlu0 %v3817
      %v3819 = vpop.xlane.xlu0 %3818
      %v3820 = vsel %vm774, %v3778, 0.0
      %3821 = vadd.xlane.f32.xlu0 %v3820
      %v3822 = vpop.xlane.xlu0 %3821
      %v3823 = vsel %vm774, %v3779, 0.0
      %3824 = vadd.xlane.f32.xlu0 %v3823
      %v3825 = vpop.xlane.xlu0 %3824
      %v3826 = vsel %vm774, %v3780, 0.0
      %3827 = vadd.xlane.f32.xlu0 %v3826
      %v3828 = vpop.xlane.xlu0 %3827
      %v3829 = vsel %vm774, %v3781, 0.0
      %3830 = vadd.xlane.f32.xlu0 %v3829
      %v3831 = vpop.xlane.xlu0 %3830
      %v3832 = vsel %vm774, %v3782, 0.0
      %3833 = vadd.xlane.f32.xlu0 %v3832
      %v3834 = vpop.xlane.xlu0 %3833
      %v3835 = vmul.f32 %v3789, %v823
      %v3836 = vmul.f32 %v3792, %v823
      %v3837 = vmul.f32 %v3795, %v823
      %v3838 = vmul.f32 %v3798, %v823
      %v3839 = vmul.f32 %v3801, %v823
      %v3840 = vmul.f32 %v3804, %v823
      %v3841 = vmul.f32 %v3807, %v823
      %v3842 = vmul.f32 %v3810, %v823
      %v3843 = vmul.f32 %v3813, %v823
      %v3844 = vmul.f32 %v3816, %v823
      %v3845 = vmul.f32 %v3819, %v823
      %v3846 = vmul.f32 %v3822, %v823
      %v3847 = vmul.f32 %v3825, %v823
      %v3848 = vmul.f32 %v3828, %v823
      %v3849 = vmul.f32 %v3831, %v823
      %v3850 = vmul.f32 %v3834, %v823
      %v3851 = vsub.f32 %v3767, %v3835
      %v3852 = vsub.f32 %v3768, %v3836
      %v3853 = vsub.f32 %v3769, %v3837
      %v3854 = vsub.f32 %v3770, %v3838
      %v3855 = vsub.f32 %v3771, %v3839
      %v3856 = vsub.f32 %v3772, %v3840
      %v3857 = vsub.f32 %v3773, %v3841
      %v3858 = vsub.f32 %v3774, %v3842
      %v3859 = vsub.f32 %v3775, %v3843
      %v3860 = vsub.f32 %v3776, %v3844
      %v3861 = vsub.f32 %v3777, %v3845
      %v3862 = vsub.f32 %v3778, %v3846
      %v3863 = vsub.f32 %v3779, %v3847
      %v3864 = vsub.f32 %v3780, %v3848
      %v3865 = vsub.f32 %v3781, %v3849
      %v3866 = vsub.f32 %v3782, %v3850
      %v3867 = vmul.f32 %v3851, %v3851
      %v3868 = vmul.f32 %v3852, %v3852
      %v3869 = vmul.f32 %v3853, %v3853
      %v3870 = vmul.f32 %v3854, %v3854
      %v3871 = vmul.f32 %v3855, %v3855
      %v3872 = vmul.f32 %v3856, %v3856
      %v3873 = vmul.f32 %v3857, %v3857
      %v3874 = vmul.f32 %v3858, %v3858
      %v3875 = vmul.f32 %v3859, %v3859
      %v3876 = vmul.f32 %v3860, %v3860
      %v3877 = vmul.f32 %v3861, %v3861
      %v3878 = vmul.f32 %v3862, %v3862
      %v3879 = vmul.f32 %v3863, %v3863
      %v3880 = vmul.f32 %v3864, %v3864
      %v3881 = vmul.f32 %v3865, %v3865
      %v3882 = vmul.f32 %v3866, %v3866
      %v3883 = vsel %vm774, %v3867, 0.0
      %3884 = vadd.xlane.f32.xlu0 %v3883
      %v3885 = vpop.xlane.xlu0 %3884
      %v3886 = vsel %vm774, %v3868, 0.0
      %3887 = vadd.xlane.f32.xlu0 %v3886
      %v3888 = vpop.xlane.xlu0 %3887
      %v3889 = vsel %vm774, %v3869, 0.0
      %3890 = vadd.xlane.f32.xlu0 %v3889
      %v3891 = vpop.xlane.xlu0 %3890
      %v3892 = vsel %vm774, %v3870, 0.0
      %3893 = vadd.xlane.f32.xlu0 %v3892
      %v3894 = vpop.xlane.xlu0 %3893
      %v3895 = vsel %vm774, %v3871, 0.0
      %3896 = vadd.xlane.f32.xlu0 %v3895
      %v3897 = vpop.xlane.xlu0 %3896
      %v3898 = vsel %vm774, %v3872, 0.0
      %3899 = vadd.xlane.f32.xlu0 %v3898
      %v3900 = vpop.xlane.xlu0 %3899
      %v3901 = vsel %vm774, %v3873, 0.0
      %3902 = vadd.xlane.f32.xlu0 %v3901
      %v3903 = vpop.xlane.xlu0 %3902
      %v3904 = vsel %vm774, %v3874, 0.0
      %3905 = vadd.xlane.f32.xlu0 %v3904
      %v3906 = vpop.xlane.xlu0 %3905
      %v3907 = vsel %vm774, %v3875, 0.0
      %3908 = vadd.xlane.f32.xlu0 %v3907
      %v3909 = vpop.xlane.xlu0 %3908
      %v3910 = vsel %vm774, %v3876, 0.0
      %3911 = vadd.xlane.f32.xlu0 %v3910
      %v3912 = vpop.xlane.xlu0 %3911
      %v3913 = vsel %vm774, %v3877, 0.0
      %3914 = vadd.xlane.f32.xlu0 %v3913
      %v3915 = vpop.xlane.xlu0 %3914
      %v3916 = vsel %vm774, %v3878, 0.0
      %3917 = vadd.xlane.f32.xlu0 %v3916
      %v3918 = vpop.xlane.xlu0 %3917
      %v3919 = vsel %vm774, %v3879, 0.0
      %3920 = vadd.xlane.f32.xlu0 %v3919
      %v3921 = vpop.xlane.xlu0 %3920
      %v3922 = vsel %vm774, %v3880, 0.0
      %3923 = vadd.xlane.f32.xlu0 %v3922
      %v3924 = vpop.xlane.xlu0 %3923
      %v3925 = vsel %vm774, %v3881, 0.0
      %3926 = vadd.xlane.f32.xlu0 %v3925
      %v3927 = vpop.xlane.xlu0 %3926
      %v3928 = vsel %vm774, %v3882, 0.0
      %3929 = vadd.xlane.f32.xlu0 %v3928
      %v3930 = vpop.xlane.xlu0 %3929
      %v3931 = vmul.f32 %v3885, %v823
      %v3932 = vmul.f32 %v3888, %v823
      %v3933 = vmul.f32 %v3891, %v823
      %v3934 = vmul.f32 %v3894, %v823
      %v3935 = vmul.f32 %v3897, %v823
      %v3936 = vmul.f32 %v3900, %v823
      %v3937 = vmul.f32 %v3903, %v823
      %v3938 = vmul.f32 %v3906, %v823
      %v3939 = vmul.f32 %v3909, %v823
      %v3940 = vmul.f32 %v3912, %v823
      %v3941 = vmul.f32 %v3915, %v823
      %v3942 = vmul.f32 %v3918, %v823
      %v3943 = vmul.f32 %v3921, %v823
      %v3944 = vmul.f32 %v3924, %v823
      %v3945 = vmul.f32 %v3927, %v823
      %v3946 = vmul.f32 %v3930, %v823
      %v3947 = vadd.f32 %v3931, 1e-05
      %v3948 = vadd.f32 %v3932, 1e-05
      %v3949 = vadd.f32 %v3933, 1e-05
      %v3950 = vadd.f32 %v3934, 1e-05
      %v3951 = vadd.f32 %v3935, 1e-05
      %v3952 = vadd.f32 %v3936, 1e-05
      %v3953 = vadd.f32 %v3937, 1e-05
      %v3954 = vadd.f32 %v3938, 1e-05
      %v3955 = vadd.f32 %v3939, 1e-05
      %v3956 = vadd.f32 %v3940, 1e-05
      %v3957 = vadd.f32 %v3941, 1e-05
      %v3958 = vadd.f32 %v3942, 1e-05
      %v3959 = vadd.f32 %v3943, 1e-05
      %v3960 = vadd.f32 %v3944, 1e-05
      %v3961 = vadd.f32 %v3945, 1e-05
      %v3962 = vadd.f32 %v3946, 1e-05
      %v3963 = vrsqrt.pop %v3947
      %v3964 = vrsqrt.pop %v3948
      %v3965 = vrsqrt.pop %v3949
      %v3966 = vrsqrt.pop %v3950
      %v3967 = vrsqrt.pop %v3951
      %v3968 = vrsqrt.pop %v3952
      %v3969 = vrsqrt.pop %v3953
      %v3970 = vrsqrt.pop %v3954
      %v3971 = vrsqrt.pop %v3955
      %v3972 = vrsqrt.pop %v3956
      %v3973 = vrsqrt.pop %v3957
      %v3974 = vrsqrt.pop %v3958
      %v3975 = vrsqrt.pop %v3959
      %v3976 = vrsqrt.pop %v3960
      %v3977 = vrsqrt.pop %v3961
      %v3978 = vrsqrt.pop %v3962
      %v3979 = vmul.f32 %v3851, %v3963
      %v3980 = vmul.f32 %v3852, %v3964
      %v3981 = vmul.f32 %v3853, %v3965
      %v3982 = vmul.f32 %v3854, %v3966
      %v3983 = vmul.f32 %v3855, %v3967
      %v3984 = vmul.f32 %v3856, %v3968
      %v3985 = vmul.f32 %v3857, %v3969
      %v3986 = vmul.f32 %v3858, %v3970
      %v3987 = vmul.f32 %v3859, %v3971
      %v3988 = vmul.f32 %v3860, %v3972
      %v3989 = vmul.f32 %v3861, %v3973
      %v3990 = vmul.f32 %v3862, %v3974
      %v3991 = vmul.f32 %v3863, %v3975
      %v3992 = vmul.f32 %v3864, %v3976
      %v3993 = vmul.f32 %v3865, %v3977
      %v3994 = vmul.f32 %v3866, %v3978
      %v3996 = vlaneseq
      %v3997 = vshrl.u32 %v3996, 7
      %v3998 = vsub.s32 0, %v3997
      %v3999 = vrot.slane %v3784, %v3998
      %v4001 = vmul.f32 %v3979, %v3999
      %v4002 = vmul.f32 %v3980, %v3999
      %v4003 = vmul.f32 %v3981, %v3999
      %v4004 = vmul.f32 %v3982, %v3999
      %v4005 = vmul.f32 %v3983, %v3999
      %v4006 = vmul.f32 %v3984, %v3999
      %v4007 = vmul.f32 %v3985, %v3999
      %v4008 = vmul.f32 %v3986, %v3999
      %v4009 = vmul.f32 %v3987, %v3999
      %v4010 = vmul.f32 %v3988, %v3999
      %v4011 = vmul.f32 %v3989, %v3999
      %v4012 = vmul.f32 %v3990, %v3999
      %v4013 = vmul.f32 %v3991, %v3999
      %v4014 = vmul.f32 %v3992, %v3999
      %v4015 = vmul.f32 %v3993, %v3999
      %v4016 = vmul.f32 %v3994, %v3999
      %v4018 = vlaneseq
      %v4019 = vshrl.u32 %v4018, 7
      %v4020 = vsub.s32 0, %v4019
      %v4021 = vrot.slane %v3786, %v4020
      %v4023 = vadd.f32 %v4001, %v4021
      %v4024 = vadd.f32 %v4002, %v4021
      %v4025 = vadd.f32 %v4003, %v4021
      %v4026 = vadd.f32 %v4004, %v4021
      %v4027 = vadd.f32 %v4005, %v4021
      %v4028 = vadd.f32 %v4006, %v4021
      %v4029 = vadd.f32 %v4007, %v4021
      %v4030 = vadd.f32 %v4008, %v4021
      %v4031 = vadd.f32 %v4009, %v4021
      %v4032 = vadd.f32 %v4010, %v4021
      %v4033 = vadd.f32 %v4011, %v4021
      %v4034 = vadd.f32 %v4012, %v4021
      %v4035 = vadd.f32 %v4013, %v4021
      %v4036 = vadd.f32 %v4014, %v4021
      %v4037 = vadd.f32 %v4015, %v4021
      %v4038 = vadd.f32 %v4016, %v4021
      %v4039 = vpack.c.bf16 %v4024, %v4023
      %v4040 = vpack.c.bf16 %v4026, %v4025
      %v4041 = vpack.c.bf16 %v4028, %v4027
      %v4042 = vpack.c.bf16 %v4030, %v4029
      %v4043 = vpack.c.bf16 %v4032, %v4031
      %v4044 = vpack.c.bf16 %v4034, %v4033
      %v4045 = vpack.c.bf16 %v4036, %v4035
      %v4046 = vpack.c.bf16 %v4038, %v4037
      %s4047 = scalar_lea.vmem %s7, 16
      %v4048 = vld [vmem:[%s4047] sm:$0xf]
      %v4049 = vld [vmem:[%s4047 + $0x4] sm:$0xf]
      %v4050 = vld [vmem:[%s4047 + $0x8] sm:$0xf]
      %v4051 = vld [vmem:[%s4047 + $0xc] sm:$0xf]
      %s4052 = scalar_lea.vmem %s8, 1
      %v4053 = vld [vmem:[%s4052] sm:$0x1]
      %v4055 = vlaneseq
      %v4056 = vshrl.u32 %v4055, 7
      %v4057 = vsub.s32 0, %v4056
      %v4058 = vrot.slane %v4053, %v4057
      %v4064 = vunpack.c.l.b16 %v4048
      %v4065 = vunpack.c.l.b16 %v4049
      %v4066 = vunpack.c.l.b16 %v4050
      %v4067 = vunpack.c.l.b16 %v4051
      %v4068 = vpack.c.b16 %v4065, %v4064
      %v4069 = vpack.c.b16 %v4067, %v4066
      %v4073 = vsel %vm774, %v4039, 0
      %v4076 = vsel %vm774, %v4040, 0
      %v4079 = vsel %vm774, %v4041, 0
      %v4082 = vsel %vm774, %v4042, 0
      %v4085 = vsel %vm774, %v4043, 0
      %v4088 = vsel %vm774, %v4044, 0
      %v4091 = vsel %vm774, %v4045, 0
      %v4094 = vsel %vm774, %v4046, 0
      %4096 = vmatprep.subr.bf16.mxu0 0
      %4097 = vmatpush1.bf16.msra.mxu0 %v4068
      %4098 = vmatprep.subr.bf16.mxu0 0
      %4099 = vmatpush1.bf16.msra.mxu0 %v4069
      %4100 = vmatprep.subr.bf16.mxu0 0
      %4101 = vmatpush1.bf16.msra.mxu0 0
      %4102 = vmatprep.subr.bf16.mxu0 0
      %4103 = vmatpush1.bf16.msra.mxu0 0
      %4104 = vmatprep.subr.bf16.mxu0 0
      %4105 = vmatpush1.bf16.msra.mxu0 0
      %4106 = vmatprep.subr.bf16.mxu0 0
      %4107 = vmatpush1.bf16.msra.mxu0 0
      %4108 = vmatprep.subr.bf16.mxu0 0
      %4109 = vmatpush1.bf16.msra.mxu0 0
      %4110 = vmatprep.subr.bf16.mxu0 0
      %4111 = vmatpush1.bf16.msra.mxu0 0
      %4112 = vmatprep.subr.bf16.mxu0 0
      %4113 = vmatpush1.bf16.msra.mxu0 0
      %4114 = vmatprep.subr.bf16.mxu0 0
      %4115 = vmatpush1.bf16.msra.mxu0 0
      %4116 = vmatprep.subr.bf16.mxu0 0
      %4117 = vmatpush1.bf16.msra.mxu0 0
      %4118 = vmatprep.subr.bf16.mxu0 0
      %4119 = vmatpush1.bf16.msra.mxu0 0
      %4120 = vmatprep.subr.bf16.mxu0 0
      %4121 = vmatpush1.bf16.msra.mxu0 0
      %4122 = vmatprep.subr.bf16.mxu0 0
      %4123 = vmatpush1.bf16.msra.mxu0 0
      %4124 = vmatprep.subr.bf16.mxu0 0
      %4125 = vmatpush1.bf16.msra.mxu0 0
      %4126 = vmatprep.subr.bf16.mxu0 0
      %4127 = vmatpush1.bf16.msra.mxu0 0
      %4128 = vmatprep.mubr.bf16.mxu0 0
      %4129 = vmatmul.mubr.bf16.gmra.mrb[0].mxu0 %v4073
      %v4130 = vpop.f32.mrb[0].mxu0
      %v4131 = vadd.f32 %v4058, %v4130
      %v4132 = vpop.f32.mrb[0].mxu0
      %v4133 = vpop.f32.mrb[0].mxu0
      %v4134 = vadd.f32 %v4058, %v4133
      %v4135 = vpop.f32.mrb[0].mxu0
      %4136 = vmatprep.mubr.bf16.mxu0 0
      %4137 = vmatmul.mubr.bf16.gmra.mrb[0].mxu0 %v4076
      %v4138 = vpop.f32.mrb[0].mxu0
      %v4139 = vadd.f32 %v4058, %v4138
      %v4140 = vpop.f32.mrb[0].mxu0
      %v4141 = vpop.f32.mrb[0].mxu0
      %v4142 = vadd.f32 %v4058, %v4141
      %v4143 = vpop.f32.mrb[0].mxu0
      %4144 = vmatprep.mubr.bf16.mxu0 0
      %4145 = vmatmul.mubr.bf16.gmra.mrb[0].mxu0 %v4079
      %v4146 = vpop.f32.mrb[0].mxu0
      %v4147 = vadd.f32 %v4058, %v4146
      %v4148 = vpop.f32.mrb[0].mxu0
      %v4149 = vpop.f32.mrb[0].mxu0
      %v4150 = vadd.f32 %v4058, %v4149
      %v4151 = vpop.f32.mrb[0].mxu0
      %4152 = vmatprep.mubr.bf16.mxu0 0
      %4153 = vmatmul.mubr.bf16.gmra.mrb[0].mxu0 %v4082
      %v4154 = vpop.f32.mrb[0].mxu0
      %v4155 = vadd.f32 %v4058, %v4154
      %v4156 = vpop.f32.mrb[0].mxu0
      %v4157 = vpop.f32.mrb[0].mxu0
      %v4158 = vadd.f32 %v4058, %v4157
      %v4159 = vpop.f32.mrb[0].mxu0
      %4160 = vmatprep.mubr.bf16.mxu0 0
      %4161 = vmatmul.mubr.bf16.gmra.mrb[0].mxu0 %v4085
      %v4162 = vpop.f32.mrb[0].mxu0
      %v4163 = vadd.f32 %v4058, %v4162
      %v4164 = vpop.f32.mrb[0].mxu0
      %v4165 = vpop.f32.mrb[0].mxu0
      %v4166 = vadd.f32 %v4058, %v4165
      %v4167 = vpop.f32.mrb[0].mxu0
      %4168 = vmatprep.mubr.bf16.mxu0 0
      %4169 = vmatmul.mubr.bf16.gmra.mrb[0].mxu0 %v4088
      %v4170 = vpop.f32.mrb[0].mxu0
      %v4171 = vadd.f32 %v4058, %v4170
      %v4172 = vpop.f32.mrb[0].mxu0
      %v4173 = vpop.f32.mrb[0].mxu0
      %v4174 = vadd.f32 %v4058, %v4173
      %v4175 = vpop.f32.mrb[0].mxu0
      %4176 = vmatprep.mubr.bf16.mxu0 0
      %4177 = vmatmul.mubr.bf16.gmra.mrb[0].mxu0 %v4091
      %v4178 = vpop.f32.mrb[0].mxu0
      %v4179 = vadd.f32 %v4058, %v4178
      %v4180 = vpop.f32.mrb[0].mxu0
      %v4181 = vpop.f32.mrb[0].mxu0
      %v4182 = vadd.f32 %v4058, %v4181
      %v4183 = vpop.f32.mrb[0].mxu0
      %4184 = vmatprep.mubr.bf16.mxu0 0
      %4185 = vmatmul.mubr.bf16.gmra.mrb[0].mxu0 %v4094
      %v4186 = vpop.f32.mrb[0].mxu0
      %v4187 = vadd.f32 %v4058, %v4186
      %v4188 = vpop.f32.mrb[0].mxu0
      %v4189 = vpop.f32.mrb[0].mxu0
      %v4190 = vadd.f32 %v4058, %v4189
      %v4191 = vpop.f32.mrb[0].mxu0
      %4192 = vdwg.mxu0
      %v4193 = vpack.c.bf16 %v4134, %v4131
      %v4194 = vpack.c.bf16 %v4142, %v4139
      %v4195 = vpack.c.bf16 %v4150, %v4147
      %v4196 = vpack.c.bf16 %v4158, %v4155
      %v4197 = vpack.c.bf16 %v4166, %v4163
      %v4198 = vpack.c.bf16 %v4174, %v4171
      %v4199 = vpack.c.bf16 %v4182, %v4179
      %v4200 = vpack.c.bf16 %v4190, %v4187
      %v4201 = vmul.f32 %v4131, %v1193
      %v4202 = vmul.f32 %v4134, %v1193
      %v4203 = vmul.f32 %v4139, %v1193
      %v4204 = vmul.f32 %v4142, %v1193
      %v4205 = vmul.f32 %v4147, %v1193
      %v4206 = vmul.f32 %v4150, %v1193
      %v4207 = vmul.f32 %v4155, %v1193
      %v4208 = vmul.f32 %v4158, %v1193
      %v4209 = vmul.f32 %v4163, %v1193
      %v4210 = vmul.f32 %v4166, %v1193
      %v4211 = vmul.f32 %v4171, %v1193
      %v4212 = vmul.f32 %v4174, %v1193
      %v4213 = vmul.f32 %v4179, %v1193
      %v4214 = vmul.f32 %v4182, %v1193
      %v4215 = vmul.f32 %v4187, %v1193
      %v4216 = vmul.f32 %v4190, %v1193
      %v4217 = vpack.c.bf16 %v4202, %v4201
      %v4218 = vpack.c.bf16 %v4204, %v4203
      %v4219 = vpack.c.bf16 %v4206, %v4205
      %v4220 = vpack.c.bf16 %v4208, %v4207
      %v4221 = vpack.c.bf16 %v4210, %v4209
      %v4222 = vpack.c.bf16 %v4212, %v4211
      %v4223 = vpack.c.bf16 %v4214, %v4213
      %v4224 = vpack.c.bf16 %v4216, %v4215
      %v4225 = vmul.f32 %v4131, %v1225
      %v4226 = vmul.f32 %v4134, %v1225
      %v4227 = vmul.f32 %v4139, %v1225
      %v4228 = vmul.f32 %v4142, %v1225
      %v4229 = vmul.f32 %v4147, %v1225
      %v4230 = vmul.f32 %v4150, %v1225
      %v4231 = vmul.f32 %v4155, %v1225
      %v4232 = vmul.f32 %v4158, %v1225
      %v4233 = vmul.f32 %v4163, %v1225
      %v4234 = vmul.f32 %v4166, %v1225
      %v4235 = vmul.f32 %v4171, %v1225
      %v4236 = vmul.f32 %v4174, %v1225
      %v4237 = vmul.f32 %v4179, %v1225
      %v4238 = vmul.f32 %v4182, %v1225
      %v4239 = vmul.f32 %v4187, %v1225
      %v4240 = vmul.f32 %v4190, %v1225
      %v4241 = vpack.c.bf16 %v4226, %v4225
      %v4242 = vpack.c.bf16 %v4228, %v4227
      %v4243 = vpack.c.bf16 %v4230, %v4229
      %v4244 = vpack.c.bf16 %v4232, %v4231
      %v4245 = vpack.c.bf16 %v4234, %v4233
      %v4246 = vpack.c.bf16 %v4236, %v4235
      %v4247 = vpack.c.bf16 %v4238, %v4237
      %v4248 = vpack.c.bf16 %v4240, %v4239
      %4257 = vrot.lane.b32.xlu0 %v4193, 96
      %v4258 = vpop.permute.xlu0 %4257
      %4259 = vrot.lane.b32.xlu0 %v4194, 96
      %v4260 = vpop.permute.xlu0 %4259
      %4261 = vrot.lane.b32.xlu0 %v4195, 96
      %v4262 = vpop.permute.xlu0 %4261
      %4263 = vrot.lane.b32.xlu0 %v4196, 96
      %v4264 = vpop.permute.xlu0 %4263
      %4265 = vrot.lane.b32.xlu0 %v4197, 96
      %v4266 = vpop.permute.xlu0 %4265
      %4267 = vrot.lane.b32.xlu0 %v4198, 96
      %v4268 = vpop.permute.xlu0 %4267
      %4269 = vrot.lane.b32.xlu0 %v4199, 96
      %v4270 = vpop.permute.xlu0 %4269
      %4271 = vrot.lane.b32.xlu0 %v4200, 96
      %v4272 = vpop.permute.xlu0 %4271
      %v4274 = vsel %vm774, %v4217, 0
      %v4277 = vsel %vm774, %v4218, 0
      %v4280 = vsel %vm774, %v4219, 0
      %v4283 = vsel %vm774, %v4220, 0
      %v4286 = vsel %vm774, %v4221, 0
      %v4289 = vsel %vm774, %v4222, 0
      %v4292 = vsel %vm774, %v4223, 0
      %v4295 = vsel %vm774, %v4224, 0
      %v4298 = vsel %vm774, %v4258, 0
      %v4301 = vsel %vm774, %v4260, 0
      %v4304 = vsel %vm774, %v4262, 0
      %v4307 = vsel %vm774, %v4264, 0
      %v4310 = vsel %vm774, %v4266, 0
      %v4313 = vsel %vm774, %v4268, 0
      %v4316 = vsel %vm774, %v4270, 0
      %v4319 = vsel %vm774, %v4272, 0
      %4321 = vmatprep.subr.bf16.mxu0 0
      %4322 = vmatpush1.bf16.xpose.msra.mxu0 %v4298
      %4323 = vmatprep.subr.bf16.mxu0 0
      %4324 = vmatpush1.bf16.xpose.msra.mxu0 %v4301
      %4325 = vmatprep.subr.bf16.mxu0 0
      %4326 = vmatpush1.bf16.xpose.msra.mxu0 %v4304
      %4327 = vmatprep.subr.bf16.mxu0 0
      %4328 = vmatpush1.bf16.xpose.msra.mxu0 %v4307
      %4329 = vmatprep.subr.bf16.mxu0 0
      %4330 = vmatpush1.bf16.xpose.msra.mxu0 %v4310
      %4331 = vmatprep.subr.bf16.mxu0 0
      %4332 = vmatpush1.bf16.xpose.msra.mxu0 %v4313
      %4333 = vmatprep.subr.bf16.mxu0 0
      %4334 = vmatpush1.bf16.xpose.msra.mxu0 %v4316
      %4335 = vmatprep.subr.bf16.mxu0 0
      %4336 = vmatpush1.bf16.xpose.msra.mxu0 %v4319
      %4337 = vmatprep.subr.bf16.mxu0 0
      %4338 = vmatpush1.bf16.xpose.msra.mxu0 0
      %4339 = vmatprep.subr.bf16.mxu0 0
      %4340 = vmatpush1.bf16.xpose.msra.mxu0 0
      %4341 = vmatprep.subr.bf16.mxu0 0
      %4342 = vmatpush1.bf16.xpose.msra.mxu0 0
      %4343 = vmatprep.subr.bf16.mxu0 0
      %4344 = vmatpush1.bf16.xpose.msra.mxu0 0
      %4345 = vmatprep.subr.bf16.mxu0 0
      %4346 = vmatpush1.bf16.xpose.msra.mxu0 0
      %4347 = vmatprep.subr.bf16.mxu0 0
      %4348 = vmatpush1.bf16.xpose.msra.mxu0 0
      %4349 = vmatprep.subr.bf16.mxu0 0
      %4350 = vmatpush1.bf16.xpose.msra.mxu0 0
      %4351 = vmatprep.subr.bf16.mxu0 0
      %4352 = vmatpush1.bf16.xpose.msra.mxu0 0
      %4353 = vmatprep.mubr.bf16.mxu0 0
      %4354 = vmatmul.mubr.bf16.gmra.mrb[0].mxu0 %v4274
      %v4355 = vpop.f32.mrb[0].mxu0
      %v4356 = vadd.f32 %v752, %v4355
      %v4357 = vpop.f32.mrb[0].mxu0
      %v4358 = vpop.f32.mrb[0].mxu0
      %v4359 = vadd.f32 %v753, %v4358
      %v4360 = vpop.f32.mrb[0].mxu0
      %4361 = vmatprep.mubr.bf16.mxu0 0
      %4362 = vmatmul.mubr.bf16.gmra.mrb[0].mxu0 %v4277
      %v4363 = vpop.f32.mrb[0].mxu0
      %v4364 = vadd.f32 %v754, %v4363
      %v4365 = vpop.f32.mrb[0].mxu0
      %v4366 = vpop.f32.mrb[0].mxu0
      %v4367 = vadd.f32 %v755, %v4366
      %v4368 = vpop.f32.mrb[0].mxu0
      %4369 = vmatprep.mubr.bf16.mxu0 0
      %4370 = vmatmul.mubr.bf16.gmra.mrb[0].mxu0 %v4280
      %v4371 = vpop.f32.mrb[0].mxu0
      %v4372 = vadd.f32 %v756, %v4371
      %v4373 = vpop.f32.mrb[0].mxu0
      %v4374 = vpop.f32.mrb[0].mxu0
      %v4375 = vadd.f32 %v757, %v4374
      %v4376 = vpop.f32.mrb[0].mxu0
      %4377 = vmatprep.mubr.bf16.mxu0 0
      %4378 = vmatmul.mubr.bf16.gmra.mrb[0].mxu0 %v4283
      %v4379 = vpop.f32.mrb[0].mxu0
      %v4380 = vadd.f32 %v758, %v4379
      %v4381 = vpop.f32.mrb[0].mxu0
      %v4382 = vpop.f32.mrb[0].mxu0
      %v4383 = vadd.f32 %v759, %v4382
      %v4384 = vpop.f32.mrb[0].mxu0
      %4385 = vmatprep.mubr.bf16.mxu0 0
      %4386 = vmatmul.mubr.bf16.gmra.mrb[0].mxu0 %v4286
      %v4387 = vpop.f32.mrb[0].mxu0
      %v4388 = vadd.f32 %v760, %v4387
      %v4389 = vpop.f32.mrb[0].mxu0
      %v4390 = vpop.f32.mrb[0].mxu0
      %v4391 = vadd.f32 %v761, %v4390
      %v4392 = vpop.f32.mrb[0].mxu0
      %4393 = vmatprep.mubr.bf16.mxu0 0
      %4394 = vmatmul.mubr.bf16.gmra.mrb[0].mxu0 %v4289
      %v4395 = vpop.f32.mrb[0].mxu0
      %v4396 = vadd.f32 %v762, %v4395
      %v4397 = vpop.f32.mrb[0].mxu0
      %v4398 = vpop.f32.mrb[0].mxu0
      %v4399 = vadd.f32 %v763, %v4398
      %v4400 = vpop.f32.mrb[0].mxu0
      %4401 = vmatprep.mubr.bf16.mxu0 0
      %4402 = vmatmul.mubr.bf16.gmra.mrb[0].mxu0 %v4292
      %v4403 = vpop.f32.mrb[0].mxu0
      %v4404 = vadd.f32 %v764, %v4403
      %v4405 = vpop.f32.mrb[0].mxu0
      %v4406 = vpop.f32.mrb[0].mxu0
      %v4407 = vadd.f32 %v765, %v4406
      %v4408 = vpop.f32.mrb[0].mxu0
      %4409 = vmatprep.mubr.bf16.mxu0 0
      %4410 = vmatmul.mubr.bf16.gmra.mrb[0].mxu0 %v4295
      %v4411 = vpop.f32.mrb[0].mxu0
      %v4412 = vadd.f32 %v766, %v4411
      %v4413 = vpop.f32.mrb[0].mxu0
      %v4414 = vpop.f32.mrb[0].mxu0
      %v4415 = vadd.f32 %v767, %v4414
      %v4416 = vpop.f32.mrb[0].mxu0
      %4417 = vdwg.mxu0
      %4418 = vmax.xlane.f32.xlu0 %v4356
      %v4419 = vpop.xlane.xlu0 %4418
      %4420 = vmax.xlane.f32.xlu0 %v4359
      %v4421 = vpop.xlane.xlu0 %4420
      %4422 = vmax.xlane.f32.xlu0 %v4364
      %v4423 = vpop.xlane.xlu0 %4422
      %4424 = vmax.xlane.f32.xlu0 %v4367
      %v4425 = vpop.xlane.xlu0 %4424
      %4426 = vmax.xlane.f32.xlu0 %v4372
      %v4427 = vpop.xlane.xlu0 %4426
      %4428 = vmax.xlane.f32.xlu0 %v4375
      %v4429 = vpop.xlane.xlu0 %4428
      %4430 = vmax.xlane.f32.xlu0 %v4380
      %v4431 = vpop.xlane.xlu0 %4430
      %4432 = vmax.xlane.f32.xlu0 %v4383
      %v4433 = vpop.xlane.xlu0 %4432
      %4434 = vmax.xlane.f32.xlu0 %v4388
      %v4435 = vpop.xlane.xlu0 %4434
      %4436 = vmax.xlane.f32.xlu0 %v4391
      %v4437 = vpop.xlane.xlu0 %4436
      %4438 = vmax.xlane.f32.xlu0 %v4396
      %v4439 = vpop.xlane.xlu0 %4438
      %4440 = vmax.xlane.f32.xlu0 %v4399
      %v4441 = vpop.xlane.xlu0 %4440
      %4442 = vmax.xlane.f32.xlu0 %v4404
      %v4443 = vpop.xlane.xlu0 %4442
      %4444 = vmax.xlane.f32.xlu0 %v4407
      %v4445 = vpop.xlane.xlu0 %4444
      %4446 = vmax.xlane.f32.xlu0 %v4412
      %v4447 = vpop.xlane.xlu0 %4446
      %4448 = vmax.xlane.f32.xlu0 %v4415
      %v4449 = vpop.xlane.xlu0 %4448
      %v4450 = vsub.f32 %v4356, %v4419
      %v4451 = vsub.f32 %v4359, %v4421
      %v4452 = vsub.f32 %v4364, %v4423
      %v4453 = vsub.f32 %v4367, %v4425
      %v4454 = vsub.f32 %v4372, %v4427
      %v4455 = vsub.f32 %v4375, %v4429
      %v4456 = vsub.f32 %v4380, %v4431
      %v4457 = vsub.f32 %v4383, %v4433
      %v4458 = vsub.f32 %v4388, %v4435
      %v4459 = vsub.f32 %v4391, %v4437
      %v4460 = vsub.f32 %v4396, %v4439
      %v4461 = vsub.f32 %v4399, %v4441
      %v4462 = vsub.f32 %v4404, %v4443
      %v4463 = vsub.f32 %v4407, %v4445
      %v4464 = vsub.f32 %v4412, %v4447
      %v4465 = vsub.f32 %v4415, %v4449
      %v4466 = vmul.f32 %v4450, 1.442695
      %v4467 = vpow.pop %v4466
      %v4468 = vmul.f32 %v4451, 1.442695
      %v4469 = vpow.pop %v4468
      %v4470 = vmul.f32 %v4452, 1.442695
      %v4471 = vpow.pop %v4470
      %v4472 = vmul.f32 %v4453, 1.442695
      %v4473 = vpow.pop %v4472
      %v4474 = vmul.f32 %v4454, 1.442695
      %v4475 = vpow.pop %v4474
      %v4476 = vmul.f32 %v4455, 1.442695
      %v4477 = vpow.pop %v4476
      %v4478 = vmul.f32 %v4456, 1.442695
      %v4479 = vpow.pop %v4478
      %v4480 = vmul.f32 %v4457, 1.442695
      %v4481 = vpow.pop %v4480
      %v4482 = vmul.f32 %v4458, 1.442695
      %v4483 = vpow.pop %v4482
      %v4484 = vmul.f32 %v4459, 1.442695
      %v4485 = vpow.pop %v4484
      %v4486 = vmul.f32 %v4460, 1.442695
      %v4487 = vpow.pop %v4486
      %v4488 = vmul.f32 %v4461, 1.442695
      %v4489 = vpow.pop %v4488
      %v4490 = vmul.f32 %v4462, 1.442695
      %v4491 = vpow.pop %v4490
      %v4492 = vmul.f32 %v4463, 1.442695
      %v4493 = vpow.pop %v4492
      %v4494 = vmul.f32 %v4464, 1.442695
      %v4495 = vpow.pop %v4494
      %v4496 = vmul.f32 %v4465, 1.442695
      %v4497 = vpow.pop %v4496
      %4498 = vadd.xlane.f32.xlu0 %v4467
      %v4499 = vpop.xlane.xlu0 %4498
      %4500 = vadd.xlane.f32.xlu0 %v4469
      %v4501 = vpop.xlane.xlu0 %4500
      %4502 = vadd.xlane.f32.xlu0 %v4471
      %v4503 = vpop.xlane.xlu0 %4502
      %4504 = vadd.xlane.f32.xlu0 %v4473
      %v4505 = vpop.xlane.xlu0 %4504
      %4506 = vadd.xlane.f32.xlu0 %v4475
      %v4507 = vpop.xlane.xlu0 %4506
      %4508 = vadd.xlane.f32.xlu0 %v4477
      %v4509 = vpop.xlane.xlu0 %4508
      %4510 = vadd.xlane.f32.xlu0 %v4479
      %v4511 = vpop.xlane.xlu0 %4510
      %4512 = vadd.xlane.f32.xlu0 %v4481
      %v4513 = vpop.xlane.xlu0 %4512
      %4514 = vadd.xlane.f32.xlu0 %v4483
      %v4515 = vpop.xlane.xlu0 %4514
      %4516 = vadd.xlane.f32.xlu0 %v4485
      %v4517 = vpop.xlane.xlu0 %4516
      %4518 = vadd.xlane.f32.xlu0 %v4487
      %v4519 = vpop.xlane.xlu0 %4518
      %4520 = vadd.xlane.f32.xlu0 %v4489
      %v4521 = vpop.xlane.xlu0 %4520
      %4522 = vadd.xlane.f32.xlu0 %v4491
      %v4523 = vpop.xlane.xlu0 %4522
      %4524 = vadd.xlane.f32.xlu0 %v4493
      %v4525 = vpop.xlane.xlu0 %4524
      %4526 = vadd.xlane.f32.xlu0 %v4495
      %v4527 = vpop.xlane.xlu0 %4526
      %4528 = vadd.xlane.f32.xlu0 %v4497
      %v4529 = vpop.xlane.xlu0 %4528
      %v4530 = vrcp.pop %v4499
      %v4531 = vrcp.pop %v4501
      %v4532 = vrcp.pop %v4503
      %v4533 = vrcp.pop %v4505
      %v4534 = vrcp.pop %v4507
      %v4535 = vrcp.pop %v4509
      %v4536 = vrcp.pop %v4511
      %v4537 = vrcp.pop %v4513
      %v4538 = vrcp.pop %v4515
      %v4539 = vrcp.pop %v4517
      %v4540 = vrcp.pop %v4519
      %v4541 = vrcp.pop %v4521
      %v4542 = vrcp.pop %v4523
      %v4543 = vrcp.pop %v4525
      %v4544 = vrcp.pop %v4527
      %v4545 = vrcp.pop %v4529
      %v4546 = vmul.f32 %v4467, %v4530
      %v4547 = vmul.f32 %v4469, %v4531
      %v4548 = vmul.f32 %v4471, %v4532
      %v4549 = vmul.f32 %v4473, %v4533
      %v4550 = vmul.f32 %v4475, %v4534
      %v4551 = vmul.f32 %v4477, %v4535
      %v4552 = vmul.f32 %v4479, %v4536
      %v4553 = vmul.f32 %v4481, %v4537
      %v4554 = vmul.f32 %v4483, %v4538
      %v4555 = vmul.f32 %v4485, %v4539
      %v4556 = vmul.f32 %v4487, %v4540
      %v4557 = vmul.f32 %v4489, %v4541
      %v4558 = vmul.f32 %v4491, %v4542
      %v4559 = vmul.f32 %v4493, %v4543
      %v4560 = vmul.f32 %v4495, %v4544
      %v4561 = vmul.f32 %v4497, %v4545
      %v4562 = vpack.c.bf16 %v4547, %v4546
      %v4563 = vpack.c.bf16 %v4549, %v4548
      %v4564 = vpack.c.bf16 %v4551, %v4550
      %v4565 = vpack.c.bf16 %v4553, %v4552
      %v4566 = vpack.c.bf16 %v4555, %v4554
      %v4567 = vpack.c.bf16 %v4557, %v4556
      %v4568 = vpack.c.bf16 %v4559, %v4558
      %v4569 = vpack.c.bf16 %v4561, %v4560
      %4578 = vrot.lane.b32.xlu0 %v4241, 64
      %v4579 = vpop.permute.xlu0 %4578
      %4580 = vrot.lane.b32.xlu0 %v4242, 64
      %v4581 = vpop.permute.xlu0 %4580
      %4582 = vrot.lane.b32.xlu0 %v4243, 64
      %v4583 = vpop.permute.xlu0 %4582
      %4584 = vrot.lane.b32.xlu0 %v4244, 64
      %v4585 = vpop.permute.xlu0 %4584
      %4586 = vrot.lane.b32.xlu0 %v4245, 64
      %v4587 = vpop.permute.xlu0 %4586
      %4588 = vrot.lane.b32.xlu0 %v4246, 64
      %v4589 = vpop.permute.xlu0 %4588
      %4590 = vrot.lane.b32.xlu0 %v4247, 64
      %v4591 = vpop.permute.xlu0 %4590
      %4592 = vrot.lane.b32.xlu0 %v4248, 64
      %v4593 = vpop.permute.xlu0 %4592
      %4602 = vmatprep.subr.bf16.mxu0 0
      %4603 = vmatpush1.bf16.msra.mxu0 %v4579
      %4604 = vmatprep.subr.bf16.mxu0 0
      %4605 = vmatpush1.bf16.msra.mxu0 %v4581
      %4606 = vmatprep.subr.bf16.mxu0 0
      %4607 = vmatpush1.bf16.msra.mxu0 %v4583
      %4608 = vmatprep.subr.bf16.mxu0 0
      %4609 = vmatpush1.bf16.msra.mxu0 %v4585
      %4610 = vmatprep.subr.bf16.mxu0 0
      %4611 = vmatpush1.bf16.msra.mxu0 %v4587
      %4612 = vmatprep.subr.bf16.mxu0 0
      %4613 = vmatpush1.bf16.msra.mxu0 %v4589
      %4614 = vmatprep.subr.bf16.mxu0 0
      %4615 = vmatpush1.bf16.msra.mxu0 %v4591
      %4616 = vmatprep.subr.bf16.mxu0 0
      %4617 = vmatpush1.bf16.msra.mxu0 %v4593
      %4618 = vmatprep.subr.bf16.mxu0 0
      %4619 = vmatpush1.bf16.msra.mxu0 0
      %4620 = vmatprep.subr.bf16.mxu0 0
      %4621 = vmatpush1.bf16.msra.mxu0 0
      %4622 = vmatprep.subr.bf16.mxu0 0
      %4623 = vmatpush1.bf16.msra.mxu0 0
      %4624 = vmatprep.subr.bf16.mxu0 0
      %4625 = vmatpush1.bf16.msra.mxu0 0
      %4626 = vmatprep.subr.bf16.mxu0 0
      %4627 = vmatpush1.bf16.msra.mxu0 0
      %4628 = vmatprep.subr.bf16.mxu0 0
      %4629 = vmatpush1.bf16.msra.mxu0 0
      %4630 = vmatprep.subr.bf16.mxu0 0
      %4631 = vmatpush1.bf16.msra.mxu0 0
      %4632 = vmatprep.subr.bf16.mxu0 0
      %4633 = vmatpush1.bf16.msra.mxu0 0
      %4634 = vmatprep.mubr.bf16.mxu0 0
      %4635 = vmatmul.mubr.bf16.gmra.mrb[0].mxu0 %v4562
      %v4636 = vpop.f32.mrb[0].mxu0
      %v4637 = vadd.f32 0.0, %v4636
      %v4638 = vpop.f32.mrb[0].mxu0
      %v4639 = vpop.f32.mrb[0].mxu0
      %v4640 = vadd.f32 0.0, %v4639
      %v4641 = vpop.f32.mrb[0].mxu0
      %4642 = vmatprep.mubr.bf16.mxu0 0
      %4643 = vmatmul.mubr.bf16.gmra.mrb[0].mxu0 %v4563
      %v4644 = vpop.f32.mrb[0].mxu0
      %v4645 = vadd.f32 0.0, %v4644
      %v4646 = vpop.f32.mrb[0].mxu0
      %v4647 = vpop.f32.mrb[0].mxu0
      %v4648 = vadd.f32 0.0, %v4647
      %v4649 = vpop.f32.mrb[0].mxu0
      %4650 = vmatprep.mubr.bf16.mxu0 0
      %4651 = vmatmul.mubr.bf16.gmra.mrb[0].mxu0 %v4564
      %v4652 = vpop.f32.mrb[0].mxu0
      %v4653 = vadd.f32 0.0, %v4652
      %v4654 = vpop.f32.mrb[0].mxu0
      %v4655 = vpop.f32.mrb[0].mxu0
      %v4656 = vadd.f32 0.0, %v4655
      %v4657 = vpop.f32.mrb[0].mxu0
      %4658 = vmatprep.mubr.bf16.mxu0 0
      %4659 = vmatmul.mubr.bf16.gmra.mrb[0].mxu0 %v4565
      %v4660 = vpop.f32.mrb[0].mxu0
      %v4661 = vadd.f32 0.0, %v4660
      %v4662 = vpop.f32.mrb[0].mxu0
      %v4663 = vpop.f32.mrb[0].mxu0
      %v4664 = vadd.f32 0.0, %v4663
      %v4665 = vpop.f32.mrb[0].mxu0
      %4666 = vmatprep.mubr.bf16.mxu0 0
      %4667 = vmatmul.mubr.bf16.gmra.mrb[0].mxu0 %v4566
      %v4668 = vpop.f32.mrb[0].mxu0
      %v4669 = vadd.f32 0.0, %v4668
      %v4670 = vpop.f32.mrb[0].mxu0
      %v4671 = vpop.f32.mrb[0].mxu0
      %v4672 = vadd.f32 0.0, %v4671
      %v4673 = vpop.f32.mrb[0].mxu0
      %4674 = vmatprep.mubr.bf16.mxu0 0
      %4675 = vmatmul.mubr.bf16.gmra.mrb[0].mxu0 %v4567
      %v4676 = vpop.f32.mrb[0].mxu0
      %v4677 = vadd.f32 0.0, %v4676
      %v4678 = vpop.f32.mrb[0].mxu0
      %v4679 = vpop.f32.mrb[0].mxu0
      %v4680 = vadd.f32 0.0, %v4679
      %v4681 = vpop.f32.mrb[0].mxu0
      %4682 = vmatprep.mubr.bf16.mxu0 0
      %4683 = vmatmul.mubr.bf16.gmra.mrb[0].mxu0 %v4568
      %v4684 = vpop.f32.mrb[0].mxu0
      %v4685 = vadd.f32 0.0, %v4684
      %v4686 = vpop.f32.mrb[0].mxu0
      %v4687 = vpop.f32.mrb[0].mxu0
      %v4688 = vadd.f32 0.0, %v4687
      %v4689 = vpop.f32.mrb[0].mxu0
      %4690 = vmatprep.mubr.bf16.mxu0 0
      %4691 = vmatmul.mubr.bf16.gmra.mrb[0].mxu0 %v4569
      %v4692 = vpop.f32.mrb[0].mxu0
      %v4693 = vadd.f32 0.0, %v4692
      %v4694 = vpop.f32.mrb[0].mxu0
      %v4695 = vpop.f32.mrb[0].mxu0
      %v4696 = vadd.f32 0.0, %v4695
      %v4697 = vpop.f32.mrb[0].mxu0
      %4698 = vdwg.mxu0
      %v4699 = vadd.f32 %v3767, %v4637
      %v4700 = vadd.f32 %v3768, %v4640
      %v4701 = vadd.f32 %v3769, %v4645
      %v4702 = vadd.f32 %v3770, %v4648
      %v4703 = vadd.f32 %v3771, %v4653
      %v4704 = vadd.f32 %v3772, %v4656
      %v4705 = vadd.f32 %v3773, %v4661
      %v4706 = vadd.f32 %v3774, %v4664
      %v4707 = vadd.f32 %v3775, %v4669
      %v4708 = vadd.f32 %v3776, %v4672
      %v4709 = vadd.f32 %v3777, %v4677
      %v4710 = vadd.f32 %v3778, %v4680
      %v4711 = vadd.f32 %v3779, %v4685
      %v4712 = vadd.f32 %v3780, %v4688
      %v4713 = vadd.f32 %v3781, %v4693
      %v4714 = vadd.f32 %v3782, %v4696
      %v4715 = vmul.f32 %v4131, %v1722
      %v4716 = vmul.f32 %v4134, %v1722
      %v4717 = vmul.f32 %v4139, %v1722
      %v4718 = vmul.f32 %v4142, %v1722
      %v4719 = vmul.f32 %v4147, %v1722
      %v4720 = vmul.f32 %v4150, %v1722
      %v4721 = vmul.f32 %v4155, %v1722
      %v4722 = vmul.f32 %v4158, %v1722
      %v4723 = vmul.f32 %v4163, %v1722
      %v4724 = vmul.f32 %v4166, %v1722
      %v4725 = vmul.f32 %v4171, %v1722
      %v4726 = vmul.f32 %v4174, %v1722
      %v4727 = vmul.f32 %v4179, %v1722
      %v4728 = vmul.f32 %v4182, %v1722
      %v4729 = vmul.f32 %v4187, %v1722
      %v4730 = vmul.f32 %v4190, %v1722
      %v4731 = vpack.c.bf16 %v4716, %v4715
      %v4732 = vpack.c.bf16 %v4718, %v4717
      %v4733 = vpack.c.bf16 %v4720, %v4719
      %v4734 = vpack.c.bf16 %v4722, %v4721
      %v4735 = vpack.c.bf16 %v4724, %v4723
      %v4736 = vpack.c.bf16 %v4726, %v4725
      %v4737 = vpack.c.bf16 %v4728, %v4727
      %v4738 = vpack.c.bf16 %v4730, %v4729
      %v4739 = vmul.f32 %v4131, %v1754
      %v4740 = vmul.f32 %v4134, %v1754
      %v4741 = vmul.f32 %v4139, %v1754
      %v4742 = vmul.f32 %v4142, %v1754
      %v4743 = vmul.f32 %v4147, %v1754
      %v4744 = vmul.f32 %v4150, %v1754
      %v4745 = vmul.f32 %v4155, %v1754
      %v4746 = vmul.f32 %v4158, %v1754
      %v4747 = vmul.f32 %v4163, %v1754
      %v4748 = vmul.f32 %v4166, %v1754
      %v4749 = vmul.f32 %v4171, %v1754
      %v4750 = vmul.f32 %v4174, %v1754
      %v4751 = vmul.f32 %v4179, %v1754
      %v4752 = vmul.f32 %v4182, %v1754
      %v4753 = vmul.f32 %v4187, %v1754
      %v4754 = vmul.f32 %v4190, %v1754
      %v4755 = vpack.c.bf16 %v4740, %v4739
      %v4756 = vpack.c.bf16 %v4742, %v4741
      %v4757 = vpack.c.bf16 %v4744, %v4743
      %v4758 = vpack.c.bf16 %v4746, %v4745
      %v4759 = vpack.c.bf16 %v4748, %v4747
      %v4760 = vpack.c.bf16 %v4750, %v4749
      %v4761 = vpack.c.bf16 %v4752, %v4751
      %v4762 = vpack.c.bf16 %v4754, %v4753
      %v4764 = vsel %vm774, %v4731, 0
      %v4767 = vsel %vm774, %v4732, 0
      %v4770 = vsel %vm774, %v4733, 0
      %v4773 = vsel %vm774, %v4734, 0
      %v4776 = vsel %vm774, %v4735, 0
      %v4779 = vsel %vm774, %v4736, 0
      %v4782 = vsel %vm774, %v4737, 0
      %v4785 = vsel %vm774, %v4738, 0
      %4787 = vmatprep.subr.bf16.mxu0 0
      %4788 = vmatpush1.bf16.xpose.msra.mxu0 %v4298
      %4789 = vmatprep.subr.bf16.mxu0 0
      %4790 = vmatpush1.bf16.xpose.msra.mxu0 %v4301
      %4791 = vmatprep.subr.bf16.mxu0 0
      %4792 = vmatpush1.bf16.xpose.msra.mxu0 %v4304
      %4793 = vmatprep.subr.bf16.mxu0 0
      %4794 = vmatpush1.bf16.xpose.msra.mxu0 %v4307
      %4795 = vmatprep.subr.bf16.mxu0 0
      %4796 = vmatpush1.bf16.xpose.msra.mxu0 %v4310
      %4797 = vmatprep.subr.bf16.mxu0 0
      %4798 = vmatpush1.bf16.xpose.msra.mxu0 %v4313
      %4799 = vmatprep.subr.bf16.mxu0 0
      %4800 = vmatpush1.bf16.xpose.msra.mxu0 %v4316
      %4801 = vmatprep.subr.bf16.mxu0 0
      %4802 = vmatpush1.bf16.xpose.msra.mxu0 %v4319
      %4803 = vmatprep.subr.bf16.mxu0 0
      %4804 = vmatpush1.bf16.xpose.msra.mxu0 0
      %4805 = vmatprep.subr.bf16.mxu0 0
      %4806 = vmatpush1.bf16.xpose.msra.mxu0 0
      %4807 = vmatprep.subr.bf16.mxu0 0
      %4808 = vmatpush1.bf16.xpose.msra.mxu0 0
      %4809 = vmatprep.subr.bf16.mxu0 0
      %4810 = vmatpush1.bf16.xpose.msra.mxu0 0
      %4811 = vmatprep.subr.bf16.mxu0 0
      %4812 = vmatpush1.bf16.xpose.msra.mxu0 0
      %4813 = vmatprep.subr.bf16.mxu0 0
      %4814 = vmatpush1.bf16.xpose.msra.mxu0 0
      %4815 = vmatprep.subr.bf16.mxu0 0
      %4816 = vmatpush1.bf16.xpose.msra.mxu0 0
      %4817 = vmatprep.subr.bf16.mxu0 0
      %4818 = vmatpush1.bf16.xpose.msra.mxu0 0
      %4819 = vmatprep.mubr.bf16.mxu0 0
      %4820 = vmatmul.mubr.bf16.gmra.mrb[0].mxu0 %v4764
      %v4821 = vpop.f32.mrb[0].mxu0
      %v4822 = vadd.f32 %v752, %v4821
      %v4823 = vpop.f32.mrb[0].mxu0
      %v4824 = vpop.f32.mrb[0].mxu0
      %v4825 = vadd.f32 %v753, %v4824
      %v4826 = vpop.f32.mrb[0].mxu0
      %4827 = vmatprep.mubr.bf16.mxu0 0
      %4828 = vmatmul.mubr.bf16.gmra.mrb[0].mxu0 %v4767
      %v4829 = vpop.f32.mrb[0].mxu0
      %v4830 = vadd.f32 %v754, %v4829
      %v4831 = vpop.f32.mrb[0].mxu0
      %v4832 = vpop.f32.mrb[0].mxu0
      %v4833 = vadd.f32 %v755, %v4832
      %v4834 = vpop.f32.mrb[0].mxu0
      %4835 = vmatprep.mubr.bf16.mxu0 0
      %4836 = vmatmul.mubr.bf16.gmra.mrb[0].mxu0 %v4770
      %v4837 = vpop.f32.mrb[0].mxu0
      %v4838 = vadd.f32 %v756, %v4837
      %v4839 = vpop.f32.mrb[0].mxu0
      %v4840 = vpop.f32.mrb[0].mxu0
      %v4841 = vadd.f32 %v757, %v4840
      %v4842 = vpop.f32.mrb[0].mxu0
      %4843 = vmatprep.mubr.bf16.mxu0 0
      %4844 = vmatmul.mubr.bf16.gmra.mrb[0].mxu0 %v4773
      %v4845 = vpop.f32.mrb[0].mxu0
      %v4846 = vadd.f32 %v758, %v4845
      %v4847 = vpop.f32.mrb[0].mxu0
      %v4848 = vpop.f32.mrb[0].mxu0
      %v4849 = vadd.f32 %v759, %v4848
      %v4850 = vpop.f32.mrb[0].mxu0
      %4851 = vmatprep.mubr.bf16.mxu0 0
      %4852 = vmatmul.mubr.bf16.gmra.mrb[0].mxu0 %v4776
      %v4853 = vpop.f32.mrb[0].mxu0
      %v4854 = vadd.f32 %v760, %v4853
      %v4855 = vpop.f32.mrb[0].mxu0
      %v4856 = vpop.f32.mrb[0].mxu0
      %v4857 = vadd.f32 %v761, %v4856
      %v4858 = vpop.f32.mrb[0].mxu0
      %4859 = vmatprep.mubr.bf16.mxu0 0
      %4860 = vmatmul.mubr.bf16.gmra.mrb[0].mxu0 %v4779
      %v4861 = vpop.f32.mrb[0].mxu0
      %v4862 = vadd.f32 %v762, %v4861
      %v4863 = vpop.f32.mrb[0].mxu0
      %v4864 = vpop.f32.mrb[0].mxu0
      %v4865 = vadd.f32 %v763, %v4864
      %v4866 = vpop.f32.mrb[0].mxu0
      %4867 = vmatprep.mubr.bf16.mxu0 0
      %4868 = vmatmul.mubr.bf16.gmra.mrb[0].mxu0 %v4782
      %v4869 = vpop.f32.mrb[0].mxu0
      %v4870 = vadd.f32 %v764, %v4869
      %v4871 = vpop.f32.mrb[0].mxu0
      %v4872 = vpop.f32.mrb[0].mxu0
      %v4873 = vadd.f32 %v765, %v4872
      %v4874 = vpop.f32.mrb[0].mxu0
      %4875 = vmatprep.mubr.bf16.mxu0 0
      %4876 = vmatmul.mubr.bf16.gmra.mrb[0].mxu0 %v4785
      %v4877 = vpop.f32.mrb[0].mxu0
      %v4878 = vadd.f32 %v766, %v4877
      %v4879 = vpop.f32.mrb[0].mxu0
      %v4880 = vpop.f32.mrb[0].mxu0
      %v4881 = vadd.f32 %v767, %v4880
      %v4882 = vpop.f32.mrb[0].mxu0
      %4883 = vdwg.mxu0
      %4884 = vmax.xlane.f32.xlu0 %v4822
      %v4885 = vpop.xlane.xlu0 %4884
      %4886 = vmax.xlane.f32.xlu0 %v4825
      %v4887 = vpop.xlane.xlu0 %4886
      %4888 = vmax.xlane.f32.xlu0 %v4830
      %v4889 = vpop.xlane.xlu0 %4888
      %4890 = vmax.xlane.f32.xlu0 %v4833
      %v4891 = vpop.xlane.xlu0 %4890
      %4892 = vmax.xlane.f32.xlu0 %v4838
      %v4893 = vpop.xlane.xlu0 %4892
      %4894 = vmax.xlane.f32.xlu0 %v4841
      %v4895 = vpop.xlane.xlu0 %4894
      %4896 = vmax.xlane.f32.xlu0 %v4846
      %v4897 = vpop.xlane.xlu0 %4896
      %4898 = vmax.xlane.f32.xlu0 %v4849
      %v4899 = vpop.xlane.xlu0 %4898
      %4900 = vmax.xlane.f32.xlu0 %v4854
      %v4901 = vpop.xlane.xlu0 %4900
      %4902 = vmax.xlane.f32.xlu0 %v4857
      %v4903 = vpop.xlane.xlu0 %4902
      %4904 = vmax.xlane.f32.xlu0 %v4862
      %v4905 = vpop.xlane.xlu0 %4904
      %4906 = vmax.xlane.f32.xlu0 %v4865
      %v4907 = vpop.xlane.xlu0 %4906
      %4908 = vmax.xlane.f32.xlu0 %v4870
      %v4909 = vpop.xlane.xlu0 %4908
      %4910 = vmax.xlane.f32.xlu0 %v4873
      %v4911 = vpop.xlane.xlu0 %4910
      %4912 = vmax.xlane.f32.xlu0 %v4878
      %v4913 = vpop.xlane.xlu0 %4912
      %4914 = vmax.xlane.f32.xlu0 %v4881
      %v4915 = vpop.xlane.xlu0 %4914
      %v4916 = vsub.f32 %v4822, %v4885
      %v4917 = vsub.f32 %v4825, %v4887
      %v4918 = vsub.f32 %v4830, %v4889
      %v4919 = vsub.f32 %v4833, %v4891
      %v4920 = vsub.f32 %v4838, %v4893
      %v4921 = vsub.f32 %v4841, %v4895
      %v4922 = vsub.f32 %v4846, %v4897
      %v4923 = vsub.f32 %v4849, %v4899
      %v4924 = vsub.f32 %v4854, %v4901
      %v4925 = vsub.f32 %v4857, %v4903
      %v4926 = vsub.f32 %v4862, %v4905
      %v4927 = vsub.f32 %v4865, %v4907
      %v4928 = vsub.f32 %v4870, %v4909
      %v4929 = vsub.f32 %v4873, %v4911
      %v4930 = vsub.f32 %v4878, %v4913
      %v4931 = vsub.f32 %v4881, %v4915
      %v4932 = vmul.f32 %v4916, 1.442695
      %v4933 = vpow.pop %v4932
      %v4934 = vmul.f32 %v4917, 1.442695
      %v4935 = vpow.pop %v4934
      %v4936 = vmul.f32 %v4918, 1.442695
      %v4937 = vpow.pop %v4936
      %v4938 = vmul.f32 %v4919, 1.442695
      %v4939 = vpow.pop %v4938
      %v4940 = vmul.f32 %v4920, 1.442695
      %v4941 = vpow.pop %v4940
      %v4942 = vmul.f32 %v4921, 1.442695
      %v4943 = vpow.pop %v4942
      %v4944 = vmul.f32 %v4922, 1.442695
      %v4945 = vpow.pop %v4944
      %v4946 = vmul.f32 %v4923, 1.442695
      %v4947 = vpow.pop %v4946
      %v4948 = vmul.f32 %v4924, 1.442695
      %v4949 = vpow.pop %v4948
      %v4950 = vmul.f32 %v4925, 1.442695
      %v4951 = vpow.pop %v4950
      %v4952 = vmul.f32 %v4926, 1.442695
      %v4953 = vpow.pop %v4952
      %v4954 = vmul.f32 %v4927, 1.442695
      %v4955 = vpow.pop %v4954
      %v4956 = vmul.f32 %v4928, 1.442695
      %v4957 = vpow.pop %v4956
      %v4958 = vmul.f32 %v4929, 1.442695
      %v4959 = vpow.pop %v4958
      %v4960 = vmul.f32 %v4930, 1.442695
      %v4961 = vpow.pop %v4960
      %v4962 = vmul.f32 %v4931, 1.442695
      %v4963 = vpow.pop %v4962
      %4964 = vadd.xlane.f32.xlu0 %v4933
      %v4965 = vpop.xlane.xlu0 %4964
      %4966 = vadd.xlane.f32.xlu0 %v4935
      %v4967 = vpop.xlane.xlu0 %4966
      %4968 = vadd.xlane.f32.xlu0 %v4937
      %v4969 = vpop.xlane.xlu0 %4968
      %4970 = vadd.xlane.f32.xlu0 %v4939
      %v4971 = vpop.xlane.xlu0 %4970
      %4972 = vadd.xlane.f32.xlu0 %v4941
      %v4973 = vpop.xlane.xlu0 %4972
      %4974 = vadd.xlane.f32.xlu0 %v4943
      %v4975 = vpop.xlane.xlu0 %4974
      %4976 = vadd.xlane.f32.xlu0 %v4945
      %v4977 = vpop.xlane.xlu0 %4976
      %4978 = vadd.xlane.f32.xlu0 %v4947
      %v4979 = vpop.xlane.xlu0 %4978
      %4980 = vadd.xlane.f32.xlu0 %v4949
      %v4981 = vpop.xlane.xlu0 %4980
      %4982 = vadd.xlane.f32.xlu0 %v4951
      %v4983 = vpop.xlane.xlu0 %4982
      %4984 = vadd.xlane.f32.xlu0 %v4953
      %v4985 = vpop.xlane.xlu0 %4984
      %4986 = vadd.xlane.f32.xlu0 %v4955
      %v4987 = vpop.xlane.xlu0 %4986
      %4988 = vadd.xlane.f32.xlu0 %v4957
      %v4989 = vpop.xlane.xlu0 %4988
      %4990 = vadd.xlane.f32.xlu0 %v4959
      %v4991 = vpop.xlane.xlu0 %4990
      %4992 = vadd.xlane.f32.xlu0 %v4961
      %v4993 = vpop.xlane.xlu0 %4992
      %4994 = vadd.xlane.f32.xlu0 %v4963
      %v4995 = vpop.xlane.xlu0 %4994
      %v4996 = vrcp.pop %v4965
      %v4997 = vrcp.pop %v4967
      %v4998 = vrcp.pop %v4969
      %v4999 = vrcp.pop %v4971
      %v5000 = vrcp.pop %v4973
      %v5001 = vrcp.pop %v4975
      %v5002 = vrcp.pop %v4977
      %v5003 = vrcp.pop %v4979
      %v5004 = vrcp.pop %v4981
      %v5005 = vrcp.pop %v4983
      %v5006 = vrcp.pop %v4985
      %v5007 = vrcp.pop %v4987
      %v5008 = vrcp.pop %v4989
      %v5009 = vrcp.pop %v4991
      %v5010 = vrcp.pop %v4993
      %v5011 = vrcp.pop %v4995
      %v5012 = vmul.f32 %v4933, %v4996
      %v5013 = vmul.f32 %v4935, %v4997
      %v5014 = vmul.f32 %v4937, %v4998
      %v5015 = vmul.f32 %v4939, %v4999
      %v5016 = vmul.f32 %v4941, %v5000
      %v5017 = vmul.f32 %v4943, %v5001
      %v5018 = vmul.f32 %v4945, %v5002
      %v5019 = vmul.f32 %v4947, %v5003
      %v5020 = vmul.f32 %v4949, %v5004
      %v5021 = vmul.f32 %v4951, %v5005
      %v5022 = vmul.f32 %v4953, %v5006
      %v5023 = vmul.f32 %v4955, %v5007
      %v5024 = vmul.f32 %v4957, %v5008
      %v5025 = vmul.f32 %v4959, %v5009
      %v5026 = vmul.f32 %v4961, %v5010
      %v5027 = vmul.f32 %v4963, %v5011
      %v5028 = vpack.c.bf16 %v5013, %v5012
      %v5029 = vpack.c.bf16 %v5015, %v5014
      %v5030 = vpack.c.bf16 %v5017, %v5016
      %v5031 = vpack.c.bf16 %v5019, %v5018
      %v5032 = vpack.c.bf16 %v5021, %v5020
      %v5033 = vpack.c.bf16 %v5023, %v5022
      %v5034 = vpack.c.bf16 %v5025, %v5024
      %v5035 = vpack.c.bf16 %v5027, %v5026
      %5044 = vrot.lane.b32.xlu0 %v4755, 64
      %v5045 = vpop.permute.xlu0 %5044
      %5046 = vrot.lane.b32.xlu0 %v4756, 64
      %v5047 = vpop.permute.xlu0 %5046
      %5048 = vrot.lane.b32.xlu0 %v4757, 64
      %v5049 = vpop.permute.xlu0 %5048
      %5050 = vrot.lane.b32.xlu0 %v4758, 64
      %v5051 = vpop.permute.xlu0 %5050
      %5052 = vrot.lane.b32.xlu0 %v4759, 64
      %v5053 = vpop.permute.xlu0 %5052
      %5054 = vrot.lane.b32.xlu0 %v4760, 64
      %v5055 = vpop.permute.xlu0 %5054
      %5056 = vrot.lane.b32.xlu0 %v4761, 64
      %v5057 = vpop.permute.xlu0 %5056
      %5058 = vrot.lane.b32.xlu0 %v4762, 64
      %v5059 = vpop.permute.xlu0 %5058
      %5068 = vmatprep.subr.bf16.mxu0 0
      %5069 = vmatpush1.bf16.msra.mxu0 %v5045
      %5070 = vmatprep.subr.bf16.mxu0 0
      %5071 = vmatpush1.bf16.msra.mxu0 %v5047
      %5072 = vmatprep.subr.bf16.mxu0 0
      %5073 = vmatpush1.bf16.msra.mxu0 %v5049
      %5074 = vmatprep.subr.bf16.mxu0 0
      %5075 = vmatpush1.bf16.msra.mxu0 %v5051
      %5076 = vmatprep.subr.bf16.mxu0 0
      %5077 = vmatpush1.bf16.msra.mxu0 %v5053
      %5078 = vmatprep.subr.bf16.mxu0 0
      %5079 = vmatpush1.bf16.msra.mxu0 %v5055
      %5080 = vmatprep.subr.bf16.mxu0 0
      %5081 = vmatpush1.bf16.msra.mxu0 %v5057
      %5082 = vmatprep.subr.bf16.mxu0 0
      %5083 = vmatpush1.bf16.msra.mxu0 %v5059
      %5084 = vmatprep.subr.bf16.mxu0 0
      %5085 = vmatpush1.bf16.msra.mxu0 0
      %5086 = vmatprep.subr.bf16.mxu0 0
      %5087 = vmatpush1.bf16.msra.mxu0 0
      %5088 = vmatprep.subr.bf16.mxu0 0
      %5089 = vmatpush1.bf16.msra.mxu0 0
      %5090 = vmatprep.subr.bf16.mxu0 0
      %5091 = vmatpush1.bf16.msra.mxu0 0
      %5092 = vmatprep.subr.bf16.mxu0 0
      %5093 = vmatpush1.bf16.msra.mxu0 0
      %5094 = vmatprep.subr.bf16.mxu0 0
      %5095 = vmatpush1.bf16.msra.mxu0 0
      %5096 = vmatprep.subr.bf16.mxu0 0
      %5097 = vmatpush1.bf16.msra.mxu0 0
      %5098 = vmatprep.subr.bf16.mxu0 0
      %5099 = vmatpush1.bf16.msra.mxu0 0
      %5100 = vmatprep.mubr.bf16.mxu0 0
      %5101 = vmatmul.mubr.bf16.gmra.mrb[0].mxu0 %v5028
      %v5102 = vpop.f32.mrb[0].mxu0
      %v5103 = vadd.f32 0.0, %v5102
      %v5104 = vpop.f32.mrb[0].mxu0
      %v5105 = vpop.f32.mrb[0].mxu0
      %v5106 = vadd.f32 0.0, %v5105
      %v5107 = vpop.f32.mrb[0].mxu0
      %5108 = vmatprep.mubr.bf16.mxu0 0
      %5109 = vmatmul.mubr.bf16.gmra.mrb[0].mxu0 %v5029
      %v5110 = vpop.f32.mrb[0].mxu0
      %v5111 = vadd.f32 0.0, %v5110
      %v5112 = vpop.f32.mrb[0].mxu0
      %v5113 = vpop.f32.mrb[0].mxu0
      %v5114 = vadd.f32 0.0, %v5113
      %v5115 = vpop.f32.mrb[0].mxu0
      %5116 = vmatprep.mubr.bf16.mxu0 0
      %5117 = vmatmul.mubr.bf16.gmra.mrb[0].mxu0 %v5030
      %v5118 = vpop.f32.mrb[0].mxu0
      %v5119 = vadd.f32 0.0, %v5118
      %v5120 = vpop.f32.mrb[0].mxu0
      %v5121 = vpop.f32.mrb[0].mxu0
      %v5122 = vadd.f32 0.0, %v5121
      %v5123 = vpop.f32.mrb[0].mxu0
      %5124 = vmatprep.mubr.bf16.mxu0 0
      %5125 = vmatmul.mubr.bf16.gmra.mrb[0].mxu0 %v5031
      %v5126 = vpop.f32.mrb[0].mxu0
      %v5127 = vadd.f32 0.0, %v5126
      %v5128 = vpop.f32.mrb[0].mxu0
      %v5129 = vpop.f32.mrb[0].mxu0
      %v5130 = vadd.f32 0.0, %v5129
      %v5131 = vpop.f32.mrb[0].mxu0
      %5132 = vmatprep.mubr.bf16.mxu0 0
      %5133 = vmatmul.mubr.bf16.gmra.mrb[0].mxu0 %v5032
      %v5134 = vpop.f32.mrb[0].mxu0
      %v5135 = vadd.f32 0.0, %v5134
      %v5136 = vpop.f32.mrb[0].mxu0
      %v5137 = vpop.f32.mrb[0].mxu0
      %v5138 = vadd.f32 0.0, %v5137
      %v5139 = vpop.f32.mrb[0].mxu0
      %5140 = vmatprep.mubr.bf16.mxu0 0
      %5141 = vmatmul.mubr.bf16.gmra.mrb[0].mxu0 %v5033
      %v5142 = vpop.f32.mrb[0].mxu0
      %v5143 = vadd.f32 0.0, %v5142
      %v5144 = vpop.f32.mrb[0].mxu0
      %v5145 = vpop.f32.mrb[0].mxu0
      %v5146 = vadd.f32 0.0, %v5145
      %v5147 = vpop.f32.mrb[0].mxu0
      %5148 = vmatprep.mubr.bf16.mxu0 0
      %5149 = vmatmul.mubr.bf16.gmra.mrb[0].mxu0 %v5034
      %v5150 = vpop.f32.mrb[0].mxu0
      %v5151 = vadd.f32 0.0, %v5150
      %v5152 = vpop.f32.mrb[0].mxu0
      %v5153 = vpop.f32.mrb[0].mxu0
      %v5154 = vadd.f32 0.0, %v5153
      %v5155 = vpop.f32.mrb[0].mxu0
      %5156 = vmatprep.mubr.bf16.mxu0 0
      %5157 = vmatmul.mubr.bf16.gmra.mrb[0].mxu0 %v5035
      %v5158 = vpop.f32.mrb[0].mxu0
      %v5159 = vadd.f32 0.0, %v5158
      %v5160 = vpop.f32.mrb[0].mxu0
      %v5161 = vpop.f32.mrb[0].mxu0
      %v5162 = vadd.f32 0.0, %v5161
      %v5163 = vpop.f32.mrb[0].mxu0
      %5164 = vdwg.mxu0
      %v5165 = vadd.f32 %v4699, %v5103
      %v5166 = vadd.f32 %v4700, %v5106
      %v5167 = vadd.f32 %v4701, %v5111
      %v5168 = vadd.f32 %v4702, %v5114
      %v5169 = vadd.f32 %v4703, %v5119
      %v5170 = vadd.f32 %v4704, %v5122
      %v5171 = vadd.f32 %v4705, %v5127
      %v5172 = vadd.f32 %v4706, %v5130
      %v5173 = vadd.f32 %v4707, %v5135
      %v5174 = vadd.f32 %v4708, %v5138
      %v5175 = vadd.f32 %v4709, %v5143
      %v5176 = vadd.f32 %v4710, %v5146
      %v5177 = vadd.f32 %v4711, %v5151
      %v5178 = vadd.f32 %v4712, %v5154
      %v5179 = vadd.f32 %v4713, %v5159
      %v5180 = vadd.f32 %v4714, %v5162
      %v5181 = vmul.f32 %v4131, %v2203
      %v5182 = vmul.f32 %v4134, %v2203
      %v5183 = vmul.f32 %v4139, %v2203
      %v5184 = vmul.f32 %v4142, %v2203
      %v5185 = vmul.f32 %v4147, %v2203
      %v5186 = vmul.f32 %v4150, %v2203
      %v5187 = vmul.f32 %v4155, %v2203
      %v5188 = vmul.f32 %v4158, %v2203
      %v5189 = vmul.f32 %v4163, %v2203
      %v5190 = vmul.f32 %v4166, %v2203
      %v5191 = vmul.f32 %v4171, %v2203
      %v5192 = vmul.f32 %v4174, %v2203
      %v5193 = vmul.f32 %v4179, %v2203
      %v5194 = vmul.f32 %v4182, %v2203
      %v5195 = vmul.f32 %v4187, %v2203
      %v5196 = vmul.f32 %v4190, %v2203
      %v5197 = vpack.c.bf16 %v5182, %v5181
      %v5198 = vpack.c.bf16 %v5184, %v5183
      %v5199 = vpack.c.bf16 %v5186, %v5185
      %v5200 = vpack.c.bf16 %v5188, %v5187
      %v5201 = vpack.c.bf16 %v5190, %v5189
      %v5202 = vpack.c.bf16 %v5192, %v5191
      %v5203 = vpack.c.bf16 %v5194, %v5193
      %v5204 = vpack.c.bf16 %v5196, %v5195
      %v5205 = vmul.f32 %v4131, %v2235
      %v5206 = vmul.f32 %v4134, %v2235
      %v5207 = vmul.f32 %v4139, %v2235
      %v5208 = vmul.f32 %v4142, %v2235
      %v5209 = vmul.f32 %v4147, %v2235
      %v5210 = vmul.f32 %v4150, %v2235
      %v5211 = vmul.f32 %v4155, %v2235
      %v5212 = vmul.f32 %v4158, %v2235
      %v5213 = vmul.f32 %v4163, %v2235
      %v5214 = vmul.f32 %v4166, %v2235
      %v5215 = vmul.f32 %v4171, %v2235
      %v5216 = vmul.f32 %v4174, %v2235
      %v5217 = vmul.f32 %v4179, %v2235
      %v5218 = vmul.f32 %v4182, %v2235
      %v5219 = vmul.f32 %v4187, %v2235
      %v5220 = vmul.f32 %v4190, %v2235
      %v5221 = vpack.c.bf16 %v5206, %v5205
      %v5222 = vpack.c.bf16 %v5208, %v5207
      %v5223 = vpack.c.bf16 %v5210, %v5209
      %v5224 = vpack.c.bf16 %v5212, %v5211
      %v5225 = vpack.c.bf16 %v5214, %v5213
      %v5226 = vpack.c.bf16 %v5216, %v5215
      %v5227 = vpack.c.bf16 %v5218, %v5217
      %v5228 = vpack.c.bf16 %v5220, %v5219
      %v5230 = vsel %vm774, %v5197, 0
      %v5233 = vsel %vm774, %v5198, 0
      %v5236 = vsel %vm774, %v5199, 0
      %v5239 = vsel %vm774, %v5200, 0
      %v5242 = vsel %vm774, %v5201, 0
      %v5245 = vsel %vm774, %v5202, 0
      %v5248 = vsel %vm774, %v5203, 0
      %v5251 = vsel %vm774, %v5204, 0
      %5253 = vmatprep.subr.bf16.mxu0 0
      %5254 = vmatpush1.bf16.xpose.msra.mxu0 %v4298
      %5255 = vmatprep.subr.bf16.mxu0 0
      %5256 = vmatpush1.bf16.xpose.msra.mxu0 %v4301
      %5257 = vmatprep.subr.bf16.mxu0 0
      %5258 = vmatpush1.bf16.xpose.msra.mxu0 %v4304
      %5259 = vmatprep.subr.bf16.mxu0 0
      %5260 = vmatpush1.bf16.xpose.msra.mxu0 %v4307
      %5261 = vmatprep.subr.bf16.mxu0 0
      %5262 = vmatpush1.bf16.xpose.msra.mxu0 %v4310
      %5263 = vmatprep.subr.bf16.mxu0 0
      %5264 = vmatpush1.bf16.xpose.msra.mxu0 %v4313
      %5265 = vmatprep.subr.bf16.mxu0 0
      %5266 = vmatpush1.bf16.xpose.msra.mxu0 %v4316
      %5267 = vmatprep.subr.bf16.mxu0 0
      %5268 = vmatpush1.bf16.xpose.msra.mxu0 %v4319
      %5269 = vmatprep.subr.bf16.mxu0 0
      %5270 = vmatpush1.bf16.xpose.msra.mxu0 0
      %5271 = vmatprep.subr.bf16.mxu0 0
      %5272 = vmatpush1.bf16.xpose.msra.mxu0 0
      %5273 = vmatprep.subr.bf16.mxu0 0
      %5274 = vmatpush1.bf16.xpose.msra.mxu0 0
      %5275 = vmatprep.subr.bf16.mxu0 0
      %5276 = vmatpush1.bf16.xpose.msra.mxu0 0
      %5277 = vmatprep.subr.bf16.mxu0 0
      %5278 = vmatpush1.bf16.xpose.msra.mxu0 0
      %5279 = vmatprep.subr.bf16.mxu0 0
      %5280 = vmatpush1.bf16.xpose.msra.mxu0 0
      %5281 = vmatprep.subr.bf16.mxu0 0
      %5282 = vmatpush1.bf16.xpose.msra.mxu0 0
      %5283 = vmatprep.subr.bf16.mxu0 0
      %5284 = vmatpush1.bf16.xpose.msra.mxu0 0
      %5285 = vmatprep.mubr.bf16.mxu0 0
      %5286 = vmatmul.mubr.bf16.gmra.mrb[0].mxu0 %v5230
      %v5287 = vpop.f32.mrb[0].mxu0
      %v5288 = vadd.f32 %v752, %v5287
      %v5289 = vpop.f32.mrb[0].mxu0
      %v5290 = vpop.f32.mrb[0].mxu0
      %v5291 = vadd.f32 %v753, %v5290
      %v5292 = vpop.f32.mrb[0].mxu0
      %5293 = vmatprep.mubr.bf16.mxu0 0
      %5294 = vmatmul.mubr.bf16.gmra.mrb[0].mxu0 %v5233
      %v5295 = vpop.f32.mrb[0].mxu0
      %v5296 = vadd.f32 %v754, %v5295
      %v5297 = vpop.f32.mrb[0].mxu0
      %v5298 = vpop.f32.mrb[0].mxu0
      %v5299 = vadd.f32 %v755, %v5298
      %v5300 = vpop.f32.mrb[0].mxu0
      %5301 = vmatprep.mubr.bf16.mxu0 0
      %5302 = vmatmul.mubr.bf16.gmra.mrb[0].mxu0 %v5236
      %v5303 = vpop.f32.mrb[0].mxu0
      %v5304 = vadd.f32 %v756, %v5303
      %v5305 = vpop.f32.mrb[0].mxu0
      %v5306 = vpop.f32.mrb[0].mxu0
      %v5307 = vadd.f32 %v757, %v5306
      %v5308 = vpop.f32.mrb[0].mxu0
      %5309 = vmatprep.mubr.bf16.mxu0 0
      %5310 = vmatmul.mubr.bf16.gmra.mrb[0].mxu0 %v5239
      %v5311 = vpop.f32.mrb[0].mxu0
      %v5312 = vadd.f32 %v758, %v5311
      %v5313 = vpop.f32.mrb[0].mxu0
      %v5314 = vpop.f32.mrb[0].mxu0
      %v5315 = vadd.f32 %v759, %v5314
      %v5316 = vpop.f32.mrb[0].mxu0
      %5317 = vmatprep.mubr.bf16.mxu0 0
      %5318 = vmatmul.mubr.bf16.gmra.mrb[0].mxu0 %v5242
      %v5319 = vpop.f32.mrb[0].mxu0
      %v5320 = vadd.f32 %v760, %v5319
      %v5321 = vpop.f32.mrb[0].mxu0
      %v5322 = vpop.f32.mrb[0].mxu0
      %v5323 = vadd.f32 %v761, %v5322
      %v5324 = vpop.f32.mrb[0].mxu0
      %5325 = vmatprep.mubr.bf16.mxu0 0
      %5326 = vmatmul.mubr.bf16.gmra.mrb[0].mxu0 %v5245
      %v5327 = vpop.f32.mrb[0].mxu0
      %v5328 = vadd.f32 %v762, %v5327
      %v5329 = vpop.f32.mrb[0].mxu0
      %v5330 = vpop.f32.mrb[0].mxu0
      %v5331 = vadd.f32 %v763, %v5330
      %v5332 = vpop.f32.mrb[0].mxu0
      %5333 = vmatprep.mubr.bf16.mxu0 0
      %5334 = vmatmul.mubr.bf16.gmra.mrb[0].mxu0 %v5248
      %v5335 = vpop.f32.mrb[0].mxu0
      %v5336 = vadd.f32 %v764, %v5335
      %v5337 = vpop.f32.mrb[0].mxu0
      %v5338 = vpop.f32.mrb[0].mxu0
      %v5339 = vadd.f32 %v765, %v5338
      %v5340 = vpop.f32.mrb[0].mxu0
      %5341 = vmatprep.mubr.bf16.mxu0 0
      %5342 = vmatmul.mubr.bf16.gmra.mrb[0].mxu0 %v5251
      %v5343 = vpop.f32.mrb[0].mxu0
      %v5344 = vadd.f32 %v766, %v5343
      %v5345 = vpop.f32.mrb[0].mxu0
      %v5346 = vpop.f32.mrb[0].mxu0
      %v5347 = vadd.f32 %v767, %v5346
      %v5348 = vpop.f32.mrb[0].mxu0
      %5349 = vdwg.mxu0
      %5350 = vmax.xlane.f32.xlu0 %v5288
      %v5351 = vpop.xlane.xlu0 %5350
      %5352 = vmax.xlane.f32.xlu0 %v5291
      %v5353 = vpop.xlane.xlu0 %5352
      %5354 = vmax.xlane.f32.xlu0 %v5296
      %v5355 = vpop.xlane.xlu0 %5354
      %5356 = vmax.xlane.f32.xlu0 %v5299
      %v5357 = vpop.xlane.xlu0 %5356
      %5358 = vmax.xlane.f32.xlu0 %v5304
      %v5359 = vpop.xlane.xlu0 %5358
      %5360 = vmax.xlane.f32.xlu0 %v5307
      %v5361 = vpop.xlane.xlu0 %5360
      %5362 = vmax.xlane.f32.xlu0 %v5312
      %v5363 = vpop.xlane.xlu0 %5362
      %5364 = vmax.xlane.f32.xlu0 %v5315
      %v5365 = vpop.xlane.xlu0 %5364
      %5366 = vmax.xlane.f32.xlu0 %v5320
      %v5367 = vpop.xlane.xlu0 %5366
      %5368 = vmax.xlane.f32.xlu0 %v5323
      %v5369 = vpop.xlane.xlu0 %5368
      %5370 = vmax.xlane.f32.xlu0 %v5328
      %v5371 = vpop.xlane.xlu0 %5370
      %5372 = vmax.xlane.f32.xlu0 %v5331
      %v5373 = vpop.xlane.xlu0 %5372
      %5374 = vmax.xlane.f32.xlu0 %v5336
      %v5375 = vpop.xlane.xlu0 %5374
      %5376 = vmax.xlane.f32.xlu0 %v5339
      %v5377 = vpop.xlane.xlu0 %5376
      %5378 = vmax.xlane.f32.xlu0 %v5344
      %v5379 = vpop.xlane.xlu0 %5378
      %5380 = vmax.xlane.f32.xlu0 %v5347
      %v5381 = vpop.xlane.xlu0 %5380
      %v5382 = vsub.f32 %v5288, %v5351
      %v5383 = vsub.f32 %v5291, %v5353
      %v5384 = vsub.f32 %v5296, %v5355
      %v5385 = vsub.f32 %v5299, %v5357
      %v5386 = vsub.f32 %v5304, %v5359
      %v5387 = vsub.f32 %v5307, %v5361
      %v5388 = vsub.f32 %v5312, %v5363
      %v5389 = vsub.f32 %v5315, %v5365
      %v5390 = vsub.f32 %v5320, %v5367
      %v5391 = vsub.f32 %v5323, %v5369
      %v5392 = vsub.f32 %v5328, %v5371
      %v5393 = vsub.f32 %v5331, %v5373
      %v5394 = vsub.f32 %v5336, %v5375
      %v5395 = vsub.f32 %v5339, %v5377
      %v5396 = vsub.f32 %v5344, %v5379
      %v5397 = vsub.f32 %v5347, %v5381
      %v5398 = vmul.f32 %v5382, 1.442695
      %v5399 = vpow.pop %v5398
      %v5400 = vmul.f32 %v5383, 1.442695
      %v5401 = vpow.pop %v5400
      %v5402 = vmul.f32 %v5384, 1.442695
      %v5403 = vpow.pop %v5402
      %v5404 = vmul.f32 %v5385, 1.442695
      %v5405 = vpow.pop %v5404
      %v5406 = vmul.f32 %v5386, 1.442695
      %v5407 = vpow.pop %v5406
      %v5408 = vmul.f32 %v5387, 1.442695
      %v5409 = vpow.pop %v5408
      %v5410 = vmul.f32 %v5388, 1.442695
      %v5411 = vpow.pop %v5410
      %v5412 = vmul.f32 %v5389, 1.442695
      %v5413 = vpow.pop %v5412
      %v5414 = vmul.f32 %v5390, 1.442695
      %v5415 = vpow.pop %v5414
      %v5416 = vmul.f32 %v5391, 1.442695
      %v5417 = vpow.pop %v5416
      %v5418 = vmul.f32 %v5392, 1.442695
      %v5419 = vpow.pop %v5418
      %v5420 = vmul.f32 %v5393, 1.442695
      %v5421 = vpow.pop %v5420
      %v5422 = vmul.f32 %v5394, 1.442695
      %v5423 = vpow.pop %v5422
      %v5424 = vmul.f32 %v5395, 1.442695
      %v5425 = vpow.pop %v5424
      %v5426 = vmul.f32 %v5396, 1.442695
      %v5427 = vpow.pop %v5426
      %v5428 = vmul.f32 %v5397, 1.442695
      %v5429 = vpow.pop %v5428
      %5430 = vadd.xlane.f32.xlu0 %v5399
      %v5431 = vpop.xlane.xlu0 %5430
      %5432 = vadd.xlane.f32.xlu0 %v5401
      %v5433 = vpop.xlane.xlu0 %5432
      %5434 = vadd.xlane.f32.xlu0 %v5403
      %v5435 = vpop.xlane.xlu0 %5434
      %5436 = vadd.xlane.f32.xlu0 %v5405
      %v5437 = vpop.xlane.xlu0 %5436
      %5438 = vadd.xlane.f32.xlu0 %v5407
      %v5439 = vpop.xlane.xlu0 %5438
      %5440 = vadd.xlane.f32.xlu0 %v5409
      %v5441 = vpop.xlane.xlu0 %5440
      %5442 = vadd.xlane.f32.xlu0 %v5411
      %v5443 = vpop.xlane.xlu0 %5442
      %5444 = vadd.xlane.f32.xlu0 %v5413
      %v5445 = vpop.xlane.xlu0 %5444
      %5446 = vadd.xlane.f32.xlu0 %v5415
      %v5447 = vpop.xlane.xlu0 %5446
      %5448 = vadd.xlane.f32.xlu0 %v5417
      %v5449 = vpop.xlane.xlu0 %5448
      %5450 = vadd.xlane.f32.xlu0 %v5419
      %v5451 = vpop.xlane.xlu0 %5450
      %5452 = vadd.xlane.f32.xlu0 %v5421
      %v5453 = vpop.xlane.xlu0 %5452
      %5454 = vadd.xlane.f32.xlu0 %v5423
      %v5455 = vpop.xlane.xlu0 %5454
      %5456 = vadd.xlane.f32.xlu0 %v5425
      %v5457 = vpop.xlane.xlu0 %5456
      %5458 = vadd.xlane.f32.xlu0 %v5427
      %v5459 = vpop.xlane.xlu0 %5458
      %5460 = vadd.xlane.f32.xlu0 %v5429
      %v5461 = vpop.xlane.xlu0 %5460
      %v5462 = vrcp.pop %v5431
      %v5463 = vrcp.pop %v5433
      %v5464 = vrcp.pop %v5435
      %v5465 = vrcp.pop %v5437
      %v5466 = vrcp.pop %v5439
      %v5467 = vrcp.pop %v5441
      %v5468 = vrcp.pop %v5443
      %v5469 = vrcp.pop %v5445
      %v5470 = vrcp.pop %v5447
      %v5471 = vrcp.pop %v5449
      %v5472 = vrcp.pop %v5451
      %v5473 = vrcp.pop %v5453
      %v5474 = vrcp.pop %v5455
      %v5475 = vrcp.pop %v5457
      %v5476 = vrcp.pop %v5459
      %v5477 = vrcp.pop %v5461
      %v5478 = vmul.f32 %v5399, %v5462
      %v5479 = vmul.f32 %v5401, %v5463
      %v5480 = vmul.f32 %v5403, %v5464
      %v5481 = vmul.f32 %v5405, %v5465
      %v5482 = vmul.f32 %v5407, %v5466
      %v5483 = vmul.f32 %v5409, %v5467
      %v5484 = vmul.f32 %v5411, %v5468
      %v5485 = vmul.f32 %v5413, %v5469
      %v5486 = vmul.f32 %v5415, %v5470
      %v5487 = vmul.f32 %v5417, %v5471
      %v5488 = vmul.f32 %v5419, %v5472
      %v5489 = vmul.f32 %v5421, %v5473
      %v5490 = vmul.f32 %v5423, %v5474
      %v5491 = vmul.f32 %v5425, %v5475
      %v5492 = vmul.f32 %v5427, %v5476
      %v5493 = vmul.f32 %v5429, %v5477
      %v5494 = vpack.c.bf16 %v5479, %v5478
      %v5495 = vpack.c.bf16 %v5481, %v5480
      %v5496 = vpack.c.bf16 %v5483, %v5482
      %v5497 = vpack.c.bf16 %v5485, %v5484
      %v5498 = vpack.c.bf16 %v5487, %v5486
      %v5499 = vpack.c.bf16 %v5489, %v5488
      %v5500 = vpack.c.bf16 %v5491, %v5490
      %v5501 = vpack.c.bf16 %v5493, %v5492
      %5510 = vrot.lane.b32.xlu0 %v5221, 64
      %v5511 = vpop.permute.xlu0 %5510
      %5512 = vrot.lane.b32.xlu0 %v5222, 64
      %v5513 = vpop.permute.xlu0 %5512
      %5514 = vrot.lane.b32.xlu0 %v5223, 64
      %v5515 = vpop.permute.xlu0 %5514
      %5516 = vrot.lane.b32.xlu0 %v5224, 64
      %v5517 = vpop.permute.xlu0 %5516
      %5518 = vrot.lane.b32.xlu0 %v5225, 64
      %v5519 = vpop.permute.xlu0 %5518
      %5520 = vrot.lane.b32.xlu0 %v5226, 64
      %v5521 = vpop.permute.xlu0 %5520
      %5522 = vrot.lane.b32.xlu0 %v5227, 64
      %v5523 = vpop.permute.xlu0 %5522
      %5524 = vrot.lane.b32.xlu0 %v5228, 64
      %v5525 = vpop.permute.xlu0 %5524
      %5534 = vmatprep.subr.bf16.mxu0 0
      %5535 = vmatpush1.bf16.msra.mxu0 %v5511
      %5536 = vmatprep.subr.bf16.mxu0 0
      %5537 = vmatpush1.bf16.msra.mxu0 %v5513
      %5538 = vmatprep.subr.bf16.mxu0 0
      %5539 = vmatpush1.bf16.msra.mxu0 %v5515
      %5540 = vmatprep.subr.bf16.mxu0 0
      %5541 = vmatpush1.bf16.msra.mxu0 %v5517
      %5542 = vmatprep.subr.bf16.mxu0 0
      %5543 = vmatpush1.bf16.msra.mxu0 %v5519
      %5544 = vmatprep.subr.bf16.mxu0 0
      %5545 = vmatpush1.bf16.msra.mxu0 %v5521
      %5546 = vmatprep.subr.bf16.mxu0 0
      %5547 = vmatpush1.bf16.msra.mxu0 %v5523
      %5548 = vmatprep.subr.bf16.mxu0 0
      %5549 = vmatpush1.bf16.msra.mxu0 %v5525
      %5550 = vmatprep.subr.bf16.mxu0 0
      %5551 = vmatpush1.bf16.msra.mxu0 0
      %5552 = vmatprep.subr.bf16.mxu0 0
      %5553 = vmatpush1.bf16.msra.mxu0 0
      %5554 = vmatprep.subr.bf16.mxu0 0
      %5555 = vmatpush1.bf16.msra.mxu0 0
      %5556 = vmatprep.subr.bf16.mxu0 0
      %5557 = vmatpush1.bf16.msra.mxu0 0
      %5558 = vmatprep.subr.bf16.mxu0 0
      %5559 = vmatpush1.bf16.msra.mxu0 0
      %5560 = vmatprep.subr.bf16.mxu0 0
      %5561 = vmatpush1.bf16.msra.mxu0 0
      %5562 = vmatprep.subr.bf16.mxu0 0
      %5563 = vmatpush1.bf16.msra.mxu0 0
      %5564 = vmatprep.subr.bf16.mxu0 0
      %5565 = vmatpush1.bf16.msra.mxu0 0
      %5566 = vmatprep.mubr.bf16.mxu0 0
      %5567 = vmatmul.mubr.bf16.gmra.mrb[0].mxu0 %v5494
      %v5568 = vpop.f32.mrb[0].mxu0
      %v5569 = vadd.f32 0.0, %v5568
      %v5570 = vpop.f32.mrb[0].mxu0
      %v5571 = vpop.f32.mrb[0].mxu0
      %v5572 = vadd.f32 0.0, %v5571
      %v5573 = vpop.f32.mrb[0].mxu0
      %5574 = vmatprep.mubr.bf16.mxu0 0
      %5575 = vmatmul.mubr.bf16.gmra.mrb[0].mxu0 %v5495
      %v5576 = vpop.f32.mrb[0].mxu0
      %v5577 = vadd.f32 0.0, %v5576
      %v5578 = vpop.f32.mrb[0].mxu0
      %v5579 = vpop.f32.mrb[0].mxu0
      %v5580 = vadd.f32 0.0, %v5579
      %v5581 = vpop.f32.mrb[0].mxu0
      %5582 = vmatprep.mubr.bf16.mxu0 0
      %5583 = vmatmul.mubr.bf16.gmra.mrb[0].mxu0 %v5496
      %v5584 = vpop.f32.mrb[0].mxu0
      %v5585 = vadd.f32 0.0, %v5584
      %v5586 = vpop.f32.mrb[0].mxu0
      %v5587 = vpop.f32.mrb[0].mxu0
      %v5588 = vadd.f32 0.0, %v5587
      %v5589 = vpop.f32.mrb[0].mxu0
      %5590 = vmatprep.mubr.bf16.mxu0 0
      %5591 = vmatmul.mubr.bf16.gmra.mrb[0].mxu0 %v5497
      %v5592 = vpop.f32.mrb[0].mxu0
      %v5593 = vadd.f32 0.0, %v5592
      %v5594 = vpop.f32.mrb[0].mxu0
      %v5595 = vpop.f32.mrb[0].mxu0
      %v5596 = vadd.f32 0.0, %v5595
      %v5597 = vpop.f32.mrb[0].mxu0
      %5598 = vmatprep.mubr.bf16.mxu0 0
      %5599 = vmatmul.mubr.bf16.gmra.mrb[0].mxu0 %v5498
      %v5600 = vpop.f32.mrb[0].mxu0
      %v5601 = vadd.f32 0.0, %v5600
      %v5602 = vpop.f32.mrb[0].mxu0
      %v5603 = vpop.f32.mrb[0].mxu0
      %v5604 = vadd.f32 0.0, %v5603
      %v5605 = vpop.f32.mrb[0].mxu0
      %5606 = vmatprep.mubr.bf16.mxu0 0
      %5607 = vmatmul.mubr.bf16.gmra.mrb[0].mxu0 %v5499
      %v5608 = vpop.f32.mrb[0].mxu0
      %v5609 = vadd.f32 0.0, %v5608
      %v5610 = vpop.f32.mrb[0].mxu0
      %v5611 = vpop.f32.mrb[0].mxu0
      %v5612 = vadd.f32 0.0, %v5611
      %v5613 = vpop.f32.mrb[0].mxu0
      %5614 = vmatprep.mubr.bf16.mxu0 0
      %5615 = vmatmul.mubr.bf16.gmra.mrb[0].mxu0 %v5500
      %v5616 = vpop.f32.mrb[0].mxu0
      %v5617 = vadd.f32 0.0, %v5616
      %v5618 = vpop.f32.mrb[0].mxu0
      %v5619 = vpop.f32.mrb[0].mxu0
      %v5620 = vadd.f32 0.0, %v5619
      %v5621 = vpop.f32.mrb[0].mxu0
      %5622 = vmatprep.mubr.bf16.mxu0 0
      %5623 = vmatmul.mubr.bf16.gmra.mrb[0].mxu0 %v5501
      %v5624 = vpop.f32.mrb[0].mxu0
      %v5625 = vadd.f32 0.0, %v5624
      %v5626 = vpop.f32.mrb[0].mxu0
      %v5627 = vpop.f32.mrb[0].mxu0
      %v5628 = vadd.f32 0.0, %v5627
      %v5629 = vpop.f32.mrb[0].mxu0
      %5630 = vdwg.mxu0
      %v5631 = vadd.f32 %v5165, %v5569
      %v5632 = vadd.f32 %v5166, %v5572
      %v5633 = vadd.f32 %v5167, %v5577
      %v5634 = vadd.f32 %v5168, %v5580
      %v5635 = vadd.f32 %v5169, %v5585
      %v5636 = vadd.f32 %v5170, %v5588
      %v5637 = vadd.f32 %v5171, %v5593
      %v5638 = vadd.f32 %v5172, %v5596
      %v5639 = vadd.f32 %v5173, %v5601
      %v5640 = vadd.f32 %v5174, %v5604
      %v5641 = vadd.f32 %v5175, %v5609
      %v5642 = vadd.f32 %v5176, %v5612
      %v5643 = vadd.f32 %v5177, %v5617
      %v5644 = vadd.f32 %v5178, %v5620
      %v5645 = vadd.f32 %v5179, %v5625
      %v5646 = vadd.f32 %v5180, %v5628
      %v5647 = vmul.f32 %v4131, %v2684
      %v5648 = vmul.f32 %v4134, %v2684
      %v5649 = vmul.f32 %v4139, %v2684
      %v5650 = vmul.f32 %v4142, %v2684
      %v5651 = vmul.f32 %v4147, %v2684
      %v5652 = vmul.f32 %v4150, %v2684
      %v5653 = vmul.f32 %v4155, %v2684
      %v5654 = vmul.f32 %v4158, %v2684
      %v5655 = vmul.f32 %v4163, %v2684
      %v5656 = vmul.f32 %v4166, %v2684
      %v5657 = vmul.f32 %v4171, %v2684
      %v5658 = vmul.f32 %v4174, %v2684
      %v5659 = vmul.f32 %v4179, %v2684
      %v5660 = vmul.f32 %v4182, %v2684
      %v5661 = vmul.f32 %v4187, %v2684
      %v5662 = vmul.f32 %v4190, %v2684
      %v5663 = vpack.c.bf16 %v5648, %v5647
      %v5664 = vpack.c.bf16 %v5650, %v5649
      %v5665 = vpack.c.bf16 %v5652, %v5651
      %v5666 = vpack.c.bf16 %v5654, %v5653
      %v5667 = vpack.c.bf16 %v5656, %v5655
      %v5668 = vpack.c.bf16 %v5658, %v5657
      %v5669 = vpack.c.bf16 %v5660, %v5659
      %v5670 = vpack.c.bf16 %v5662, %v5661
      %v5671 = vmul.f32 %v4131, %v2716
      %v5672 = vmul.f32 %v4134, %v2716
      %v5673 = vmul.f32 %v4139, %v2716
      %v5674 = vmul.f32 %v4142, %v2716
      %v5675 = vmul.f32 %v4147, %v2716
      %v5676 = vmul.f32 %v4150, %v2716
      %v5677 = vmul.f32 %v4155, %v2716
      %v5678 = vmul.f32 %v4158, %v2716
      %v5679 = vmul.f32 %v4163, %v2716
      %v5680 = vmul.f32 %v4166, %v2716
      %v5681 = vmul.f32 %v4171, %v2716
      %v5682 = vmul.f32 %v4174, %v2716
      %v5683 = vmul.f32 %v4179, %v2716
      %v5684 = vmul.f32 %v4182, %v2716
      %v5685 = vmul.f32 %v4187, %v2716
      %v5686 = vmul.f32 %v4190, %v2716
      %v5687 = vpack.c.bf16 %v5672, %v5671
      %v5688 = vpack.c.bf16 %v5674, %v5673
      %v5689 = vpack.c.bf16 %v5676, %v5675
      %v5690 = vpack.c.bf16 %v5678, %v5677
      %v5691 = vpack.c.bf16 %v5680, %v5679
      %v5692 = vpack.c.bf16 %v5682, %v5681
      %v5693 = vpack.c.bf16 %v5684, %v5683
      %v5694 = vpack.c.bf16 %v5686, %v5685
      %v5696 = vsel %vm774, %v5663, 0
      %v5699 = vsel %vm774, %v5664, 0
      %v5702 = vsel %vm774, %v5665, 0
      %v5705 = vsel %vm774, %v5666, 0
      %v5708 = vsel %vm774, %v5667, 0
      %v5711 = vsel %vm774, %v5668, 0
      %v5714 = vsel %vm774, %v5669, 0
      %v5717 = vsel %vm774, %v5670, 0
      %5719 = vmatprep.subr.bf16.mxu0 0
      %5720 = vmatpush1.bf16.xpose.msra.mxu0 %v4298
      %5721 = vmatprep.subr.bf16.mxu0 0
      %5722 = vmatpush1.bf16.xpose.msra.mxu0 %v4301
      %5723 = vmatprep.subr.bf16.mxu0 0
      %5724 = vmatpush1.bf16.xpose.msra.mxu0 %v4304
      %5725 = vmatprep.subr.bf16.mxu0 0
      %5726 = vmatpush1.bf16.xpose.msra.mxu0 %v4307
      %5727 = vmatprep.subr.bf16.mxu0 0
      %5728 = vmatpush1.bf16.xpose.msra.mxu0 %v4310
      %5729 = vmatprep.subr.bf16.mxu0 0
      %5730 = vmatpush1.bf16.xpose.msra.mxu0 %v4313
      %5731 = vmatprep.subr.bf16.mxu0 0
      %5732 = vmatpush1.bf16.xpose.msra.mxu0 %v4316
      %5733 = vmatprep.subr.bf16.mxu0 0
      %5734 = vmatpush1.bf16.xpose.msra.mxu0 %v4319
      %5735 = vmatprep.subr.bf16.mxu0 0
      %5736 = vmatpush1.bf16.xpose.msra.mxu0 0
      %5737 = vmatprep.subr.bf16.mxu0 0
      %5738 = vmatpush1.bf16.xpose.msra.mxu0 0
      %5739 = vmatprep.subr.bf16.mxu0 0
      %5740 = vmatpush1.bf16.xpose.msra.mxu0 0
      %5741 = vmatprep.subr.bf16.mxu0 0
      %5742 = vmatpush1.bf16.xpose.msra.mxu0 0
      %5743 = vmatprep.subr.bf16.mxu0 0
      %5744 = vmatpush1.bf16.xpose.msra.mxu0 0
      %5745 = vmatprep.subr.bf16.mxu0 0
      %5746 = vmatpush1.bf16.xpose.msra.mxu0 0
      %5747 = vmatprep.subr.bf16.mxu0 0
      %5748 = vmatpush1.bf16.xpose.msra.mxu0 0
      %5749 = vmatprep.subr.bf16.mxu0 0
      %5750 = vmatpush1.bf16.xpose.msra.mxu0 0
      %5751 = vmatprep.mubr.bf16.mxu0 0
      %5752 = vmatmul.mubr.bf16.gmra.mrb[0].mxu0 %v5696
      %v5753 = vpop.f32.mrb[0].mxu0
      %v5754 = vadd.f32 %v752, %v5753
      %v5755 = vpop.f32.mrb[0].mxu0
      %v5756 = vpop.f32.mrb[0].mxu0
      %v5757 = vadd.f32 %v753, %v5756
      %v5758 = vpop.f32.mrb[0].mxu0
      %5759 = vmatprep.mubr.bf16.mxu0 0
      %5760 = vmatmul.mubr.bf16.gmra.mrb[0].mxu0 %v5699
      %v5761 = vpop.f32.mrb[0].mxu0
      %v5762 = vadd.f32 %v754, %v5761
      %v5763 = vpop.f32.mrb[0].mxu0
      %v5764 = vpop.f32.mrb[0].mxu0
      %v5765 = vadd.f32 %v755, %v5764
      %v5766 = vpop.f32.mrb[0].mxu0
      %5767 = vmatprep.mubr.bf16.mxu0 0
      %5768 = vmatmul.mubr.bf16.gmra.mrb[0].mxu0 %v5702
      %v5769 = vpop.f32.mrb[0].mxu0
      %v5770 = vadd.f32 %v756, %v5769
      %v5771 = vpop.f32.mrb[0].mxu0
      %v5772 = vpop.f32.mrb[0].mxu0
      %v5773 = vadd.f32 %v757, %v5772
      %v5774 = vpop.f32.mrb[0].mxu0
      %5775 = vmatprep.mubr.bf16.mxu0 0
      %5776 = vmatmul.mubr.bf16.gmra.mrb[0].mxu0 %v5705
      %v5777 = vpop.f32.mrb[0].mxu0
      %v5778 = vadd.f32 %v758, %v5777
      %v5779 = vpop.f32.mrb[0].mxu0
      %v5780 = vpop.f32.mrb[0].mxu0
      %v5781 = vadd.f32 %v759, %v5780
      %v5782 = vpop.f32.mrb[0].mxu0
      %5783 = vmatprep.mubr.bf16.mxu0 0
      %5784 = vmatmul.mubr.bf16.gmra.mrb[0].mxu0 %v5708
      %v5785 = vpop.f32.mrb[0].mxu0
      %v5786 = vadd.f32 %v760, %v5785
      %v5787 = vpop.f32.mrb[0].mxu0
      %v5788 = vpop.f32.mrb[0].mxu0
      %v5789 = vadd.f32 %v761, %v5788
      %v5790 = vpop.f32.mrb[0].mxu0
      %5791 = vmatprep.mubr.bf16.mxu0 0
      %5792 = vmatmul.mubr.bf16.gmra.mrb[0].mxu0 %v5711
      %v5793 = vpop.f32.mrb[0].mxu0
      %v5794 = vadd.f32 %v762, %v5793
      %v5795 = vpop.f32.mrb[0].mxu0
      %v5796 = vpop.f32.mrb[0].mxu0
      %v5797 = vadd.f32 %v763, %v5796
      %v5798 = vpop.f32.mrb[0].mxu0
      %5799 = vmatprep.mubr.bf16.mxu0 0
      %5800 = vmatmul.mubr.bf16.gmra.mrb[0].mxu0 %v5714
      %v5801 = vpop.f32.mrb[0].mxu0
      %v5802 = vadd.f32 %v764, %v5801
      %v5803 = vpop.f32.mrb[0].mxu0
      %v5804 = vpop.f32.mrb[0].mxu0
      %v5805 = vadd.f32 %v765, %v5804
      %v5806 = vpop.f32.mrb[0].mxu0
      %5807 = vmatprep.mubr.bf16.mxu0 0
      %5808 = vmatmul.mubr.bf16.gmra.mrb[0].mxu0 %v5717
      %v5809 = vpop.f32.mrb[0].mxu0
      %v5810 = vadd.f32 %v766, %v5809
      %v5811 = vpop.f32.mrb[0].mxu0
      %v5812 = vpop.f32.mrb[0].mxu0
      %v5813 = vadd.f32 %v767, %v5812
      %v5814 = vpop.f32.mrb[0].mxu0
      %5815 = vdwg.mxu0
      %5816 = vmax.xlane.f32.xlu0 %v5754
      %v5817 = vpop.xlane.xlu0 %5816
      %5818 = vmax.xlane.f32.xlu0 %v5757
      %v5819 = vpop.xlane.xlu0 %5818
      %5820 = vmax.xlane.f32.xlu0 %v5762
      %v5821 = vpop.xlane.xlu0 %5820
      %5822 = vmax.xlane.f32.xlu0 %v5765
      %v5823 = vpop.xlane.xlu0 %5822
      %5824 = vmax.xlane.f32.xlu0 %v5770
      %v5825 = vpop.xlane.xlu0 %5824
      %5826 = vmax.xlane.f32.xlu0 %v5773
      %v5827 = vpop.xlane.xlu0 %5826
      %5828 = vmax.xlane.f32.xlu0 %v5778
      %v5829 = vpop.xlane.xlu0 %5828
      %5830 = vmax.xlane.f32.xlu0 %v5781
      %v5831 = vpop.xlane.xlu0 %5830
      %5832 = vmax.xlane.f32.xlu0 %v5786
      %v5833 = vpop.xlane.xlu0 %5832
      %5834 = vmax.xlane.f32.xlu0 %v5789
      %v5835 = vpop.xlane.xlu0 %5834
      %5836 = vmax.xlane.f32.xlu0 %v5794
      %v5837 = vpop.xlane.xlu0 %5836
      %5838 = vmax.xlane.f32.xlu0 %v5797
      %v5839 = vpop.xlane.xlu0 %5838
      %5840 = vmax.xlane.f32.xlu0 %v5802
      %v5841 = vpop.xlane.xlu0 %5840
      %5842 = vmax.xlane.f32.xlu0 %v5805
      %v5843 = vpop.xlane.xlu0 %5842
      %5844 = vmax.xlane.f32.xlu0 %v5810
      %v5845 = vpop.xlane.xlu0 %5844
      %5846 = vmax.xlane.f32.xlu0 %v5813
      %v5847 = vpop.xlane.xlu0 %5846
      %v5848 = vsub.f32 %v5754, %v5817
      %v5849 = vsub.f32 %v5757, %v5819
      %v5850 = vsub.f32 %v5762, %v5821
      %v5851 = vsub.f32 %v5765, %v5823
      %v5852 = vsub.f32 %v5770, %v5825
      %v5853 = vsub.f32 %v5773, %v5827
      %v5854 = vsub.f32 %v5778, %v5829
      %v5855 = vsub.f32 %v5781, %v5831
      %v5856 = vsub.f32 %v5786, %v5833
      %v5857 = vsub.f32 %v5789, %v5835
      %v5858 = vsub.f32 %v5794, %v5837
      %v5859 = vsub.f32 %v5797, %v5839
      %v5860 = vsub.f32 %v5802, %v5841
      %v5861 = vsub.f32 %v5805, %v5843
      %v5862 = vsub.f32 %v5810, %v5845
      %v5863 = vsub.f32 %v5813, %v5847
      %v5864 = vmul.f32 %v5848, 1.442695
      %v5865 = vpow.pop %v5864
      %v5866 = vmul.f32 %v5849, 1.442695
      %v5867 = vpow.pop %v5866
      %v5868 = vmul.f32 %v5850, 1.442695
      %v5869 = vpow.pop %v5868
      %v5870 = vmul.f32 %v5851, 1.442695
      %v5871 = vpow.pop %v5870
      %v5872 = vmul.f32 %v5852, 1.442695
      %v5873 = vpow.pop %v5872
      %v5874 = vmul.f32 %v5853, 1.442695
      %v5875 = vpow.pop %v5874
      %v5876 = vmul.f32 %v5854, 1.442695
      %v5877 = vpow.pop %v5876
      %v5878 = vmul.f32 %v5855, 1.442695
      %v5879 = vpow.pop %v5878
      %v5880 = vmul.f32 %v5856, 1.442695
      %v5881 = vpow.pop %v5880
      %v5882 = vmul.f32 %v5857, 1.442695
      %v5883 = vpow.pop %v5882
      %v5884 = vmul.f32 %v5858, 1.442695
      %v5885 = vpow.pop %v5884
      %v5886 = vmul.f32 %v5859, 1.442695
      %v5887 = vpow.pop %v5886
      %v5888 = vmul.f32 %v5860, 1.442695
      %v5889 = vpow.pop %v5888
      %v5890 = vmul.f32 %v5861, 1.442695
      %v5891 = vpow.pop %v5890
      %v5892 = vmul.f32 %v5862, 1.442695
      %v5893 = vpow.pop %v5892
      %v5894 = vmul.f32 %v5863, 1.442695
      %v5895 = vpow.pop %v5894
      %5896 = vadd.xlane.f32.xlu0 %v5865
      %v5897 = vpop.xlane.xlu0 %5896
      %5898 = vadd.xlane.f32.xlu0 %v5867
      %v5899 = vpop.xlane.xlu0 %5898
      %5900 = vadd.xlane.f32.xlu0 %v5869
      %v5901 = vpop.xlane.xlu0 %5900
      %5902 = vadd.xlane.f32.xlu0 %v5871
      %v5903 = vpop.xlane.xlu0 %5902
      %5904 = vadd.xlane.f32.xlu0 %v5873
      %v5905 = vpop.xlane.xlu0 %5904
      %5906 = vadd.xlane.f32.xlu0 %v5875
      %v5907 = vpop.xlane.xlu0 %5906
      %5908 = vadd.xlane.f32.xlu0 %v5877
      %v5909 = vpop.xlane.xlu0 %5908
      %5910 = vadd.xlane.f32.xlu0 %v5879
      %v5911 = vpop.xlane.xlu0 %5910
      %5912 = vadd.xlane.f32.xlu0 %v5881
      %v5913 = vpop.xlane.xlu0 %5912
      %5914 = vadd.xlane.f32.xlu0 %v5883
      %v5915 = vpop.xlane.xlu0 %5914
      %5916 = vadd.xlane.f32.xlu0 %v5885
      %v5917 = vpop.xlane.xlu0 %5916
      %5918 = vadd.xlane.f32.xlu0 %v5887
      %v5919 = vpop.xlane.xlu0 %5918
      %5920 = vadd.xlane.f32.xlu0 %v5889
      %v5921 = vpop.xlane.xlu0 %5920
      %5922 = vadd.xlane.f32.xlu0 %v5891
      %v5923 = vpop.xlane.xlu0 %5922
      %5924 = vadd.xlane.f32.xlu0 %v5893
      %v5925 = vpop.xlane.xlu0 %5924
      %5926 = vadd.xlane.f32.xlu0 %v5895
      %v5927 = vpop.xlane.xlu0 %5926
      %v5928 = vrcp.pop %v5897
      %v5929 = vrcp.pop %v5899
      %v5930 = vrcp.pop %v5901
      %v5931 = vrcp.pop %v5903
      %v5932 = vrcp.pop %v5905
      %v5933 = vrcp.pop %v5907
      %v5934 = vrcp.pop %v5909
      %v5935 = vrcp.pop %v5911
      %v5936 = vrcp.pop %v5913
      %v5937 = vrcp.pop %v5915
      %v5938 = vrcp.pop %v5917
      %v5939 = vrcp.pop %v5919
      %v5940 = vrcp.pop %v5921
      %v5941 = vrcp.pop %v5923
      %v5942 = vrcp.pop %v5925
      %v5943 = vrcp.pop %v5927
      %v5944 = vmul.f32 %v5865, %v5928
      %v5945 = vmul.f32 %v5867, %v5929
      %v5946 = vmul.f32 %v5869, %v5930
      %v5947 = vmul.f32 %v5871, %v5931
      %v5948 = vmul.f32 %v5873, %v5932
      %v5949 = vmul.f32 %v5875, %v5933
      %v5950 = vmul.f32 %v5877, %v5934
      %v5951 = vmul.f32 %v5879, %v5935
      %v5952 = vmul.f32 %v5881, %v5936
      %v5953 = vmul.f32 %v5883, %v5937
      %v5954 = vmul.f32 %v5885, %v5938
      %v5955 = vmul.f32 %v5887, %v5939
      %v5956 = vmul.f32 %v5889, %v5940
      %v5957 = vmul.f32 %v5891, %v5941
      %v5958 = vmul.f32 %v5893, %v5942
      %v5959 = vmul.f32 %v5895, %v5943
      %v5960 = vpack.c.bf16 %v5945, %v5944
      %v5961 = vpack.c.bf16 %v5947, %v5946
      %v5962 = vpack.c.bf16 %v5949, %v5948
      %v5963 = vpack.c.bf16 %v5951, %v5950
      %v5964 = vpack.c.bf16 %v5953, %v5952
      %v5965 = vpack.c.bf16 %v5955, %v5954
      %v5966 = vpack.c.bf16 %v5957, %v5956
      %v5967 = vpack.c.bf16 %v5959, %v5958
      %5976 = vrot.lane.b32.xlu0 %v5687, 64
      %v5977 = vpop.permute.xlu0 %5976
      %5978 = vrot.lane.b32.xlu0 %v5688, 64
      %v5979 = vpop.permute.xlu0 %5978
      %5980 = vrot.lane.b32.xlu0 %v5689, 64
      %v5981 = vpop.permute.xlu0 %5980
      %5982 = vrot.lane.b32.xlu0 %v5690, 64
      %v5983 = vpop.permute.xlu0 %5982
      %5984 = vrot.lane.b32.xlu0 %v5691, 64
      %v5985 = vpop.permute.xlu0 %5984
      %5986 = vrot.lane.b32.xlu0 %v5692, 64
      %v5987 = vpop.permute.xlu0 %5986
      %5988 = vrot.lane.b32.xlu0 %v5693, 64
      %v5989 = vpop.permute.xlu0 %5988
      %5990 = vrot.lane.b32.xlu0 %v5694, 64
      %v5991 = vpop.permute.xlu0 %5990
      %6000 = vmatprep.subr.bf16.mxu0 0
      %6001 = vmatpush1.bf16.msra.mxu0 %v5977
      %6002 = vmatprep.subr.bf16.mxu0 0
      %6003 = vmatpush1.bf16.msra.mxu0 %v5979
      %6004 = vmatprep.subr.bf16.mxu0 0
      %6005 = vmatpush1.bf16.msra.mxu0 %v5981
      %6006 = vmatprep.subr.bf16.mxu0 0
      %6007 = vmatpush1.bf16.msra.mxu0 %v5983
      %6008 = vmatprep.subr.bf16.mxu0 0
      %6009 = vmatpush1.bf16.msra.mxu0 %v5985
      %6010 = vmatprep.subr.bf16.mxu0 0
      %6011 = vmatpush1.bf16.msra.mxu0 %v5987
      %6012 = vmatprep.subr.bf16.mxu0 0
      %6013 = vmatpush1.bf16.msra.mxu0 %v5989
      %6014 = vmatprep.subr.bf16.mxu0 0
      %6015 = vmatpush1.bf16.msra.mxu0 %v5991
      %6016 = vmatprep.subr.bf16.mxu0 0
      %6017 = vmatpush1.bf16.msra.mxu0 0
      %6018 = vmatprep.subr.bf16.mxu0 0
      %6019 = vmatpush1.bf16.msra.mxu0 0
      %6020 = vmatprep.subr.bf16.mxu0 0
      %6021 = vmatpush1.bf16.msra.mxu0 0
      %6022 = vmatprep.subr.bf16.mxu0 0
      %6023 = vmatpush1.bf16.msra.mxu0 0
      %6024 = vmatprep.subr.bf16.mxu0 0
      %6025 = vmatpush1.bf16.msra.mxu0 0
      %6026 = vmatprep.subr.bf16.mxu0 0
      %6027 = vmatpush1.bf16.msra.mxu0 0
      %6028 = vmatprep.subr.bf16.mxu0 0
      %6029 = vmatpush1.bf16.msra.mxu0 0
      %6030 = vmatprep.subr.bf16.mxu0 0
      %6031 = vmatpush1.bf16.msra.mxu0 0
      %6032 = vmatprep.mubr.bf16.mxu0 0
      %6033 = vmatmul.mubr.bf16.gmra.mrb[0].mxu0 %v5960
      %v6034 = vpop.f32.mrb[0].mxu0
      %v6035 = vadd.f32 0.0, %v6034
      %v6036 = vpop.f32.mrb[0].mxu0
      %v6037 = vpop.f32.mrb[0].mxu0
      %v6038 = vadd.f32 0.0, %v6037
      %v6039 = vpop.f32.mrb[0].mxu0
      %6040 = vmatprep.mubr.bf16.mxu0 0
      %6041 = vmatmul.mubr.bf16.gmra.mrb[0].mxu0 %v5961
      %v6042 = vpop.f32.mrb[0].mxu0
      %v6043 = vadd.f32 0.0, %v6042
      %v6044 = vpop.f32.mrb[0].mxu0
      %v6045 = vpop.f32.mrb[0].mxu0
      %v6046 = vadd.f32 0.0, %v6045
      %v6047 = vpop.f32.mrb[0].mxu0
      %6048 = vmatprep.mubr.bf16.mxu0 0
      %6049 = vmatmul.mubr.bf16.gmra.mrb[0].mxu0 %v5962
      %v6050 = vpop.f32.mrb[0].mxu0
      %v6051 = vadd.f32 0.0, %v6050
      %v6052 = vpop.f32.mrb[0].mxu0
      %v6053 = vpop.f32.mrb[0].mxu0
      %v6054 = vadd.f32 0.0, %v6053
      %v6055 = vpop.f32.mrb[0].mxu0
      %6056 = vmatprep.mubr.bf16.mxu0 0
      %6057 = vmatmul.mubr.bf16.gmra.mrb[0].mxu0 %v5963
      %v6058 = vpop.f32.mrb[0].mxu0
      %v6059 = vadd.f32 0.0, %v6058
      %v6060 = vpop.f32.mrb[0].mxu0
      %v6061 = vpop.f32.mrb[0].mxu0
      %v6062 = vadd.f32 0.0, %v6061
      %v6063 = vpop.f32.mrb[0].mxu0
      %6064 = vmatprep.mubr.bf16.mxu0 0
      %6065 = vmatmul.mubr.bf16.gmra.mrb[0].mxu0 %v5964
      %v6066 = vpop.f32.mrb[0].mxu0
      %v6067 = vadd.f32 0.0, %v6066
      %v6068 = vpop.f32.mrb[0].mxu0
      %v6069 = vpop.f32.mrb[0].mxu0
      %v6070 = vadd.f32 0.0, %v6069
      %v6071 = vpop.f32.mrb[0].mxu0
      %6072 = vmatprep.mubr.bf16.mxu0 0
      %6073 = vmatmul.mubr.bf16.gmra.mrb[0].mxu0 %v5965
      %v6074 = vpop.f32.mrb[0].mxu0
      %v6075 = vadd.f32 0.0, %v6074
      %v6076 = vpop.f32.mrb[0].mxu0
      %v6077 = vpop.f32.mrb[0].mxu0
      %v6078 = vadd.f32 0.0, %v6077
      %v6079 = vpop.f32.mrb[0].mxu0
      %6080 = vmatprep.mubr.bf16.mxu0 0
      %6081 = vmatmul.mubr.bf16.gmra.mrb[0].mxu0 %v5966
      %v6082 = vpop.f32.mrb[0].mxu0
      %v6083 = vadd.f32 0.0, %v6082
      %v6084 = vpop.f32.mrb[0].mxu0
      %v6085 = vpop.f32.mrb[0].mxu0
      %v6086 = vadd.f32 0.0, %v6085
      %v6087 = vpop.f32.mrb[0].mxu0
      %6088 = vmatprep.mubr.bf16.mxu0 0
      %6089 = vmatmul.mubr.bf16.gmra.mrb[0].mxu0 %v5967
      %v6090 = vpop.f32.mrb[0].mxu0
      %v6091 = vadd.f32 0.0, %v6090
      %v6092 = vpop.f32.mrb[0].mxu0
      %v6093 = vpop.f32.mrb[0].mxu0
      %v6094 = vadd.f32 0.0, %v6093
      %v6095 = vpop.f32.mrb[0].mxu0
      %6096 = vdwg.mxu0
      %v6097 = vadd.f32 %v5631, %v6035
      %v6098 = vadd.f32 %v5632, %v6038
      %v6099 = vadd.f32 %v5633, %v6043
      %v6100 = vadd.f32 %v5634, %v6046
      %v6101 = vadd.f32 %v5635, %v6051
      %v6102 = vadd.f32 %v5636, %v6054
      %v6103 = vadd.f32 %v5637, %v6059
      %v6104 = vadd.f32 %v5638, %v6062
      %v6105 = vadd.f32 %v5639, %v6067
      %v6106 = vadd.f32 %v5640, %v6070
      %v6107 = vadd.f32 %v5641, %v6075
      %v6108 = vadd.f32 %v5642, %v6078
      %v6109 = vadd.f32 %v5643, %v6083
      %v6110 = vadd.f32 %v5644, %v6086
      %v6111 = vadd.f32 %v5645, %v6091
      %v6112 = vadd.f32 %v5646, %v6094
      %s6113 = scalar_lea.vmem %s9, 1
      %v6114 = vld [vmem:[%s6113] sm:$0x1]
      %s6115 = scalar_lea.vmem %s10, 1
      %v6116 = vld [vmem:[%s6115] sm:$0x1]
      %v6117 = vsel %vm774, %v6097, 0.0
      %6118 = vadd.xlane.f32.xlu0 %v6117
      %v6119 = vpop.xlane.xlu0 %6118
      %v6120 = vsel %vm774, %v6098, 0.0
      %6121 = vadd.xlane.f32.xlu0 %v6120
      %v6122 = vpop.xlane.xlu0 %6121
      %v6123 = vsel %vm774, %v6099, 0.0
      %6124 = vadd.xlane.f32.xlu0 %v6123
      %v6125 = vpop.xlane.xlu0 %6124
      %v6126 = vsel %vm774, %v6100, 0.0
      %6127 = vadd.xlane.f32.xlu0 %v6126
      %v6128 = vpop.xlane.xlu0 %6127
      %v6129 = vsel %vm774, %v6101, 0.0
      %6130 = vadd.xlane.f32.xlu0 %v6129
      %v6131 = vpop.xlane.xlu0 %6130
      %v6132 = vsel %vm774, %v6102, 0.0
      %6133 = vadd.xlane.f32.xlu0 %v6132
      %v6134 = vpop.xlane.xlu0 %6133
      %v6135 = vsel %vm774, %v6103, 0.0
      %6136 = vadd.xlane.f32.xlu0 %v6135
      %v6137 = vpop.xlane.xlu0 %6136
      %v6138 = vsel %vm774, %v6104, 0.0
      %6139 = vadd.xlane.f32.xlu0 %v6138
      %v6140 = vpop.xlane.xlu0 %6139
      %v6141 = vsel %vm774, %v6105, 0.0
      %6142 = vadd.xlane.f32.xlu0 %v6141
      %v6143 = vpop.xlane.xlu0 %6142
      %v6144 = vsel %vm774, %v6106, 0.0
      %6145 = vadd.xlane.f32.xlu0 %v6144
      %v6146 = vpop.xlane.xlu0 %6145
      %v6147 = vsel %vm774, %v6107, 0.0
      %6148 = vadd.xlane.f32.xlu0 %v6147
      %v6149 = vpop.xlane.xlu0 %6148
      %v6150 = vsel %vm774, %v6108, 0.0
      %6151 = vadd.xlane.f32.xlu0 %v6150
      %v6152 = vpop.xlane.xlu0 %6151
      %v6153 = vsel %vm774, %v6109, 0.0
      %6154 = vadd.xlane.f32.xlu0 %v6153
      %v6155 = vpop.xlane.xlu0 %6154
      %v6156 = vsel %vm774, %v6110, 0.0
      %6157 = vadd.xlane.f32.xlu0 %v6156
      %v6158 = vpop.xlane.xlu0 %6157
      %v6159 = vsel %vm774, %v6111, 0.0
      %6160 = vadd.xlane.f32.xlu0 %v6159
      %v6161 = vpop.xlane.xlu0 %6160
      %v6162 = vsel %vm774, %v6112, 0.0
      %6163 = vadd.xlane.f32.xlu0 %v6162
      %v6164 = vpop.xlane.xlu0 %6163
      %v6165 = vmul.f32 %v6119, %v823
      %v6166 = vmul.f32 %v6122, %v823
      %v6167 = vmul.f32 %v6125, %v823
      %v6168 = vmul.f32 %v6128, %v823
      %v6169 = vmul.f32 %v6131, %v823
      %v6170 = vmul.f32 %v6134, %v823
      %v6171 = vmul.f32 %v6137, %v823
      %v6172 = vmul.f32 %v6140, %v823
      %v6173 = vmul.f32 %v6143, %v823
      %v6174 = vmul.f32 %v6146, %v823
      %v6175 = vmul.f32 %v6149, %v823
      %v6176 = vmul.f32 %v6152, %v823
      %v6177 = vmul.f32 %v6155, %v823
      %v6178 = vmul.f32 %v6158, %v823
      %v6179 = vmul.f32 %v6161, %v823
      %v6180 = vmul.f32 %v6164, %v823
      %v6181 = vsub.f32 %v6097, %v6165
      %v6182 = vsub.f32 %v6098, %v6166
      %v6183 = vsub.f32 %v6099, %v6167
      %v6184 = vsub.f32 %v6100, %v6168
      %v6185 = vsub.f32 %v6101, %v6169
      %v6186 = vsub.f32 %v6102, %v6170
      %v6187 = vsub.f32 %v6103, %v6171
      %v6188 = vsub.f32 %v6104, %v6172
      %v6189 = vsub.f32 %v6105, %v6173
      %v6190 = vsub.f32 %v6106, %v6174
      %v6191 = vsub.f32 %v6107, %v6175
      %v6192 = vsub.f32 %v6108, %v6176
      %v6193 = vsub.f32 %v6109, %v6177
      %v6194 = vsub.f32 %v6110, %v6178
      %v6195 = vsub.f32 %v6111, %v6179
      %v6196 = vsub.f32 %v6112, %v6180
      %v6197 = vmul.f32 %v6181, %v6181
      %v6198 = vmul.f32 %v6182, %v6182
      %v6199 = vmul.f32 %v6183, %v6183
      %v6200 = vmul.f32 %v6184, %v6184
      %v6201 = vmul.f32 %v6185, %v6185
      %v6202 = vmul.f32 %v6186, %v6186
      %v6203 = vmul.f32 %v6187, %v6187
      %v6204 = vmul.f32 %v6188, %v6188
      %v6205 = vmul.f32 %v6189, %v6189
      %v6206 = vmul.f32 %v6190, %v6190
      %v6207 = vmul.f32 %v6191, %v6191
      %v6208 = vmul.f32 %v6192, %v6192
      %v6209 = vmul.f32 %v6193, %v6193
      %v6210 = vmul.f32 %v6194, %v6194
      %v6211 = vmul.f32 %v6195, %v6195
      %v6212 = vmul.f32 %v6196, %v6196
      %v6213 = vsel %vm774, %v6197, 0.0
      %6214 = vadd.xlane.f32.xlu0 %v6213
      %v6215 = vpop.xlane.xlu0 %6214
      %v6216 = vsel %vm774, %v6198, 0.0
      %6217 = vadd.xlane.f32.xlu0 %v6216
      %v6218 = vpop.xlane.xlu0 %6217
      %v6219 = vsel %vm774, %v6199, 0.0
      %6220 = vadd.xlane.f32.xlu0 %v6219
      %v6221 = vpop.xlane.xlu0 %6220
      %v6222 = vsel %vm774, %v6200, 0.0
      %6223 = vadd.xlane.f32.xlu0 %v6222
      %v6224 = vpop.xlane.xlu0 %6223
      %v6225 = vsel %vm774, %v6201, 0.0
      %6226 = vadd.xlane.f32.xlu0 %v6225
      %v6227 = vpop.xlane.xlu0 %6226
      %v6228 = vsel %vm774, %v6202, 0.0
      %6229 = vadd.xlane.f32.xlu0 %v6228
      %v6230 = vpop.xlane.xlu0 %6229
      %v6231 = vsel %vm774, %v6203, 0.0
      %6232 = vadd.xlane.f32.xlu0 %v6231
      %v6233 = vpop.xlane.xlu0 %6232
      %v6234 = vsel %vm774, %v6204, 0.0
      %6235 = vadd.xlane.f32.xlu0 %v6234
      %v6236 = vpop.xlane.xlu0 %6235
      %v6237 = vsel %vm774, %v6205, 0.0
      %6238 = vadd.xlane.f32.xlu0 %v6237
      %v6239 = vpop.xlane.xlu0 %6238
      %v6240 = vsel %vm774, %v6206, 0.0
      %6241 = vadd.xlane.f32.xlu0 %v6240
      %v6242 = vpop.xlane.xlu0 %6241
      %v6243 = vsel %vm774, %v6207, 0.0
      %6244 = vadd.xlane.f32.xlu0 %v6243
      %v6245 = vpop.xlane.xlu0 %6244
      %v6246 = vsel %vm774, %v6208, 0.0
      %6247 = vadd.xlane.f32.xlu0 %v6246
      %v6248 = vpop.xlane.xlu0 %6247
      %v6249 = vsel %vm774, %v6209, 0.0
      %6250 = vadd.xlane.f32.xlu0 %v6249
      %v6251 = vpop.xlane.xlu0 %6250
      %v6252 = vsel %vm774, %v6210, 0.0
      %6253 = vadd.xlane.f32.xlu0 %v6252
      %v6254 = vpop.xlane.xlu0 %6253
      %v6255 = vsel %vm774, %v6211, 0.0
      %6256 = vadd.xlane.f32.xlu0 %v6255
      %v6257 = vpop.xlane.xlu0 %6256
      %v6258 = vsel %vm774, %v6212, 0.0
      %6259 = vadd.xlane.f32.xlu0 %v6258
      %v6260 = vpop.xlane.xlu0 %6259
      %v6261 = vmul.f32 %v6215, %v823
      %v6262 = vmul.f32 %v6218, %v823
      %v6263 = vmul.f32 %v6221, %v823
      %v6264 = vmul.f32 %v6224, %v823
      %v6265 = vmul.f32 %v6227, %v823
      %v6266 = vmul.f32 %v6230, %v823
      %v6267 = vmul.f32 %v6233, %v823
      %v6268 = vmul.f32 %v6236, %v823
      %v6269 = vmul.f32 %v6239, %v823
      %v6270 = vmul.f32 %v6242, %v823
      %v6271 = vmul.f32 %v6245, %v823
      %v6272 = vmul.f32 %v6248, %v823
      %v6273 = vmul.f32 %v6251, %v823
      %v6274 = vmul.f32 %v6254, %v823
      %v6275 = vmul.f32 %v6257, %v823
      %v6276 = vmul.f32 %v6260, %v823
      %v6277 = vadd.f32 %v6261, 1e-05
      %v6278 = vadd.f32 %v6262, 1e-05
      %v6279 = vadd.f32 %v6263, 1e-05
      %v6280 = vadd.f32 %v6264, 1e-05
      %v6281 = vadd.f32 %v6265, 1e-05
      %v6282 = vadd.f32 %v6266, 1e-05
      %v6283 = vadd.f32 %v6267, 1e-05
      %v6284 = vadd.f32 %v6268, 1e-05
      %v6285 = vadd.f32 %v6269, 1e-05
      %v6286 = vadd.f32 %v6270, 1e-05
      %v6287 = vadd.f32 %v6271, 1e-05
      %v6288 = vadd.f32 %v6272, 1e-05
      %v6289 = vadd.f32 %v6273, 1e-05
      %v6290 = vadd.f32 %v6274, 1e-05
      %v6291 = vadd.f32 %v6275, 1e-05
      %v6292 = vadd.f32 %v6276, 1e-05
      %v6293 = vrsqrt.pop %v6277
      %v6294 = vrsqrt.pop %v6278
      %v6295 = vrsqrt.pop %v6279
      %v6296 = vrsqrt.pop %v6280
      %v6297 = vrsqrt.pop %v6281
      %v6298 = vrsqrt.pop %v6282
      %v6299 = vrsqrt.pop %v6283
      %v6300 = vrsqrt.pop %v6284
      %v6301 = vrsqrt.pop %v6285
      %v6302 = vrsqrt.pop %v6286
      %v6303 = vrsqrt.pop %v6287
      %v6304 = vrsqrt.pop %v6288
      %v6305 = vrsqrt.pop %v6289
      %v6306 = vrsqrt.pop %v6290
      %v6307 = vrsqrt.pop %v6291
      %v6308 = vrsqrt.pop %v6292
      %v6309 = vmul.f32 %v6181, %v6293
      %v6310 = vmul.f32 %v6182, %v6294
      %v6311 = vmul.f32 %v6183, %v6295
      %v6312 = vmul.f32 %v6184, %v6296
      %v6313 = vmul.f32 %v6185, %v6297
      %v6314 = vmul.f32 %v6186, %v6298
      %v6315 = vmul.f32 %v6187, %v6299
      %v6316 = vmul.f32 %v6188, %v6300
      %v6317 = vmul.f32 %v6189, %v6301
      %v6318 = vmul.f32 %v6190, %v6302
      %v6319 = vmul.f32 %v6191, %v6303
      %v6320 = vmul.f32 %v6192, %v6304
      %v6321 = vmul.f32 %v6193, %v6305
      %v6322 = vmul.f32 %v6194, %v6306
      %v6323 = vmul.f32 %v6195, %v6307
      %v6324 = vmul.f32 %v6196, %v6308
      %v6326 = vlaneseq
      %v6327 = vshrl.u32 %v6326, 7
      %v6328 = vsub.s32 0, %v6327
      %v6329 = vrot.slane %v6114, %v6328
      %v6331 = vmul.f32 %v6309, %v6329
      %v6332 = vmul.f32 %v6310, %v6329
      %v6333 = vmul.f32 %v6311, %v6329
      %v6334 = vmul.f32 %v6312, %v6329
      %v6335 = vmul.f32 %v6313, %v6329
      %v6336 = vmul.f32 %v6314, %v6329
      %v6337 = vmul.f32 %v6315, %v6329
      %v6338 = vmul.f32 %v6316, %v6329
      %v6339 = vmul.f32 %v6317, %v6329
      %v6340 = vmul.f32 %v6318, %v6329
      %v6341 = vmul.f32 %v6319, %v6329
      %v6342 = vmul.f32 %v6320, %v6329
      %v6343 = vmul.f32 %v6321, %v6329
      %v6344 = vmul.f32 %v6322, %v6329
      %v6345 = vmul.f32 %v6323, %v6329
      %v6346 = vmul.f32 %v6324, %v6329
      %v6348 = vlaneseq
      %v6349 = vshrl.u32 %v6348, 7
      %v6350 = vsub.s32 0, %v6349
      %v6351 = vrot.slane %v6116, %v6350
      %v6353 = vadd.f32 %v6331, %v6351
      %v6354 = vadd.f32 %v6332, %v6351
      %v6355 = vadd.f32 %v6333, %v6351
      %v6356 = vadd.f32 %v6334, %v6351
      %v6357 = vadd.f32 %v6335, %v6351
      %v6358 = vadd.f32 %v6336, %v6351
      %v6359 = vadd.f32 %v6337, %v6351
      %v6360 = vadd.f32 %v6338, %v6351
      %v6361 = vadd.f32 %v6339, %v6351
      %v6362 = vadd.f32 %v6340, %v6351
      %v6363 = vadd.f32 %v6341, %v6351
      %v6364 = vadd.f32 %v6342, %v6351
      %v6365 = vadd.f32 %v6343, %v6351
      %v6366 = vadd.f32 %v6344, %v6351
      %v6367 = vadd.f32 %v6345, %v6351
      %v6368 = vadd.f32 %v6346, %v6351
      %v6369 = vpack.c.bf16 %v6354, %v6353
      %v6370 = vpack.c.bf16 %v6356, %v6355
      %v6371 = vpack.c.bf16 %v6358, %v6357
      %v6372 = vpack.c.bf16 %v6360, %v6359
      %v6373 = vpack.c.bf16 %v6362, %v6361
      %v6374 = vpack.c.bf16 %v6364, %v6363
      %v6375 = vpack.c.bf16 %v6366, %v6365
      %v6376 = vpack.c.bf16 %v6368, %v6367
      %s6377 = scalar_lea.vmem %s11, 16
      %v6378 = vld [vmem:[%s6377] sm:$0xf]
      %v6379 = vld [vmem:[%s6377 + $0x4] sm:$0xf]
      %v6380 = vld [vmem:[%s6377 + $0x8] sm:$0xf]
      %v6381 = vld [vmem:[%s6377 + $0xc] sm:$0xf]
      %s6382 = scalar_lea.vmem %s12, 1
      %v6383 = vld [vmem:[%s6382] sm:$0x1]
      %v6385 = vlaneseq
      %v6386 = vshrl.u32 %v6385, 7
      %v6387 = vsub.s32 0, %v6386
      %v6388 = vrot.slane %v6383, %v6387
      %v6394 = vunpack.c.l.b16 %v6378
      %v6395 = vunpack.c.l.b16 %v6379
      %v6396 = vunpack.c.l.b16 %v6380
      %v6397 = vunpack.c.l.b16 %v6381
      %v6398 = vpack.c.b16 %v6395, %v6394
      %v6399 = vpack.c.b16 %v6397, %v6396
      %v6403 = vsel %vm774, %v6369, 0
      %v6406 = vsel %vm774, %v6370, 0
      %v6409 = vsel %vm774, %v6371, 0
      %v6412 = vsel %vm774, %v6372, 0
      %v6415 = vsel %vm774, %v6373, 0
      %v6418 = vsel %vm774, %v6374, 0
      %v6421 = vsel %vm774, %v6375, 0
      %v6424 = vsel %vm774, %v6376, 0
      %6426 = vmatprep.subr.bf16.mxu0 0
      %6427 = vmatpush1.bf16.msra.mxu0 %v6398
      %6428 = vmatprep.subr.bf16.mxu0 0
      %6429 = vmatpush1.bf16.msra.mxu0 %v6399
      %6430 = vmatprep.subr.bf16.mxu0 0
      %6431 = vmatpush1.bf16.msra.mxu0 0
      %6432 = vmatprep.subr.bf16.mxu0 0
      %6433 = vmatpush1.bf16.msra.mxu0 0
      %6434 = vmatprep.subr.bf16.mxu0 0
      %6435 = vmatpush1.bf16.msra.mxu0 0
      %6436 = vmatprep.subr.bf16.mxu0 0
      %6437 = vmatpush1.bf16.msra.mxu0 0
      %6438 = vmatprep.subr.bf16.mxu0 0
      %6439 = vmatpush1.bf16.msra.mxu0 0
      %6440 = vmatprep.subr.bf16.mxu0 0
      %6441 = vmatpush1.bf16.msra.mxu0 0
      %6442 = vmatprep.subr.bf16.mxu0 0
      %6443 = vmatpush1.bf16.msra.mxu0 0
      %6444 = vmatprep.subr.bf16.mxu0 0
      %6445 = vmatpush1.bf16.msra.mxu0 0
      %6446 = vmatprep.subr.bf16.mxu0 0
      %6447 = vmatpush1.bf16.msra.mxu0 0
      %6448 = vmatprep.subr.bf16.mxu0 0
      %6449 = vmatpush1.bf16.msra.mxu0 0
      %6450 = vmatprep.subr.bf16.mxu0 0
      %6451 = vmatpush1.bf16.msra.mxu0 0
      %6452 = vmatprep.subr.bf16.mxu0 0
      %6453 = vmatpush1.bf16.msra.mxu0 0
      %6454 = vmatprep.subr.bf16.mxu0 0
      %6455 = vmatpush1.bf16.msra.mxu0 0
      %6456 = vmatprep.subr.bf16.mxu0 0
      %6457 = vmatpush1.bf16.msra.mxu0 0
      %6458 = vmatprep.mubr.bf16.mxu0 0
      %6459 = vmatmul.mubr.bf16.gmra.mrb[0].mxu0 %v6403
      %v6460 = vpop.f32.mrb[0].mxu0
      %v6461 = vadd.f32 %v6388, %v6460
      %v6462 = vpop.f32.mrb[0].mxu0
      %v6463 = vpop.f32.mrb[0].mxu0
      %v6464 = vadd.f32 %v6388, %v6463
      %v6465 = vpop.f32.mrb[0].mxu0
      %6466 = vmatprep.mubr.bf16.mxu0 0
      %6467 = vmatmul.mubr.bf16.gmra.mrb[0].mxu0 %v6406
      %v6468 = vpop.f32.mrb[0].mxu0
      %v6469 = vadd.f32 %v6388, %v6468
      %v6470 = vpop.f32.mrb[0].mxu0
      %v6471 = vpop.f32.mrb[0].mxu0
      %v6472 = vadd.f32 %v6388, %v6471
      %v6473 = vpop.f32.mrb[0].mxu0
      %6474 = vmatprep.mubr.bf16.mxu0 0
      %6475 = vmatmul.mubr.bf16.gmra.mrb[0].mxu0 %v6409
      %v6476 = vpop.f32.mrb[0].mxu0
      %v6477 = vadd.f32 %v6388, %v6476
      %v6478 = vpop.f32.mrb[0].mxu0
      %v6479 = vpop.f32.mrb[0].mxu0
      %v6480 = vadd.f32 %v6388, %v6479
      %v6481 = vpop.f32.mrb[0].mxu0
      %6482 = vmatprep.mubr.bf16.mxu0 0
      %6483 = vmatmul.mubr.bf16.gmra.mrb[0].mxu0 %v6412
      %v6484 = vpop.f32.mrb[0].mxu0
      %v6485 = vadd.f32 %v6388, %v6484
      %v6486 = vpop.f32.mrb[0].mxu0
      %v6487 = vpop.f32.mrb[0].mxu0
      %v6488 = vadd.f32 %v6388, %v6487
      %v6489 = vpop.f32.mrb[0].mxu0
      %6490 = vmatprep.mubr.bf16.mxu0 0
      %6491 = vmatmul.mubr.bf16.gmra.mrb[0].mxu0 %v6415
      %v6492 = vpop.f32.mrb[0].mxu0
      %v6493 = vadd.f32 %v6388, %v6492
      %v6494 = vpop.f32.mrb[0].mxu0
      %v6495 = vpop.f32.mrb[0].mxu0
      %v6496 = vadd.f32 %v6388, %v6495
      %v6497 = vpop.f32.mrb[0].mxu0
      %6498 = vmatprep.mubr.bf16.mxu0 0
      %6499 = vmatmul.mubr.bf16.gmra.mrb[0].mxu0 %v6418
      %v6500 = vpop.f32.mrb[0].mxu0
      %v6501 = vadd.f32 %v6388, %v6500
      %v6502 = vpop.f32.mrb[0].mxu0
      %v6503 = vpop.f32.mrb[0].mxu0
      %v6504 = vadd.f32 %v6388, %v6503
      %v6505 = vpop.f32.mrb[0].mxu0
      %6506 = vmatprep.mubr.bf16.mxu0 0
      %6507 = vmatmul.mubr.bf16.gmra.mrb[0].mxu0 %v6421
      %v6508 = vpop.f32.mrb[0].mxu0
      %v6509 = vadd.f32 %v6388, %v6508
      %v6510 = vpop.f32.mrb[0].mxu0
      %v6511 = vpop.f32.mrb[0].mxu0
      %v6512 = vadd.f32 %v6388, %v6511
      %v6513 = vpop.f32.mrb[0].mxu0
      %6514 = vmatprep.mubr.bf16.mxu0 0
      %6515 = vmatmul.mubr.bf16.gmra.mrb[0].mxu0 %v6424
      %v6516 = vpop.f32.mrb[0].mxu0
      %v6517 = vadd.f32 %v6388, %v6516
      %v6518 = vpop.f32.mrb[0].mxu0
      %v6519 = vpop.f32.mrb[0].mxu0
      %v6520 = vadd.f32 %v6388, %v6519
      %v6521 = vpop.f32.mrb[0].mxu0
      %6522 = vdwg.mxu0
      %v6523 = vmax.f32 %v6461, 0.0
      %v6524 = vmax.f32 %v6464, 0.0
      %v6525 = vmax.f32 %v6469, 0.0
      %v6526 = vmax.f32 %v6472, 0.0
      %v6527 = vmax.f32 %v6477, 0.0
      %v6528 = vmax.f32 %v6480, 0.0
      %v6529 = vmax.f32 %v6485, 0.0
      %v6530 = vmax.f32 %v6488, 0.0
      %v6531 = vmax.f32 %v6493, 0.0
      %v6532 = vmax.f32 %v6496, 0.0
      %v6533 = vmax.f32 %v6501, 0.0
      %v6534 = vmax.f32 %v6504, 0.0
      %v6535 = vmax.f32 %v6509, 0.0
      %v6536 = vmax.f32 %v6512, 0.0
      %v6537 = vmax.f32 %v6517, 0.0
      %v6538 = vmax.f32 %v6520, 0.0
      %v6539 = vpack.c.bf16 %v6524, %v6523
      %v6540 = vpack.c.bf16 %v6526, %v6525
      %v6541 = vpack.c.bf16 %v6528, %v6527
      %v6542 = vpack.c.bf16 %v6530, %v6529
      %v6543 = vpack.c.bf16 %v6532, %v6531
      %v6544 = vpack.c.bf16 %v6534, %v6533
      %v6545 = vpack.c.bf16 %v6536, %v6535
      %v6546 = vpack.c.bf16 %v6538, %v6537
      %s6547 = scalar_lea.vmem %s13, 32
      %v6548 = vld [vmem:[%s6547] sm:$0xf]
      %v6549 = vld [vmem:[%s6547 + $0x4] sm:$0xf]
      %v6550 = vld [vmem:[%s6547 + $0x8] sm:$0xf]
      %v6551 = vld [vmem:[%s6547 + $0xc] sm:$0xf]
      %v6552 = vld [vmem:[%s6547 + $0x10] sm:$0xf]
      %v6553 = vld [vmem:[%s6547 + $0x14] sm:$0xf]
      %v6554 = vld [vmem:[%s6547 + $0x18] sm:$0xf]
      %v6555 = vld [vmem:[%s6547 + $0x1c] sm:$0xf]
      %v6564 = vunpack.c.l.b16 %v6548
      %v6565 = vunpack.c.l.b16 %v6549
      %v6566 = vunpack.c.l.b16 %v6550
      %v6567 = vunpack.c.l.b16 %v6551
      %v6568 = vunpack.c.l.b16 %v6552
      %v6569 = vunpack.c.l.b16 %v6553
      %v6570 = vunpack.c.l.b16 %v6554
      %v6571 = vunpack.c.l.b16 %v6555
      %v6572 = vpack.c.b16 %v6565, %v6564
      %v6573 = vpack.c.b16 %v6567, %v6566
      %v6574 = vpack.c.b16 %v6569, %v6568
      %v6575 = vpack.c.b16 %v6571, %v6570
      %v6581 = vsel %vm3622, %v6539, 0
      %v6584 = vsel %vm3622, %v6540, 0
      %v6587 = vsel %vm3622, %v6541, 0
      %v6590 = vsel %vm3622, %v6542, 0
      %v6593 = vsel %vm3622, %v6543, 0
      %v6596 = vsel %vm3622, %v6544, 0
      %v6599 = vsel %vm3622, %v6545, 0
      %v6602 = vsel %vm3622, %v6546, 0
      %6604 = vmatprep.subr.bf16.mxu0 0
      %6605 = vmatpush1.bf16.msra.mxu0 %v6572
      %6606 = vmatprep.subr.bf16.mxu0 0
      %6607 = vmatpush1.bf16.msra.mxu0 %v6573
      %6608 = vmatprep.subr.bf16.mxu0 0
      %6609 = vmatpush1.bf16.msra.mxu0 %v6574
      %6610 = vmatprep.subr.bf16.mxu0 0
      %6611 = vmatpush1.bf16.msra.mxu0 %v6575
      %6612 = vmatprep.subr.bf16.mxu0 0
      %6613 = vmatpush1.bf16.msra.mxu0 0
      %6614 = vmatprep.subr.bf16.mxu0 0
      %6615 = vmatpush1.bf16.msra.mxu0 0
      %6616 = vmatprep.subr.bf16.mxu0 0
      %6617 = vmatpush1.bf16.msra.mxu0 0
      %6618 = vmatprep.subr.bf16.mxu0 0
      %6619 = vmatpush1.bf16.msra.mxu0 0
      %6620 = vmatprep.subr.bf16.mxu0 0
      %6621 = vmatpush1.bf16.msra.mxu0 0
      %6622 = vmatprep.subr.bf16.mxu0 0
      %6623 = vmatpush1.bf16.msra.mxu0 0
      %6624 = vmatprep.subr.bf16.mxu0 0
      %6625 = vmatpush1.bf16.msra.mxu0 0
      %6626 = vmatprep.subr.bf16.mxu0 0
      %6627 = vmatpush1.bf16.msra.mxu0 0
      %6628 = vmatprep.subr.bf16.mxu0 0
      %6629 = vmatpush1.bf16.msra.mxu0 0
      %6630 = vmatprep.subr.bf16.mxu0 0
      %6631 = vmatpush1.bf16.msra.mxu0 0
      %6632 = vmatprep.subr.bf16.mxu0 0
      %6633 = vmatpush1.bf16.msra.mxu0 0
      %6634 = vmatprep.subr.bf16.mxu0 0
      %6635 = vmatpush1.bf16.msra.mxu0 0
      %6636 = vmatprep.mubr.bf16.mxu0 0
      %6637 = vmatmul.mubr.bf16.gmra.mrb[0].mxu0 %v6581
      %v6638 = vpop.f32.mrb[0].mxu0
      %v6639 = vadd.f32 0.0, %v6638
      %v6640 = vpop.f32.mrb[0].mxu0
      %v6641 = vpop.f32.mrb[0].mxu0
      %v6642 = vadd.f32 0.0, %v6641
      %v6643 = vpop.f32.mrb[0].mxu0
      %6644 = vmatprep.mubr.bf16.mxu0 0
      %6645 = vmatmul.mubr.bf16.gmra.mrb[0].mxu0 %v6584
      %v6646 = vpop.f32.mrb[0].mxu0
      %v6647 = vadd.f32 0.0, %v6646
      %v6648 = vpop.f32.mrb[0].mxu0
      %v6649 = vpop.f32.mrb[0].mxu0
      %v6650 = vadd.f32 0.0, %v6649
      %v6651 = vpop.f32.mrb[0].mxu0
      %6652 = vmatprep.mubr.bf16.mxu0 0
      %6653 = vmatmul.mubr.bf16.gmra.mrb[0].mxu0 %v6587
      %v6654 = vpop.f32.mrb[0].mxu0
      %v6655 = vadd.f32 0.0, %v6654
      %v6656 = vpop.f32.mrb[0].mxu0
      %v6657 = vpop.f32.mrb[0].mxu0
      %v6658 = vadd.f32 0.0, %v6657
      %v6659 = vpop.f32.mrb[0].mxu0
      %6660 = vmatprep.mubr.bf16.mxu0 0
      %6661 = vmatmul.mubr.bf16.gmra.mrb[0].mxu0 %v6590
      %v6662 = vpop.f32.mrb[0].mxu0
      %v6663 = vadd.f32 0.0, %v6662
      %v6664 = vpop.f32.mrb[0].mxu0
      %v6665 = vpop.f32.mrb[0].mxu0
      %v6666 = vadd.f32 0.0, %v6665
      %v6667 = vpop.f32.mrb[0].mxu0
      %6668 = vmatprep.mubr.bf16.mxu0 0
      %6669 = vmatmul.mubr.bf16.gmra.mrb[0].mxu0 %v6593
      %v6670 = vpop.f32.mrb[0].mxu0
      %v6671 = vadd.f32 0.0, %v6670
      %v6672 = vpop.f32.mrb[0].mxu0
      %v6673 = vpop.f32.mrb[0].mxu0
      %v6674 = vadd.f32 0.0, %v6673
      %v6675 = vpop.f32.mrb[0].mxu0
      %6676 = vmatprep.mubr.bf16.mxu0 0
      %6677 = vmatmul.mubr.bf16.gmra.mrb[0].mxu0 %v6596
      %v6678 = vpop.f32.mrb[0].mxu0
      %v6679 = vadd.f32 0.0, %v6678
      %v6680 = vpop.f32.mrb[0].mxu0
      %v6681 = vpop.f32.mrb[0].mxu0
      %v6682 = vadd.f32 0.0, %v6681
      %v6683 = vpop.f32.mrb[0].mxu0
      %6684 = vmatprep.mubr.bf16.mxu0 0
      %6685 = vmatmul.mubr.bf16.gmra.mrb[0].mxu0 %v6599
      %v6686 = vpop.f32.mrb[0].mxu0
      %v6687 = vadd.f32 0.0, %v6686
      %v6688 = vpop.f32.mrb[0].mxu0
      %v6689 = vpop.f32.mrb[0].mxu0
      %v6690 = vadd.f32 0.0, %v6689
      %v6691 = vpop.f32.mrb[0].mxu0
      %6692 = vmatprep.mubr.bf16.mxu0 0
      %6693 = vmatmul.mubr.bf16.gmra.mrb[0].mxu0 %v6602
      %v6694 = vpop.f32.mrb[0].mxu0
      %v6695 = vadd.f32 0.0, %v6694
      %v6696 = vpop.f32.mrb[0].mxu0
      %v6697 = vpop.f32.mrb[0].mxu0
      %v6698 = vadd.f32 0.0, %v6697
      %v6699 = vpop.f32.mrb[0].mxu0
      %6700 = vdwg.mxu0
      %v6701 = vadd.f32 %v6097, %v6639
      %v6702 = vadd.f32 %v6098, %v6642
      %v6703 = vadd.f32 %v6099, %v6647
      %v6704 = vadd.f32 %v6100, %v6650
      %v6705 = vadd.f32 %v6101, %v6655
      %v6706 = vadd.f32 %v6102, %v6658
      %v6707 = vadd.f32 %v6103, %v6663
      %v6708 = vadd.f32 %v6104, %v6666
      %v6709 = vadd.f32 %v6105, %v6671
      %v6710 = vadd.f32 %v6106, %v6674
      %v6711 = vadd.f32 %v6107, %v6679
      %v6712 = vadd.f32 %v6108, %v6682
      %v6713 = vadd.f32 %v6109, %v6687
      %v6714 = vadd.f32 %v6110, %v6690
      %v6715 = vadd.f32 %v6111, %v6695
      %v6716 = vadd.f32 %v6112, %v6698
      %s6717 = scalar_lea.vmem %s14, 1
      %v6718 = vld [vmem:[%s6717] sm:$0x1]
      %v6720 = vlaneseq
      %v6721 = vshrl.u32 %v6720, 7
      %v6722 = vsub.s32 0, %v6721
      %v6723 = vrot.slane %v6718, %v6722
      %v6725 = vadd.f32 %v6701, %v6723
      %v6726 = vadd.f32 %v6702, %v6723
      %v6727 = vadd.f32 %v6703, %v6723
      %v6728 = vadd.f32 %v6704, %v6723
      %v6729 = vadd.f32 %v6705, %v6723
      %v6730 = vadd.f32 %v6706, %v6723
      %v6731 = vadd.f32 %v6707, %v6723
      %v6732 = vadd.f32 %v6708, %v6723
      %v6733 = vadd.f32 %v6709, %v6723
      %v6734 = vadd.f32 %v6710, %v6723
      %v6735 = vadd.f32 %v6711, %v6723
      %v6736 = vadd.f32 %v6712, %v6723
      %v6737 = vadd.f32 %v6713, %v6723
      %v6738 = vadd.f32 %v6714, %v6723
      %v6739 = vadd.f32 %v6715, %v6723
      %v6740 = vadd.f32 %v6716, %v6723
      %v6741 = vpack.c.bf16 %v6726, %v6725
      %v6742 = vpack.c.bf16 %v6728, %v6727
      %v6743 = vpack.c.bf16 %v6730, %v6729
      %v6744 = vpack.c.bf16 %v6732, %v6731
      %v6745 = vpack.c.bf16 %v6734, %v6733
      %v6746 = vpack.c.bf16 %v6736, %v6735
      %v6747 = vpack.c.bf16 %v6738, %v6737
      %v6748 = vpack.c.bf16 %v6740, %v6739
      %v6749 = vld [vmem:[%s15] sm:$0xf]
      %v6750 = vld [vmem:[%s15 + $0x4] sm:$0xf]
      %v6751 = vld [vmem:[%s15 + $0x8] sm:$0xf]
      %v6752 = vld [vmem:[%s15 + $0xc] sm:$0xf]
      %v6753 = vld [vmem:[#allocation2] sm:$0x1]
      %v6755 = vlaneseq
      %v6756 = vshrl.u32 %v6755, 7
      %v6757 = vsub.s32 0, %v6756
      %v6758 = vrot.slane %v6753, %v6757
      %v6764 = vunpack.c.l.b16 %v6749
      %v6765 = vunpack.c.l.b16 %v6750
      %v6766 = vunpack.c.l.b16 %v6751
      %v6767 = vunpack.c.l.b16 %v6752
      %v6768 = vpack.c.b16 %v6765, %v6764
      %v6769 = vpack.c.b16 %v6767, %v6766
      %v6773 = vsel %vm774, %v6741, 0
      %v6776 = vsel %vm774, %v6742, 0
      %v6779 = vsel %vm774, %v6743, 0
      %v6782 = vsel %vm774, %v6744, 0
      %v6785 = vsel %vm774, %v6745, 0
      %v6788 = vsel %vm774, %v6746, 0
      %v6791 = vsel %vm774, %v6747, 0
      %v6794 = vsel %vm774, %v6748, 0
      %6796 = vmatprep.subr.bf16.mxu0 0
      %6797 = vmatpush1.bf16.msra.mxu0 %v6768
      %6798 = vmatprep.subr.bf16.mxu0 0
      %6799 = vmatpush1.bf16.msra.mxu0 %v6769
      %6800 = vmatprep.subr.bf16.mxu0 0
      %6801 = vmatpush1.bf16.msra.mxu0 0
      %6802 = vmatprep.subr.bf16.mxu0 0
      %6803 = vmatpush1.bf16.msra.mxu0 0
      %6804 = vmatprep.subr.bf16.mxu0 0
      %6805 = vmatpush1.bf16.msra.mxu0 0
      %6806 = vmatprep.subr.bf16.mxu0 0
      %6807 = vmatpush1.bf16.msra.mxu0 0
      %6808 = vmatprep.subr.bf16.mxu0 0
      %6809 = vmatpush1.bf16.msra.mxu0 0
      %6810 = vmatprep.subr.bf16.mxu0 0
      %6811 = vmatpush1.bf16.msra.mxu0 0
      %6812 = vmatprep.subr.bf16.mxu0 0
      %6813 = vmatpush1.bf16.msra.mxu0 0
      %6814 = vmatprep.subr.bf16.mxu0 0
      %6815 = vmatpush1.bf16.msra.mxu0 0
      %6816 = vmatprep.subr.bf16.mxu0 0
      %6817 = vmatpush1.bf16.msra.mxu0 0
      %6818 = vmatprep.subr.bf16.mxu0 0
      %6819 = vmatpush1.bf16.msra.mxu0 0
      %6820 = vmatprep.subr.bf16.mxu0 0
      %6821 = vmatpush1.bf16.msra.mxu0 0
      %6822 = vmatprep.subr.bf16.mxu0 0
      %6823 = vmatpush1.bf16.msra.mxu0 0
      %6824 = vmatprep.subr.bf16.mxu0 0
      %6825 = vmatpush1.bf16.msra.mxu0 0
      %6826 = vmatprep.subr.bf16.mxu0 0
      %6827 = vmatpush1.bf16.msra.mxu0 0
      %6828 = vmatprep.mubr.bf16.mxu0 0
      %6829 = vmatmul.mubr.bf16.gmra.mrb[0].mxu0 %v6773
      %v6830 = vpop.f32.mrb[0].mxu0
      %v6831 = vadd.f32 %v6758, %v6830
      %v6832 = vpop.f32.mrb[0].mxu0
      %v6833 = vpop.f32.mrb[0].mxu0
      %v6834 = vadd.f32 %v6758, %v6833
      %v6835 = vpop.f32.mrb[0].mxu0
      %6836 = vmatprep.mubr.bf16.mxu0 0
      %6837 = vmatmul.mubr.bf16.gmra.mrb[0].mxu0 %v6776
      %v6838 = vpop.f32.mrb[0].mxu0
      %v6839 = vadd.f32 %v6758, %v6838
      %v6840 = vpop.f32.mrb[0].mxu0
      %v6841 = vpop.f32.mrb[0].mxu0
      %v6842 = vadd.f32 %v6758, %v6841
      %v6843 = vpop.f32.mrb[0].mxu0
      %6844 = vmatprep.mubr.bf16.mxu0 0
      %6845 = vmatmul.mubr.bf16.gmra.mrb[0].mxu0 %v6779
      %v6846 = vpop.f32.mrb[0].mxu0
      %v6847 = vadd.f32 %v6758, %v6846
      %v6848 = vpop.f32.mrb[0].mxu0
      %v6849 = vpop.f32.mrb[0].mxu0
      %v6850 = vadd.f32 %v6758, %v6849
      %v6851 = vpop.f32.mrb[0].mxu0
      %6852 = vmatprep.mubr.bf16.mxu0 0
      %6853 = vmatmul.mubr.bf16.gmra.mrb[0].mxu0 %v6782
      %v6854 = vpop.f32.mrb[0].mxu0
      %v6855 = vadd.f32 %v6758, %v6854
      %v6856 = vpop.f32.mrb[0].mxu0
      %v6857 = vpop.f32.mrb[0].mxu0
      %v6858 = vadd.f32 %v6758, %v6857
      %v6859 = vpop.f32.mrb[0].mxu0
      %6860 = vmatprep.mubr.bf16.mxu0 0
      %6861 = vmatmul.mubr.bf16.gmra.mrb[0].mxu0 %v6785
      %v6862 = vpop.f32.mrb[0].mxu0
      %v6863 = vadd.f32 %v6758, %v6862
      %v6864 = vpop.f32.mrb[0].mxu0
      %v6865 = vpop.f32.mrb[0].mxu0
      %v6866 = vadd.f32 %v6758, %v6865
      %v6867 = vpop.f32.mrb[0].mxu0
      %6868 = vmatprep.mubr.bf16.mxu0 0
      %6869 = vmatmul.mubr.bf16.gmra.mrb[0].mxu0 %v6788
      %v6870 = vpop.f32.mrb[0].mxu0
      %v6871 = vadd.f32 %v6758, %v6870
      %v6872 = vpop.f32.mrb[0].mxu0
      %v6873 = vpop.f32.mrb[0].mxu0
      %v6874 = vadd.f32 %v6758, %v6873
      %v6875 = vpop.f32.mrb[0].mxu0
      %6876 = vmatprep.mubr.bf16.mxu0 0
      %6877 = vmatmul.mubr.bf16.gmra.mrb[0].mxu0 %v6791
      %v6878 = vpop.f32.mrb[0].mxu0
      %v6879 = vadd.f32 %v6758, %v6878
      %v6880 = vpop.f32.mrb[0].mxu0
      %v6881 = vpop.f32.mrb[0].mxu0
      %v6882 = vadd.f32 %v6758, %v6881
      %v6883 = vpop.f32.mrb[0].mxu0
      %6884 = vmatprep.mubr.bf16.mxu0 0
      %6885 = vmatmul.mubr.bf16.gmra.mrb[0].mxu0 %v6794
      %v6886 = vpop.f32.mrb[0].mxu0
      %v6887 = vadd.f32 %v6758, %v6886
      %v6888 = vpop.f32.mrb[0].mxu0
      %v6889 = vpop.f32.mrb[0].mxu0
      %v6890 = vadd.f32 %v6758, %v6889
      %v6891 = vpop.f32.mrb[0].mxu0
      %6892 = vdwg.mxu0
      %v6893 = vld [vmem:[%s17] sm:$0xff]
      %v6894 = vld [vmem:[%s17 + $0x8] sm:$0xff]
      %v6895 = vld [vmem:[%s17 + $0x10] sm:$0xff]
      %v6896 = vld [vmem:[%s17 + $0x18] sm:$0xff]
      %v6897 = vld [vmem:[%s17 + $0x20] sm:$0xff]
      %v6898 = vld [vmem:[%s17 + $0x28] sm:$0xff]
      %v6899 = vld [vmem:[%s17 + $0x30] sm:$0xff]
      %v6900 = vld [vmem:[%s17 + $0x38] sm:$0xff]
      %6901 = vmatprep.subr.mxu0 0.0
      %6902 = vmatpush1.msra.mxu0 %v6831
      %6903 = vmatprep.subr.mxu0 0.0
      %6904 = vmatpush1.msra.mxu0 %v6834
      %6905 = vmatprep.subr.mxu0 0.0
      %6906 = vmatpush1.msra.mxu0 %v6839
      %6907 = vmatprep.subr.mxu0 0.0
      %6908 = vmatpush1.msra.mxu0 %v6842
      %6909 = vmatprep.subr.mxu0 0.0
      %6910 = vmatpush1.msra.mxu0 %v6847
      %6911 = vmatprep.subr.mxu0 0.0
      %6912 = vmatpush1.msra.mxu0 %v6850
      %6913 = vmatprep.subr.mxu0 0.0
      %6914 = vmatpush1.msra.mxu0 %v6855
      %6915 = vmatprep.subr.mxu0 0.0
      %6916 = vmatpush1.msra.mxu0 %v6858
      %6917 = vmatprep.subr.mxu0 0.0
      %6918 = vmatpush1.msra.mxu0 %v6863
      %6919 = vmatprep.subr.mxu0 0.0
      %6920 = vmatpush1.msra.mxu0 %v6866
      %6921 = vmatprep.subr.mxu0 0.0
      %6922 = vmatpush1.msra.mxu0 %v6871
      %6923 = vmatprep.subr.mxu0 0.0
      %6924 = vmatpush1.msra.mxu0 %v6874
      %6925 = vmatprep.subr.mxu0 0.0
      %6926 = vmatpush1.msra.mxu0 %v6879
      %6927 = vmatprep.subr.mxu0 0.0
      %6928 = vmatpush1.msra.mxu0 %v6882
      %6929 = vmatprep.subr.mxu0 0.0
      %6930 = vmatpush1.msra.mxu0 %v6887
      %6931 = vmatprep.subr.mxu0 0.0
      %6932 = vmatpush1.msra.mxu0 %v6890
      %6933 = vmatprep.subr.mxu0 0.0
      %6934 = vmatpush1.msra.mxu0 0.0
      %6935 = vmatprep.subr.mxu0 0.0
      %6936 = vmatpush1.msra.mxu0 0.0
      %6937 = vmatprep.subr.mxu0 0.0
      %6938 = vmatpush1.msra.mxu0 0.0
      %6939 = vmatprep.subr.mxu0 0.0
      %6940 = vmatpush1.msra.mxu0 0.0
      %6941 = vmatprep.subr.mxu0 0.0
      %6942 = vmatpush1.msra.mxu0 0.0
      %6943 = vmatprep.subr.mxu0 0.0
      %6944 = vmatpush1.msra.mxu0 0.0
      %6945 = vmatprep.subr.mxu0 0.0
      %6946 = vmatpush1.msra.mxu0 0.0
      %6947 = vmatprep.subr.mxu0 0.0
      %6948 = vmatpush1.msra.mxu0 0.0
      %6949 = vmatprep.subr.mxu0 0.0
      %6950 = vmatpush1.msra.mxu0 0.0
      %6951 = vmatprep.subr.mxu0 0.0
      %6952 = vmatpush1.msra.mxu0 0.0
      %6953 = vmatprep.subr.mxu0 0.0
      %6954 = vmatpush1.msra.mxu0 0.0
      %6955 = vmatprep.subr.mxu0 0.0
      %6956 = vmatpush1.msra.mxu0 0.0
      %6957 = vmatprep.subr.mxu0 0.0
      %6958 = vmatpush1.msra.mxu0 0.0
      %6959 = vmatprep.subr.mxu0 0.0
      %6960 = vmatpush1.msra.mxu0 0.0
      %6961 = vmatprep.subr.mxu0 0.0
      %6962 = vmatpush1.msra.mxu0 0.0
      %6963 = vmatprep.subr.mxu0 0.0
      %6964 = vmatpush1.msra.mxu0 0.0
      %6965 = vmatprep.mubr.f32.mxu0 0.0
      %6966 = vmatmul.mubr.f32.gmra.mrb[0].mxu0 %v6893
      %v6967 = vpop.f32.mrb[0].mxu0
      %v6968 = vadd.f32 0.0, %v6967
      %v6969 = vpop.f32.mrb[0].mxu0
      %6970 = vmatprep.mubr.f32.mxu0 0.0
      %6971 = vmatmul.mubr.f32.gmra.mrb[0].mxu0 %v6894
      %v6972 = vpop.f32.mrb[0].mxu0
      %v6973 = vadd.f32 0.0, %v6972
      %v6974 = vpop.f32.mrb[0].mxu0
      %6975 = vmatprep.mubr.f32.mxu0 0.0
      %6976 = vmatmul.mubr.f32.gmra.mrb[0].mxu0 %v6895
      %v6977 = vpop.f32.mrb[0].mxu0
      %v6978 = vadd.f32 0.0, %v6977
      %v6979 = vpop.f32.mrb[0].mxu0
      %6980 = vmatprep.mubr.f32.mxu0 0.0
      %6981 = vmatmul.mubr.f32.gmra.mrb[0].mxu0 %v6896
      %v6982 = vpop.f32.mrb[0].mxu0
      %v6983 = vadd.f32 0.0, %v6982
      %v6984 = vpop.f32.mrb[0].mxu0
      %6985 = vmatprep.mubr.f32.mxu0 0.0
      %6986 = vmatmul.mubr.f32.gmra.mrb[0].mxu0 %v6897
      %v6987 = vpop.f32.mrb[0].mxu0
      %v6988 = vadd.f32 0.0, %v6987
      %v6989 = vpop.f32.mrb[0].mxu0
      %6990 = vmatprep.mubr.f32.mxu0 0.0
      %6991 = vmatmul.mubr.f32.gmra.mrb[0].mxu0 %v6898
      %v6992 = vpop.f32.mrb[0].mxu0
      %v6993 = vadd.f32 0.0, %v6992
      %v6994 = vpop.f32.mrb[0].mxu0
      %6995 = vmatprep.mubr.f32.mxu0 0.0
      %6996 = vmatmul.mubr.f32.gmra.mrb[0].mxu0 %v6899
      %v6997 = vpop.f32.mrb[0].mxu0
      %v6998 = vadd.f32 0.0, %v6997
      %v6999 = vpop.f32.mrb[0].mxu0
      %7000 = vmatprep.mubr.f32.mxu0 0.0
      %7001 = vmatmul.mubr.f32.gmra.mrb[0].mxu0 %v6900
      %v7002 = vpop.f32.mrb[0].mxu0
      %v7003 = vadd.f32 0.0, %v7002
      %v7004 = vpop.f32.mrb[0].mxu0
      %7005 = vdwg.mxu0
      %vm7006 = vcmask 7168
      %7007 = vst.msk [vmem:[%s579] sm:$0xff] %vm7006, %v6968
      %7008 = vst.msk [vmem:[%s579 + $0x8] sm:$0xff] %vm7006, %v6973
      %7009 = vst.msk [vmem:[%s579 + $0x10] sm:$0xff] %vm7006, %v6978
      %7010 = vst.msk [vmem:[%s579 + $0x18] sm:$0xff] %vm7006, %v6983
      %7011 = vst.msk [vmem:[%s579 + $0x20] sm:$0xff] %vm7006, %v6988
      %7012 = vst.msk [vmem:[%s579 + $0x28] sm:$0xff] %vm7006, %v6993
      %7013 = vst.msk [vmem:[%s579 + $0x30] sm:$0xff] %vm7006, %v6998
      %7014 = vst.msk [vmem:[%s579 + $0x38] sm:$0xff] %vm7006, %v7003
      %s7015 = smul.u32 8, %s31
      %p7016 = scmp.lt.s32.totalorder %s7015, 15
      %s7017 = scalar_select %p7016, %s7015, 15
      %s7018 = smul.addr %s7017, 8
      %s7019 = scalar_lea.vmem %s18, %s7018
      // Predicated region
      $region93: #{tpu_custom_call.1} parent=91 // pred_check
        %p7020 = pneg %p432
      $region94: #{tpu_custom_call.1} parent=91 // pred_check_branch
        %7022 = sbr.rel (%p7020) target = $region96
      $region95: #{tpu_custom_call.1} parent=91 // pred_region
        %s7023 = smul.u32 8, %s31
      $region96: #{tpu_custom_call.1} parent=91 // pred_fallthru
        _
    $region92: #{tpu_custom_call.1} parent=5 // pred_fallthru
      _
    %p7024 = scmp.le.s32.totalorder 2, %s26
    // Predicated region
    $region97: #{tpu_custom_call.1} parent=5 // pred_check
      %p7025 = pneg %p7024
    $region98: #{tpu_custom_call.1} parent=5 // pred_check_branch
      %7027 = sbr.rel (%p7025) target = $region100
    $region99: #{tpu_custom_call.1} parent=5 // pred_region
      %s7028 = ssub.s32 %s26, 2
      // Predicated region
      $region101: #{tpu_custom_call.1} parent=99 // pred_check
        %p7029 = pneg %p438
      $region102: #{tpu_custom_call.1} parent=99 // pred_check_branch
        %7031 = sbr.rel (%p7029) target = $region104
      $region103: #{tpu_custom_call.1} parent=99 // pred_region
        %s7032 = smul.u32 8, %s32
        %p7033 = scmp.lt.s32.totalorder %s7032, 15
        %s7034 = scalar_select %p7033, %s7032, 15
        %s7035 = smul.addr %s7034, 8
        %s7036 = scalar_lea.vmem %s18, %s7035
      $region104: #{tpu_custom_call.1} parent=99 // pred_fallthru
        _
    $region100: #{tpu_custom_call.1} parent=5 // pred_fallthru
      _
  $region6: #{tpu_custom_call.1} parent=0 // loop_footer
    %s30 = sadd.s32 1, %s26
  $region7: #{tpu_custom_call.1} parent=0 // loop_footer_branch
    %25 = sbr.rel target = $region3
  $region8: #{tpu_custom_call.1} parent=0 // loop_exit
    _

</llo_original>
